<compile_context>
chip_gen: v6e
topology: v6e:2x2x1
jax: 0.10.0
libtpu: 0.0.40
codegen_flags: <defaults>
</compile_context>

<pallas_src>
import functools

import numpy as np
import jax
import jax.numpy as jnp
from jax.experimental import pallas as pl
from jax.experimental.pallas import tpu as pltpu

# ----------------------------- configuration -------------------------------
BOARD_SIZE = 1            # forced by VJEPA's (.., 12N) * (.., N) broadcast
EMBED_DIM = 32
NUM_HEADS = 4             # heads fold away (seq_len == 1), kept for reference
ENC_LAYERS = 2
PRED_LAYERS = 2
SEQ_LENGTH = 1            # forced by the nonzero/view plumbing
BATCH = 1                 # forced by pred_reps[i] indexing in IJEPA loss
NUM_TARGET_MASKS = 4

N_PATCH = BOARD_SIZE ** 2
FEAT = N_PATCH * 12
FEAT_PAD = 128            # FEAT zero-padded to full vreg lane width
FFN_DIM = 4 * EMBED_DIM
LN_EPS = 1e-5

M_PAD = 8                 # sublane-aligned row count shared by all towers
N_ENC_TOWERS = 4          # [ijepa ctx, ijepa tgt, vjepa ctx, vjepa tgt]
N_PRED_TOWERS = 2         # [ijepa predictor, vjepa predictor]
LANES = 128


# --------------------------- packed weight layout ----------------------------
def _build_layout():
    """Row offsets of every parameter slab inside the single (R, 128) blob.

    All slots start at sublane-multiple-of-8 offsets.  Matrices whose natural
    width is EMBED_DIM (=32) pack the towers side by side along lanes so the
    blob stays lane-dense (~0.7 MiB total, one DMA).
    """
    layout = {}
    row = 0

    def alloc(name, nrows):
        nonlocal row
        layout[name] = row
        row += ((nrows + 7) // 8) * 8

    alloc('enc_bw', FEAT_PAD)                       # (128, 4*E): board embeds, K zero-padded
    for l in range(ENC_LAYERS):
        alloc(f'enc_wv_{l}', EMBED_DIM)             # (E, 4*E): V proj, towers lane-packed
        alloc(f'enc_wo_{l}', EMBED_DIM)             # (E, 4*E): out proj
        alloc(f'enc_w2_{l}', FFN_DIM)               # (4E, 4*E): FFN down proj
    for t in range(N_ENC_TOWERS):
        for l in range(ENC_LAYERS):
            alloc(f'enc_w1_{t}_{l}', EMBED_DIM)     # (E, 4E): FFN up proj (full width)
            alloc(f'enc_vec_{t}_{l}', 8)            # bias / LN vector page
    alloc('enc_misc', 8)                            # row0: board_b x4, row1: pos x4
    for l in range(PRED_LAYERS):
        alloc(f'prd_wv_{l}', EMBED_DIM)
        alloc(f'prd_wo_{l}', EMBED_DIM)
        alloc(f'prd_w2_{l}', FFN_DIM)
    for p in range(N_PRED_TOWERS):
        for l in range(PRED_LAYERS):
            alloc(f'prd_w1_{p}_{l}', EMBED_DIM)
            alloc(f'prd_vec_{p}_{l}', 8)
    alloc('prd_misc', 8)                            # row0: predictor pos_embed x2
    alloc('gen_w', EMBED_DIM)                       # (E, FEAT_PAD): gpredlayer weight
    alloc('gen_misc', 8)                            # row0: gpred bias, row1: FEAT lane mask
    return layout, row


_LAYOUT, _BLOB_ROWS = _build_layout()

# row indices inside a `*_vec_{t}_{l}` page
_VEC_BV, _VEC_BO, _VEC_B2, _VEC_G1, _VEC_BE1, _VEC_G2, _VEC_BE2, _VEC_B1 = range(8)


# --------------------------- in-kernel math helpers --------------------------
def _layernorm(x, g, b):
    """PyTorch LayerNorm over the last dim (biased variance)."""
    mu = jnp.mean(x, axis=-1, keepdims=True)
    xc = x - mu
    var = jnp.mean(xc * xc, axis=-1, keepdims=True)
    return xc * jax.lax.rsqrt(var + LN_EPS) * g + b


def _encoder_layer(h, wv, bv, wo, bo, w1, b1, w2, b2, g1, be1, g2, be2):
    """One nn.TransformerEncoderLayer (post-norm, relu, eval-mode) on (M, E) rows.

    Every row is an independent seq_len==1 token (forced by the module's shape
    plumbing), so softmax(q k^T / sqrt(d)) over a single key is identically 1
    and multi-head attention output == the V projection exactly.  Q/K are
    mathematically dead and are not computed.
    """
    v = jnp.dot(h, wv, preferred_element_type=jnp.float32) + bv
    a = jnp.dot(v, wo, preferred_element_type=jnp.float32) + bo
    h = _layernorm(h + a, g1, be1)
    f = jnp.dot(h, w1, preferred_element_type=jnp.float32) + b1
    f = jnp.maximum(f, 0.0)
    f = jnp.dot(f, w2, preferred_element_type=jnp.float32) + b2
    return _layernorm(h + f, g2, be2)


def _stack_rows2(top, bottom):
    """Stack two (1, E) rows into a (2, E) block (avoids a sublane concatenate)."""
    e = top.shape[-1]
    row = jax.lax.broadcasted_iota(jnp.int32, (2, e), 0)
    return jnp.where(row == 0, jnp.broadcast_to(top, (2, e)),
                     jnp.broadcast_to(bottom, (2, e)))


# ------------------------------ the fused kernel ------------------------------
def _cjepa_kernel(boards_ref, w_ref, tgen_ref, loss_ref, *, num_targets):
    """Entire CJEPA forward: 4 encoder towers + 2 predictors + gen head + losses."""
    E, F = EMBED_DIM, FFN_DIM

    def w(name, r0, nrows, c0, ncols):
        off = _LAYOUT[name] + r0
        return w_ref[off:off + nrows, c0:c0 + ncols]

    # ---- four ViTEncoder towers (fully unrolled; reps stay in vregs) ----
    reps = []
    for t in range(N_ENC_TOWERS):
        c = t * E
        h = jnp.dot(boards_ref[M_PAD * t:M_PAD * (t + 1), :],
                    w('enc_bw', 0, FEAT_PAD, c, E),
                    preferred_element_type=jnp.float32)
        h = h + w('enc_misc', 0, 1, c, E) + w('enc_misc', 1, 1, c, E)
        for l in range(ENC_LAYERS):
            v = f'enc_vec_{t}_{l}'
            h = _encoder_layer(
                h,
                w(f'enc_wv_{l}', 0, E, c, E), w(v, _VEC_BV, 1, 0, E),
                w(f'enc_wo_{l}', 0, E, c, E), w(v, _VEC_BO, 1, 0, E),
                w(f'enc_w1_{t}_{l}', 0, E, 0, F), w(v, _VEC_B1, 1, 0, F),
                w(f'enc_w2_{l}', 0, F, c, E), w(v, _VEC_B2, 1, 0, E),
                w(v, _VEC_G1, 1, 0, E), w(v, _VEC_BE1, 1, 0, E),
                w(v, _VEC_G2, 1, 0, E), w(v, _VEC_BE2, 1, 0, E))
        reps.append(h)

    # Padded rows beyond the real board rows are never read below.
    ictx = reps[0][0:1, :]                  # ijepa context rep     (1, E)
    itgt = reps[1][0:num_targets, :]        # ijepa target reps     (K, E)
    vctx = reps[2][0:1, :]                  # vjepa context rep     (1, E)
    vtgt = reps[3][0:1, :]                  # vjepa target rep 0    (1, E)

    # ---- both ViTPredictor towers ----
    preds = []
    for p in range(N_PRED_TOWERS):
        c = p * E
        ctx = ictx if p == 0 else vctx
        h = _stack_rows2(ctx, w('prd_misc', 0, 1, c, E))   # cat([x, pos], dim=1)
        for l in range(PRED_LAYERS):
            v = f'prd_vec_{p}_{l}'
            h = _encoder_layer(
                h,
                w(f'prd_wv_{l}', 0, E, c, E), w(v, _VEC_BV, 1, 0, E),
                w(f'prd_wo_{l}', 0, E, c, E), w(v, _VEC_BO, 1, 0, E),
                w(f'prd_w1_{p}_{l}', 0, E, 0, F), w(v, _VEC_B1, 1, 0, F),
                w(f'prd_w2_{l}', 0, F, c, E), w(v, _VEC_B2, 1, 0, E),
                w(v, _VEC_G1, 1, 0, E), w(v, _VEC_BE1, 1, 0, E),
                w(v, _VEC_G2, 1, 0, E), w(v, _VEC_BE2, 1, 0, E))
        preds.append(h[1:2, :])             # x[:, -pos.shape[1]:, :] with P == 1
    pred_i, pred_v = preds

    # ---- gpredlayer + the three MSE losses ----
    # Reference: pred_gen (1, FEAT) minus the single gathered board value
    # broadcasts the scalar against all FEAT outputs and means over FEAT.
    pred_gen = jnp.dot(ictx, w('gen_w', 0, E, 0, FEAT_PAD),
                       preferred_element_type=jnp.float32) \
        + w('gen_misc', 0, 1, 0, FEAT_PAD)
    dg = pred_gen - tgen_ref[0]                          # SMEM scalar broadcast
    genmask = w('gen_misc', 1, 1, 0, FEAT_PAD)           # 1.0 on the real FEAT lanes

    di = pred_i - itgt                      # (K, E): pred broadcast vs all K targets
    dv = pred_v - vtgt                      # (1, E): only target_reps[0] is used

    ijepa_loss = jnp.sum(di * di) * (1.0 / (num_targets * E))
    vjepa_loss = jnp.sum(dv * dv) * (1.0 / E)
    gen_loss = jnp.sum(dg * dg * genmask) * (1.0 / FEAT)

    loss_ref[0] = ijepa_loss + vjepa_loss + gen_loss


# ------------------------------ forward pass --------------------------------
def nonzero_cols(mask_2d):
    # TODO(synk): torch.nonzero has a data-dependent output shape; masks are
    # concrete host values in this script, so mirror it with numpy (row-major,
    # like torch).  This stays outside the jitted core.
    _, cols = np.nonzero(np.asarray(mask_2d))
    return cols.astype(np.int32)


@jax.jit
def _cjepa_core(wblob, x, context_mask, target_masks, target_gen):
    B, T = x.shape[0], x.shape[1]
    K = target_masks.shape[1]
    x_last = x[:, -1]                                          # (B, FEAT)

    # IJEPA boards (x[:, -1] path).
    ctx_i = x_last * context_mask.reshape(-1)
    tgt_i = (x_last[:, None, :] * target_masks.reshape(B, -1, FEAT)).reshape(-1, FEAT)

    # VJEPA boards: masks repeated over T exactly as in CJEPA.forward.
    cm_rep = jnp.repeat(context_mask[:, None], T, axis=1)      # (B, T, 1, 1)
    tm_rep = jnp.repeat(target_masks[:, None], T, axis=1)      # (B, T, K, FEAT)
    xr = x.reshape(-1, T, FEAT)
    ctx_v = (xr * cm_rep.reshape(-1, T, N_PATCH)).reshape(-1, FEAT)
    tgt_v = (xr[:, :, None, :] * tm_rep.reshape(-1, T, 1, FEAT)).reshape(-1, FEAT)

    def pad(a):                                                # rows -> 8, lanes -> 128
        return jnp.pad(a, ((0, M_PAD - a.shape[0]), (0, FEAT_PAD - a.shape[1])))

    boards = jnp.concatenate([pad(ctx_i), pad(tgt_i), pad(ctx_v), pad(tgt_v)],
                             axis=0)                           # (32, 128), lane-dense

    # IJEPA's context encoder output is reused for the generative path: the
    # reference recomputes the identical module on the identical input.
    loss = pl.pallas_call(
        functools.partial(_cjepa_kernel, num_targets=K),
        out_shape=jax.ShapeDtypeStruct((1,), jnp.float32),
        in_specs=[pl.BlockSpec(memory_space=pltpu.MemorySpace.VMEM),   # boards
                  pl.BlockSpec(memory_space=pltpu.MemorySpace.VMEM),   # weight blob
                  pl.BlockSpec(memory_space=pltpu.MemorySpace.SMEM)],  # target_gen
        out_specs=pl.BlockSpec(memory_space=pltpu.MemorySpace.SMEM),   # scalar loss
    )(boards, wblob, target_gen)
    return loss[0]


def cjepa_fwd(wblob, x, context_mask, target_masks):
    B, T, K = x.shape[0], x.shape[1], target_masks.shape[1]
    # Host-side nonzero bookkeeping (mirrors torch.nonzero / view plumbing).
    mask_index = nonzero_cols(np.asarray(target_masks).reshape(B, -1)).reshape(B, -1)
    P = mask_index.shape[1]
    # The reference module's advanced indexing is only in bounds for this
    # degenerate configuration; assert so deviations are caught loudly.
    assert B == 1 and T == SEQ_LENGTH and N_PATCH == 1 and P == 1, \
        "reference CJEPA.forward is only well-defined for this degenerate config"
    assert int(mask_index[0, 0]) == 0, \
        "gen-path gather must stay in bounds (single patch)"
    assert B * K <= M_PAD

    x_last = x[:, -1]
    # target_gen = x[:, -1].flatten(1)[:, mask_index]  (a single scalar here).
    target_gen = x_last.reshape(B, -1)[:, mask_index[0]].reshape(1).astype(jnp.float32)
    return _cjepa_core(wblob, x, context_mask, target_masks, target_gen)


# --------------------------- deterministic params ---------------------------
def _init_linear_params(key, dout, din, scale=0.05):
    kw, kb = jax.random.split(key)
    return (scale * jax.random.normal(kw, (dout, din), jnp.float32),
            scale * jax.random.normal(kb, (dout,), jnp.float32))


def init_encoder_layer(key):
    E = EMBED_DIM
    ks = jax.random.split(key, 4)
    in_w, in_b = _init_linear_params(ks[0], 3 * E, E)
    out_w, out_b = _init_linear_params(ks[1], E, E)
    l1w, l1b = _init_linear_params(ks[2], FFN_DIM, E)
    l2w, l2b = _init_linear_params(ks[3], E, FFN_DIM)
    return dict(in_proj_w=in_w, in_proj_b=in_b,
                out_proj_w=out_w, out_proj_b=out_b,
                lin1_w=l1w, lin1_b=l1b, lin2_w=l2w, lin2_b=l2b,
                ln1_g=jnp.ones((E,), jnp.float32), ln1_b=jnp.zeros((E,), jnp.float32),
                ln2_g=jnp.ones((E,), jnp.float32), ln2_b=jnp.zeros((E,), jnp.float32))


def init_vit_encoder(key):
    ks = jax.random.split(key, ENC_LAYERS + 2)
    bw, bb = _init_linear_params(ks[0], EMBED_DIM, FEAT)
    pos = 0.02 * jax.random.normal(ks[1], (1, N_PATCH, EMBED_DIM), jnp.float32)
    return dict(board_w=bw, board_b=bb, pos=pos,
                layers=[init_encoder_layer(k) for k in ks[2:]])


def init_vit_predictor(key):
    ks = jax.random.split(key, PRED_LAYERS + 1)
    pos = 0.02 * jax.random.normal(ks[0], (1, 1, EMBED_DIM), jnp.float32)
    return dict(pos=pos, layers=[init_encoder_layer(k) for k in ks[1:]])


def _pack_blob(enc_towers, pred_towers, gpred_w, gpred_b):
    """Pack every parameter into one lane-dense (R, 128) f32 blob, ONCE at init.

    All PyTorch->kernel transposes, the V-slice of in_proj (Q/K are dead at
    seq_len==1), FEAT->128 zero padding and tower lane-packing happen here so
    the kernel only carves static views and the call issues a single weight DMA.
    """
    E = EMBED_DIM
    blob = np.zeros((_BLOB_ROWS, LANES), np.float32)

    def put(name, r0, c0, arr):
        arr = np.asarray(arr, np.float32)
        off = _LAYOUT[name] + r0
        blob[off:off + arr.shape[0], c0:c0 + arr.shape[1]] = arr

    def put_layer(prefix, vec_name, t, l, lp):
        c = t * E
        put(f'{prefix}_wv_{l}', 0, c, np.asarray(lp['in_proj_w'])[2 * E:, :].T)
        put(f'{prefix}_wo_{l}', 0, c, np.asarray(lp['out_proj_w']).T)
        put(f'{prefix}_w1_{t}_{l}', 0, 0, np.asarray(lp['lin1_w']).T)
        put(f'{prefix}_w2_{l}', 0, c, np.asarray(lp['lin2_w']).T)
        put(vec_name, _VEC_BV, 0, np.asarray(lp['in_proj_b'])[2 * E:][None, :])
        put(vec_name, _VEC_BO, 0, np.asarray(lp['out_proj_b'])[None, :])
        put(vec_name, _VEC_B2, 0, np.asarray(lp['lin2_b'])[None, :])
        put(vec_name, _VEC_G1, 0, np.asarray(lp['ln1_g'])[None, :])
        put(vec_name, _VEC_BE1, 0, np.asarray(lp['ln1_b'])[None, :])
        put(vec_name, _VEC_G2, 0, np.asarray(lp['ln2_g'])[None, :])
        put(vec_name, _VEC_BE2, 0, np.asarray(lp['ln2_b'])[None, :])
        put(vec_name, _VEC_B1, 0, np.asarray(lp['lin1_b'])[None, :])

    for t, tw in enumerate(enc_towers):
        c = t * E
        put('enc_bw', 0, c, np.asarray(tw['board_w']).T)        # (FEAT, E), K rows 12..127 stay 0
        put('enc_misc', 0, c, np.asarray(tw['board_b'])[None, :])
        put('enc_misc', 1, c, np.asarray(tw['pos']).reshape(1, EMBED_DIM))
        for l, lp in enumerate(tw['layers']):
            put_layer('enc', f'enc_vec_{t}_{l}', t, l, lp)

    for p, tw in enumerate(pred_towers):
        c = p * E
        put('prd_misc', 0, c, np.asarray(tw['pos']).reshape(1, EMBED_DIM))
        for l, lp in enumerate(tw['layers']):
            put_layer('prd', f'prd_vec_{p}_{l}', p, l, lp)

    put('gen_w', 0, 0, np.asarray(gpred_w).T)                   # (E, FEAT) in lanes 0:FEAT
    put('gen_misc', 0, 0, np.asarray(gpred_b)[None, :])         # gpred bias
    put('gen_misc', 1, 0, np.ones((1, FEAT), np.float32))       # gen-loss lane mask

    return jnp.asarray(blob)


def init_cjepa(key):
    ks = jax.random.split(key, 7)
    # Encoder tower order: [ijepa context, ijepa target, vjepa context, vjepa target].
    enc_towers = [init_vit_encoder(ks[0]), init_vit_encoder(ks[1]),
                  init_vit_encoder(ks[3]), init_vit_encoder(ks[4])]
    # Predictor order: [ijepa predictor, vjepa predictor].
    pred_towers = [init_vit_predictor(ks[2]), init_vit_predictor(ks[5])]
    gw, gb = _init_linear_params(ks[6], FEAT, EMBED_DIM)
    return _pack_blob(enc_towers, pred_towers, gw, gb)


# ----------------------------------- main ------------------------------------
if __name__ == "__main__":
    key = jax.random.PRNGKey(0)
    pkey, xkey = jax.random.split(key)
    wblob = init_cjepa(pkey)

    x = jax.random.normal(xkey, (BATCH, SEQ_LENGTH, FEAT), jnp.float32)
    context_mask = jnp.ones((BATCH, 1, 1), jnp.float32)
    # Single nonzero at flat position 0: the only pattern for which the
    # reference module's advanced indexing stays in bounds.
    target_masks = jnp.zeros((BATCH, NUM_TARGET_MASKS, FEAT),
                             jnp.float32).at[0, 0, 0].set(1.0)

    loss = cjepa_fwd(wblob, x, context_mask, target_masks)
    loss = jax.block_until_ready(loss)
    assert jnp.isfinite(loss), "loss is not finite"
    print("KERNEL_OK")
</pallas_src>

<mosaic_0001>
module attributes {stable_mosaic.version = 11 : i64} {
  func.func @_cjepa_kernel(%arg0: memref<32x128xf32, #tpu.memory_space<vmem>>, %arg1: memref<1432x128xf32, #tpu.memory_space<vmem>>, %arg2: memref<1xf32, #tpu.memory_space<smem>>, %arg3: memref<1xf32, #tpu.memory_space<smem>>) attributes {dimension_semantics = [], scalar_prefetch = 0 : i64, scratch_operands = 0 : i64, tpu.core_type = #tpu.core_type<tc>} {
    %c0 = arith.constant 0 : index
    %c0_0 = arith.constant 0 : index
    %0 = vector.load %arg0[%c0, %c0_0] : memref<32x128xf32, #tpu.memory_space<vmem>>, vector<8x128xf32>
    %c0_1 = arith.constant 0 : index
    %c0_2 = arith.constant 0 : index
    %1 = vector.load %arg1[%c0_1, %c0_2] : memref<1432x128xf32, #tpu.memory_space<vmem>>, vector<128x32xf32>
    %cst = arith.constant dense<0.000000e+00> : vector<8x32xf32>
    %2 = tpu.matmul %0, %1, %cst {dimension_numbers = #tpu.dot_dimension_numbers<[1], [0], [0], [1], [0, 0, 1, 1], [], []>} : vector<8x128xf32>, vector<128x32xf32>, vector<8x32xf32> -> vector<8x32xf32>
    %c832 = arith.constant 832 : index
    %c0_3 = arith.constant 0 : index
    %3 = vector.load %arg1[%c832, %c0_3] : memref<1432x128xf32, #tpu.memory_space<vmem>>, vector<1x32xf32>
    %4 = vector.broadcast %3 : vector<1x32xf32> to vector<8x32xf32>
    %5 = arith.addf %2, %4 : vector<8x32xf32>
    %c833 = arith.constant 833 : index
    %c0_4 = arith.constant 0 : index
    %6 = vector.load %arg1[%c833, %c0_4] : memref<1432x128xf32, #tpu.memory_space<vmem>>, vector<1x32xf32>
    %7 = vector.broadcast %6 : vector<1x32xf32> to vector<8x32xf32>
    %8 = arith.addf %5, %7 : vector<8x32xf32>
    %c128 = arith.constant 128 : index
    %c0_5 = arith.constant 0 : index
    %9 = vector.load %arg1[%c128, %c0_5] : memref<1432x128xf32, #tpu.memory_space<vmem>>, vector<32x32xf32>
    %c544 = arith.constant 544 : index
    %c0_6 = arith.constant 0 : index
    %10 = vector.load %arg1[%c544, %c0_6] : memref<1432x128xf32, #tpu.memory_space<vmem>>, vector<1x32xf32>
    %c160 = arith.constant 160 : index
    %c0_7 = arith.constant 0 : index
    %11 = vector.load %arg1[%c160, %c0_7] : memref<1432x128xf32, #tpu.memory_space<vmem>>, vector<32x32xf32>
    %c545 = arith.constant 545 : index
    %c0_8 = arith.constant 0 : index
    %12 = vector.load %arg1[%c545, %c0_8] : memref<1432x128xf32, #tpu.memory_space<vmem>>, vector<1x32xf32>
    %c512 = arith.constant 512 : index
    %c0_9 = arith.constant 0 : index
    %13 = vector.load %arg1[%c512, %c0_9] : memref<1432x128xf32, #tpu.memory_space<vmem>>, vector<32x128xf32>
    %c551 = arith.constant 551 : index
    %c0_10 = arith.constant 0 : index
    %14 = vector.load %arg1[%c551, %c0_10] : memref<1432x128xf32, #tpu.memory_space<vmem>>, vector<1x128xf32>
    %c192 = arith.constant 192 : index
    %c0_11 = arith.constant 0 : index
    %15 = vector.load %arg1[%c192, %c0_11] : memref<1432x128xf32, #tpu.memory_space<vmem>>, vector<128x32xf32>
    %c546 = arith.constant 546 : index
    %c0_12 = arith.constant 0 : index
    %16 = vector.load %arg1[%c546, %c0_12] : memref<1432x128xf32, #tpu.memory_space<vmem>>, vector<1x32xf32>
    %c547 = arith.constant 547 : index
    %c0_13 = arith.constant 0 : index
    %17 = vector.load %arg1[%c547, %c0_13] : memref<1432x128xf32, #tpu.memory_space<vmem>>, vector<1x32xf32>
    %c548 = arith.constant 548 : index
    %c0_14 = arith.constant 0 : index
    %18 = vector.load %arg1[%c548, %c0_14] : memref<1432x128xf32, #tpu.memory_space<vmem>>, vector<1x32xf32>
    %c549 = arith.constant 549 : index
    %c0_15 = arith.constant 0 : index
    %19 = vector.load %arg1[%c549, %c0_15] : memref<1432x128xf32, #tpu.memory_space<vmem>>, vector<1x32xf32>
    %c550 = arith.constant 550 : index
    %c0_16 = arith.constant 0 : index
    %20 = vector.load %arg1[%c550, %c0_16] : memref<1432x128xf32, #tpu.memory_space<vmem>>, vector<1x32xf32>
    %cst_17 = arith.constant dense<0.000000e+00> : vector<8x32xf32>
    %21 = tpu.matmul %8, %9, %cst_17 {dimension_numbers = #tpu.dot_dimension_numbers<[1], [0], [0], [1], [0, 0, 1, 1], [], []>} : vector<8x32xf32>, vector<32x32xf32>, vector<8x32xf32> -> vector<8x32xf32>
    %22 = vector.broadcast %10 : vector<1x32xf32> to vector<8x32xf32>
    %23 = arith.addf %21, %22 : vector<8x32xf32>
    %cst_18 = arith.constant dense<0.000000e+00> : vector<8x32xf32>
    %24 = tpu.matmul %23, %11, %cst_18 {dimension_numbers = #tpu.dot_dimension_numbers<[1], [0], [0], [1], [0, 0, 1, 1], [], []>} : vector<8x32xf32>, vector<32x32xf32>, vector<8x32xf32> -> vector<8x32xf32>
    %25 = vector.broadcast %12 : vector<1x32xf32> to vector<8x32xf32>
    %26 = arith.addf %24, %25 : vector<8x32xf32>
    %27 = arith.addf %8, %26 : vector<8x32xf32>
    %cst_19 = arith.constant dense<0.000000e+00> : vector<8xf32>
    %28 = vector.multi_reduction <add>, %27, %cst_19 [1] : vector<8x32xf32> to vector<8xf32>
    %29 = vector.shape_cast %28 : vector<8xf32> to vector<8x1xf32>
    %cst_20 = arith.constant 3.200000e+01 : f32
    %30 = vector.broadcast %cst_20 : f32 to vector<8x1xf32>
    %31 = arith.divf %29, %30 : vector<8x1xf32>
    %32 = vector.broadcast %31 : vector<8x1xf32> to vector<8x32xf32>
    %33 = arith.subf %27, %32 : vector<8x32xf32>
    %34 = arith.mulf %33, %33 : vector<8x32xf32>
    %cst_21 = arith.constant dense<0.000000e+00> : vector<8xf32>
    %35 = vector.multi_reduction <add>, %34, %cst_21 [1] : vector<8x32xf32> to vector<8xf32>
    %36 = vector.shape_cast %35 : vector<8xf32> to vector<8x1xf32>
    %cst_22 = arith.constant 3.200000e+01 : f32
    %37 = vector.broadcast %cst_22 : f32 to vector<8x1xf32>
    %38 = arith.divf %36, %37 : vector<8x1xf32>
    %cst_23 = arith.constant 9.99999974E-6 : f32
    %39 = vector.broadcast %cst_23 : f32 to vector<8x1xf32>
    %40 = arith.addf %38, %39 : vector<8x1xf32>
    %41 = math.rsqrt %40 : vector<8x1xf32>
    %42 = vector.broadcast %41 : vector<8x1xf32> to vector<8x32xf32>
    %43 = arith.mulf %33, %42 : vector<8x32xf32>
    %44 = vector.broadcast %17 : vector<1x32xf32> to vector<8x32xf32>
    %45 = arith.mulf %43, %44 : vector<8x32xf32>
    %46 = vector.broadcast %18 : vector<1x32xf32> to vector<8x32xf32>
    %47 = arith.addf %45, %46 : vector<8x32xf32>
    %cst_24 = arith.constant dense<0.000000e+00> : vector<8x128xf32>
    %48 = tpu.matmul %47, %13, %cst_24 {dimension_numbers = #tpu.dot_dimension_numbers<[1], [0], [0], [1], [0, 0, 1, 1], [], []>} : vector<8x32xf32>, vector<32x128xf32>, vector<8x128xf32> -> vector<8x128xf32>
    %49 = vector.broadcast %14 : vector<1x128xf32> to vector<8x128xf32>
    %50 = arith.addf %48, %49 : vector<8x128xf32>
    %cst_25 = arith.constant 0.000000e+00 : f32
    %51 = vector.broadcast %cst_25 : f32 to vector<8x128xf32>
    %52 = arith.maximumf %50, %51 : vector<8x128xf32>
    %cst_26 = arith.constant dense<0.000000e+00> : vector<8x32xf32>
    %53 = tpu.matmul %52, %15, %cst_26 {dimension_numbers = #tpu.dot_dimension_numbers<[1], [0], [0], [1], [0, 0, 1, 1], [], []>} : vector<8x128xf32>, vector<128x32xf32>, vector<8x32xf32> -> vector<8x32xf32>
    %54 = vector.broadcast %16 : vector<1x32xf32> to vector<8x32xf32>
    %55 = arith.addf %53, %54 : vector<8x32xf32>
    %56 = arith.addf %47, %55 : vector<8x32xf32>
    %cst_27 = arith.constant dense<0.000000e+00> : vector<8xf32>
    %57 = vector.multi_reduction <add>, %56, %cst_27 [1] : vector<8x32xf32> to vector<8xf32>
    %58 = vector.shape_cast %57 : vector<8xf32> to vector<8x1xf32>
    %cst_28 = arith.constant 3.200000e+01 : f32
    %59 = vector.broadcast %cst_28 : f32 to vector<8x1xf32>
    %60 = arith.divf %58, %59 : vector<8x1xf32>
    %61 = vector.broadcast %60 : vector<8x1xf32> to vector<8x32xf32>
    %62 = arith.subf %56, %61 : vector<8x32xf32>
    %63 = arith.mulf %62, %62 : vector<8x32xf32>
    %cst_29 = arith.constant dense<0.000000e+00> : vector<8xf32>
    %64 = vector.multi_reduction <add>, %63, %cst_29 [1] : vector<8x32xf32> to vector<8xf32>
    %65 = vector.shape_cast %64 : vector<8xf32> to vector<8x1xf32>
    %cst_30 = arith.constant 3.200000e+01 : f32
    %66 = vector.broadcast %cst_30 : f32 to vector<8x1xf32>
    %67 = arith.divf %65, %66 : vector<8x1xf32>
    %cst_31 = arith.constant 9.99999974E-6 : f32
    %68 = vector.broadcast %cst_31 : f32 to vector<8x1xf32>
    %69 = arith.addf %67, %68 : vector<8x1xf32>
    %70 = math.rsqrt %69 : vector<8x1xf32>
    %71 = vector.broadcast %70 : vector<8x1xf32> to vector<8x32xf32>
    %72 = arith.mulf %62, %71 : vector<8x32xf32>
    %73 = vector.broadcast %19 : vector<1x32xf32> to vector<8x32xf32>
    %74 = arith.mulf %72, %73 : vector<8x32xf32>
    %75 = vector.broadcast %20 : vector<1x32xf32> to vector<8x32xf32>
    %76 = arith.addf %74, %75 : vector<8x32xf32>
    %c320 = arith.constant 320 : index
    %c0_32 = arith.constant 0 : index
    %77 = vector.load %arg1[%c320, %c0_32] : memref<1432x128xf32, #tpu.memory_space<vmem>>, vector<32x32xf32>
    %c584 = arith.constant 584 : index
    %c0_33 = arith.constant 0 : index
    %78 = vector.load %arg1[%c584, %c0_33] : memref<1432x128xf32, #tpu.memory_space<vmem>>, vector<1x32xf32>
    %c352 = arith.constant 352 : index
    %c0_34 = arith.constant 0 : index
    %79 = vector.load %arg1[%c352, %c0_34] : memref<1432x128xf32, #tpu.memory_space<vmem>>, vector<32x32xf32>
    %c585 = arith.constant 585 : index
    %c0_35 = arith.constant 0 : index
    %80 = vector.load %arg1[%c585, %c0_35] : memref<1432x128xf32, #tpu.memory_space<vmem>>, vector<1x32xf32>
    %c552 = arith.constant 552 : index
    %c0_36 = arith.constant 0 : index
    %81 = vector.load %arg1[%c552, %c0_36] : memref<1432x128xf32, #tpu.memory_space<vmem>>, vector<32x128xf32>
    %c591 = arith.constant 591 : index
    %c0_37 = arith.constant 0 : index
    %82 = vector.load %arg1[%c591, %c0_37] : memref<1432x128xf32, #tpu.memory_space<vmem>>, vector<1x128xf32>
    %c384 = arith.constant 384 : index
    %c0_38 = arith.constant 0 : index
    %83 = vector.load %arg1[%c384, %c0_38] : memref<1432x128xf32, #tpu.memory_space<vmem>>, vector<128x32xf32>
    %c586 = arith.constant 586 : index
    %c0_39 = arith.constant 0 : index
    %84 = vector.load %arg1[%c586, %c0_39] : memref<1432x128xf32, #tpu.memory_space<vmem>>, vector<1x32xf32>
    %c587 = arith.constant 587 : index
    %c0_40 = arith.constant 0 : index
    %85 = vector.load %arg1[%c587, %c0_40] : memref<1432x128xf32, #tpu.memory_space<vmem>>, vector<1x32xf32>
    %c588 = arith.constant 588 : index
    %c0_41 = arith.constant 0 : index
    %86 = vector.load %arg1[%c588, %c0_41] : memref<1432x128xf32, #tpu.memory_space<vmem>>, vector<1x32xf32>
    %c589 = arith.constant 589 : index
    %c0_42 = arith.constant 0 : index
    %87 = vector.load %arg1[%c589, %c0_42] : memref<1432x128xf32, #tpu.memory_space<vmem>>, vector<1x32xf32>
    %c590 = arith.constant 590 : index
    %c0_43 = arith.constant 0 : index
    %88 = vector.load %arg1[%c590, %c0_43] : memref<1432x128xf32, #tpu.memory_space<vmem>>, vector<1x32xf32>
    %cst_44 = arith.constant dense<0.000000e+00> : vector<8x32xf32>
    %89 = tpu.matmul %76, %77, %cst_44 {dimension_numbers = #tpu.dot_dimension_numbers<[1], [0], [0], [1], [0, 0, 1, 1], [], []>} : vector<8x32xf32>, vector<32x32xf32>, vector<8x32xf32> -> vector<8x32xf32>
    %90 = vector.broadcast %78 : vector<1x32xf32> to vector<8x32xf32>
    %91 = arith.addf %89, %90 : vector<8x32xf32>
    %cst_45 = arith.constant dense<0.000000e+00> : vector<8x32xf32>
    %92 = tpu.matmul %91, %79, %cst_45 {dimension_numbers = #tpu.dot_dimension_numbers<[1], [0], [0], [1], [0, 0, 1, 1], [], []>} : vector<8x32xf32>, vector<32x32xf32>, vector<8x32xf32> -> vector<8x32xf32>
    %93 = vector.broadcast %80 : vector<1x32xf32> to vector<8x32xf32>
    %94 = arith.addf %92, %93 : vector<8x32xf32>
    %95 = arith.addf %76, %94 : vector<8x32xf32>
    %cst_46 = arith.constant dense<0.000000e+00> : vector<8xf32>
    %96 = vector.multi_reduction <add>, %95, %cst_46 [1] : vector<8x32xf32> to vector<8xf32>
    %97 = vector.shape_cast %96 : vector<8xf32> to vector<8x1xf32>
    %cst_47 = arith.constant 3.200000e+01 : f32
    %98 = vector.broadcast %cst_47 : f32 to vector<8x1xf32>
    %99 = arith.divf %97, %98 : vector<8x1xf32>
    %100 = vector.broadcast %99 : vector<8x1xf32> to vector<8x32xf32>
    %101 = arith.subf %95, %100 : vector<8x32xf32>
    %102 = arith.mulf %101, %101 : vector<8x32xf32>
    %cst_48 = arith.constant dense<0.000000e+00> : vector<8xf32>
    %103 = vector.multi_reduction <add>, %102, %cst_48 [1] : vector<8x32xf32> to vector<8xf32>
    %104 = vector.shape_cast %103 : vector<8xf32> to vector<8x1xf32>
    %cst_49 = arith.constant 3.200000e+01 : f32
    %105 = vector.broadcast %cst_49 : f32 to vector<8x1xf32>
    %106 = arith.divf %104, %105 : vector<8x1xf32>
    %cst_50 = arith.constant 9.99999974E-6 : f32
    %107 = vector.broadcast %cst_50 : f32 to vector<8x1xf32>
    %108 = arith.addf %106, %107 : vector<8x1xf32>
    %109 = math.rsqrt %108 : vector<8x1xf32>
    %110 = vector.broadcast %109 : vector<8x1xf32> to vector<8x32xf32>
    %111 = arith.mulf %101, %110 : vector<8x32xf32>
    %112 = vector.broadcast %85 : vector<1x32xf32> to vector<8x32xf32>
    %113 = arith.mulf %111, %112 : vector<8x32xf32>
    %114 = vector.broadcast %86 : vector<1x32xf32> to vector<8x32xf32>
    %115 = arith.addf %113, %114 : vector<8x32xf32>
    %cst_51 = arith.constant dense<0.000000e+00> : vector<8x128xf32>
    %116 = tpu.matmul %115, %81, %cst_51 {dimension_numbers = #tpu.dot_dimension_numbers<[1], [0], [0], [1], [0, 0, 1, 1], [], []>} : vector<8x32xf32>, vector<32x128xf32>, vector<8x128xf32> -> vector<8x128xf32>
    %117 = vector.broadcast %82 : vector<1x128xf32> to vector<8x128xf32>
    %118 = arith.addf %116, %117 : vector<8x128xf32>
    %cst_52 = arith.constant 0.000000e+00 : f32
    %119 = vector.broadcast %cst_52 : f32 to vector<8x128xf32>
    %120 = arith.maximumf %118, %119 : vector<8x128xf32>
    %cst_53 = arith.constant dense<0.000000e+00> : vector<8x32xf32>
    %121 = tpu.matmul %120, %83, %cst_53 {dimension_numbers = #tpu.dot_dimension_numbers<[1], [0], [0], [1], [0, 0, 1, 1], [], []>} : vector<8x128xf32>, vector<128x32xf32>, vector<8x32xf32> -> vector<8x32xf32>
    %122 = vector.broadcast %84 : vector<1x32xf32> to vector<8x32xf32>
    %123 = arith.addf %121, %122 : vector<8x32xf32>
    %124 = arith.addf %115, %123 : vector<8x32xf32>
    %cst_54 = arith.constant dense<0.000000e+00> : vector<8xf32>
    %125 = vector.multi_reduction <add>, %124, %cst_54 [1] : vector<8x32xf32> to vector<8xf32>
    %126 = vector.shape_cast %125 : vector<8xf32> to vector<8x1xf32>
    %cst_55 = arith.constant 3.200000e+01 : f32
    %127 = vector.broadcast %cst_55 : f32 to vector<8x1xf32>
    %128 = arith.divf %126, %127 : vector<8x1xf32>
    %129 = vector.broadcast %128 : vector<8x1xf32> to vector<8x32xf32>
    %130 = arith.subf %124, %129 : vector<8x32xf32>
    %131 = arith.mulf %130, %130 : vector<8x32xf32>
    %cst_56 = arith.constant dense<0.000000e+00> : vector<8xf32>
    %132 = vector.multi_reduction <add>, %131, %cst_56 [1] : vector<8x32xf32> to vector<8xf32>
    %133 = vector.shape_cast %132 : vector<8xf32> to vector<8x1xf32>
    %cst_57 = arith.constant 3.200000e+01 : f32
    %134 = vector.broadcast %cst_57 : f32 to vector<8x1xf32>
    %135 = arith.divf %133, %134 : vector<8x1xf32>
    %cst_58 = arith.constant 9.99999974E-6 : f32
    %136 = vector.broadcast %cst_58 : f32 to vector<8x1xf32>
    %137 = arith.addf %135, %136 : vector<8x1xf32>
    %138 = math.rsqrt %137 : vector<8x1xf32>
    %139 = vector.broadcast %138 : vector<8x1xf32> to vector<8x32xf32>
    %140 = arith.mulf %130, %139 : vector<8x32xf32>
    %141 = vector.broadcast %87 : vector<1x32xf32> to vector<8x32xf32>
    %142 = arith.mulf %140, %141 : vector<8x32xf32>
    %143 = vector.broadcast %88 : vector<1x32xf32> to vector<8x32xf32>
    %144 = arith.addf %142, %143 : vector<8x32xf32>
    %c8 = arith.constant 8 : index
    %c0_59 = arith.constant 0 : index
    %145 = vector.load %arg0[%c8, %c0_59] : memref<32x128xf32, #tpu.memory_space<vmem>>, vector<8x128xf32>
    %c0_60 = arith.constant 0 : index
    %c32 = arith.constant 32 : index
    %146 = vector.load %arg1[%c0_60, %c32] : memref<1432x128xf32, #tpu.memory_space<vmem>>, vector<128x32xf32>
    %cst_61 = arith.constant dense<0.000000e+00> : vector<8x32xf32>
    %147 = tpu.matmul %145, %146, %cst_61 {dimension_numbers = #tpu.dot_dimension_numbers<[1], [0], [0], [1], [0, 0, 1, 1], [], []>} : vector<8x128xf32>, vector<128x32xf32>, vector<8x32xf32> -> vector<8x32xf32>
    %c832_62 = arith.constant 832 : index
    %c32_63 = arith.constant 32 : index
    %148 = vector.load %arg1[%c832_62, %c32_63] : memref<1432x128xf32, #tpu.memory_space<vmem>>, vector<1x32xf32>
    %149 = vector.broadcast %148 : vector<1x32xf32> to vector<8x32xf32>
    %150 = arith.addf %147, %149 : vector<8x32xf32>
    %c833_64 = arith.constant 833 : index
    %c32_65 = arith.constant 32 : index
    %151 = vector.load %arg1[%c833_64, %c32_65] : memref<1432x128xf32, #tpu.memory_space<vmem>>, vector<1x32xf32>
    %152 = vector.broadcast %151 : vector<1x32xf32> to vector<8x32xf32>
    %153 = arith.addf %150, %152 : vector<8x32xf32>
    %c128_66 = arith.constant 128 : index
    %c32_67 = arith.constant 32 : index
    %154 = vector.load %arg1[%c128_66, %c32_67] : memref<1432x128xf32, #tpu.memory_space<vmem>>, vector<32x32xf32>
    %c624 = arith.constant 624 : index
    %c0_68 = arith.constant 0 : index
    %155 = vector.load %arg1[%c624, %c0_68] : memref<1432x128xf32, #tpu.memory_space<vmem>>, vector<1x32xf32>
    %c160_69 = arith.constant 160 : index
    %c32_70 = arith.constant 32 : index
    %156 = vector.load %arg1[%c160_69, %c32_70] : memref<1432x128xf32, #tpu.memory_space<vmem>>, vector<32x32xf32>
    %c625 = arith.constant 625 : index
    %c0_71 = arith.constant 0 : index
    %157 = vector.load %arg1[%c625, %c0_71] : memref<1432x128xf32, #tpu.memory_space<vmem>>, vector<1x32xf32>
    %c592 = arith.constant 592 : index
    %c0_72 = arith.constant 0 : index
    %158 = vector.load %arg1[%c592, %c0_72] : memref<1432x128xf32, #tpu.memory_space<vmem>>, vector<32x128xf32>
    %c631 = arith.constant 631 : index
    %c0_73 = arith.constant 0 : index
    %159 = vector.load %arg1[%c631, %c0_73] : memref<1432x128xf32, #tpu.memory_space<vmem>>, vector<1x128xf32>
    %c192_74 = arith.constant 192 : index
    %c32_75 = arith.constant 32 : index
    %160 = vector.load %arg1[%c192_74, %c32_75] : memref<1432x128xf32, #tpu.memory_space<vmem>>, vector<128x32xf32>
    %c626 = arith.constant 626 : index
    %c0_76 = arith.constant 0 : index
    %161 = vector.load %arg1[%c626, %c0_76] : memref<1432x128xf32, #tpu.memory_space<vmem>>, vector<1x32xf32>
    %c627 = arith.constant 627 : index
    %c0_77 = arith.constant 0 : index
    %162 = vector.load %arg1[%c627, %c0_77] : memref<1432x128xf32, #tpu.memory_space<vmem>>, vector<1x32xf32>
    %c628 = arith.constant 628 : index
    %c0_78 = arith.constant 0 : index
    %163 = vector.load %arg1[%c628, %c0_78] : memref<1432x128xf32, #tpu.memory_space<vmem>>, vector<1x32xf32>
    %c629 = arith.constant 629 : index
    %c0_79 = arith.constant 0 : index
    %164 = vector.load %arg1[%c629, %c0_79] : memref<1432x128xf32, #tpu.memory_space<vmem>>, vector<1x32xf32>
    %c630 = arith.constant 630 : index
    %c0_80 = arith.constant 0 : index
    %165 = vector.load %arg1[%c630, %c0_80] : memref<1432x128xf32, #tpu.memory_space<vmem>>, vector<1x32xf32>
    %cst_81 = arith.constant dense<0.000000e+00> : vector<8x32xf32>
    %166 = tpu.matmul %153, %154, %cst_81 {dimension_numbers = #tpu.dot_dimension_numbers<[1], [0], [0], [1], [0, 0, 1, 1], [], []>} : vector<8x32xf32>, vector<32x32xf32>, vector<8x32xf32> -> vector<8x32xf32>
    %167 = vector.broadcast %155 : vector<1x32xf32> to vector<8x32xf32>
    %168 = arith.addf %166, %167 : vector<8x32xf32>
    %cst_82 = arith.constant dense<0.000000e+00> : vector<8x32xf32>
    %169 = tpu.matmul %168, %156, %cst_82 {dimension_numbers = #tpu.dot_dimension_numbers<[1], [0], [0], [1], [0, 0, 1, 1], [], []>} : vector<8x32xf32>, vector<32x32xf32>, vector<8x32xf32> -> vector<8x32xf32>
    %170 = vector.broadcast %157 : vector<1x32xf32> to vector<8x32xf32>
    %171 = arith.addf %169, %170 : vector<8x32xf32>
    %172 = arith.addf %153, %171 : vector<8x32xf32>
    %cst_83 = arith.constant dense<0.000000e+00> : vector<8xf32>
    %173 = vector.multi_reduction <add>, %172, %cst_83 [1] : vector<8x32xf32> to vector<8xf32>
    %174 = vector.shape_cast %173 : vector<8xf32> to vector<8x1xf32>
    %cst_84 = arith.constant 3.200000e+01 : f32
    %175 = vector.broadcast %cst_84 : f32 to vector<8x1xf32>
    %176 = arith.divf %174, %175 : vector<8x1xf32>
    %177 = vector.broadcast %176 : vector<8x1xf32> to vector<8x32xf32>
    %178 = arith.subf %172, %177 : vector<8x32xf32>
    %179 = arith.mulf %178, %178 : vector<8x32xf32>
    %cst_85 = arith.constant dense<0.000000e+00> : vector<8xf32>
    %180 = vector.multi_reduction <add>, %179, %cst_85 [1] : vector<8x32xf32> to vector<8xf32>
    %181 = vector.shape_cast %180 : vector<8xf32> to vector<8x1xf32>
    %cst_86 = arith.constant 3.200000e+01 : f32
    %182 = vector.broadcast %cst_86 : f32 to vector<8x1xf32>
    %183 = arith.divf %181, %182 : vector<8x1xf32>
    %cst_87 = arith.constant 9.99999974E-6 : f32
    %184 = vector.broadcast %cst_87 : f32 to vector<8x1xf32>
    %185 = arith.addf %183, %184 : vector<8x1xf32>
    %186 = math.rsqrt %185 : vector<8x1xf32>
    %187 = vector.broadcast %186 : vector<8x1xf32> to vector<8x32xf32>
    %188 = arith.mulf %178, %187 : vector<8x32xf32>
    %189 = vector.broadcast %162 : vector<1x32xf32> to vector<8x32xf32>
    %190 = arith.mulf %188, %189 : vector<8x32xf32>
    %191 = vector.broadcast %163 : vector<1x32xf32> to vector<8x32xf32>
    %192 = arith.addf %190, %191 : vector<8x32xf32>
    %cst_88 = arith.constant dense<0.000000e+00> : vector<8x128xf32>
    %193 = tpu.matmul %192, %158, %cst_88 {dimension_numbers = #tpu.dot_dimension_numbers<[1], [0], [0], [1], [0, 0, 1, 1], [], []>} : vector<8x32xf32>, vector<32x128xf32>, vector<8x128xf32> -> vector<8x128xf32>
    %194 = vector.broadcast %159 : vector<1x128xf32> to vector<8x128xf32>
    %195 = arith.addf %193, %194 : vector<8x128xf32>
    %cst_89 = arith.constant 0.000000e+00 : f32
    %196 = vector.broadcast %cst_89 : f32 to vector<8x128xf32>
    %197 = arith.maximumf %195, %196 : vector<8x128xf32>
    %cst_90 = arith.constant dense<0.000000e+00> : vector<8x32xf32>
    %198 = tpu.matmul %197, %160, %cst_90 {dimension_numbers = #tpu.dot_dimension_numbers<[1], [0], [0], [1], [0, 0, 1, 1], [], []>} : vector<8x128xf32>, vector<128x32xf32>, vector<8x32xf32> -> vector<8x32xf32>
    %199 = vector.broadcast %161 : vector<1x32xf32> to vector<8x32xf32>
    %200 = arith.addf %198, %199 : vector<8x32xf32>
    %201 = arith.addf %192, %200 : vector<8x32xf32>
    %cst_91 = arith.constant dense<0.000000e+00> : vector<8xf32>
    %202 = vector.multi_reduction <add>, %201, %cst_91 [1] : vector<8x32xf32> to vector<8xf32>
    %203 = vector.shape_cast %202 : vector<8xf32> to vector<8x1xf32>
    %cst_92 = arith.constant 3.200000e+01 : f32
    %204 = vector.broadcast %cst_92 : f32 to vector<8x1xf32>
    %205 = arith.divf %203, %204 : vector<8x1xf32>
    %206 = vector.broadcast %205 : vector<8x1xf32> to vector<8x32xf32>
    %207 = arith.subf %201, %206 : vector<8x32xf32>
    %208 = arith.mulf %207, %207 : vector<8x32xf32>
    %cst_93 = arith.constant dense<0.000000e+00> : vector<8xf32>
    %209 = vector.multi_reduction <add>, %208, %cst_93 [1] : vector<8x32xf32> to vector<8xf32>
    %210 = vector.shape_cast %209 : vector<8xf32> to vector<8x1xf32>
    %cst_94 = arith.constant 3.200000e+01 : f32
    %211 = vector.broadcast %cst_94 : f32 to vector<8x1xf32>
    %212 = arith.divf %210, %211 : vector<8x1xf32>
    %cst_95 = arith.constant 9.99999974E-6 : f32
    %213 = vector.broadcast %cst_95 : f32 to vector<8x1xf32>
    %214 = arith.addf %212, %213 : vector<8x1xf32>
    %215 = math.rsqrt %214 : vector<8x1xf32>
    %216 = vector.broadcast %215 : vector<8x1xf32> to vector<8x32xf32>
    %217 = arith.mulf %207, %216 : vector<8x32xf32>
    %218 = vector.broadcast %164 : vector<1x32xf32> to vector<8x32xf32>
    %219 = arith.mulf %217, %218 : vector<8x32xf32>
    %220 = vector.broadcast %165 : vector<1x32xf32> to vector<8x32xf32>
    %221 = arith.addf %219, %220 : vector<8x32xf32>
    %c320_96 = arith.constant 320 : index
    %c32_97 = arith.constant 32 : index
    %222 = vector.load %arg1[%c320_96, %c32_97] : memref<1432x128xf32, #tpu.memory_space<vmem>>, vector<32x32xf32>
    %c664 = arith.constant 664 : index
    %c0_98 = arith.constant 0 : index
    %223 = vector.load %arg1[%c664, %c0_98] : memref<1432x128xf32, #tpu.memory_space<vmem>>, vector<1x32xf32>
    %c352_99 = arith.constant 352 : index
    %c32_100 = arith.constant 32 : index
    %224 = vector.load %arg1[%c352_99, %c32_100] : memref<1432x128xf32, #tpu.memory_space<vmem>>, vector<32x32xf32>
    %c665 = arith.constant 665 : index
    %c0_101 = arith.constant 0 : index
    %225 = vector.load %arg1[%c665, %c0_101] : memref<1432x128xf32, #tpu.memory_space<vmem>>, vector<1x32xf32>
    %c632 = arith.constant 632 : index
    %c0_102 = arith.constant 0 : index
    %226 = vector.load %arg1[%c632, %c0_102] : memref<1432x128xf32, #tpu.memory_space<vmem>>, vector<32x128xf32>
    %c671 = arith.constant 671 : index
    %c0_103 = arith.constant 0 : index
    %227 = vector.load %arg1[%c671, %c0_103] : memref<1432x128xf32, #tpu.memory_space<vmem>>, vector<1x128xf32>
    %c384_104 = arith.constant 384 : index
    %c32_105 = arith.constant 32 : index
    %228 = vector.load %arg1[%c384_104, %c32_105] : memref<1432x128xf32, #tpu.memory_space<vmem>>, vector<128x32xf32>
    %c666 = arith.constant 666 : index
    %c0_106 = arith.constant 0 : index
    %229 = vector.load %arg1[%c666, %c0_106] : memref<1432x128xf32, #tpu.memory_space<vmem>>, vector<1x32xf32>
    %c667 = arith.constant 667 : index
    %c0_107 = arith.constant 0 : index
    %230 = vector.load %arg1[%c667, %c0_107] : memref<1432x128xf32, #tpu.memory_space<vmem>>, vector<1x32xf32>
    %c668 = arith.constant 668 : index
    %c0_108 = arith.constant 0 : index
    %231 = vector.load %arg1[%c668, %c0_108] : memref<1432x128xf32, #tpu.memory_space<vmem>>, vector<1x32xf32>
    %c669 = arith.constant 669 : index
    %c0_109 = arith.constant 0 : index
    %232 = vector.load %arg1[%c669, %c0_109] : memref<1432x128xf32, #tpu.memory_space<vmem>>, vector<1x32xf32>
    %c670 = arith.constant 670 : index
    %c0_110 = arith.constant 0 : index
    %233 = vector.load %arg1[%c670, %c0_110] : memref<1432x128xf32, #tpu.memory_space<vmem>>, vector<1x32xf32>
    %cst_111 = arith.constant dense<0.000000e+00> : vector<8x32xf32>
    %234 = tpu.matmul %221, %222, %cst_111 {dimension_numbers = #tpu.dot_dimension_numbers<[1], [0], [0], [1], [0, 0, 1, 1], [], []>} : vector<8x32xf32>, vector<32x32xf32>, vector<8x32xf32> -> vector<8x32xf32>
    %235 = vector.broadcast %223 : vector<1x32xf32> to vector<8x32xf32>
    %236 = arith.addf %234, %235 : vector<8x32xf32>
    %cst_112 = arith.constant dense<0.000000e+00> : vector<8x32xf32>
    %237 = tpu.matmul %236, %224, %cst_112 {dimension_numbers = #tpu.dot_dimension_numbers<[1], [0], [0], [1], [0, 0, 1, 1], [], []>} : vector<8x32xf32>, vector<32x32xf32>, vector<8x32xf32> -> vector<8x32xf32>
    %238 = vector.broadcast %225 : vector<1x32xf32> to vector<8x32xf32>
    %239 = arith.addf %237, %238 : vector<8x32xf32>
    %240 = arith.addf %221, %239 : vector<8x32xf32>
    %cst_113 = arith.constant dense<0.000000e+00> : vector<8xf32>
    %241 = vector.multi_reduction <add>, %240, %cst_113 [1] : vector<8x32xf32> to vector<8xf32>
    %242 = vector.shape_cast %241 : vector<8xf32> to vector<8x1xf32>
    %cst_114 = arith.constant 3.200000e+01 : f32
    %243 = vector.broadcast %cst_114 : f32 to vector<8x1xf32>
    %244 = arith.divf %242, %243 : vector<8x1xf32>
    %245 = vector.broadcast %244 : vector<8x1xf32> to vector<8x32xf32>
    %246 = arith.subf %240, %245 : vector<8x32xf32>
    %247 = arith.mulf %246, %246 : vector<8x32xf32>
    %cst_115 = arith.constant dense<0.000000e+00> : vector<8xf32>
    %248 = vector.multi_reduction <add>, %247, %cst_115 [1] : vector<8x32xf32> to vector<8xf32>
    %249 = vector.shape_cast %248 : vector<8xf32> to vector<8x1xf32>
    %cst_116 = arith.constant 3.200000e+01 : f32
    %250 = vector.broadcast %cst_116 : f32 to vector<8x1xf32>
    %251 = arith.divf %249, %250 : vector<8x1xf32>
    %cst_117 = arith.constant 9.99999974E-6 : f32
    %252 = vector.broadcast %cst_117 : f32 to vector<8x1xf32>
    %253 = arith.addf %251, %252 : vector<8x1xf32>
    %254 = math.rsqrt %253 : vector<8x1xf32>
    %255 = vector.broadcast %254 : vector<8x1xf32> to vector<8x32xf32>
    %256 = arith.mulf %246, %255 : vector<8x32xf32>
    %257 = vector.broadcast %230 : vector<1x32xf32> to vector<8x32xf32>
    %258 = arith.mulf %256, %257 : vector<8x32xf32>
    %259 = vector.broadcast %231 : vector<1x32xf32> to vector<8x32xf32>
    %260 = arith.addf %258, %259 : vector<8x32xf32>
    %cst_118 = arith.constant dense<0.000000e+00> : vector<8x128xf32>
    %261 = tpu.matmul %260, %226, %cst_118 {dimension_numbers = #tpu.dot_dimension_numbers<[1], [0], [0], [1], [0, 0, 1, 1], [], []>} : vector<8x32xf32>, vector<32x128xf32>, vector<8x128xf32> -> vector<8x128xf32>
    %262 = vector.broadcast %227 : vector<1x128xf32> to vector<8x128xf32>
    %263 = arith.addf %261, %262 : vector<8x128xf32>
    %cst_119 = arith.constant 0.000000e+00 : f32
    %264 = vector.broadcast %cst_119 : f32 to vector<8x128xf32>
    %265 = arith.maximumf %263, %264 : vector<8x128xf32>
    %cst_120 = arith.constant dense<0.000000e+00> : vector<8x32xf32>
    %266 = tpu.matmul %265, %228, %cst_120 {dimension_numbers = #tpu.dot_dimension_numbers<[1], [0], [0], [1], [0, 0, 1, 1], [], []>} : vector<8x128xf32>, vector<128x32xf32>, vector<8x32xf32> -> vector<8x32xf32>
    %267 = vector.broadcast %229 : vector<1x32xf32> to vector<8x32xf32>
    %268 = arith.addf %266, %267 : vector<8x32xf32>
    %269 = arith.addf %260, %268 : vector<8x32xf32>
    %cst_121 = arith.constant dense<0.000000e+00> : vector<8xf32>
    %270 = vector.multi_reduction <add>, %269, %cst_121 [1] : vector<8x32xf32> to vector<8xf32>
    %271 = vector.shape_cast %270 : vector<8xf32> to vector<8x1xf32>
    %cst_122 = arith.constant 3.200000e+01 : f32
    %272 = vector.broadcast %cst_122 : f32 to vector<8x1xf32>
    %273 = arith.divf %271, %272 : vector<8x1xf32>
    %274 = vector.broadcast %273 : vector<8x1xf32> to vector<8x32xf32>
    %275 = arith.subf %269, %274 : vector<8x32xf32>
    %276 = arith.mulf %275, %275 : vector<8x32xf32>
    %cst_123 = arith.constant dense<0.000000e+00> : vector<8xf32>
    %277 = vector.multi_reduction <add>, %276, %cst_123 [1] : vector<8x32xf32> to vector<8xf32>
    %278 = vector.shape_cast %277 : vector<8xf32> to vector<8x1xf32>
    %cst_124 = arith.constant 3.200000e+01 : f32
    %279 = vector.broadcast %cst_124 : f32 to vector<8x1xf32>
    %280 = arith.divf %278, %279 : vector<8x1xf32>
    %cst_125 = arith.constant 9.99999974E-6 : f32
    %281 = vector.broadcast %cst_125 : f32 to vector<8x1xf32>
    %282 = arith.addf %280, %281 : vector<8x1xf32>
    %283 = math.rsqrt %282 : vector<8x1xf32>
    %284 = vector.broadcast %283 : vector<8x1xf32> to vector<8x32xf32>
    %285 = arith.mulf %275, %284 : vector<8x32xf32>
    %286 = vector.broadcast %232 : vector<1x32xf32> to vector<8x32xf32>
    %287 = arith.mulf %285, %286 : vector<8x32xf32>
    %288 = vector.broadcast %233 : vector<1x32xf32> to vector<8x32xf32>
    %289 = arith.addf %287, %288 : vector<8x32xf32>
    %c16 = arith.constant 16 : index
    %c0_126 = arith.constant 0 : index
    %290 = vector.load %arg0[%c16, %c0_126] : memref<32x128xf32, #tpu.memory_space<vmem>>, vector<8x128xf32>
    %c0_127 = arith.constant 0 : index
    %c64 = arith.constant 64 : index
    %291 = vector.load %arg1[%c0_127, %c64] : memref<1432x128xf32, #tpu.memory_space<vmem>>, vector<128x32xf32>
    %cst_128 = arith.constant dense<0.000000e+00> : vector<8x32xf32>
    %292 = tpu.matmul %290, %291, %cst_128 {dimension_numbers = #tpu.dot_dimension_numbers<[1], [0], [0], [1], [0, 0, 1, 1], [], []>} : vector<8x128xf32>, vector<128x32xf32>, vector<8x32xf32> -> vector<8x32xf32>
    %c832_129 = arith.constant 832 : index
    %c64_130 = arith.constant 64 : index
    %293 = vector.load %arg1[%c832_129, %c64_130] : memref<1432x128xf32, #tpu.memory_space<vmem>>, vector<1x32xf32>
    %294 = vector.broadcast %293 : vector<1x32xf32> to vector<8x32xf32>
    %295 = arith.addf %292, %294 : vector<8x32xf32>
    %c833_131 = arith.constant 833 : index
    %c64_132 = arith.constant 64 : index
    %296 = vector.load %arg1[%c833_131, %c64_132] : memref<1432x128xf32, #tpu.memory_space<vmem>>, vector<1x32xf32>
    %297 = vector.broadcast %296 : vector<1x32xf32> to vector<8x32xf32>
    %298 = arith.addf %295, %297 : vector<8x32xf32>
    %c128_133 = arith.constant 128 : index
    %c64_134 = arith.constant 64 : index
    %299 = vector.load %arg1[%c128_133, %c64_134] : memref<1432x128xf32, #tpu.memory_space<vmem>>, vector<32x32xf32>
    %c704 = arith.constant 704 : index
    %c0_135 = arith.constant 0 : index
    %300 = vector.load %arg1[%c704, %c0_135] : memref<1432x128xf32, #tpu.memory_space<vmem>>, vector<1x32xf32>
    %c160_136 = arith.constant 160 : index
    %c64_137 = arith.constant 64 : index
    %301 = vector.load %arg1[%c160_136, %c64_137] : memref<1432x128xf32, #tpu.memory_space<vmem>>, vector<32x32xf32>
    %c705 = arith.constant 705 : index
    %c0_138 = arith.constant 0 : index
    %302 = vector.load %arg1[%c705, %c0_138] : memref<1432x128xf32, #tpu.memory_space<vmem>>, vector<1x32xf32>
    %c672 = arith.constant 672 : index
    %c0_139 = arith.constant 0 : index
    %303 = vector.load %arg1[%c672, %c0_139] : memref<1432x128xf32, #tpu.memory_space<vmem>>, vector<32x128xf32>
    %c711 = arith.constant 711 : index
    %c0_140 = arith.constant 0 : index
    %304 = vector.load %arg1[%c711, %c0_140] : memref<1432x128xf32, #tpu.memory_space<vmem>>, vector<1x128xf32>
    %c192_141 = arith.constant 192 : index
    %c64_142 = arith.constant 64 : index
    %305 = vector.load %arg1[%c192_141, %c64_142] : memref<1432x128xf32, #tpu.memory_space<vmem>>, vector<128x32xf32>
    %c706 = arith.constant 706 : index
    %c0_143 = arith.constant 0 : index
    %306 = vector.load %arg1[%c706, %c0_143] : memref<1432x128xf32, #tpu.memory_space<vmem>>, vector<1x32xf32>
    %c707 = arith.constant 707 : index
    %c0_144 = arith.constant 0 : index
    %307 = vector.load %arg1[%c707, %c0_144] : memref<1432x128xf32, #tpu.memory_space<vmem>>, vector<1x32xf32>
    %c708 = arith.constant 708 : index
    %c0_145 = arith.constant 0 : index
    %308 = vector.load %arg1[%c708, %c0_145] : memref<1432x128xf32, #tpu.memory_space<vmem>>, vector<1x32xf32>
    %c709 = arith.constant 709 : index
    %c0_146 = arith.constant 0 : index
    %309 = vector.load %arg1[%c709, %c0_146] : memref<1432x128xf32, #tpu.memory_space<vmem>>, vector<1x32xf32>
    %c710 = arith.constant 710 : index
    %c0_147 = arith.constant 0 : index
    %310 = vector.load %arg1[%c710, %c0_147] : memref<1432x128xf32, #tpu.memory_space<vmem>>, vector<1x32xf32>
    %cst_148 = arith.constant dense<0.000000e+00> : vector<8x32xf32>
    %311 = tpu.matmul %298, %299, %cst_148 {dimension_numbers = #tpu.dot_dimension_numbers<[1], [0], [0], [1], [0, 0, 1, 1], [], []>} : vector<8x32xf32>, vector<32x32xf32>, vector<8x32xf32> -> vector<8x32xf32>
    %312 = vector.broadcast %300 : vector<1x32xf32> to vector<8x32xf32>
    %313 = arith.addf %311, %312 : vector<8x32xf32>
    %cst_149 = arith.constant dense<0.000000e+00> : vector<8x32xf32>
    %314 = tpu.matmul %313, %301, %cst_149 {dimension_numbers = #tpu.dot_dimension_numbers<[1], [0], [0], [1], [0, 0, 1, 1], [], []>} : vector<8x32xf32>, vector<32x32xf32>, vector<8x32xf32> -> vector<8x32xf32>
    %315 = vector.broadcast %302 : vector<1x32xf32> to vector<8x32xf32>
    %316 = arith.addf %314, %315 : vector<8x32xf32>
    %317 = arith.addf %298, %316 : vector<8x32xf32>
    %cst_150 = arith.constant dense<0.000000e+00> : vector<8xf32>
    %318 = vector.multi_reduction <add>, %317, %cst_150 [1] : vector<8x32xf32> to vector<8xf32>
    %319 = vector.shape_cast %318 : vector<8xf32> to vector<8x1xf32>
    %cst_151 = arith.constant 3.200000e+01 : f32
    %320 = vector.broadcast %cst_151 : f32 to vector<8x1xf32>
    %321 = arith.divf %319, %320 : vector<8x1xf32>
    %322 = vector.broadcast %321 : vector<8x1xf32> to vector<8x32xf32>
    %323 = arith.subf %317, %322 : vector<8x32xf32>
    %324 = arith.mulf %323, %323 : vector<8x32xf32>
    %cst_152 = arith.constant dense<0.000000e+00> : vector<8xf32>
    %325 = vector.multi_reduction <add>, %324, %cst_152 [1] : vector<8x32xf32> to vector<8xf32>
    %326 = vector.shape_cast %325 : vector<8xf32> to vector<8x1xf32>
    %cst_153 = arith.constant 3.200000e+01 : f32
    %327 = vector.broadcast %cst_153 : f32 to vector<8x1xf32>
    %328 = arith.divf %326, %327 : vector<8x1xf32>
    %cst_154 = arith.constant 9.99999974E-6 : f32
    %329 = vector.broadcast %cst_154 : f32 to vector<8x1xf32>
    %330 = arith.addf %328, %329 : vector<8x1xf32>
    %331 = math.rsqrt %330 : vector<8x1xf32>
    %332 = vector.broadcast %331 : vector<8x1xf32> to vector<8x32xf32>
    %333 = arith.mulf %323, %332 : vector<8x32xf32>
    %334 = vector.broadcast %307 : vector<1x32xf32> to vector<8x32xf32>
    %335 = arith.mulf %333, %334 : vector<8x32xf32>
    %336 = vector.broadcast %308 : vector<1x32xf32> to vector<8x32xf32>
    %337 = arith.addf %335, %336 : vector<8x32xf32>
    %cst_155 = arith.constant dense<0.000000e+00> : vector<8x128xf32>
    %338 = tpu.matmul %337, %303, %cst_155 {dimension_numbers = #tpu.dot_dimension_numbers<[1], [0], [0], [1], [0, 0, 1, 1], [], []>} : vector<8x32xf32>, vector<32x128xf32>, vector<8x128xf32> -> vector<8x128xf32>
    %339 = vector.broadcast %304 : vector<1x128xf32> to vector<8x128xf32>
    %340 = arith.addf %338, %339 : vector<8x128xf32>
    %cst_156 = arith.constant 0.000000e+00 : f32
    %341 = vector.broadcast %cst_156 : f32 to vector<8x128xf32>
    %342 = arith.maximumf %340, %341 : vector<8x128xf32>
    %cst_157 = arith.constant dense<0.000000e+00> : vector<8x32xf32>
    %343 = tpu.matmul %342, %305, %cst_157 {dimension_numbers = #tpu.dot_dimension_numbers<[1], [0], [0], [1], [0, 0, 1, 1], [], []>} : vector<8x128xf32>, vector<128x32xf32>, vector<8x32xf32> -> vector<8x32xf32>
    %344 = vector.broadcast %306 : vector<1x32xf32> to vector<8x32xf32>
    %345 = arith.addf %343, %344 : vector<8x32xf32>
    %346 = arith.addf %337, %345 : vector<8x32xf32>
    %cst_158 = arith.constant dense<0.000000e+00> : vector<8xf32>
    %347 = vector.multi_reduction <add>, %346, %cst_158 [1] : vector<8x32xf32> to vector<8xf32>
    %348 = vector.shape_cast %347 : vector<8xf32> to vector<8x1xf32>
    %cst_159 = arith.constant 3.200000e+01 : f32
    %349 = vector.broadcast %cst_159 : f32 to vector<8x1xf32>
    %350 = arith.divf %348, %349 : vector<8x1xf32>
    %351 = vector.broadcast %350 : vector<8x1xf32> to vector<8x32xf32>
    %352 = arith.subf %346, %351 : vector<8x32xf32>
    %353 = arith.mulf %352, %352 : vector<8x32xf32>
    %cst_160 = arith.constant dense<0.000000e+00> : vector<8xf32>
    %354 = vector.multi_reduction <add>, %353, %cst_160 [1] : vector<8x32xf32> to vector<8xf32>
    %355 = vector.shape_cast %354 : vector<8xf32> to vector<8x1xf32>
    %cst_161 = arith.constant 3.200000e+01 : f32
    %356 = vector.broadcast %cst_161 : f32 to vector<8x1xf32>
    %357 = arith.divf %355, %356 : vector<8x1xf32>
    %cst_162 = arith.constant 9.99999974E-6 : f32
    %358 = vector.broadcast %cst_162 : f32 to vector<8x1xf32>
    %359 = arith.addf %357, %358 : vector<8x1xf32>
    %360 = math.rsqrt %359 : vector<8x1xf32>
    %361 = vector.broadcast %360 : vector<8x1xf32> to vector<8x32xf32>
    %362 = arith.mulf %352, %361 : vector<8x32xf32>
    %363 = vector.broadcast %309 : vector<1x32xf32> to vector<8x32xf32>
    %364 = arith.mulf %362, %363 : vector<8x32xf32>
    %365 = vector.broadcast %310 : vector<1x32xf32> to vector<8x32xf32>
    %366 = arith.addf %364, %365 : vector<8x32xf32>
    %c320_163 = arith.constant 320 : index
    %c64_164 = arith.constant 64 : index
    %367 = vector.load %arg1[%c320_163, %c64_164] : memref<1432x128xf32, #tpu.memory_space<vmem>>, vector<32x32xf32>
    %c744 = arith.constant 744 : index
    %c0_165 = arith.constant 0 : index
    %368 = vector.load %arg1[%c744, %c0_165] : memref<1432x128xf32, #tpu.memory_space<vmem>>, vector<1x32xf32>
    %c352_166 = arith.constant 352 : index
    %c64_167 = arith.constant 64 : index
    %369 = vector.load %arg1[%c352_166, %c64_167] : memref<1432x128xf32, #tpu.memory_space<vmem>>, vector<32x32xf32>
    %c745 = arith.constant 745 : index
    %c0_168 = arith.constant 0 : index
    %370 = vector.load %arg1[%c745, %c0_168] : memref<1432x128xf32, #tpu.memory_space<vmem>>, vector<1x32xf32>
    %c712 = arith.constant 712 : index
    %c0_169 = arith.constant 0 : index
    %371 = vector.load %arg1[%c712, %c0_169] : memref<1432x128xf32, #tpu.memory_space<vmem>>, vector<32x128xf32>
    %c751 = arith.constant 751 : index
    %c0_170 = arith.constant 0 : index
    %372 = vector.load %arg1[%c751, %c0_170] : memref<1432x128xf32, #tpu.memory_space<vmem>>, vector<1x128xf32>
    %c384_171 = arith.constant 384 : index
    %c64_172 = arith.constant 64 : index
    %373 = vector.load %arg1[%c384_171, %c64_172] : memref<1432x128xf32, #tpu.memory_space<vmem>>, vector<128x32xf32>
    %c746 = arith.constant 746 : index
    %c0_173 = arith.constant 0 : index
    %374 = vector.load %arg1[%c746, %c0_173] : memref<1432x128xf32, #tpu.memory_space<vmem>>, vector<1x32xf32>
    %c747 = arith.constant 747 : index
    %c0_174 = arith.constant 0 : index
    %375 = vector.load %arg1[%c747, %c0_174] : memref<1432x128xf32, #tpu.memory_space<vmem>>, vector<1x32xf32>
    %c748 = arith.constant 748 : index
    %c0_175 = arith.constant 0 : index
    %376 = vector.load %arg1[%c748, %c0_175] : memref<1432x128xf32, #tpu.memory_space<vmem>>, vector<1x32xf32>
    %c749 = arith.constant 749 : index
    %c0_176 = arith.constant 0 : index
    %377 = vector.load %arg1[%c749, %c0_176] : memref<1432x128xf32, #tpu.memory_space<vmem>>, vector<1x32xf32>
    %c750 = arith.constant 750 : index
    %c0_177 = arith.constant 0 : index
    %378 = vector.load %arg1[%c750, %c0_177] : memref<1432x128xf32, #tpu.memory_space<vmem>>, vector<1x32xf32>
    %cst_178 = arith.constant dense<0.000000e+00> : vector<8x32xf32>
    %379 = tpu.matmul %366, %367, %cst_178 {dimension_numbers = #tpu.dot_dimension_numbers<[1], [0], [0], [1], [0, 0, 1, 1], [], []>} : vector<8x32xf32>, vector<32x32xf32>, vector<8x32xf32> -> vector<8x32xf32>
    %380 = vector.broadcast %368 : vector<1x32xf32> to vector<8x32xf32>
    %381 = arith.addf %379, %380 : vector<8x32xf32>
    %cst_179 = arith.constant dense<0.000000e+00> : vector<8x32xf32>
    %382 = tpu.matmul %381, %369, %cst_179 {dimension_numbers = #tpu.dot_dimension_numbers<[1], [0], [0], [1], [0, 0, 1, 1], [], []>} : vector<8x32xf32>, vector<32x32xf32>, vector<8x32xf32> -> vector<8x32xf32>
    %383 = vector.broadcast %370 : vector<1x32xf32> to vector<8x32xf32>
    %384 = arith.addf %382, %383 : vector<8x32xf32>
    %385 = arith.addf %366, %384 : vector<8x32xf32>
    %cst_180 = arith.constant dense<0.000000e+00> : vector<8xf32>
    %386 = vector.multi_reduction <add>, %385, %cst_180 [1] : vector<8x32xf32> to vector<8xf32>
    %387 = vector.shape_cast %386 : vector<8xf32> to vector<8x1xf32>
    %cst_181 = arith.constant 3.200000e+01 : f32
    %388 = vector.broadcast %cst_181 : f32 to vector<8x1xf32>
    %389 = arith.divf %387, %388 : vector<8x1xf32>
    %390 = vector.broadcast %389 : vector<8x1xf32> to vector<8x32xf32>
    %391 = arith.subf %385, %390 : vector<8x32xf32>
    %392 = arith.mulf %391, %391 : vector<8x32xf32>
    %cst_182 = arith.constant dense<0.000000e+00> : vector<8xf32>
    %393 = vector.multi_reduction <add>, %392, %cst_182 [1] : vector<8x32xf32> to vector<8xf32>
    %394 = vector.shape_cast %393 : vector<8xf32> to vector<8x1xf32>
    %cst_183 = arith.constant 3.200000e+01 : f32
    %395 = vector.broadcast %cst_183 : f32 to vector<8x1xf32>
    %396 = arith.divf %394, %395 : vector<8x1xf32>
    %cst_184 = arith.constant 9.99999974E-6 : f32
    %397 = vector.broadcast %cst_184 : f32 to vector<8x1xf32>
    %398 = arith.addf %396, %397 : vector<8x1xf32>
    %399 = math.rsqrt %398 : vector<8x1xf32>
    %400 = vector.broadcast %399 : vector<8x1xf32> to vector<8x32xf32>
    %401 = arith.mulf %391, %400 : vector<8x32xf32>
    %402 = vector.broadcast %375 : vector<1x32xf32> to vector<8x32xf32>
    %403 = arith.mulf %401, %402 : vector<8x32xf32>
    %404 = vector.broadcast %376 : vector<1x32xf32> to vector<8x32xf32>
    %405 = arith.addf %403, %404 : vector<8x32xf32>
    %cst_185 = arith.constant dense<0.000000e+00> : vector<8x128xf32>
    %406 = tpu.matmul %405, %371, %cst_185 {dimension_numbers = #tpu.dot_dimension_numbers<[1], [0], [0], [1], [0, 0, 1, 1], [], []>} : vector<8x32xf32>, vector<32x128xf32>, vector<8x128xf32> -> vector<8x128xf32>
    %407 = vector.broadcast %372 : vector<1x128xf32> to vector<8x128xf32>
    %408 = arith.addf %406, %407 : vector<8x128xf32>
    %cst_186 = arith.constant 0.000000e+00 : f32
    %409 = vector.broadcast %cst_186 : f32 to vector<8x128xf32>
    %410 = arith.maximumf %408, %409 : vector<8x128xf32>
    %cst_187 = arith.constant dense<0.000000e+00> : vector<8x32xf32>
    %411 = tpu.matmul %410, %373, %cst_187 {dimension_numbers = #tpu.dot_dimension_numbers<[1], [0], [0], [1], [0, 0, 1, 1], [], []>} : vector<8x128xf32>, vector<128x32xf32>, vector<8x32xf32> -> vector<8x32xf32>
    %412 = vector.broadcast %374 : vector<1x32xf32> to vector<8x32xf32>
    %413 = arith.addf %411, %412 : vector<8x32xf32>
    %414 = arith.addf %405, %413 : vector<8x32xf32>
    %cst_188 = arith.constant dense<0.000000e+00> : vector<8xf32>
    %415 = vector.multi_reduction <add>, %414, %cst_188 [1] : vector<8x32xf32> to vector<8xf32>
    %416 = vector.shape_cast %415 : vector<8xf32> to vector<8x1xf32>
    %cst_189 = arith.constant 3.200000e+01 : f32
    %417 = vector.broadcast %cst_189 : f32 to vector<8x1xf32>
    %418 = arith.divf %416, %417 : vector<8x1xf32>
    %419 = vector.broadcast %418 : vector<8x1xf32> to vector<8x32xf32>
    %420 = arith.subf %414, %419 : vector<8x32xf32>
    %421 = arith.mulf %420, %420 : vector<8x32xf32>
    %cst_190 = arith.constant dense<0.000000e+00> : vector<8xf32>
    %422 = vector.multi_reduction <add>, %421, %cst_190 [1] : vector<8x32xf32> to vector<8xf32>
    %423 = vector.shape_cast %422 : vector<8xf32> to vector<8x1xf32>
    %cst_191 = arith.constant 3.200000e+01 : f32
    %424 = vector.broadcast %cst_191 : f32 to vector<8x1xf32>
    %425 = arith.divf %423, %424 : vector<8x1xf32>
    %cst_192 = arith.constant 9.99999974E-6 : f32
    %426 = vector.broadcast %cst_192 : f32 to vector<8x1xf32>
    %427 = arith.addf %425, %426 : vector<8x1xf32>
    %428 = math.rsqrt %427 : vector<8x1xf32>
    %429 = vector.broadcast %428 : vector<8x1xf32> to vector<8x32xf32>
    %430 = arith.mulf %420, %429 : vector<8x32xf32>
    %431 = vector.broadcast %377 : vector<1x32xf32> to vector<8x32xf32>
    %432 = arith.mulf %430, %431 : vector<8x32xf32>
    %433 = vector.broadcast %378 : vector<1x32xf32> to vector<8x32xf32>
    %434 = arith.addf %432, %433 : vector<8x32xf32>
    %c24 = arith.constant 24 : index
    %c0_193 = arith.constant 0 : index
    %435 = vector.load %arg0[%c24, %c0_193] : memref<32x128xf32, #tpu.memory_space<vmem>>, vector<8x128xf32>
    %c0_194 = arith.constant 0 : index
    %c96 = arith.constant 96 : index
    %436 = vector.load %arg1[%c0_194, %c96] : memref<1432x128xf32, #tpu.memory_space<vmem>>, vector<128x32xf32>
    %cst_195 = arith.constant dense<0.000000e+00> : vector<8x32xf32>
    %437 = tpu.matmul %435, %436, %cst_195 {dimension_numbers = #tpu.dot_dimension_numbers<[1], [0], [0], [1], [0, 0, 1, 1], [], []>} : vector<8x128xf32>, vector<128x32xf32>, vector<8x32xf32> -> vector<8x32xf32>
    %c832_196 = arith.constant 832 : index
    %c96_197 = arith.constant 96 : index
    %438 = vector.load %arg1[%c832_196, %c96_197] : memref<1432x128xf32, #tpu.memory_space<vmem>>, vector<1x32xf32>
    %439 = vector.broadcast %438 : vector<1x32xf32> to vector<8x32xf32>
    %440 = arith.addf %437, %439 : vector<8x32xf32>
    %c833_198 = arith.constant 833 : index
    %c96_199 = arith.constant 96 : index
    %441 = vector.load %arg1[%c833_198, %c96_199] : memref<1432x128xf32, #tpu.memory_space<vmem>>, vector<1x32xf32>
    %442 = vector.broadcast %441 : vector<1x32xf32> to vector<8x32xf32>
    %443 = arith.addf %440, %442 : vector<8x32xf32>
    %c128_200 = arith.constant 128 : index
    %c96_201 = arith.constant 96 : index
    %444 = vector.load %arg1[%c128_200, %c96_201] : memref<1432x128xf32, #tpu.memory_space<vmem>>, vector<32x32xf32>
    %c784 = arith.constant 784 : index
    %c0_202 = arith.constant 0 : index
    %445 = vector.load %arg1[%c784, %c0_202] : memref<1432x128xf32, #tpu.memory_space<vmem>>, vector<1x32xf32>
    %c160_203 = arith.constant 160 : index
    %c96_204 = arith.constant 96 : index
    %446 = vector.load %arg1[%c160_203, %c96_204] : memref<1432x128xf32, #tpu.memory_space<vmem>>, vector<32x32xf32>
    %c785 = arith.constant 785 : index
    %c0_205 = arith.constant 0 : index
    %447 = vector.load %arg1[%c785, %c0_205] : memref<1432x128xf32, #tpu.memory_space<vmem>>, vector<1x32xf32>
    %c752 = arith.constant 752 : index
    %c0_206 = arith.constant 0 : index
    %448 = vector.load %arg1[%c752, %c0_206] : memref<1432x128xf32, #tpu.memory_space<vmem>>, vector<32x128xf32>
    %c791 = arith.constant 791 : index
    %c0_207 = arith.constant 0 : index
    %449 = vector.load %arg1[%c791, %c0_207] : memref<1432x128xf32, #tpu.memory_space<vmem>>, vector<1x128xf32>
    %c192_208 = arith.constant 192 : index
    %c96_209 = arith.constant 96 : index
    %450 = vector.load %arg1[%c192_208, %c96_209] : memref<1432x128xf32, #tpu.memory_space<vmem>>, vector<128x32xf32>
    %c786 = arith.constant 786 : index
    %c0_210 = arith.constant 0 : index
    %451 = vector.load %arg1[%c786, %c0_210] : memref<1432x128xf32, #tpu.memory_space<vmem>>, vector<1x32xf32>
    %c787 = arith.constant 787 : index
    %c0_211 = arith.constant 0 : index
    %452 = vector.load %arg1[%c787, %c0_211] : memref<1432x128xf32, #tpu.memory_space<vmem>>, vector<1x32xf32>
    %c788 = arith.constant 788 : index
    %c0_212 = arith.constant 0 : index
    %453 = vector.load %arg1[%c788, %c0_212] : memref<1432x128xf32, #tpu.memory_space<vmem>>, vector<1x32xf32>
    %c789 = arith.constant 789 : index
    %c0_213 = arith.constant 0 : index
    %454 = vector.load %arg1[%c789, %c0_213] : memref<1432x128xf32, #tpu.memory_space<vmem>>, vector<1x32xf32>
    %c790 = arith.constant 790 : index
    %c0_214 = arith.constant 0 : index
    %455 = vector.load %arg1[%c790, %c0_214] : memref<1432x128xf32, #tpu.memory_space<vmem>>, vector<1x32xf32>
    %cst_215 = arith.constant dense<0.000000e+00> : vector<8x32xf32>
    %456 = tpu.matmul %443, %444, %cst_215 {dimension_numbers = #tpu.dot_dimension_numbers<[1], [0], [0], [1], [0, 0, 1, 1], [], []>} : vector<8x32xf32>, vector<32x32xf32>, vector<8x32xf32> -> vector<8x32xf32>
    %457 = vector.broadcast %445 : vector<1x32xf32> to vector<8x32xf32>
    %458 = arith.addf %456, %457 : vector<8x32xf32>
    %cst_216 = arith.constant dense<0.000000e+00> : vector<8x32xf32>
    %459 = tpu.matmul %458, %446, %cst_216 {dimension_numbers = #tpu.dot_dimension_numbers<[1], [0], [0], [1], [0, 0, 1, 1], [], []>} : vector<8x32xf32>, vector<32x32xf32>, vector<8x32xf32> -> vector<8x32xf32>
    %460 = vector.broadcast %447 : vector<1x32xf32> to vector<8x32xf32>
    %461 = arith.addf %459, %460 : vector<8x32xf32>
    %462 = arith.addf %443, %461 : vector<8x32xf32>
    %cst_217 = arith.constant dense<0.000000e+00> : vector<8xf32>
    %463 = vector.multi_reduction <add>, %462, %cst_217 [1] : vector<8x32xf32> to vector<8xf32>
    %464 = vector.shape_cast %463 : vector<8xf32> to vector<8x1xf32>
    %cst_218 = arith.constant 3.200000e+01 : f32
    %465 = vector.broadcast %cst_218 : f32 to vector<8x1xf32>
    %466 = arith.divf %464, %465 : vector<8x1xf32>
    %467 = vector.broadcast %466 : vector<8x1xf32> to vector<8x32xf32>
    %468 = arith.subf %462, %467 : vector<8x32xf32>
    %469 = arith.mulf %468, %468 : vector<8x32xf32>
    %cst_219 = arith.constant dense<0.000000e+00> : vector<8xf32>
    %470 = vector.multi_reduction <add>, %469, %cst_219 [1] : vector<8x32xf32> to vector<8xf32>
    %471 = vector.shape_cast %470 : vector<8xf32> to vector<8x1xf32>
    %cst_220 = arith.constant 3.200000e+01 : f32
    %472 = vector.broadcast %cst_220 : f32 to vector<8x1xf32>
    %473 = arith.divf %471, %472 : vector<8x1xf32>
    %cst_221 = arith.constant 9.99999974E-6 : f32
    %474 = vector.broadcast %cst_221 : f32 to vector<8x1xf32>
    %475 = arith.addf %473, %474 : vector<8x1xf32>
    %476 = math.rsqrt %475 : vector<8x1xf32>
    %477 = vector.broadcast %476 : vector<8x1xf32> to vector<8x32xf32>
    %478 = arith.mulf %468, %477 : vector<8x32xf32>
    %479 = vector.broadcast %452 : vector<1x32xf32> to vector<8x32xf32>
    %480 = arith.mulf %478, %479 : vector<8x32xf32>
    %481 = vector.broadcast %453 : vector<1x32xf32> to vector<8x32xf32>
    %482 = arith.addf %480, %481 : vector<8x32xf32>
    %cst_222 = arith.constant dense<0.000000e+00> : vector<8x128xf32>
    %483 = tpu.matmul %482, %448, %cst_222 {dimension_numbers = #tpu.dot_dimension_numbers<[1], [0], [0], [1], [0, 0, 1, 1], [], []>} : vector<8x32xf32>, vector<32x128xf32>, vector<8x128xf32> -> vector<8x128xf32>
    %484 = vector.broadcast %449 : vector<1x128xf32> to vector<8x128xf32>
    %485 = arith.addf %483, %484 : vector<8x128xf32>
    %cst_223 = arith.constant 0.000000e+00 : f32
    %486 = vector.broadcast %cst_223 : f32 to vector<8x128xf32>
    %487 = arith.maximumf %485, %486 : vector<8x128xf32>
    %cst_224 = arith.constant dense<0.000000e+00> : vector<8x32xf32>
    %488 = tpu.matmul %487, %450, %cst_224 {dimension_numbers = #tpu.dot_dimension_numbers<[1], [0], [0], [1], [0, 0, 1, 1], [], []>} : vector<8x128xf32>, vector<128x32xf32>, vector<8x32xf32> -> vector<8x32xf32>
    %489 = vector.broadcast %451 : vector<1x32xf32> to vector<8x32xf32>
    %490 = arith.addf %488, %489 : vector<8x32xf32>
    %491 = arith.addf %482, %490 : vector<8x32xf32>
    %cst_225 = arith.constant dense<0.000000e+00> : vector<8xf32>
    %492 = vector.multi_reduction <add>, %491, %cst_225 [1] : vector<8x32xf32> to vector<8xf32>
    %493 = vector.shape_cast %492 : vector<8xf32> to vector<8x1xf32>
    %cst_226 = arith.constant 3.200000e+01 : f32
    %494 = vector.broadcast %cst_226 : f32 to vector<8x1xf32>
    %495 = arith.divf %493, %494 : vector<8x1xf32>
    %496 = vector.broadcast %495 : vector<8x1xf32> to vector<8x32xf32>
    %497 = arith.subf %491, %496 : vector<8x32xf32>
    %498 = arith.mulf %497, %497 : vector<8x32xf32>
    %cst_227 = arith.constant dense<0.000000e+00> : vector<8xf32>
    %499 = vector.multi_reduction <add>, %498, %cst_227 [1] : vector<8x32xf32> to vector<8xf32>
    %500 = vector.shape_cast %499 : vector<8xf32> to vector<8x1xf32>
    %cst_228 = arith.constant 3.200000e+01 : f32
    %501 = vector.broadcast %cst_228 : f32 to vector<8x1xf32>
    %502 = arith.divf %500, %501 : vector<8x1xf32>
    %cst_229 = arith.constant 9.99999974E-6 : f32
    %503 = vector.broadcast %cst_229 : f32 to vector<8x1xf32>
    %504 = arith.addf %502, %503 : vector<8x1xf32>
    %505 = math.rsqrt %504 : vector<8x1xf32>
    %506 = vector.broadcast %505 : vector<8x1xf32> to vector<8x32xf32>
    %507 = arith.mulf %497, %506 : vector<8x32xf32>
    %508 = vector.broadcast %454 : vector<1x32xf32> to vector<8x32xf32>
    %509 = arith.mulf %507, %508 : vector<8x32xf32>
    %510 = vector.broadcast %455 : vector<1x32xf32> to vector<8x32xf32>
    %511 = arith.addf %509, %510 : vector<8x32xf32>
    %c320_230 = arith.constant 320 : index
    %c96_231 = arith.constant 96 : index
    %512 = vector.load %arg1[%c320_230, %c96_231] : memref<1432x128xf32, #tpu.memory_space<vmem>>, vector<32x32xf32>
    %c824 = arith.constant 824 : index
    %c0_232 = arith.constant 0 : index
    %513 = vector.load %arg1[%c824, %c0_232] : memref<1432x128xf32, #tpu.memory_space<vmem>>, vector<1x32xf32>
    %c352_233 = arith.constant 352 : index
    %c96_234 = arith.constant 96 : index
    %514 = vector.load %arg1[%c352_233, %c96_234] : memref<1432x128xf32, #tpu.memory_space<vmem>>, vector<32x32xf32>
    %c825 = arith.constant 825 : index
    %c0_235 = arith.constant 0 : index
    %515 = vector.load %arg1[%c825, %c0_235] : memref<1432x128xf32, #tpu.memory_space<vmem>>, vector<1x32xf32>
    %c792 = arith.constant 792 : index
    %c0_236 = arith.constant 0 : index
    %516 = vector.load %arg1[%c792, %c0_236] : memref<1432x128xf32, #tpu.memory_space<vmem>>, vector<32x128xf32>
    %c831 = arith.constant 831 : index
    %c0_237 = arith.constant 0 : index
    %517 = vector.load %arg1[%c831, %c0_237] : memref<1432x128xf32, #tpu.memory_space<vmem>>, vector<1x128xf32>
    %c384_238 = arith.constant 384 : index
    %c96_239 = arith.constant 96 : index
    %518 = vector.load %arg1[%c384_238, %c96_239] : memref<1432x128xf32, #tpu.memory_space<vmem>>, vector<128x32xf32>
    %c826 = arith.constant 826 : index
    %c0_240 = arith.constant 0 : index
    %519 = vector.load %arg1[%c826, %c0_240] : memref<1432x128xf32, #tpu.memory_space<vmem>>, vector<1x32xf32>
    %c827 = arith.constant 827 : index
    %c0_241 = arith.constant 0 : index
    %520 = vector.load %arg1[%c827, %c0_241] : memref<1432x128xf32, #tpu.memory_space<vmem>>, vector<1x32xf32>
    %c828 = arith.constant 828 : index
    %c0_242 = arith.constant 0 : index
    %521 = vector.load %arg1[%c828, %c0_242] : memref<1432x128xf32, #tpu.memory_space<vmem>>, vector<1x32xf32>
    %c829 = arith.constant 829 : index
    %c0_243 = arith.constant 0 : index
    %522 = vector.load %arg1[%c829, %c0_243] : memref<1432x128xf32, #tpu.memory_space<vmem>>, vector<1x32xf32>
    %c830 = arith.constant 830 : index
    %c0_244 = arith.constant 0 : index
    %523 = vector.load %arg1[%c830, %c0_244] : memref<1432x128xf32, #tpu.memory_space<vmem>>, vector<1x32xf32>
    %cst_245 = arith.constant dense<0.000000e+00> : vector<8x32xf32>
    %524 = tpu.matmul %511, %512, %cst_245 {dimension_numbers = #tpu.dot_dimension_numbers<[1], [0], [0], [1], [0, 0, 1, 1], [], []>} : vector<8x32xf32>, vector<32x32xf32>, vector<8x32xf32> -> vector<8x32xf32>
    %525 = vector.broadcast %513 : vector<1x32xf32> to vector<8x32xf32>
    %526 = arith.addf %524, %525 : vector<8x32xf32>
    %cst_246 = arith.constant dense<0.000000e+00> : vector<8x32xf32>
    %527 = tpu.matmul %526, %514, %cst_246 {dimension_numbers = #tpu.dot_dimension_numbers<[1], [0], [0], [1], [0, 0, 1, 1], [], []>} : vector<8x32xf32>, vector<32x32xf32>, vector<8x32xf32> -> vector<8x32xf32>
    %528 = vector.broadcast %515 : vector<1x32xf32> to vector<8x32xf32>
    %529 = arith.addf %527, %528 : vector<8x32xf32>
    %530 = arith.addf %511, %529 : vector<8x32xf32>
    %cst_247 = arith.constant dense<0.000000e+00> : vector<8xf32>
    %531 = vector.multi_reduction <add>, %530, %cst_247 [1] : vector<8x32xf32> to vector<8xf32>
    %532 = vector.shape_cast %531 : vector<8xf32> to vector<8x1xf32>
    %cst_248 = arith.constant 3.200000e+01 : f32
    %533 = vector.broadcast %cst_248 : f32 to vector<8x1xf32>
    %534 = arith.divf %532, %533 : vector<8x1xf32>
    %535 = vector.broadcast %534 : vector<8x1xf32> to vector<8x32xf32>
    %536 = arith.subf %530, %535 : vector<8x32xf32>
    %537 = arith.mulf %536, %536 : vector<8x32xf32>
    %cst_249 = arith.constant dense<0.000000e+00> : vector<8xf32>
    %538 = vector.multi_reduction <add>, %537, %cst_249 [1] : vector<8x32xf32> to vector<8xf32>
    %539 = vector.shape_cast %538 : vector<8xf32> to vector<8x1xf32>
    %cst_250 = arith.constant 3.200000e+01 : f32
    %540 = vector.broadcast %cst_250 : f32 to vector<8x1xf32>
    %541 = arith.divf %539, %540 : vector<8x1xf32>
    %cst_251 = arith.constant 9.99999974E-6 : f32
    %542 = vector.broadcast %cst_251 : f32 to vector<8x1xf32>
    %543 = arith.addf %541, %542 : vector<8x1xf32>
    %544 = math.rsqrt %543 : vector<8x1xf32>
    %545 = vector.broadcast %544 : vector<8x1xf32> to vector<8x32xf32>
    %546 = arith.mulf %536, %545 : vector<8x32xf32>
    %547 = vector.broadcast %520 : vector<1x32xf32> to vector<8x32xf32>
    %548 = arith.mulf %546, %547 : vector<8x32xf32>
    %549 = vector.broadcast %521 : vector<1x32xf32> to vector<8x32xf32>
    %550 = arith.addf %548, %549 : vector<8x32xf32>
    %cst_252 = arith.constant dense<0.000000e+00> : vector<8x128xf32>
    %551 = tpu.matmul %550, %516, %cst_252 {dimension_numbers = #tpu.dot_dimension_numbers<[1], [0], [0], [1], [0, 0, 1, 1], [], []>} : vector<8x32xf32>, vector<32x128xf32>, vector<8x128xf32> -> vector<8x128xf32>
    %552 = vector.broadcast %517 : vector<1x128xf32> to vector<8x128xf32>
    %553 = arith.addf %551, %552 : vector<8x128xf32>
    %cst_253 = arith.constant 0.000000e+00 : f32
    %554 = vector.broadcast %cst_253 : f32 to vector<8x128xf32>
    %555 = arith.maximumf %553, %554 : vector<8x128xf32>
    %cst_254 = arith.constant dense<0.000000e+00> : vector<8x32xf32>
    %556 = tpu.matmul %555, %518, %cst_254 {dimension_numbers = #tpu.dot_dimension_numbers<[1], [0], [0], [1], [0, 0, 1, 1], [], []>} : vector<8x128xf32>, vector<128x32xf32>, vector<8x32xf32> -> vector<8x32xf32>
    %557 = vector.broadcast %519 : vector<1x32xf32> to vector<8x32xf32>
    %558 = arith.addf %556, %557 : vector<8x32xf32>
    %559 = arith.addf %550, %558 : vector<8x32xf32>
    %cst_255 = arith.constant dense<0.000000e+00> : vector<8xf32>
    %560 = vector.multi_reduction <add>, %559, %cst_255 [1] : vector<8x32xf32> to vector<8xf32>
    %561 = vector.shape_cast %560 : vector<8xf32> to vector<8x1xf32>
    %cst_256 = arith.constant 3.200000e+01 : f32
    %562 = vector.broadcast %cst_256 : f32 to vector<8x1xf32>
    %563 = arith.divf %561, %562 : vector<8x1xf32>
    %564 = vector.broadcast %563 : vector<8x1xf32> to vector<8x32xf32>
    %565 = arith.subf %559, %564 : vector<8x32xf32>
    %566 = arith.mulf %565, %565 : vector<8x32xf32>
    %cst_257 = arith.constant dense<0.000000e+00> : vector<8xf32>
    %567 = vector.multi_reduction <add>, %566, %cst_257 [1] : vector<8x32xf32> to vector<8xf32>
    %568 = vector.shape_cast %567 : vector<8xf32> to vector<8x1xf32>
    %cst_258 = arith.constant 3.200000e+01 : f32
    %569 = vector.broadcast %cst_258 : f32 to vector<8x1xf32>
    %570 = arith.divf %568, %569 : vector<8x1xf32>
    %cst_259 = arith.constant 9.99999974E-6 : f32
    %571 = vector.broadcast %cst_259 : f32 to vector<8x1xf32>
    %572 = arith.addf %570, %571 : vector<8x1xf32>
    %573 = math.rsqrt %572 : vector<8x1xf32>
    %574 = vector.broadcast %573 : vector<8x1xf32> to vector<8x32xf32>
    %575 = arith.mulf %565, %574 : vector<8x32xf32>
    %576 = vector.broadcast %522 : vector<1x32xf32> to vector<8x32xf32>
    %577 = arith.mulf %575, %576 : vector<8x32xf32>
    %578 = vector.broadcast %523 : vector<1x32xf32> to vector<8x32xf32>
    %579 = arith.addf %577, %578 : vector<8x32xf32>
    %580 = vector.extract_strided_slice %144 {offsets = [0, 0], sizes = [1, 32], strides = [1, 1]} : vector<8x32xf32> to vector<1x32xf32>
    %581 = vector.extract_strided_slice %289 {offsets = [0, 0], sizes = [4, 32], strides = [1, 1]} : vector<8x32xf32> to vector<4x32xf32>
    %582 = vector.extract_strided_slice %434 {offsets = [0, 0], sizes = [1, 32], strides = [1, 1]} : vector<8x32xf32> to vector<1x32xf32>
    %583 = vector.extract_strided_slice %579 {offsets = [0, 0], sizes = [1, 32], strides = [1, 1]} : vector<8x32xf32> to vector<1x32xf32>
    %c1384 = arith.constant 1384 : index
    %c0_260 = arith.constant 0 : index
    %584 = vector.load %arg1[%c1384, %c0_260] : memref<1432x128xf32, #tpu.memory_space<vmem>>, vector<1x32xf32>
    %585 = tpu.iota {dimensions = array<i32: 0>} : vector<2x32xi32>
    %c0_i32 = arith.constant 0 : i32
    %586 = vector.broadcast %c0_i32 : i32 to vector<2x32xi32>
    %587 = arith.cmpi eq, %585, %586 : vector<2x32xi32>
    %588 = vector.shape_cast %580 : vector<1x32xf32> to vector<1x32xf32>
    %589 = vector.broadcast %588 : vector<1x32xf32> to vector<2x32xf32>
    %590 = vector.shape_cast %584 : vector<1x32xf32> to vector<1x32xf32>
    %591 = vector.broadcast %590 : vector<1x32xf32> to vector<2x32xf32>
    %592 = arith.select %587, %589, %591 : vector<2x32xi1>, vector<2x32xf32>
    %c840 = arith.constant 840 : index
    %c0_261 = arith.constant 0 : index
    %593 = vector.load %arg1[%c840, %c0_261] : memref<1432x128xf32, #tpu.memory_space<vmem>>, vector<32x32xf32>
    %c1256 = arith.constant 1256 : index
    %c0_262 = arith.constant 0 : index
    %594 = vector.load %arg1[%c1256, %c0_262] : memref<1432x128xf32, #tpu.memory_space<vmem>>, vector<1x32xf32>
    %c872 = arith.constant 872 : index
    %c0_263 = arith.constant 0 : index
    %595 = vector.load %arg1[%c872, %c0_263] : memref<1432x128xf32, #tpu.memory_space<vmem>>, vector<32x32xf32>
    %c1257 = arith.constant 1257 : index
    %c0_264 = arith.constant 0 : index
    %596 = vector.load %arg1[%c1257, %c0_264] : memref<1432x128xf32, #tpu.memory_space<vmem>>, vector<1x32xf32>
    %c1224 = arith.constant 1224 : index
    %c0_265 = arith.constant 0 : index
    %597 = vector.load %arg1[%c1224, %c0_265] : memref<1432x128xf32, #tpu.memory_space<vmem>>, vector<32x128xf32>
    %c1263 = arith.constant 1263 : index
    %c0_266 = arith.constant 0 : index
    %598 = vector.load %arg1[%c1263, %c0_266] : memref<1432x128xf32, #tpu.memory_space<vmem>>, vector<1x128xf32>
    %c904 = arith.constant 904 : index
    %c0_267 = arith.constant 0 : index
    %599 = vector.load %arg1[%c904, %c0_267] : memref<1432x128xf32, #tpu.memory_space<vmem>>, vector<128x32xf32>
    %c1258 = arith.constant 1258 : index
    %c0_268 = arith.constant 0 : index
    %600 = vector.load %arg1[%c1258, %c0_268] : memref<1432x128xf32, #tpu.memory_space<vmem>>, vector<1x32xf32>
    %c1259 = arith.constant 1259 : index
    %c0_269 = arith.constant 0 : index
    %601 = vector.load %arg1[%c1259, %c0_269] : memref<1432x128xf32, #tpu.memory_space<vmem>>, vector<1x32xf32>
    %c1260 = arith.constant 1260 : index
    %c0_270 = arith.constant 0 : index
    %602 = vector.load %arg1[%c1260, %c0_270] : memref<1432x128xf32, #tpu.memory_space<vmem>>, vector<1x32xf32>
    %c1261 = arith.constant 1261 : index
    %c0_271 = arith.constant 0 : index
    %603 = vector.load %arg1[%c1261, %c0_271] : memref<1432x128xf32, #tpu.memory_space<vmem>>, vector<1x32xf32>
    %c1262 = arith.constant 1262 : index
    %c0_272 = arith.constant 0 : index
    %604 = vector.load %arg1[%c1262, %c0_272] : memref<1432x128xf32, #tpu.memory_space<vmem>>, vector<1x32xf32>
    %cst_273 = arith.constant dense<0.000000e+00> : vector<2x32xf32>
    %605 = tpu.matmul %592, %593, %cst_273 {dimension_numbers = #tpu.dot_dimension_numbers<[1], [0], [0], [1], [0, 0, 1, 1], [], []>} : vector<2x32xf32>, vector<32x32xf32>, vector<2x32xf32> -> vector<2x32xf32>
    %606 = vector.broadcast %594 : vector<1x32xf32> to vector<2x32xf32>
    %607 = arith.addf %605, %606 : vector<2x32xf32>
    %cst_274 = arith.constant dense<0.000000e+00> : vector<2x32xf32>
    %608 = tpu.matmul %607, %595, %cst_274 {dimension_numbers = #tpu.dot_dimension_numbers<[1], [0], [0], [1], [0, 0, 1, 1], [], []>} : vector<2x32xf32>, vector<32x32xf32>, vector<2x32xf32> -> vector<2x32xf32>
    %609 = vector.broadcast %596 : vector<1x32xf32> to vector<2x32xf32>
    %610 = arith.addf %608, %609 : vector<2x32xf32>
    %611 = arith.addf %592, %610 : vector<2x32xf32>
    %cst_275 = arith.constant dense<0.000000e+00> : vector<2xf32>
    %612 = vector.multi_reduction <add>, %611, %cst_275 [1] : vector<2x32xf32> to vector<2xf32>
    %613 = vector.shape_cast %612 : vector<2xf32> to vector<2x1xf32>
    %cst_276 = arith.constant 3.200000e+01 : f32
    %614 = vector.broadcast %cst_276 : f32 to vector<2x1xf32>
    %615 = arith.divf %613, %614 : vector<2x1xf32>
    %616 = vector.broadcast %615 : vector<2x1xf32> to vector<2x32xf32>
    %617 = arith.subf %611, %616 : vector<2x32xf32>
    %618 = arith.mulf %617, %617 : vector<2x32xf32>
    %cst_277 = arith.constant dense<0.000000e+00> : vector<2xf32>
    %619 = vector.multi_reduction <add>, %618, %cst_277 [1] : vector<2x32xf32> to vector<2xf32>
    %620 = vector.shape_cast %619 : vector<2xf32> to vector<2x1xf32>
    %cst_278 = arith.constant 3.200000e+01 : f32
    %621 = vector.broadcast %cst_278 : f32 to vector<2x1xf32>
    %622 = arith.divf %620, %621 : vector<2x1xf32>
    %cst_279 = arith.constant 9.99999974E-6 : f32
    %623 = vector.broadcast %cst_279 : f32 to vector<2x1xf32>
    %624 = arith.addf %622, %623 : vector<2x1xf32>
    %625 = math.rsqrt %624 : vector<2x1xf32>
    %626 = vector.broadcast %625 : vector<2x1xf32> to vector<2x32xf32>
    %627 = arith.mulf %617, %626 : vector<2x32xf32>
    %628 = vector.broadcast %601 : vector<1x32xf32> to vector<2x32xf32>
    %629 = arith.mulf %627, %628 : vector<2x32xf32>
    %630 = vector.broadcast %602 : vector<1x32xf32> to vector<2x32xf32>
    %631 = arith.addf %629, %630 : vector<2x32xf32>
    %cst_280 = arith.constant dense<0.000000e+00> : vector<2x128xf32>
    %632 = tpu.matmul %631, %597, %cst_280 {dimension_numbers = #tpu.dot_dimension_numbers<[1], [0], [0], [1], [0, 0, 1, 1], [], []>} : vector<2x32xf32>, vector<32x128xf32>, vector<2x128xf32> -> vector<2x128xf32>
    %633 = vector.broadcast %598 : vector<1x128xf32> to vector<2x128xf32>
    %634 = arith.addf %632, %633 : vector<2x128xf32>
    %cst_281 = arith.constant 0.000000e+00 : f32
    %635 = vector.broadcast %cst_281 : f32 to vector<2x128xf32>
    %636 = arith.maximumf %634, %635 : vector<2x128xf32>
    %cst_282 = arith.constant dense<0.000000e+00> : vector<2x32xf32>
    %637 = tpu.matmul %636, %599, %cst_282 {dimension_numbers = #tpu.dot_dimension_numbers<[1], [0], [0], [1], [0, 0, 1, 1], [], []>} : vector<2x128xf32>, vector<128x32xf32>, vector<2x32xf32> -> vector<2x32xf32>
    %638 = vector.broadcast %600 : vector<1x32xf32> to vector<2x32xf32>
    %639 = arith.addf %637, %638 : vector<2x32xf32>
    %640 = arith.addf %631, %639 : vector<2x32xf32>
    %cst_283 = arith.constant dense<0.000000e+00> : vector<2xf32>
    %641 = vector.multi_reduction <add>, %640, %cst_283 [1] : vector<2x32xf32> to vector<2xf32>
    %642 = vector.shape_cast %641 : vector<2xf32> to vector<2x1xf32>
    %cst_284 = arith.constant 3.200000e+01 : f32
    %643 = vector.broadcast %cst_284 : f32 to vector<2x1xf32>
    %644 = arith.divf %642, %643 : vector<2x1xf32>
    %645 = vector.broadcast %644 : vector<2x1xf32> to vector<2x32xf32>
    %646 = arith.subf %640, %645 : vector<2x32xf32>
    %647 = arith.mulf %646, %646 : vector<2x32xf32>
    %cst_285 = arith.constant dense<0.000000e+00> : vector<2xf32>
    %648 = vector.multi_reduction <add>, %647, %cst_285 [1] : vector<2x32xf32> to vector<2xf32>
    %649 = vector.shape_cast %648 : vector<2xf32> to vector<2x1xf32>
    %cst_286 = arith.constant 3.200000e+01 : f32
    %650 = vector.broadcast %cst_286 : f32 to vector<2x1xf32>
    %651 = arith.divf %649, %650 : vector<2x1xf32>
    %cst_287 = arith.constant 9.99999974E-6 : f32
    %652 = vector.broadcast %cst_287 : f32 to vector<2x1xf32>
    %653 = arith.addf %651, %652 : vector<2x1xf32>
    %654 = math.rsqrt %653 : vector<2x1xf32>
    %655 = vector.broadcast %654 : vector<2x1xf32> to vector<2x32xf32>
    %656 = arith.mulf %646, %655 : vector<2x32xf32>
    %657 = vector.broadcast %603 : vector<1x32xf32> to vector<2x32xf32>
    %658 = arith.mulf %656, %657 : vector<2x32xf32>
    %659 = vector.broadcast %604 : vector<1x32xf32> to vector<2x32xf32>
    %660 = arith.addf %658, %659 : vector<2x32xf32>
    %c1032 = arith.constant 1032 : index
    %c0_288 = arith.constant 0 : index
    %661 = vector.load %arg1[%c1032, %c0_288] : memref<1432x128xf32, #tpu.memory_space<vmem>>, vector<32x32xf32>
    %c1296 = arith.constant 1296 : index
    %c0_289 = arith.constant 0 : index
    %662 = vector.load %arg1[%c1296, %c0_289] : memref<1432x128xf32, #tpu.memory_space<vmem>>, vector<1x32xf32>
    %c1064 = arith.constant 1064 : index
    %c0_290 = arith.constant 0 : index
    %663 = vector.load %arg1[%c1064, %c0_290] : memref<1432x128xf32, #tpu.memory_space<vmem>>, vector<32x32xf32>
    %c1297 = arith.constant 1297 : index
    %c0_291 = arith.constant 0 : index
    %664 = vector.load %arg1[%c1297, %c0_291] : memref<1432x128xf32, #tpu.memory_space<vmem>>, vector<1x32xf32>
    %c1264 = arith.constant 1264 : index
    %c0_292 = arith.constant 0 : index
    %665 = vector.load %arg1[%c1264, %c0_292] : memref<1432x128xf32, #tpu.memory_space<vmem>>, vector<32x128xf32>
    %c1303 = arith.constant 1303 : index
    %c0_293 = arith.constant 0 : index
    %666 = vector.load %arg1[%c1303, %c0_293] : memref<1432x128xf32, #tpu.memory_space<vmem>>, vector<1x128xf32>
    %c1096 = arith.constant 1096 : index
    %c0_294 = arith.constant 0 : index
    %667 = vector.load %arg1[%c1096, %c0_294] : memref<1432x128xf32, #tpu.memory_space<vmem>>, vector<128x32xf32>
    %c1298 = arith.constant 1298 : index
    %c0_295 = arith.constant 0 : index
    %668 = vector.load %arg1[%c1298, %c0_295] : memref<1432x128xf32, #tpu.memory_space<vmem>>, vector<1x32xf32>
    %c1299 = arith.constant 1299 : index
    %c0_296 = arith.constant 0 : index
    %669 = vector.load %arg1[%c1299, %c0_296] : memref<1432x128xf32, #tpu.memory_space<vmem>>, vector<1x32xf32>
    %c1300 = arith.constant 1300 : index
    %c0_297 = arith.constant 0 : index
    %670 = vector.load %arg1[%c1300, %c0_297] : memref<1432x128xf32, #tpu.memory_space<vmem>>, vector<1x32xf32>
    %c1301 = arith.constant 1301 : index
    %c0_298 = arith.constant 0 : index
    %671 = vector.load %arg1[%c1301, %c0_298] : memref<1432x128xf32, #tpu.memory_space<vmem>>, vector<1x32xf32>
    %c1302 = arith.constant 1302 : index
    %c0_299 = arith.constant 0 : index
    %672 = vector.load %arg1[%c1302, %c0_299] : memref<1432x128xf32, #tpu.memory_space<vmem>>, vector<1x32xf32>
    %cst_300 = arith.constant dense<0.000000e+00> : vector<2x32xf32>
    %673 = tpu.matmul %660, %661, %cst_300 {dimension_numbers = #tpu.dot_dimension_numbers<[1], [0], [0], [1], [0, 0, 1, 1], [], []>} : vector<2x32xf32>, vector<32x32xf32>, vector<2x32xf32> -> vector<2x32xf32>
    %674 = vector.broadcast %662 : vector<1x32xf32> to vector<2x32xf32>
    %675 = arith.addf %673, %674 : vector<2x32xf32>
    %cst_301 = arith.constant dense<0.000000e+00> : vector<2x32xf32>
    %676 = tpu.matmul %675, %663, %cst_301 {dimension_numbers = #tpu.dot_dimension_numbers<[1], [0], [0], [1], [0, 0, 1, 1], [], []>} : vector<2x32xf32>, vector<32x32xf32>, vector<2x32xf32> -> vector<2x32xf32>
    %677 = vector.broadcast %664 : vector<1x32xf32> to vector<2x32xf32>
    %678 = arith.addf %676, %677 : vector<2x32xf32>
    %679 = arith.addf %660, %678 : vector<2x32xf32>
    %cst_302 = arith.constant dense<0.000000e+00> : vector<2xf32>
    %680 = vector.multi_reduction <add>, %679, %cst_302 [1] : vector<2x32xf32> to vector<2xf32>
    %681 = vector.shape_cast %680 : vector<2xf32> to vector<2x1xf32>
    %cst_303 = arith.constant 3.200000e+01 : f32
    %682 = vector.broadcast %cst_303 : f32 to vector<2x1xf32>
    %683 = arith.divf %681, %682 : vector<2x1xf32>
    %684 = vector.broadcast %683 : vector<2x1xf32> to vector<2x32xf32>
    %685 = arith.subf %679, %684 : vector<2x32xf32>
    %686 = arith.mulf %685, %685 : vector<2x32xf32>
    %cst_304 = arith.constant dense<0.000000e+00> : vector<2xf32>
    %687 = vector.multi_reduction <add>, %686, %cst_304 [1] : vector<2x32xf32> to vector<2xf32>
    %688 = vector.shape_cast %687 : vector<2xf32> to vector<2x1xf32>
    %cst_305 = arith.constant 3.200000e+01 : f32
    %689 = vector.broadcast %cst_305 : f32 to vector<2x1xf32>
    %690 = arith.divf %688, %689 : vector<2x1xf32>
    %cst_306 = arith.constant 9.99999974E-6 : f32
    %691 = vector.broadcast %cst_306 : f32 to vector<2x1xf32>
    %692 = arith.addf %690, %691 : vector<2x1xf32>
    %693 = math.rsqrt %692 : vector<2x1xf32>
    %694 = vector.broadcast %693 : vector<2x1xf32> to vector<2x32xf32>
    %695 = arith.mulf %685, %694 : vector<2x32xf32>
    %696 = vector.broadcast %669 : vector<1x32xf32> to vector<2x32xf32>
    %697 = arith.mulf %695, %696 : vector<2x32xf32>
    %698 = vector.broadcast %670 : vector<1x32xf32> to vector<2x32xf32>
    %699 = arith.addf %697, %698 : vector<2x32xf32>
    %cst_307 = arith.constant dense<0.000000e+00> : vector<2x128xf32>
    %700 = tpu.matmul %699, %665, %cst_307 {dimension_numbers = #tpu.dot_dimension_numbers<[1], [0], [0], [1], [0, 0, 1, 1], [], []>} : vector<2x32xf32>, vector<32x128xf32>, vector<2x128xf32> -> vector<2x128xf32>
    %701 = vector.broadcast %666 : vector<1x128xf32> to vector<2x128xf32>
    %702 = arith.addf %700, %701 : vector<2x128xf32>
    %cst_308 = arith.constant 0.000000e+00 : f32
    %703 = vector.broadcast %cst_308 : f32 to vector<2x128xf32>
    %704 = arith.maximumf %702, %703 : vector<2x128xf32>
    %cst_309 = arith.constant dense<0.000000e+00> : vector<2x32xf32>
    %705 = tpu.matmul %704, %667, %cst_309 {dimension_numbers = #tpu.dot_dimension_numbers<[1], [0], [0], [1], [0, 0, 1, 1], [], []>} : vector<2x128xf32>, vector<128x32xf32>, vector<2x32xf32> -> vector<2x32xf32>
    %706 = vector.broadcast %668 : vector<1x32xf32> to vector<2x32xf32>
    %707 = arith.addf %705, %706 : vector<2x32xf32>
    %708 = arith.addf %699, %707 : vector<2x32xf32>
    %cst_310 = arith.constant dense<0.000000e+00> : vector<2xf32>
    %709 = vector.multi_reduction <add>, %708, %cst_310 [1] : vector<2x32xf32> to vector<2xf32>
    %710 = vector.shape_cast %709 : vector<2xf32> to vector<2x1xf32>
    %cst_311 = arith.constant 3.200000e+01 : f32
    %711 = vector.broadcast %cst_311 : f32 to vector<2x1xf32>
    %712 = arith.divf %710, %711 : vector<2x1xf32>
    %713 = vector.broadcast %712 : vector<2x1xf32> to vector<2x32xf32>
    %714 = arith.subf %708, %713 : vector<2x32xf32>
    %715 = arith.mulf %714, %714 : vector<2x32xf32>
    %cst_312 = arith.constant dense<0.000000e+00> : vector<2xf32>
    %716 = vector.multi_reduction <add>, %715, %cst_312 [1] : vector<2x32xf32> to vector<2xf32>
    %717 = vector.shape_cast %716 : vector<2xf32> to vector<2x1xf32>
    %cst_313 = arith.constant 3.200000e+01 : f32
    %718 = vector.broadcast %cst_313 : f32 to vector<2x1xf32>
    %719 = arith.divf %717, %718 : vector<2x1xf32>
    %cst_314 = arith.constant 9.99999974E-6 : f32
    %720 = vector.broadcast %cst_314 : f32 to vector<2x1xf32>
    %721 = arith.addf %719, %720 : vector<2x1xf32>
    %722 = math.rsqrt %721 : vector<2x1xf32>
    %723 = vector.broadcast %722 : vector<2x1xf32> to vector<2x32xf32>
    %724 = arith.mulf %714, %723 : vector<2x32xf32>
    %725 = vector.broadcast %671 : vector<1x32xf32> to vector<2x32xf32>
    %726 = arith.mulf %724, %725 : vector<2x32xf32>
    %727 = vector.broadcast %672 : vector<1x32xf32> to vector<2x32xf32>
    %728 = arith.addf %726, %727 : vector<2x32xf32>
    %729 = vector.extract_strided_slice %728 {offsets = [1, 0], sizes = [1, 32], strides = [1, 1]} : vector<2x32xf32> to vector<1x32xf32>
    %c1384_315 = arith.constant 1384 : index
    %c32_316 = arith.constant 32 : index
    %730 = vector.load %arg1[%c1384_315, %c32_316] : memref<1432x128xf32, #tpu.memory_space<vmem>>, vector<1x32xf32>
    %731 = tpu.iota {dimensions = array<i32: 0>} : vector<2x32xi32>
    %c0_i32_317 = arith.constant 0 : i32
    %732 = vector.broadcast %c0_i32_317 : i32 to vector<2x32xi32>
    %733 = arith.cmpi eq, %731, %732 : vector<2x32xi32>
    %734 = vector.shape_cast %582 : vector<1x32xf32> to vector<1x32xf32>
    %735 = vector.broadcast %734 : vector<1x32xf32> to vector<2x32xf32>
    %736 = vector.shape_cast %730 : vector<1x32xf32> to vector<1x32xf32>
    %737 = vector.broadcast %736 : vector<1x32xf32> to vector<2x32xf32>
    %738 = arith.select %733, %735, %737 : vector<2x32xi1>, vector<2x32xf32>
    %c840_318 = arith.constant 840 : index
    %c32_319 = arith.constant 32 : index
    %739 = vector.load %arg1[%c840_318, %c32_319] : memref<1432x128xf32, #tpu.memory_space<vmem>>, vector<32x32xf32>
    %c1336 = arith.constant 1336 : index
    %c0_320 = arith.constant 0 : index
    %740 = vector.load %arg1[%c1336, %c0_320] : memref<1432x128xf32, #tpu.memory_space<vmem>>, vector<1x32xf32>
    %c872_321 = arith.constant 872 : index
    %c32_322 = arith.constant 32 : index
    %741 = vector.load %arg1[%c872_321, %c32_322] : memref<1432x128xf32, #tpu.memory_space<vmem>>, vector<32x32xf32>
    %c1337 = arith.constant 1337 : index
    %c0_323 = arith.constant 0 : index
    %742 = vector.load %arg1[%c1337, %c0_323] : memref<1432x128xf32, #tpu.memory_space<vmem>>, vector<1x32xf32>
    %c1304 = arith.constant 1304 : index
    %c0_324 = arith.constant 0 : index
    %743 = vector.load %arg1[%c1304, %c0_324] : memref<1432x128xf32, #tpu.memory_space<vmem>>, vector<32x128xf32>
    %c1343 = arith.constant 1343 : index
    %c0_325 = arith.constant 0 : index
    %744 = vector.load %arg1[%c1343, %c0_325] : memref<1432x128xf32, #tpu.memory_space<vmem>>, vector<1x128xf32>
    %c904_326 = arith.constant 904 : index
    %c32_327 = arith.constant 32 : index
    %745 = vector.load %arg1[%c904_326, %c32_327] : memref<1432x128xf32, #tpu.memory_space<vmem>>, vector<128x32xf32>
    %c1338 = arith.constant 1338 : index
    %c0_328 = arith.constant 0 : index
    %746 = vector.load %arg1[%c1338, %c0_328] : memref<1432x128xf32, #tpu.memory_space<vmem>>, vector<1x32xf32>
    %c1339 = arith.constant 1339 : index
    %c0_329 = arith.constant 0 : index
    %747 = vector.load %arg1[%c1339, %c0_329] : memref<1432x128xf32, #tpu.memory_space<vmem>>, vector<1x32xf32>
    %c1340 = arith.constant 1340 : index
    %c0_330 = arith.constant 0 : index
    %748 = vector.load %arg1[%c1340, %c0_330] : memref<1432x128xf32, #tpu.memory_space<vmem>>, vector<1x32xf32>
    %c1341 = arith.constant 1341 : index
    %c0_331 = arith.constant 0 : index
    %749 = vector.load %arg1[%c1341, %c0_331] : memref<1432x128xf32, #tpu.memory_space<vmem>>, vector<1x32xf32>
    %c1342 = arith.constant 1342 : index
    %c0_332 = arith.constant 0 : index
    %750 = vector.load %arg1[%c1342, %c0_332] : memref<1432x128xf32, #tpu.memory_space<vmem>>, vector<1x32xf32>
    %cst_333 = arith.constant dense<0.000000e+00> : vector<2x32xf32>
    %751 = tpu.matmul %738, %739, %cst_333 {dimension_numbers = #tpu.dot_dimension_numbers<[1], [0], [0], [1], [0, 0, 1, 1], [], []>} : vector<2x32xf32>, vector<32x32xf32>, vector<2x32xf32> -> vector<2x32xf32>
    %752 = vector.broadcast %740 : vector<1x32xf32> to vector<2x32xf32>
    %753 = arith.addf %751, %752 : vector<2x32xf32>
    %cst_334 = arith.constant dense<0.000000e+00> : vector<2x32xf32>
    %754 = tpu.matmul %753, %741, %cst_334 {dimension_numbers = #tpu.dot_dimension_numbers<[1], [0], [0], [1], [0, 0, 1, 1], [], []>} : vector<2x32xf32>, vector<32x32xf32>, vector<2x32xf32> -> vector<2x32xf32>
    %755 = vector.broadcast %742 : vector<1x32xf32> to vector<2x32xf32>
    %756 = arith.addf %754, %755 : vector<2x32xf32>
    %757 = arith.addf %738, %756 : vector<2x32xf32>
    %cst_335 = arith.constant dense<0.000000e+00> : vector<2xf32>
    %758 = vector.multi_reduction <add>, %757, %cst_335 [1] : vector<2x32xf32> to vector<2xf32>
    %759 = vector.shape_cast %758 : vector<2xf32> to vector<2x1xf32>
    %cst_336 = arith.constant 3.200000e+01 : f32
    %760 = vector.broadcast %cst_336 : f32 to vector<2x1xf32>
    %761 = arith.divf %759, %760 : vector<2x1xf32>
    %762 = vector.broadcast %761 : vector<2x1xf32> to vector<2x32xf32>
    %763 = arith.subf %757, %762 : vector<2x32xf32>
    %764 = arith.mulf %763, %763 : vector<2x32xf32>
    %cst_337 = arith.constant dense<0.000000e+00> : vector<2xf32>
    %765 = vector.multi_reduction <add>, %764, %cst_337 [1] : vector<2x32xf32> to vector<2xf32>
    %766 = vector.shape_cast %765 : vector<2xf32> to vector<2x1xf32>
    %cst_338 = arith.constant 3.200000e+01 : f32
    %767 = vector.broadcast %cst_338 : f32 to vector<2x1xf32>
    %768 = arith.divf %766, %767 : vector<2x1xf32>
    %cst_339 = arith.constant 9.99999974E-6 : f32
    %769 = vector.broadcast %cst_339 : f32 to vector<2x1xf32>
    %770 = arith.addf %768, %769 : vector<2x1xf32>
    %771 = math.rsqrt %770 : vector<2x1xf32>
    %772 = vector.broadcast %771 : vector<2x1xf32> to vector<2x32xf32>
    %773 = arith.mulf %763, %772 : vector<2x32xf32>
    %774 = vector.broadcast %747 : vector<1x32xf32> to vector<2x32xf32>
    %775 = arith.mulf %773, %774 : vector<2x32xf32>
    %776 = vector.broadcast %748 : vector<1x32xf32> to vector<2x32xf32>
    %777 = arith.addf %775, %776 : vector<2x32xf32>
    %cst_340 = arith.constant dense<0.000000e+00> : vector<2x128xf32>
    %778 = tpu.matmul %777, %743, %cst_340 {dimension_numbers = #tpu.dot_dimension_numbers<[1], [0], [0], [1], [0, 0, 1, 1], [], []>} : vector<2x32xf32>, vector<32x128xf32>, vector<2x128xf32> -> vector<2x128xf32>
    %779 = vector.broadcast %744 : vector<1x128xf32> to vector<2x128xf32>
    %780 = arith.addf %778, %779 : vector<2x128xf32>
    %cst_341 = arith.constant 0.000000e+00 : f32
    %781 = vector.broadcast %cst_341 : f32 to vector<2x128xf32>
    %782 = arith.maximumf %780, %781 : vector<2x128xf32>
    %cst_342 = arith.constant dense<0.000000e+00> : vector<2x32xf32>
    %783 = tpu.matmul %782, %745, %cst_342 {dimension_numbers = #tpu.dot_dimension_numbers<[1], [0], [0], [1], [0, 0, 1, 1], [], []>} : vector<2x128xf32>, vector<128x32xf32>, vector<2x32xf32> -> vector<2x32xf32>
    %784 = vector.broadcast %746 : vector<1x32xf32> to vector<2x32xf32>
    %785 = arith.addf %783, %784 : vector<2x32xf32>
    %786 = arith.addf %777, %785 : vector<2x32xf32>
    %cst_343 = arith.constant dense<0.000000e+00> : vector<2xf32>
    %787 = vector.multi_reduction <add>, %786, %cst_343 [1] : vector<2x32xf32> to vector<2xf32>
    %788 = vector.shape_cast %787 : vector<2xf32> to vector<2x1xf32>
    %cst_344 = arith.constant 3.200000e+01 : f32
    %789 = vector.broadcast %cst_344 : f32 to vector<2x1xf32>
    %790 = arith.divf %788, %789 : vector<2x1xf32>
    %791 = vector.broadcast %790 : vector<2x1xf32> to vector<2x32xf32>
    %792 = arith.subf %786, %791 : vector<2x32xf32>
    %793 = arith.mulf %792, %792 : vector<2x32xf32>
    %cst_345 = arith.constant dense<0.000000e+00> : vector<2xf32>
    %794 = vector.multi_reduction <add>, %793, %cst_345 [1] : vector<2x32xf32> to vector<2xf32>
    %795 = vector.shape_cast %794 : vector<2xf32> to vector<2x1xf32>
    %cst_346 = arith.constant 3.200000e+01 : f32
    %796 = vector.broadcast %cst_346 : f32 to vector<2x1xf32>
    %797 = arith.divf %795, %796 : vector<2x1xf32>
    %cst_347 = arith.constant 9.99999974E-6 : f32
    %798 = vector.broadcast %cst_347 : f32 to vector<2x1xf32>
    %799 = arith.addf %797, %798 : vector<2x1xf32>
    %800 = math.rsqrt %799 : vector<2x1xf32>
    %801 = vector.broadcast %800 : vector<2x1xf32> to vector<2x32xf32>
    %802 = arith.mulf %792, %801 : vector<2x32xf32>
    %803 = vector.broadcast %749 : vector<1x32xf32> to vector<2x32xf32>
    %804 = arith.mulf %802, %803 : vector<2x32xf32>
    %805 = vector.broadcast %750 : vector<1x32xf32> to vector<2x32xf32>
    %806 = arith.addf %804, %805 : vector<2x32xf32>
    %c1032_348 = arith.constant 1032 : index
    %c32_349 = arith.constant 32 : index
    %807 = vector.load %arg1[%c1032_348, %c32_349] : memref<1432x128xf32, #tpu.memory_space<vmem>>, vector<32x32xf32>
    %c1376 = arith.constant 1376 : index
    %c0_350 = arith.constant 0 : index
    %808 = vector.load %arg1[%c1376, %c0_350] : memref<1432x128xf32, #tpu.memory_space<vmem>>, vector<1x32xf32>
    %c1064_351 = arith.constant 1064 : index
    %c32_352 = arith.constant 32 : index
    %809 = vector.load %arg1[%c1064_351, %c32_352] : memref<1432x128xf32, #tpu.memory_space<vmem>>, vector<32x32xf32>
    %c1377 = arith.constant 1377 : index
    %c0_353 = arith.constant 0 : index
    %810 = vector.load %arg1[%c1377, %c0_353] : memref<1432x128xf32, #tpu.memory_space<vmem>>, vector<1x32xf32>
    %c1344 = arith.constant 1344 : index
    %c0_354 = arith.constant 0 : index
    %811 = vector.load %arg1[%c1344, %c0_354] : memref<1432x128xf32, #tpu.memory_space<vmem>>, vector<32x128xf32>
    %c1383 = arith.constant 1383 : index
    %c0_355 = arith.constant 0 : index
    %812 = vector.load %arg1[%c1383, %c0_355] : memref<1432x128xf32, #tpu.memory_space<vmem>>, vector<1x128xf32>
    %c1096_356 = arith.constant 1096 : index
    %c32_357 = arith.constant 32 : index
    %813 = vector.load %arg1[%c1096_356, %c32_357] : memref<1432x128xf32, #tpu.memory_space<vmem>>, vector<128x32xf32>
    %c1378 = arith.constant 1378 : index
    %c0_358 = arith.constant 0 : index
    %814 = vector.load %arg1[%c1378, %c0_358] : memref<1432x128xf32, #tpu.memory_space<vmem>>, vector<1x32xf32>
    %c1379 = arith.constant 1379 : index
    %c0_359 = arith.constant 0 : index
    %815 = vector.load %arg1[%c1379, %c0_359] : memref<1432x128xf32, #tpu.memory_space<vmem>>, vector<1x32xf32>
    %c1380 = arith.constant 1380 : index
    %c0_360 = arith.constant 0 : index
    %816 = vector.load %arg1[%c1380, %c0_360] : memref<1432x128xf32, #tpu.memory_space<vmem>>, vector<1x32xf32>
    %c1381 = arith.constant 1381 : index
    %c0_361 = arith.constant 0 : index
    %817 = vector.load %arg1[%c1381, %c0_361] : memref<1432x128xf32, #tpu.memory_space<vmem>>, vector<1x32xf32>
    %c1382 = arith.constant 1382 : index
    %c0_362 = arith.constant 0 : index
    %818 = vector.load %arg1[%c1382, %c0_362] : memref<1432x128xf32, #tpu.memory_space<vmem>>, vector<1x32xf32>
    %cst_363 = arith.constant dense<0.000000e+00> : vector<2x32xf32>
    %819 = tpu.matmul %806, %807, %cst_363 {dimension_numbers = #tpu.dot_dimension_numbers<[1], [0], [0], [1], [0, 0, 1, 1], [], []>} : vector<2x32xf32>, vector<32x32xf32>, vector<2x32xf32> -> vector<2x32xf32>
    %820 = vector.broadcast %808 : vector<1x32xf32> to vector<2x32xf32>
    %821 = arith.addf %819, %820 : vector<2x32xf32>
    %cst_364 = arith.constant dense<0.000000e+00> : vector<2x32xf32>
    %822 = tpu.matmul %821, %809, %cst_364 {dimension_numbers = #tpu.dot_dimension_numbers<[1], [0], [0], [1], [0, 0, 1, 1], [], []>} : vector<2x32xf32>, vector<32x32xf32>, vector<2x32xf32> -> vector<2x32xf32>
    %823 = vector.broadcast %810 : vector<1x32xf32> to vector<2x32xf32>
    %824 = arith.addf %822, %823 : vector<2x32xf32>
    %825 = arith.addf %806, %824 : vector<2x32xf32>
    %cst_365 = arith.constant dense<0.000000e+00> : vector<2xf32>
    %826 = vector.multi_reduction <add>, %825, %cst_365 [1] : vector<2x32xf32> to vector<2xf32>
    %827 = vector.shape_cast %826 : vector<2xf32> to vector<2x1xf32>
    %cst_366 = arith.constant 3.200000e+01 : f32
    %828 = vector.broadcast %cst_366 : f32 to vector<2x1xf32>
    %829 = arith.divf %827, %828 : vector<2x1xf32>
    %830 = vector.broadcast %829 : vector<2x1xf32> to vector<2x32xf32>
    %831 = arith.subf %825, %830 : vector<2x32xf32>
    %832 = arith.mulf %831, %831 : vector<2x32xf32>
    %cst_367 = arith.constant dense<0.000000e+00> : vector<2xf32>
    %833 = vector.multi_reduction <add>, %832, %cst_367 [1] : vector<2x32xf32> to vector<2xf32>
    %834 = vector.shape_cast %833 : vector<2xf32> to vector<2x1xf32>
    %cst_368 = arith.constant 3.200000e+01 : f32
    %835 = vector.broadcast %cst_368 : f32 to vector<2x1xf32>
    %836 = arith.divf %834, %835 : vector<2x1xf32>
    %cst_369 = arith.constant 9.99999974E-6 : f32
    %837 = vector.broadcast %cst_369 : f32 to vector<2x1xf32>
    %838 = arith.addf %836, %837 : vector<2x1xf32>
    %839 = math.rsqrt %838 : vector<2x1xf32>
    %840 = vector.broadcast %839 : vector<2x1xf32> to vector<2x32xf32>
    %841 = arith.mulf %831, %840 : vector<2x32xf32>
    %842 = vector.broadcast %815 : vector<1x32xf32> to vector<2x32xf32>
    %843 = arith.mulf %841, %842 : vector<2x32xf32>
    %844 = vector.broadcast %816 : vector<1x32xf32> to vector<2x32xf32>
    %845 = arith.addf %843, %844 : vector<2x32xf32>
    %cst_370 = arith.constant dense<0.000000e+00> : vector<2x128xf32>
    %846 = tpu.matmul %845, %811, %cst_370 {dimension_numbers = #tpu.dot_dimension_numbers<[1], [0], [0], [1], [0, 0, 1, 1], [], []>} : vector<2x32xf32>, vector<32x128xf32>, vector<2x128xf32> -> vector<2x128xf32>
    %847 = vector.broadcast %812 : vector<1x128xf32> to vector<2x128xf32>
    %848 = arith.addf %846, %847 : vector<2x128xf32>
    %cst_371 = arith.constant 0.000000e+00 : f32
    %849 = vector.broadcast %cst_371 : f32 to vector<2x128xf32>
    %850 = arith.maximumf %848, %849 : vector<2x128xf32>
    %cst_372 = arith.constant dense<0.000000e+00> : vector<2x32xf32>
    %851 = tpu.matmul %850, %813, %cst_372 {dimension_numbers = #tpu.dot_dimension_numbers<[1], [0], [0], [1], [0, 0, 1, 1], [], []>} : vector<2x128xf32>, vector<128x32xf32>, vector<2x32xf32> -> vector<2x32xf32>
    %852 = vector.broadcast %814 : vector<1x32xf32> to vector<2x32xf32>
    %853 = arith.addf %851, %852 : vector<2x32xf32>
    %854 = arith.addf %845, %853 : vector<2x32xf32>
    %cst_373 = arith.constant dense<0.000000e+00> : vector<2xf32>
    %855 = vector.multi_reduction <add>, %854, %cst_373 [1] : vector<2x32xf32> to vector<2xf32>
    %856 = vector.shape_cast %855 : vector<2xf32> to vector<2x1xf32>
    %cst_374 = arith.constant 3.200000e+01 : f32
    %857 = vector.broadcast %cst_374 : f32 to vector<2x1xf32>
    %858 = arith.divf %856, %857 : vector<2x1xf32>
    %859 = vector.broadcast %858 : vector<2x1xf32> to vector<2x32xf32>
    %860 = arith.subf %854, %859 : vector<2x32xf32>
    %861 = arith.mulf %860, %860 : vector<2x32xf32>
    %cst_375 = arith.constant dense<0.000000e+00> : vector<2xf32>
    %862 = vector.multi_reduction <add>, %861, %cst_375 [1] : vector<2x32xf32> to vector<2xf32>
    %863 = vector.shape_cast %862 : vector<2xf32> to vector<2x1xf32>
    %cst_376 = arith.constant 3.200000e+01 : f32
    %864 = vector.broadcast %cst_376 : f32 to vector<2x1xf32>
    %865 = arith.divf %863, %864 : vector<2x1xf32>
    %cst_377 = arith.constant 9.99999974E-6 : f32
    %866 = vector.broadcast %cst_377 : f32 to vector<2x1xf32>
    %867 = arith.addf %865, %866 : vector<2x1xf32>
    %868 = math.rsqrt %867 : vector<2x1xf32>
    %869 = vector.broadcast %868 : vector<2x1xf32> to vector<2x32xf32>
    %870 = arith.mulf %860, %869 : vector<2x32xf32>
    %871 = vector.broadcast %817 : vector<1x32xf32> to vector<2x32xf32>
    %872 = arith.mulf %870, %871 : vector<2x32xf32>
    %873 = vector.broadcast %818 : vector<1x32xf32> to vector<2x32xf32>
    %874 = arith.addf %872, %873 : vector<2x32xf32>
    %875 = vector.extract_strided_slice %874 {offsets = [1, 0], sizes = [1, 32], strides = [1, 1]} : vector<2x32xf32> to vector<1x32xf32>
    %c1392 = arith.constant 1392 : index
    %c0_378 = arith.constant 0 : index
    %876 = vector.load %arg1[%c1392, %c0_378] : memref<1432x128xf32, #tpu.memory_space<vmem>>, vector<32x128xf32>
    %cst_379 = arith.constant dense<0.000000e+00> : vector<1x128xf32>
    %877 = tpu.matmul %580, %876, %cst_379 {dimension_numbers = #tpu.dot_dimension_numbers<[1], [0], [0], [1], [0, 0, 1, 1], [], []>} : vector<1x32xf32>, vector<32x128xf32>, vector<1x128xf32> -> vector<1x128xf32>
    %c1424 = arith.constant 1424 : index
    %c0_380 = arith.constant 0 : index
    %878 = vector.load %arg1[%c1424, %c0_380] : memref<1432x128xf32, #tpu.memory_space<vmem>>, vector<1x128xf32>
    %879 = arith.addf %877, %878 : vector<1x128xf32>
    %c0_381 = arith.constant 0 : index
    %880 = memref.load %arg2[%c0_381] : memref<1xf32, #tpu.memory_space<smem>>
    %881 = vector.broadcast %880 : f32 to vector<1x128xf32>
    %882 = arith.subf %879, %881 : vector<1x128xf32>
    %c1425 = arith.constant 1425 : index
    %c0_382 = arith.constant 0 : index
    %883 = vector.load %arg1[%c1425, %c0_382] : memref<1432x128xf32, #tpu.memory_space<vmem>>, vector<1x128xf32>
    %884 = vector.broadcast %729 : vector<1x32xf32> to vector<4x32xf32>
    %885 = arith.subf %884, %581 : vector<4x32xf32>
    %886 = arith.subf %875, %583 : vector<1x32xf32>
    %887 = arith.mulf %885, %885 : vector<4x32xf32>
    %888 = vector.shape_cast %887 : vector<4x32xf32> to vector<1x4x32xf32>
    %cst_383 = arith.constant dense<0.000000e+00> : vector<1xf32>
    %889 = vector.multi_reduction <add>, %888, %cst_383 [1, 2] : vector<1x4x32xf32> to vector<1xf32>
    %890 = vector.shape_cast %889 : vector<1xf32> to vector<1x1x1xf32>
    %891 = vector.extract %890[0, 0, 0] : f32 from vector<1x1x1xf32>
    %cst_384 = arith.constant 7.812500e-03 : f32
    %892 = arith.mulf %891, %cst_384 : f32
    %893 = arith.mulf %886, %886 : vector<1x32xf32>
    %894 = vector.shape_cast %893 : vector<1x32xf32> to vector<1x1x32xf32>
    %cst_385 = arith.constant dense<0.000000e+00> : vector<1xf32>
    %895 = vector.multi_reduction <add>, %894, %cst_385 [1, 2] : vector<1x1x32xf32> to vector<1xf32>
    %896 = vector.shape_cast %895 : vector<1xf32> to vector<1x1x1xf32>
    %897 = vector.extract %896[0, 0, 0] : f32 from vector<1x1x1xf32>
    %cst_386 = arith.constant 3.125000e-02 : f32
    %898 = arith.mulf %897, %cst_386 : f32
    %899 = arith.mulf %882, %882 : vector<1x128xf32>
    %900 = arith.mulf %899, %883 : vector<1x128xf32>
    %901 = vector.shape_cast %900 : vector<1x128xf32> to vector<1x1x128xf32>
    %cst_387 = arith.constant dense<0.000000e+00> : vector<1xf32>
    %902 = vector.multi_reduction <add>, %901, %cst_387 [1, 2] : vector<1x1x128xf32> to vector<1xf32>
    %903 = vector.shape_cast %902 : vector<1xf32> to vector<1x1x1xf32>
    %904 = vector.extract %903[0, 0, 0] : f32 from vector<1x1x1xf32>
    %cst_388 = arith.constant 0.0833333358 : f32
    %905 = arith.mulf %904, %cst_388 : f32
    %906 = arith.addf %892, %898 : f32
    %907 = arith.addf %906, %905 : f32
    %c0_389 = arith.constant 0 : index
    %908 = memref.load %arg3[%c0_389] : memref<1xf32, #tpu.memory_space<smem>>
    memref.store %907, %arg3[%c0_389] : memref<1xf32, #tpu.memory_space<smem>>
    return
  }
}

</mosaic_0001>

<llo_original>
// kernel: _cjepa_core.1
$region0: #{_cjepa_core.1}
  #allocation0 [shape = 'u32[]', space=smem, size = 0x4, offset = 0x4, fixed_abs, tag = 'smem constant byte address 0x4 - core index']
  #allocation1 [shape = 'u32[144,128]{1,0:T(1,128)}', space=vmem, size = 0x12000, scoped, tag = 'internal scratch']
  #allocation2 [shape = 'f32[1]{0:T(128)S(6)}', space=smem, size = 0x200, scoped, tag = 'scoped memory for _cjepa_core.1']
  %s0 = inlined_call_operand.vmem [shape: f32[32,128], index: 0, kind: input, shape index: {}]
  %s1 = inlined_call_operand.hbm [shape: f32[1432,128], index: 1, kind: input, shape index: {}]
  %s2 = inlined_call_operand.<no memory space> [shape: f32[1], index: 2, kind: input, shape index: {}]
  %s3 = inlined_call_operand.hbm [shape: f32[1], index: 3, kind: output, shape index: {}]
  %s4 = sld [smem:[#allocation0]]
  $region26: #{_cjepa_core.1} parent=0
    _
  %s6 = ssub.s32 1, %s4
  %s7 = scalar_select 0, %s6, %s4
  %8 = sst [smem:[#allocation2]] %s2
  $region1: #{_cjepa_core.1} parent=0
    #allocation3 [shape = 'u8[733184]{0}', space=vmem, size = 0xb3000, scoped, tag = 'input window, operand 1, single buffered']
    #allocation4 [shape = 's32[1]{0}', space=sflag, size = 0x4, scoped, tag = 'scoped memory for _cjepa_core.1']
    #allocation5 [shape = 's32[1]{0}', space=sflag, size = 0x4, scoped, tag = 'scoped memory for _cjepa_core.1']
    #allocation6 [shape = 'u8[512]{0}', space=smem, size = 0x200, scoped, tag = 'output window, operand 0, single buffered']
    %9 = vsyncpa [#allocation4], 0
    %10 = vsyncpa [#allocation5], 0
    // Predicated region
    $region2: #{_cjepa_core.1} parent=1 // pred_check
      _
    $region3: #{_cjepa_core.1} parent=1 // pred_check_branch
      %12 = sbr.rel (0) target = $region5
    $region4: #{_cjepa_core.1} parent=1 // pred_region
      _
    $region5: #{_cjepa_core.1} parent=1 // pred_fallthru
      _
    // Predicated region
    $region6: #{_cjepa_core.1} parent=1 // pred_check
      _
    $region7: #{_cjepa_core.1} parent=1 // pred_check_branch
      %14 = sbr.rel (0) target = $region9
    $region8: #{_cjepa_core.1} parent=1 // pred_region
      %s16 = ssub.s32 22912, 22912
      %17 = vsyncadd [#allocation4], %s16
      %s18 = sshll.u32 [#allocation3], 4
      %s19 = int_to_ptr.vmem [resolvable:$true] %s18
      %24 = dma.hbm_to_vmem [thread:$0]  %s1, 22912, %s19, [#allocation4], 128, 128, 8
    $region9: #{_cjepa_core.1} parent=1 // pred_fallthru
      _
    // Predicated region
    $region10: #{_cjepa_core.1} parent=1 // pred_check
      _
    $region11: #{_cjepa_core.1} parent=1 // pred_check_branch
      %26 = sbr.rel (0) target = $region13
    $region12: #{_cjepa_core.1} parent=1 // pred_region
      _
    $region13: #{_cjepa_core.1} parent=1 // pred_fallthru
      _
    // Predicated region
    $region14: #{_cjepa_core.1} parent=1 // pred_check
      _
    $region15: #{_cjepa_core.1} parent=1 // pred_check_branch
      %28 = sbr.rel (0) target = $region17
    $region16: #{_cjepa_core.1} parent=1 // pred_region
      %29 = dma.done [#allocation4], 22912
    $region17: #{_cjepa_core.1} parent=1 // pred_fallthru
      _
    %v30 = vld [vmem:[%s0] sm:$0xff]
    %v31 = vld [vmem:[#allocation3] sm:$0xff]
    %v32 = vld [vmem:[#allocation3 + $0x8] sm:$0xff]
    %v33 = vld [vmem:[#allocation3 + $0x10] sm:$0xff]
    %v34 = vld [vmem:[#allocation3 + $0x18] sm:$0xff]
    %v35 = vld [vmem:[#allocation3 + $0x20] sm:$0xff]
    %v36 = vld [vmem:[#allocation3 + $0x28] sm:$0xff]
    %v37 = vld [vmem:[#allocation3 + $0x30] sm:$0xff]
    %v38 = vld [vmem:[#allocation3 + $0x38] sm:$0xff]
    %v39 = vld [vmem:[#allocation3 + $0x40] sm:$0xff]
    %v40 = vld [vmem:[#allocation3 + $0x48] sm:$0xff]
    %v41 = vld [vmem:[#allocation3 + $0x50] sm:$0xff]
    %v42 = vld [vmem:[#allocation3 + $0x58] sm:$0xff]
    %v43 = vld [vmem:[#allocation3 + $0x60] sm:$0xff]
    %v44 = vld [vmem:[#allocation3 + $0x68] sm:$0xff]
    %v45 = vld [vmem:[#allocation3 + $0x70] sm:$0xff]
    %v46 = vld [vmem:[#allocation3 + $0x78] sm:$0xff]
    %v47 = vld [vmem:[#allocation3 + $0x340] sm:$0x1]
    %v48 = vlaneseq
    %v49 = vshrl.u32 %v48, 7
    %v50 = vsub.s32 0, %v49
    %v51 = vrot.slane %v47, %v50
    %52 = vmatprep.subr.mxu0 0.0
    %53 = vmatpush1.msra.mxu0 %v46
    %54 = vmatprep.subr.mxu0 0.0
    %55 = vmatpush1.msra.mxu0 %v45
    %56 = vmatprep.subr.mxu0 0.0
    %57 = vmatpush1.msra.mxu0 %v44
    %58 = vmatprep.subr.mxu0 0.0
    %59 = vmatpush1.msra.mxu0 %v43
    %60 = vmatprep.subr.mxu0 0.0
    %61 = vmatpush1.msra.mxu0 %v42
    %62 = vmatprep.subr.mxu0 0.0
    %63 = vmatpush1.msra.mxu0 %v41
    %64 = vmatprep.subr.mxu0 0.0
    %65 = vmatpush1.msra.mxu0 %v40
    %66 = vmatprep.subr.mxu0 0.0
    %67 = vmatpush1.msra.mxu0 %v39
    %68 = vmatprep.subr.mxu0 0.0
    %69 = vmatpush1.msra.mxu0 %v38
    %70 = vmatprep.subr.mxu0 0.0
    %71 = vmatpush1.msra.mxu0 %v37
    %72 = vmatprep.subr.mxu0 0.0
    %73 = vmatpush1.msra.mxu0 %v36
    %74 = vmatprep.subr.mxu0 0.0
    %75 = vmatpush1.msra.mxu0 %v35
    %76 = vmatprep.subr.mxu0 0.0
    %77 = vmatpush1.msra.mxu0 %v34
    %78 = vmatprep.subr.mxu0 0.0
    %79 = vmatpush1.msra.mxu0 %v33
    %80 = vmatprep.subr.mxu0 0.0
    %81 = vmatpush1.msra.mxu0 %v32
    %82 = vmatprep.subr.mxu0 0.0
    %83 = vmatpush1.msra.mxu0 %v31
    %84 = vmatprep.subr.mxu0 0.0
    %85 = vmatpush2.msra.mxu0 0.0
    %86 = vmatprep.subr.mxu0 0.0
    %87 = vmatpush2.msra.mxu0 0.0
    %88 = vmatprep.subr.mxu0 0.0
    %89 = vmatpush2.msra.mxu0 0.0
    %90 = vmatprep.subr.mxu0 0.0
    %91 = vmatpush2.msra.mxu0 0.0
    %92 = vmatprep.subr.mxu0 0.0
    %93 = vmatpush2.msra.mxu0 0.0
    %94 = vmatprep.subr.mxu0 0.0
    %95 = vmatpush2.msra.mxu0 0.0
    %96 = vmatprep.subr.mxu0 0.0
    %97 = vmatpush2.msra.mxu0 0.0
    %98 = vmatprep.subr.mxu0 0.0
    %99 = vmatpush2.msra.mxu0 0.0
    %100 = vmatprep.subr.mxu0 0.0
    %101 = vmatpush2.msra.mxu0 0.0
    %102 = vmatprep.subr.mxu0 0.0
    %103 = vmatpush2.msra.mxu0 0.0
    %104 = vmatprep.subr.mxu0 0.0
    %105 = vmatpush2.msra.mxu0 0.0
    %106 = vmatprep.subr.mxu0 0.0
    %107 = vmatpush2.msra.mxu0 0.0
    %108 = vmatprep.subr.mxu0 0.0
    %109 = vmatpush2.msra.mxu0 0.0
    %110 = vmatprep.subr.mxu0 0.0
    %111 = vmatpush2.msra.mxu0 0.0
    %112 = vmatprep.subr.mxu0 0.0
    %113 = vmatpush2.msra.mxu0 0.0
    %114 = vmatprep.subr.mxu0 0.0
    %115 = vmatpush2.msra.mxu0 0.0
    %116 = vmatprep.mubr.f32.mxu0 0.0
    %117 = vmatmul.mubr.f32.gmra.mxu0 %v30
    %v118 = vpop.f32.mrf.mxu0
    %v119 = vadd.f32 %v51, %v118
    %v120 = vpop.f32.mrf.mxu0
    %121 = vdwg.mxu0
    %v122 = vld [vmem:[#allocation3 + $0x341] sm:$0x1]
    %v123 = vlaneseq
    %v124 = vshrl.u32 %v123, 7
    %v125 = vsub.s32 0, %v124
    %v126 = vrot.slane %v122, %v125
    %v127 = vadd.f32 %v119, %v126
    %v128 = vld [vmem:[#allocation3 + $0x80] sm:$0xff]
    %v129 = vld [vmem:[#allocation3 + $0x88] sm:$0xff]
    %v130 = vld [vmem:[#allocation3 + $0x90] sm:$0xff]
    %v131 = vld [vmem:[#allocation3 + $0x98] sm:$0xff]
    %v132 = vld [vmem:[#allocation3 + $0x220] sm:$0x1]
    %v133 = vld [vmem:[#allocation3 + $0xa0] sm:$0xff]
    %v134 = vld [vmem:[#allocation3 + $0xa8] sm:$0xff]
    %v135 = vld [vmem:[#allocation3 + $0xb0] sm:$0xff]
    %v136 = vld [vmem:[#allocation3 + $0xb8] sm:$0xff]
    %v137 = vld [vmem:[#allocation3 + $0x221] sm:$0x1]
    %v138 = vld [vmem:[#allocation3 + $0x200] sm:$0xff]
    %v139 = vld [vmem:[#allocation3 + $0x208] sm:$0xff]
    %v140 = vld [vmem:[#allocation3 + $0x210] sm:$0xff]
    %v141 = vld [vmem:[#allocation3 + $0x218] sm:$0xff]
    %v142 = vld [vmem:[#allocation3 + $0x227] sm:$0x1]
    %v143 = vld [vmem:[#allocation3 + $0xc0] sm:$0xff]
    %v144 = vld [vmem:[#allocation3 + $0xc8] sm:$0xff]
    %v145 = vld [vmem:[#allocation3 + $0xd0] sm:$0xff]
    %v146 = vld [vmem:[#allocation3 + $0xd8] sm:$0xff]
    %v147 = vld [vmem:[#allocation3 + $0xe0] sm:$0xff]
    %v148 = vld [vmem:[#allocation3 + $0xe8] sm:$0xff]
    %v149 = vld [vmem:[#allocation3 + $0xf0] sm:$0xff]
    %v150 = vld [vmem:[#allocation3 + $0xf8] sm:$0xff]
    %v151 = vld [vmem:[#allocation3 + $0x100] sm:$0xff]
    %v152 = vld [vmem:[#allocation3 + $0x108] sm:$0xff]
    %v153 = vld [vmem:[#allocation3 + $0x110] sm:$0xff]
    %v154 = vld [vmem:[#allocation3 + $0x118] sm:$0xff]
    %v155 = vld [vmem:[#allocation3 + $0x120] sm:$0xff]
    %v156 = vld [vmem:[#allocation3 + $0x128] sm:$0xff]
    %v157 = vld [vmem:[#allocation3 + $0x130] sm:$0xff]
    %v158 = vld [vmem:[#allocation3 + $0x138] sm:$0xff]
    %v159 = vld [vmem:[#allocation3 + $0x222] sm:$0x1]
    %v160 = vld [vmem:[#allocation3 + $0x223] sm:$0x1]
    %v161 = vld [vmem:[#allocation3 + $0x224] sm:$0x1]
    %v162 = vld [vmem:[#allocation3 + $0x225] sm:$0x1]
    %v163 = vld [vmem:[#allocation3 + $0x226] sm:$0x1]
    %v164 = vlaneseq
    %v165 = vshrl.u32 %v164, 7
    %v166 = vsub.s32 0, %v165
    %v167 = vrot.slane %v132, %v166
    %vm168 = vcmask 261120
    %v170 = vsel %vm168, %v127, 0
    %172 = vmatprep.subr.mxu0 0.0
    %173 = vmatpush1.msra.mxu0 0.0
    %174 = vmatprep.subr.mxu0 0.0
    %175 = vmatpush1.msra.mxu0 0.0
    %176 = vmatprep.subr.mxu0 0.0
    %177 = vmatpush1.msra.mxu0 0.0
    %178 = vmatprep.subr.mxu0 0.0
    %179 = vmatpush1.msra.mxu0 0.0
    %180 = vmatprep.subr.mxu0 0.0
    %181 = vmatpush1.msra.mxu0 0.0
    %182 = vmatprep.subr.mxu0 0.0
    %183 = vmatpush1.msra.mxu0 0.0
    %184 = vmatprep.subr.mxu0 0.0
    %185 = vmatpush1.msra.mxu0 0.0
    %186 = vmatprep.subr.mxu0 0.0
    %187 = vmatpush1.msra.mxu0 0.0
    %188 = vmatprep.subr.mxu0 0.0
    %189 = vmatpush1.msra.mxu0 0.0
    %190 = vmatprep.subr.mxu0 0.0
    %191 = vmatpush1.msra.mxu0 0.0
    %192 = vmatprep.subr.mxu0 0.0
    %193 = vmatpush1.msra.mxu0 0.0
    %194 = vmatprep.subr.mxu0 0.0
    %195 = vmatpush1.msra.mxu0 0.0
    %196 = vmatprep.subr.mxu0 0.0
    %197 = vmatpush1.msra.mxu0 %v131
    %198 = vmatprep.subr.mxu0 0.0
    %199 = vmatpush1.msra.mxu0 %v130
    %200 = vmatprep.subr.mxu0 0.0
    %201 = vmatpush1.msra.mxu0 %v129
    %202 = vmatprep.subr.mxu0 0.0
    %203 = vmatpush1.msra.mxu0 %v128
    %204 = vmatprep.subr.mxu0 0.0
    %205 = vmatpush2.msra.mxu0 0.0
    %206 = vmatprep.subr.mxu0 0.0
    %207 = vmatpush2.msra.mxu0 0.0
    %208 = vmatprep.subr.mxu0 0.0
    %209 = vmatpush2.msra.mxu0 0.0
    %210 = vmatprep.subr.mxu0 0.0
    %211 = vmatpush2.msra.mxu0 0.0
    %212 = vmatprep.subr.mxu0 0.0
    %213 = vmatpush2.msra.mxu0 0.0
    %214 = vmatprep.subr.mxu0 0.0
    %215 = vmatpush2.msra.mxu0 0.0
    %216 = vmatprep.subr.mxu0 0.0
    %217 = vmatpush2.msra.mxu0 0.0
    %218 = vmatprep.subr.mxu0 0.0
    %219 = vmatpush2.msra.mxu0 0.0
    %220 = vmatprep.subr.mxu0 0.0
    %221 = vmatpush2.msra.mxu0 0.0
    %222 = vmatprep.subr.mxu0 0.0
    %223 = vmatpush2.msra.mxu0 0.0
    %224 = vmatprep.subr.mxu0 0.0
    %225 = vmatpush2.msra.mxu0 0.0
    %226 = vmatprep.subr.mxu0 0.0
    %227 = vmatpush2.msra.mxu0 0.0
    %228 = vmatprep.subr.mxu0 0.0
    %229 = vmatpush2.msra.mxu0 0.0
    %230 = vmatprep.subr.mxu0 0.0
    %231 = vmatpush2.msra.mxu0 0.0
    %232 = vmatprep.subr.mxu0 0.0
    %233 = vmatpush2.msra.mxu0 0.0
    %234 = vmatprep.subr.mxu0 0.0
    %235 = vmatpush2.msra.mxu0 0.0
    %236 = vmatprep.mubr.f32.mxu0 0.0
    %237 = vmatmul.mubr.f32.gmra.mxu0 %v170
    %v238 = vpop.f32.mrf.mxu0
    %v239 = vadd.f32 %v167, %v238
    %v240 = vpop.f32.mrf.mxu0
    %241 = vdwg.mxu0
    %v242 = vlaneseq
    %v243 = vshrl.u32 %v242, 7
    %v244 = vsub.s32 0, %v243
    %v245 = vrot.slane %v137, %v244
    %v247 = vsel %vm168, %v239, 0
    %249 = vmatprep.subr.mxu0 0.0
    %250 = vmatpush1.msra.mxu0 0.0
    %251 = vmatprep.subr.mxu0 0.0
    %252 = vmatpush1.msra.mxu0 0.0
    %253 = vmatprep.subr.mxu0 0.0
    %254 = vmatpush1.msra.mxu0 0.0
    %255 = vmatprep.subr.mxu0 0.0
    %256 = vmatpush1.msra.mxu0 0.0
    %257 = vmatprep.subr.mxu0 0.0
    %258 = vmatpush1.msra.mxu0 0.0
    %259 = vmatprep.subr.mxu0 0.0
    %260 = vmatpush1.msra.mxu0 0.0
    %261 = vmatprep.subr.mxu0 0.0
    %262 = vmatpush1.msra.mxu0 0.0
    %263 = vmatprep.subr.mxu0 0.0
    %264 = vmatpush1.msra.mxu0 0.0
    %265 = vmatprep.subr.mxu0 0.0
    %266 = vmatpush1.msra.mxu0 0.0
    %267 = vmatprep.subr.mxu0 0.0
    %268 = vmatpush1.msra.mxu0 0.0
    %269 = vmatprep.subr.mxu0 0.0
    %270 = vmatpush1.msra.mxu0 0.0
    %271 = vmatprep.subr.mxu0 0.0
    %272 = vmatpush1.msra.mxu0 0.0
    %273 = vmatprep.subr.mxu0 0.0
    %274 = vmatpush1.msra.mxu0 %v136
    %275 = vmatprep.subr.mxu0 0.0
    %276 = vmatpush1.msra.mxu0 %v135
    %277 = vmatprep.subr.mxu0 0.0
    %278 = vmatpush1.msra.mxu0 %v134
    %279 = vmatprep.subr.mxu0 0.0
    %280 = vmatpush1.msra.mxu0 %v133
    %281 = vmatprep.subr.mxu0 0.0
    %282 = vmatpush2.msra.mxu0 0.0
    %283 = vmatprep.subr.mxu0 0.0
    %284 = vmatpush2.msra.mxu0 0.0
    %285 = vmatprep.subr.mxu0 0.0
    %286 = vmatpush2.msra.mxu0 0.0
    %287 = vmatprep.subr.mxu0 0.0
    %288 = vmatpush2.msra.mxu0 0.0
    %289 = vmatprep.subr.mxu0 0.0
    %290 = vmatpush2.msra.mxu0 0.0
    %291 = vmatprep.subr.mxu0 0.0
    %292 = vmatpush2.msra.mxu0 0.0
    %293 = vmatprep.subr.mxu0 0.0
    %294 = vmatpush2.msra.mxu0 0.0
    %295 = vmatprep.subr.mxu0 0.0
    %296 = vmatpush2.msra.mxu0 0.0
    %297 = vmatprep.subr.mxu0 0.0
    %298 = vmatpush2.msra.mxu0 0.0
    %299 = vmatprep.subr.mxu0 0.0
    %300 = vmatpush2.msra.mxu0 0.0
    %301 = vmatprep.subr.mxu0 0.0
    %302 = vmatpush2.msra.mxu0 0.0
    %303 = vmatprep.subr.mxu0 0.0
    %304 = vmatpush2.msra.mxu0 0.0
    %305 = vmatprep.subr.mxu0 0.0
    %306 = vmatpush2.msra.mxu0 0.0
    %307 = vmatprep.subr.mxu0 0.0
    %308 = vmatpush2.msra.mxu0 0.0
    %309 = vmatprep.subr.mxu0 0.0
    %310 = vmatpush2.msra.mxu0 0.0
    %311 = vmatprep.subr.mxu0 0.0
    %312 = vmatpush2.msra.mxu0 0.0
    %313 = vmatprep.mubr.f32.mxu0 0.0
    %314 = vmatmul.mubr.f32.gmra.mxu0 %v247
    %v315 = vpop.f32.mrf.mxu0
    %v316 = vadd.f32 %v245, %v315
    %v317 = vpop.f32.mrf.mxu0
    %318 = vdwg.mxu0
    %v319 = vadd.f32 %v127, %v316
    %v320 = vsel %vm168, %v319, 0.0
    %321 = vadd.xlane.f32.xlu0 %v320
    %v322 = vpop.xlane.xlu0 %321
    %v323 = vrcp.pop 32.0
    %v324 = vmul.f32 %v322, %v323
    %v325 = vsub.f32 %v319, %v324
    %v326 = vmul.f32 %v325, %v325
    %v327 = vsel %vm168, %v326, 0.0
    %328 = vadd.xlane.f32.xlu0 %v327
    %v329 = vpop.xlane.xlu0 %328
    %v330 = vmul.f32 %v329, %v323
    %v331 = vadd.f32 %v330, 1e-05
    %v332 = vrsqrt.pop %v331
    %v333 = vmul.f32 %v325, %v332
    %v334 = vlaneseq
    %v335 = vshrl.u32 %v334, 7
    %v336 = vsub.s32 0, %v335
    %v337 = vrot.slane %v160, %v336
    %v338 = vmul.f32 %v333, %v337
    %v339 = vlaneseq
    %v340 = vshrl.u32 %v339, 7
    %v341 = vsub.s32 0, %v340
    %v342 = vrot.slane %v161, %v341
    %v343 = vadd.f32 %v338, %v342
    %v344 = vlaneseq
    %v345 = vshrl.u32 %v344, 7
    %v346 = vsub.s32 0, %v345
    %v347 = vrot.slane %v142, %v346
    %v349 = vsel %vm168, %v343, 0
    %351 = vmatprep.subr.mxu0 0.0
    %352 = vmatpush1.msra.mxu0 0.0
    %353 = vmatprep.subr.mxu0 0.0
    %354 = vmatpush1.msra.mxu0 0.0
    %355 = vmatprep.subr.mxu0 0.0
    %356 = vmatpush1.msra.mxu0 0.0
    %357 = vmatprep.subr.mxu0 0.0
    %358 = vmatpush1.msra.mxu0 0.0
    %359 = vmatprep.subr.mxu0 0.0
    %360 = vmatpush1.msra.mxu0 0.0
    %361 = vmatprep.subr.mxu0 0.0
    %362 = vmatpush1.msra.mxu0 0.0
    %363 = vmatprep.subr.mxu0 0.0
    %364 = vmatpush1.msra.mxu0 0.0
    %365 = vmatprep.subr.mxu0 0.0
    %366 = vmatpush1.msra.mxu0 0.0
    %367 = vmatprep.subr.mxu0 0.0
    %368 = vmatpush1.msra.mxu0 0.0
    %369 = vmatprep.subr.mxu0 0.0
    %370 = vmatpush1.msra.mxu0 0.0
    %371 = vmatprep.subr.mxu0 0.0
    %372 = vmatpush1.msra.mxu0 0.0
    %373 = vmatprep.subr.mxu0 0.0
    %374 = vmatpush1.msra.mxu0 0.0
    %375 = vmatprep.subr.mxu0 0.0
    %376 = vmatpush1.msra.mxu0 %v141
    %377 = vmatprep.subr.mxu0 0.0
    %378 = vmatpush1.msra.mxu0 %v140
    %379 = vmatprep.subr.mxu0 0.0
    %380 = vmatpush1.msra.mxu0 %v139
    %381 = vmatprep.subr.mxu0 0.0
    %382 = vmatpush1.msra.mxu0 %v138
    %383 = vmatprep.subr.mxu0 0.0
    %384 = vmatpush2.msra.mxu0 0.0
    %385 = vmatprep.subr.mxu0 0.0
    %386 = vmatpush2.msra.mxu0 0.0
    %387 = vmatprep.subr.mxu0 0.0
    %388 = vmatpush2.msra.mxu0 0.0
    %389 = vmatprep.subr.mxu0 0.0
    %390 = vmatpush2.msra.mxu0 0.0
    %391 = vmatprep.subr.mxu0 0.0
    %392 = vmatpush2.msra.mxu0 0.0
    %393 = vmatprep.subr.mxu0 0.0
    %394 = vmatpush2.msra.mxu0 0.0
    %395 = vmatprep.subr.mxu0 0.0
    %396 = vmatpush2.msra.mxu0 0.0
    %397 = vmatprep.subr.mxu0 0.0
    %398 = vmatpush2.msra.mxu0 0.0
    %399 = vmatprep.subr.mxu0 0.0
    %400 = vmatpush2.msra.mxu0 0.0
    %401 = vmatprep.subr.mxu0 0.0
    %402 = vmatpush2.msra.mxu0 0.0
    %403 = vmatprep.subr.mxu0 0.0
    %404 = vmatpush2.msra.mxu0 0.0
    %405 = vmatprep.subr.mxu0 0.0
    %406 = vmatpush2.msra.mxu0 0.0
    %407 = vmatprep.subr.mxu0 0.0
    %408 = vmatpush2.msra.mxu0 0.0
    %409 = vmatprep.subr.mxu0 0.0
    %410 = vmatpush2.msra.mxu0 0.0
    %411 = vmatprep.subr.mxu0 0.0
    %412 = vmatpush2.msra.mxu0 0.0
    %413 = vmatprep.subr.mxu0 0.0
    %414 = vmatpush2.msra.mxu0 0.0
    %415 = vmatprep.mubr.f32.mxu0 0.0
    %416 = vmatmul.mubr.f32.gmra.mxu0 %v349
    %v417 = vpop.f32.mrf.mxu0
    %v418 = vadd.f32 %v347, %v417
    %v419 = vpop.f32.mrf.mxu0
    %420 = vdwg.mxu0
    %v421 = vmax.f32 %v418, 0.0
    %v422 = vlaneseq
    %v423 = vshrl.u32 %v422, 7
    %v424 = vsub.s32 0, %v423
    %v425 = vrot.slane %v159, %v424
    %426 = vmatprep.subr.mxu0 0.0
    %427 = vmatpush1.msra.mxu0 %v158
    %428 = vmatprep.subr.mxu0 0.0
    %429 = vmatpush1.msra.mxu0 %v157
    %430 = vmatprep.subr.mxu0 0.0
    %431 = vmatpush1.msra.mxu0 %v156
    %432 = vmatprep.subr.mxu0 0.0
    %433 = vmatpush1.msra.mxu0 %v155
    %434 = vmatprep.subr.mxu0 0.0
    %435 = vmatpush1.msra.mxu0 %v154
    %436 = vmatprep.subr.mxu0 0.0
    %437 = vmatpush1.msra.mxu0 %v153
    %438 = vmatprep.subr.mxu0 0.0
    %439 = vmatpush1.msra.mxu0 %v152
    %440 = vmatprep.subr.mxu0 0.0
    %441 = vmatpush1.msra.mxu0 %v151
    %442 = vmatprep.subr.mxu0 0.0
    %443 = vmatpush1.msra.mxu0 %v150
    %444 = vmatprep.subr.mxu0 0.0
    %445 = vmatpush1.msra.mxu0 %v149
    %446 = vmatprep.subr.mxu0 0.0
    %447 = vmatpush1.msra.mxu0 %v148
    %448 = vmatprep.subr.mxu0 0.0
    %449 = vmatpush1.msra.mxu0 %v147
    %450 = vmatprep.subr.mxu0 0.0
    %451 = vmatpush1.msra.mxu0 %v146
    %452 = vmatprep.subr.mxu0 0.0
    %453 = vmatpush1.msra.mxu0 %v145
    %454 = vmatprep.subr.mxu0 0.0
    %455 = vmatpush1.msra.mxu0 %v144
    %456 = vmatprep.subr.mxu0 0.0
    %457 = vmatpush1.msra.mxu0 %v143
    %458 = vmatprep.subr.mxu0 0.0
    %459 = vmatpush2.msra.mxu0 0.0
    %460 = vmatprep.subr.mxu0 0.0
    %461 = vmatpush2.msra.mxu0 0.0
    %462 = vmatprep.subr.mxu0 0.0
    %463 = vmatpush2.msra.mxu0 0.0
    %464 = vmatprep.subr.mxu0 0.0
    %465 = vmatpush2.msra.mxu0 0.0
    %466 = vmatprep.subr.mxu0 0.0
    %467 = vmatpush2.msra.mxu0 0.0
    %468 = vmatprep.subr.mxu0 0.0
    %469 = vmatpush2.msra.mxu0 0.0
    %470 = vmatprep.subr.mxu0 0.0
    %471 = vmatpush2.msra.mxu0 0.0
    %472 = vmatprep.subr.mxu0 0.0
    %473 = vmatpush2.msra.mxu0 0.0
    %474 = vmatprep.subr.mxu0 0.0
    %475 = vmatpush2.msra.mxu0 0.0
    %476 = vmatprep.subr.mxu0 0.0
    %477 = vmatpush2.msra.mxu0 0.0
    %478 = vmatprep.subr.mxu0 0.0
    %479 = vmatpush2.msra.mxu0 0.0
    %480 = vmatprep.subr.mxu0 0.0
    %481 = vmatpush2.msra.mxu0 0.0
    %482 = vmatprep.subr.mxu0 0.0
    %483 = vmatpush2.msra.mxu0 0.0
    %484 = vmatprep.subr.mxu0 0.0
    %485 = vmatpush2.msra.mxu0 0.0
    %486 = vmatprep.subr.mxu0 0.0
    %487 = vmatpush2.msra.mxu0 0.0
    %488 = vmatprep.subr.mxu0 0.0
    %489 = vmatpush2.msra.mxu0 0.0
    %490 = vmatprep.mubr.f32.mxu0 0.0
    %491 = vmatmul.mubr.f32.gmra.mxu0 %v421
    %v492 = vpop.f32.mrf.mxu0
    %v493 = vadd.f32 %v425, %v492
    %v494 = vpop.f32.mrf.mxu0
    %495 = vdwg.mxu0
    %v496 = vadd.f32 %v343, %v493
    %v497 = vsel %vm168, %v496, 0.0
    %498 = vadd.xlane.f32.xlu0 %v497
    %v499 = vpop.xlane.xlu0 %498
    %v500 = vmul.f32 %v499, %v323
    %v501 = vsub.f32 %v496, %v500
    %v502 = vmul.f32 %v501, %v501
    %v503 = vsel %vm168, %v502, 0.0
    %504 = vadd.xlane.f32.xlu0 %v503
    %v505 = vpop.xlane.xlu0 %504
    %v506 = vmul.f32 %v505, %v323
    %v507 = vadd.f32 %v506, 1e-05
    %v508 = vrsqrt.pop %v507
    %v509 = vmul.f32 %v501, %v508
    %v510 = vlaneseq
    %v511 = vshrl.u32 %v510, 7
    %v512 = vsub.s32 0, %v511
    %v513 = vrot.slane %v162, %v512
    %v514 = vmul.f32 %v509, %v513
    %v515 = vlaneseq
    %v516 = vshrl.u32 %v515, 7
    %v517 = vsub.s32 0, %v516
    %v518 = vrot.slane %v163, %v517
    %v519 = vadd.f32 %v514, %v518
    %v520 = vld [vmem:[#allocation3 + $0x140] sm:$0xff]
    %v521 = vld [vmem:[#allocation3 + $0x148] sm:$0xff]
    %v522 = vld [vmem:[#allocation3 + $0x150] sm:$0xff]
    %v523 = vld [vmem:[#allocation3 + $0x158] sm:$0xff]
    %v524 = vld [vmem:[#allocation3 + $0x248] sm:$0x1]
    %v525 = vld [vmem:[#allocation3 + $0x160] sm:$0xff]
    %v526 = vld [vmem:[#allocation3 + $0x168] sm:$0xff]
    %v527 = vld [vmem:[#allocation3 + $0x170] sm:$0xff]
    %v528 = vld [vmem:[#allocation3 + $0x178] sm:$0xff]
    %v529 = vld [vmem:[#allocation3 + $0x249] sm:$0x1]
    %v530 = vld [vmem:[#allocation3 + $0x228] sm:$0xff]
    %v531 = vld [vmem:[#allocation3 + $0x230] sm:$0xff]
    %v532 = vld [vmem:[#allocation3 + $0x238] sm:$0xff]
    %v533 = vld [vmem:[#allocation3 + $0x240] sm:$0xff]
    %v534 = vld [vmem:[#allocation3 + $0x24f] sm:$0x1]
    %v535 = vld [vmem:[#allocation3 + $0x180] sm:$0xff]
    %v536 = vld [vmem:[#allocation3 + $0x188] sm:$0xff]
    %v537 = vld [vmem:[#allocation3 + $0x190] sm:$0xff]
    %v538 = vld [vmem:[#allocation3 + $0x198] sm:$0xff]
    %v539 = vld [vmem:[#allocation3 + $0x1a0] sm:$0xff]
    %v540 = vld [vmem:[#allocation3 + $0x1a8] sm:$0xff]
    %v541 = vld [vmem:[#allocation3 + $0x1b0] sm:$0xff]
    %v542 = vld [vmem:[#allocation3 + $0x1b8] sm:$0xff]
    %v543 = vld [vmem:[#allocation3 + $0x1c0] sm:$0xff]
    %v544 = vld [vmem:[#allocation3 + $0x1c8] sm:$0xff]
    %v545 = vld [vmem:[#allocation3 + $0x1d0] sm:$0xff]
    %v546 = vld [vmem:[#allocation3 + $0x1d8] sm:$0xff]
    %v547 = vld [vmem:[#allocation3 + $0x1e0] sm:$0xff]
    %v548 = vld [vmem:[#allocation3 + $0x1e8] sm:$0xff]
    %v549 = vld [vmem:[#allocation3 + $0x1f0] sm:$0xff]
    %v550 = vld [vmem:[#allocation3 + $0x1f8] sm:$0xff]
    %v551 = vld [vmem:[#allocation3 + $0x24a] sm:$0x1]
    %v552 = vld [vmem:[#allocation3 + $0x24b] sm:$0x1]
    %v553 = vld [vmem:[#allocation3 + $0x24c] sm:$0x1]
    %v554 = vld [vmem:[#allocation3 + $0x24d] sm:$0x1]
    %v555 = vld [vmem:[#allocation3 + $0x24e] sm:$0x1]
    %v556 = vlaneseq
    %v557 = vshrl.u32 %v556, 7
    %v558 = vsub.s32 0, %v557
    %v559 = vrot.slane %v524, %v558
    %v561 = vsel %vm168, %v519, 0
    %563 = vmatprep.subr.mxu0 0.0
    %564 = vmatpush1.msra.mxu0 0.0
    %565 = vmatprep.subr.mxu0 0.0
    %566 = vmatpush1.msra.mxu0 0.0
    %567 = vmatprep.subr.mxu0 0.0
    %568 = vmatpush1.msra.mxu0 0.0
    %569 = vmatprep.subr.mxu0 0.0
    %570 = vmatpush1.msra.mxu0 0.0
    %571 = vmatprep.subr.mxu0 0.0
    %572 = vmatpush1.msra.mxu0 0.0
    %573 = vmatprep.subr.mxu0 0.0
    %574 = vmatpush1.msra.mxu0 0.0
    %575 = vmatprep.subr.mxu0 0.0
    %576 = vmatpush1.msra.mxu0 0.0
    %577 = vmatprep.subr.mxu0 0.0
    %578 = vmatpush1.msra.mxu0 0.0
    %579 = vmatprep.subr.mxu0 0.0
    %580 = vmatpush1.msra.mxu0 0.0
    %581 = vmatprep.subr.mxu0 0.0
    %582 = vmatpush1.msra.mxu0 0.0
    %583 = vmatprep.subr.mxu0 0.0
    %584 = vmatpush1.msra.mxu0 0.0
    %585 = vmatprep.subr.mxu0 0.0
    %586 = vmatpush1.msra.mxu0 0.0
    %587 = vmatprep.subr.mxu0 0.0
    %588 = vmatpush1.msra.mxu0 %v523
    %589 = vmatprep.subr.mxu0 0.0
    %590 = vmatpush1.msra.mxu0 %v522
    %591 = vmatprep.subr.mxu0 0.0
    %592 = vmatpush1.msra.mxu0 %v521
    %593 = vmatprep.subr.mxu0 0.0
    %594 = vmatpush1.msra.mxu0 %v520
    %595 = vmatprep.subr.mxu0 0.0
    %596 = vmatpush2.msra.mxu0 0.0
    %597 = vmatprep.subr.mxu0 0.0
    %598 = vmatpush2.msra.mxu0 0.0
    %599 = vmatprep.subr.mxu0 0.0
    %600 = vmatpush2.msra.mxu0 0.0
    %601 = vmatprep.subr.mxu0 0.0
    %602 = vmatpush2.msra.mxu0 0.0
    %603 = vmatprep.subr.mxu0 0.0
    %604 = vmatpush2.msra.mxu0 0.0
    %605 = vmatprep.subr.mxu0 0.0
    %606 = vmatpush2.msra.mxu0 0.0
    %607 = vmatprep.subr.mxu0 0.0
    %608 = vmatpush2.msra.mxu0 0.0
    %609 = vmatprep.subr.mxu0 0.0
    %610 = vmatpush2.msra.mxu0 0.0
    %611 = vmatprep.subr.mxu0 0.0
    %612 = vmatpush2.msra.mxu0 0.0
    %613 = vmatprep.subr.mxu0 0.0
    %614 = vmatpush2.msra.mxu0 0.0
    %615 = vmatprep.subr.mxu0 0.0
    %616 = vmatpush2.msra.mxu0 0.0
    %617 = vmatprep.subr.mxu0 0.0
    %618 = vmatpush2.msra.mxu0 0.0
    %619 = vmatprep.subr.mxu0 0.0
    %620 = vmatpush2.msra.mxu0 0.0
    %621 = vmatprep.subr.mxu0 0.0
    %622 = vmatpush2.msra.mxu0 0.0
    %623 = vmatprep.subr.mxu0 0.0
    %624 = vmatpush2.msra.mxu0 0.0
    %625 = vmatprep.subr.mxu0 0.0
    %626 = vmatpush2.msra.mxu0 0.0
    %627 = vmatprep.mubr.f32.mxu0 0.0
    %628 = vmatmul.mubr.f32.gmra.mxu0 %v561
    %v629 = vpop.f32.mrf.mxu0
    %v630 = vadd.f32 %v559, %v629
    %v631 = vpop.f32.mrf.mxu0
    %632 = vdwg.mxu0
    %v633 = vlaneseq
    %v634 = vshrl.u32 %v633, 7
    %v635 = vsub.s32 0, %v634
    %v636 = vrot.slane %v529, %v635
    %v638 = vsel %vm168, %v630, 0
    %640 = vmatprep.subr.mxu0 0.0
    %641 = vmatpush1.msra.mxu0 0.0
    %642 = vmatprep.subr.mxu0 0.0
    %643 = vmatpush1.msra.mxu0 0.0
    %644 = vmatprep.subr.mxu0 0.0
    %645 = vmatpush1.msra.mxu0 0.0
    %646 = vmatprep.subr.mxu0 0.0
    %647 = vmatpush1.msra.mxu0 0.0
    %648 = vmatprep.subr.mxu0 0.0
    %649 = vmatpush1.msra.mxu0 0.0
    %650 = vmatprep.subr.mxu0 0.0
    %651 = vmatpush1.msra.mxu0 0.0
    %652 = vmatprep.subr.mxu0 0.0
    %653 = vmatpush1.msra.mxu0 0.0
    %654 = vmatprep.subr.mxu0 0.0
    %655 = vmatpush1.msra.mxu0 0.0
    %656 = vmatprep.subr.mxu0 0.0
    %657 = vmatpush1.msra.mxu0 0.0
    %658 = vmatprep.subr.mxu0 0.0
    %659 = vmatpush1.msra.mxu0 0.0
    %660 = vmatprep.subr.mxu0 0.0
    %661 = vmatpush1.msra.mxu0 0.0
    %662 = vmatprep.subr.mxu0 0.0
    %663 = vmatpush1.msra.mxu0 0.0
    %664 = vmatprep.subr.mxu0 0.0
    %665 = vmatpush1.msra.mxu0 %v528
    %666 = vmatprep.subr.mxu0 0.0
    %667 = vmatpush1.msra.mxu0 %v527
    %668 = vmatprep.subr.mxu0 0.0
    %669 = vmatpush1.msra.mxu0 %v526
    %670 = vmatprep.subr.mxu0 0.0
    %671 = vmatpush1.msra.mxu0 %v525
    %672 = vmatprep.subr.mxu0 0.0
    %673 = vmatpush2.msra.mxu0 0.0
    %674 = vmatprep.subr.mxu0 0.0
    %675 = vmatpush2.msra.mxu0 0.0
    %676 = vmatprep.subr.mxu0 0.0
    %677 = vmatpush2.msra.mxu0 0.0
    %678 = vmatprep.subr.mxu0 0.0
    %679 = vmatpush2.msra.mxu0 0.0
    %680 = vmatprep.subr.mxu0 0.0
    %681 = vmatpush2.msra.mxu0 0.0
    %682 = vmatprep.subr.mxu0 0.0
    %683 = vmatpush2.msra.mxu0 0.0
    %684 = vmatprep.subr.mxu0 0.0
    %685 = vmatpush2.msra.mxu0 0.0
    %686 = vmatprep.subr.mxu0 0.0
    %687 = vmatpush2.msra.mxu0 0.0
    %688 = vmatprep.subr.mxu0 0.0
    %689 = vmatpush2.msra.mxu0 0.0
    %690 = vmatprep.subr.mxu0 0.0
    %691 = vmatpush2.msra.mxu0 0.0
    %692 = vmatprep.subr.mxu0 0.0
    %693 = vmatpush2.msra.mxu0 0.0
    %694 = vmatprep.subr.mxu0 0.0
    %695 = vmatpush2.msra.mxu0 0.0
    %696 = vmatprep.subr.mxu0 0.0
    %697 = vmatpush2.msra.mxu0 0.0
    %698 = vmatprep.subr.mxu0 0.0
    %699 = vmatpush2.msra.mxu0 0.0
    %700 = vmatprep.subr.mxu0 0.0
    %701 = vmatpush2.msra.mxu0 0.0
    %702 = vmatprep.subr.mxu0 0.0
    %703 = vmatpush2.msra.mxu0 0.0
    %704 = vmatprep.mubr.f32.mxu0 0.0
    %705 = vmatmul.mubr.f32.gmra.mxu0 %v638
    %v706 = vpop.f32.mrf.mxu0
    %v707 = vadd.f32 %v636, %v706
    %v708 = vpop.f32.mrf.mxu0
    %709 = vdwg.mxu0
    %v710 = vadd.f32 %v519, %v707
    %v711 = vsel %vm168, %v710, 0.0
    %712 = vadd.xlane.f32.xlu0 %v711
    %v713 = vpop.xlane.xlu0 %712
    %v714 = vmul.f32 %v713, %v323
    %v715 = vsub.f32 %v710, %v714
    %v716 = vmul.f32 %v715, %v715
    %v717 = vsel %vm168, %v716, 0.0
    %718 = vadd.xlane.f32.xlu0 %v717
    %v719 = vpop.xlane.xlu0 %718
    %v720 = vmul.f32 %v719, %v323
    %v721 = vadd.f32 %v720, 1e-05
    %v722 = vrsqrt.pop %v721
    %v723 = vmul.f32 %v715, %v722
    %v724 = vlaneseq
    %v725 = vshrl.u32 %v724, 7
    %v726 = vsub.s32 0, %v725
    %v727 = vrot.slane %v552, %v726
    %v728 = vmul.f32 %v723, %v727
    %v729 = vlaneseq
    %v730 = vshrl.u32 %v729, 7
    %v731 = vsub.s32 0, %v730
    %v732 = vrot.slane %v553, %v731
    %v733 = vadd.f32 %v728, %v732
    %v734 = vlaneseq
    %v735 = vshrl.u32 %v734, 7
    %v736 = vsub.s32 0, %v735
    %v737 = vrot.slane %v534, %v736
    %v739 = vsel %vm168, %v733, 0
    %741 = vmatprep.subr.mxu0 0.0
    %742 = vmatpush1.msra.mxu0 0.0
    %743 = vmatprep.subr.mxu0 0.0
    %744 = vmatpush1.msra.mxu0 0.0
    %745 = vmatprep.subr.mxu0 0.0
    %746 = vmatpush1.msra.mxu0 0.0
    %747 = vmatprep.subr.mxu0 0.0
    %748 = vmatpush1.msra.mxu0 0.0
    %749 = vmatprep.subr.mxu0 0.0
    %750 = vmatpush1.msra.mxu0 0.0
    %751 = vmatprep.subr.mxu0 0.0
    %752 = vmatpush1.msra.mxu0 0.0
    %753 = vmatprep.subr.mxu0 0.0
    %754 = vmatpush1.msra.mxu0 0.0
    %755 = vmatprep.subr.mxu0 0.0
    %756 = vmatpush1.msra.mxu0 0.0
    %757 = vmatprep.subr.mxu0 0.0
    %758 = vmatpush1.msra.mxu0 0.0
    %759 = vmatprep.subr.mxu0 0.0
    %760 = vmatpush1.msra.mxu0 0.0
    %761 = vmatprep.subr.mxu0 0.0
    %762 = vmatpush1.msra.mxu0 0.0
    %763 = vmatprep.subr.mxu0 0.0
    %764 = vmatpush1.msra.mxu0 0.0
    %765 = vmatprep.subr.mxu0 0.0
    %766 = vmatpush1.msra.mxu0 %v533
    %767 = vmatprep.subr.mxu0 0.0
    %768 = vmatpush1.msra.mxu0 %v532
    %769 = vmatprep.subr.mxu0 0.0
    %770 = vmatpush1.msra.mxu0 %v531
    %771 = vmatprep.subr.mxu0 0.0
    %772 = vmatpush1.msra.mxu0 %v530
    %773 = vmatprep.subr.mxu0 0.0
    %774 = vmatpush2.msra.mxu0 0.0
    %775 = vmatprep.subr.mxu0 0.0
    %776 = vmatpush2.msra.mxu0 0.0
    %777 = vmatprep.subr.mxu0 0.0
    %778 = vmatpush2.msra.mxu0 0.0
    %779 = vmatprep.subr.mxu0 0.0
    %780 = vmatpush2.msra.mxu0 0.0
    %781 = vmatprep.subr.mxu0 0.0
    %782 = vmatpush2.msra.mxu0 0.0
    %783 = vmatprep.subr.mxu0 0.0
    %784 = vmatpush2.msra.mxu0 0.0
    %785 = vmatprep.subr.mxu0 0.0
    %786 = vmatpush2.msra.mxu0 0.0
    %787 = vmatprep.subr.mxu0 0.0
    %788 = vmatpush2.msra.mxu0 0.0
    %789 = vmatprep.subr.mxu0 0.0
    %790 = vmatpush2.msra.mxu0 0.0
    %791 = vmatprep.subr.mxu0 0.0
    %792 = vmatpush2.msra.mxu0 0.0
    %793 = vmatprep.subr.mxu0 0.0
    %794 = vmatpush2.msra.mxu0 0.0
    %795 = vmatprep.subr.mxu0 0.0
    %796 = vmatpush2.msra.mxu0 0.0
    %797 = vmatprep.subr.mxu0 0.0
    %798 = vmatpush2.msra.mxu0 0.0
    %799 = vmatprep.subr.mxu0 0.0
    %800 = vmatpush2.msra.mxu0 0.0
    %801 = vmatprep.subr.mxu0 0.0
    %802 = vmatpush2.msra.mxu0 0.0
    %803 = vmatprep.subr.mxu0 0.0
    %804 = vmatpush2.msra.mxu0 0.0
    %805 = vmatprep.mubr.f32.mxu0 0.0
    %806 = vmatmul.mubr.f32.gmra.mxu0 %v739
    %v807 = vpop.f32.mrf.mxu0
    %v808 = vadd.f32 %v737, %v807
    %v809 = vpop.f32.mrf.mxu0
    %810 = vdwg.mxu0
    %v811 = vmax.f32 %v808, 0.0
    %v812 = vlaneseq
    %v813 = vshrl.u32 %v812, 7
    %v814 = vsub.s32 0, %v813
    %v815 = vrot.slane %v551, %v814
    %816 = vmatprep.subr.mxu0 0.0
    %817 = vmatpush1.msra.mxu0 %v550
    %818 = vmatprep.subr.mxu0 0.0
    %819 = vmatpush1.msra.mxu0 %v549
    %820 = vmatprep.subr.mxu0 0.0
    %821 = vmatpush1.msra.mxu0 %v548
    %822 = vmatprep.subr.mxu0 0.0
    %823 = vmatpush1.msra.mxu0 %v547
    %824 = vmatprep.subr.mxu0 0.0
    %825 = vmatpush1.msra.mxu0 %v546
    %826 = vmatprep.subr.mxu0 0.0
    %827 = vmatpush1.msra.mxu0 %v545
    %828 = vmatprep.subr.mxu0 0.0
    %829 = vmatpush1.msra.mxu0 %v544
    %830 = vmatprep.subr.mxu0 0.0
    %831 = vmatpush1.msra.mxu0 %v543
    %832 = vmatprep.subr.mxu0 0.0
    %833 = vmatpush1.msra.mxu0 %v542
    %834 = vmatprep.subr.mxu0 0.0
    %835 = vmatpush1.msra.mxu0 %v541
    %836 = vmatprep.subr.mxu0 0.0
    %837 = vmatpush1.msra.mxu0 %v540
    %838 = vmatprep.subr.mxu0 0.0
    %839 = vmatpush1.msra.mxu0 %v539
    %840 = vmatprep.subr.mxu0 0.0
    %841 = vmatpush1.msra.mxu0 %v538
    %842 = vmatprep.subr.mxu0 0.0
    %843 = vmatpush1.msra.mxu0 %v537
    %844 = vmatprep.subr.mxu0 0.0
    %845 = vmatpush1.msra.mxu0 %v536
    %846 = vmatprep.subr.mxu0 0.0
    %847 = vmatpush1.msra.mxu0 %v535
    %848 = vmatprep.subr.mxu0 0.0
    %849 = vmatpush2.msra.mxu0 0.0
    %850 = vmatprep.subr.mxu0 0.0
    %851 = vmatpush2.msra.mxu0 0.0
    %852 = vmatprep.subr.mxu0 0.0
    %853 = vmatpush2.msra.mxu0 0.0
    %854 = vmatprep.subr.mxu0 0.0
    %855 = vmatpush2.msra.mxu0 0.0
    %856 = vmatprep.subr.mxu0 0.0
    %857 = vmatpush2.msra.mxu0 0.0
    %858 = vmatprep.subr.mxu0 0.0
    %859 = vmatpush2.msra.mxu0 0.0
    %860 = vmatprep.subr.mxu0 0.0
    %861 = vmatpush2.msra.mxu0 0.0
    %862 = vmatprep.subr.mxu0 0.0
    %863 = vmatpush2.msra.mxu0 0.0
    %864 = vmatprep.subr.mxu0 0.0
    %865 = vmatpush2.msra.mxu0 0.0
    %866 = vmatprep.subr.mxu0 0.0
    %867 = vmatpush2.msra.mxu0 0.0
    %868 = vmatprep.subr.mxu0 0.0
    %869 = vmatpush2.msra.mxu0 0.0
    %870 = vmatprep.subr.mxu0 0.0
    %871 = vmatpush2.msra.mxu0 0.0
    %872 = vmatprep.subr.mxu0 0.0
    %873 = vmatpush2.msra.mxu0 0.0
    %874 = vmatprep.subr.mxu0 0.0
    %875 = vmatpush2.msra.mxu0 0.0
    %876 = vmatprep.subr.mxu0 0.0
    %877 = vmatpush2.msra.mxu0 0.0
    %878 = vmatprep.subr.mxu0 0.0
    %879 = vmatpush2.msra.mxu0 0.0
    %880 = vmatprep.mubr.f32.mxu0 0.0
    %881 = vmatmul.mubr.f32.gmra.mxu0 %v811
    %v882 = vpop.f32.mrf.mxu0
    %v883 = vadd.f32 %v815, %v882
    %v884 = vpop.f32.mrf.mxu0
    %885 = vdwg.mxu0
    %v886 = vadd.f32 %v733, %v883
    %v887 = vsel %vm168, %v886, 0.0
    %888 = vadd.xlane.f32.xlu0 %v887
    %v889 = vpop.xlane.xlu0 %888
    %v890 = vmul.f32 %v889, %v323
    %v891 = vsub.f32 %v886, %v890
    %v892 = vmul.f32 %v891, %v891
    %v893 = vsel %vm168, %v892, 0.0
    %894 = vadd.xlane.f32.xlu0 %v893
    %v895 = vpop.xlane.xlu0 %894
    %v896 = vmul.f32 %v895, %v323
    %v897 = vadd.f32 %v896, 1e-05
    %v898 = vrsqrt.pop %v897
    %v899 = vmul.f32 %v891, %v898
    %v900 = vlaneseq
    %v901 = vshrl.u32 %v900, 7
    %v902 = vsub.s32 0, %v901
    %v903 = vrot.slane %v554, %v902
    %v904 = vmul.f32 %v899, %v903
    %v905 = vlaneseq
    %v906 = vshrl.u32 %v905, 7
    %v907 = vsub.s32 0, %v906
    %v908 = vrot.slane %v555, %v907
    %v909 = vadd.f32 %v904, %v908
    %v910 = vld [vmem:[%s0 + $0x8] sm:$0xff]
    %927 = vrot.lane.b32.xlu0 %v31, 96
    %v928 = vpop.permute.xlu0 %927
    %929 = vrot.lane.b32.xlu0 %v32, 96
    %v930 = vpop.permute.xlu0 %929
    %931 = vrot.lane.b32.xlu0 %v33, 96
    %v932 = vpop.permute.xlu0 %931
    %933 = vrot.lane.b32.xlu0 %v34, 96
    %v934 = vpop.permute.xlu0 %933
    %935 = vrot.lane.b32.xlu0 %v35, 96
    %v936 = vpop.permute.xlu0 %935
    %937 = vrot.lane.b32.xlu0 %v36, 96
    %v938 = vpop.permute.xlu0 %937
    %939 = vrot.lane.b32.xlu0 %v37, 96
    %v940 = vpop.permute.xlu0 %939
    %941 = vrot.lane.b32.xlu0 %v38, 96
    %v942 = vpop.permute.xlu0 %941
    %943 = vrot.lane.b32.xlu0 %v39, 96
    %v944 = vpop.permute.xlu0 %943
    %945 = vrot.lane.b32.xlu0 %v40, 96
    %v946 = vpop.permute.xlu0 %945
    %947 = vrot.lane.b32.xlu0 %v41, 96
    %v948 = vpop.permute.xlu0 %947
    %949 = vrot.lane.b32.xlu0 %v42, 96
    %v950 = vpop.permute.xlu0 %949
    %951 = vrot.lane.b32.xlu0 %v43, 96
    %v952 = vpop.permute.xlu0 %951
    %953 = vrot.lane.b32.xlu0 %v44, 96
    %v954 = vpop.permute.xlu0 %953
    %955 = vrot.lane.b32.xlu0 %v45, 96
    %v956 = vpop.permute.xlu0 %955
    %957 = vrot.lane.b32.xlu0 %v46, 96
    %v958 = vpop.permute.xlu0 %957
    %976 = vrot.lane.b32.xlu0 %v51, 96
    %v977 = vpop.permute.xlu0 %976
    %979 = vmatprep.subr.mxu0 0.0
    %980 = vmatpush1.msra.mxu0 %v958
    %981 = vmatprep.subr.mxu0 0.0
    %982 = vmatpush1.msra.mxu0 %v956
    %983 = vmatprep.subr.mxu0 0.0
    %984 = vmatpush1.msra.mxu0 %v954
    %985 = vmatprep.subr.mxu0 0.0
    %986 = vmatpush1.msra.mxu0 %v952
    %987 = vmatprep.subr.mxu0 0.0
    %988 = vmatpush1.msra.mxu0 %v950
    %989 = vmatprep.subr.mxu0 0.0
    %990 = vmatpush1.msra.mxu0 %v948
    %991 = vmatprep.subr.mxu0 0.0
    %992 = vmatpush1.msra.mxu0 %v946
    %993 = vmatprep.subr.mxu0 0.0
    %994 = vmatpush1.msra.mxu0 %v944
    %995 = vmatprep.subr.mxu0 0.0
    %996 = vmatpush1.msra.mxu0 %v942
    %997 = vmatprep.subr.mxu0 0.0
    %998 = vmatpush1.msra.mxu0 %v940
    %999 = vmatprep.subr.mxu0 0.0
    %1000 = vmatpush1.msra.mxu0 %v938
    %1001 = vmatprep.subr.mxu0 0.0
    %1002 = vmatpush1.msra.mxu0 %v936
    %1003 = vmatprep.subr.mxu0 0.0
    %1004 = vmatpush1.msra.mxu0 %v934
    %1005 = vmatprep.subr.mxu0 0.0
    %1006 = vmatpush1.msra.mxu0 %v932
    %1007 = vmatprep.subr.mxu0 0.0
    %1008 = vmatpush1.msra.mxu0 %v930
    %1009 = vmatprep.subr.mxu0 0.0
    %1010 = vmatpush1.msra.mxu0 %v928
    %1011 = vmatprep.subr.mxu0 0.0
    %1012 = vmatpush2.msra.mxu0 0.0
    %1013 = vmatprep.subr.mxu0 0.0
    %1014 = vmatpush2.msra.mxu0 0.0
    %1015 = vmatprep.subr.mxu0 0.0
    %1016 = vmatpush2.msra.mxu0 0.0
    %1017 = vmatprep.subr.mxu0 0.0
    %1018 = vmatpush2.msra.mxu0 0.0
    %1019 = vmatprep.subr.mxu0 0.0
    %1020 = vmatpush2.msra.mxu0 0.0
    %1021 = vmatprep.subr.mxu0 0.0
    %1022 = vmatpush2.msra.mxu0 0.0
    %1023 = vmatprep.subr.mxu0 0.0
    %1024 = vmatpush2.msra.mxu0 0.0
    %1025 = vmatprep.subr.mxu0 0.0
    %1026 = vmatpush2.msra.mxu0 0.0
    %1027 = vmatprep.subr.mxu0 0.0
    %1028 = vmatpush2.msra.mxu0 0.0
    %1029 = vmatprep.subr.mxu0 0.0
    %1030 = vmatpush2.msra.mxu0 0.0
    %1031 = vmatprep.subr.mxu0 0.0
    %1032 = vmatpush2.msra.mxu0 0.0
    %1033 = vmatprep.subr.mxu0 0.0
    %1034 = vmatpush2.msra.mxu0 0.0
    %1035 = vmatprep.subr.mxu0 0.0
    %1036 = vmatpush2.msra.mxu0 0.0
    %1037 = vmatprep.subr.mxu0 0.0
    %1038 = vmatpush2.msra.mxu0 0.0
    %1039 = vmatprep.subr.mxu0 0.0
    %1040 = vmatpush2.msra.mxu0 0.0
    %1041 = vmatprep.subr.mxu0 0.0
    %1042 = vmatpush2.msra.mxu0 0.0
    %1043 = vmatprep.mubr.f32.mxu0 0.0
    %1044 = vmatmul.mubr.f32.gmra.mxu0 %v910
    %v1045 = vpop.f32.mrf.mxu0
    %v1046 = vadd.f32 %v977, %v1045
    %v1047 = vpop.f32.mrf.mxu0
    %1048 = vdwg.mxu0
    %1050 = vrot.lane.b32.xlu0 %v126, 96
    %v1051 = vpop.permute.xlu0 %1050
    %v1053 = vadd.f32 %v1046, %v1051
    %v1054 = vld [vmem:[#allocation3 + $0x270] sm:$0x1]
    %v1055 = vld [vmem:[#allocation3 + $0x271] sm:$0x1]
    %v1056 = vld [vmem:[#allocation3 + $0x250] sm:$0xff]
    %v1057 = vld [vmem:[#allocation3 + $0x258] sm:$0xff]
    %v1058 = vld [vmem:[#allocation3 + $0x260] sm:$0xff]
    %v1059 = vld [vmem:[#allocation3 + $0x268] sm:$0xff]
    %v1060 = vld [vmem:[#allocation3 + $0x277] sm:$0x1]
    %v1061 = vld [vmem:[#allocation3 + $0x272] sm:$0x1]
    %v1062 = vld [vmem:[#allocation3 + $0x273] sm:$0x1]
    %v1063 = vld [vmem:[#allocation3 + $0x274] sm:$0x1]
    %v1064 = vld [vmem:[#allocation3 + $0x275] sm:$0x1]
    %v1065 = vld [vmem:[#allocation3 + $0x276] sm:$0x1]
    %v1066 = vlaneseq
    %v1067 = vshrl.u32 %v1066, 7
    %v1068 = vsub.s32 0, %v1067
    %v1069 = vrot.slane %v1054, %v1068
    %1074 = vrot.lane.b32.xlu0 %v128, 96
    %v1075 = vpop.permute.xlu0 %1074
    %1076 = vrot.lane.b32.xlu0 %v129, 96
    %v1077 = vpop.permute.xlu0 %1076
    %1078 = vrot.lane.b32.xlu0 %v130, 96
    %v1079 = vpop.permute.xlu0 %1078
    %1080 = vrot.lane.b32.xlu0 %v131, 96
    %v1081 = vpop.permute.xlu0 %1080
    %v1087 = vsel %vm168, %v1053, 0
    %1089 = vmatprep.subr.mxu0 0.0
    %1090 = vmatpush1.msra.mxu0 0.0
    %1091 = vmatprep.subr.mxu0 0.0
    %1092 = vmatpush1.msra.mxu0 0.0
    %1093 = vmatprep.subr.mxu0 0.0
    %1094 = vmatpush1.msra.mxu0 0.0
    %1095 = vmatprep.subr.mxu0 0.0
    %1096 = vmatpush1.msra.mxu0 0.0
    %1097 = vmatprep.subr.mxu0 0.0
    %1098 = vmatpush1.msra.mxu0 0.0
    %1099 = vmatprep.subr.mxu0 0.0
    %1100 = vmatpush1.msra.mxu0 0.0
    %1101 = vmatprep.subr.mxu0 0.0
    %1102 = vmatpush1.msra.mxu0 0.0
    %1103 = vmatprep.subr.mxu0 0.0
    %1104 = vmatpush1.msra.mxu0 0.0
    %1105 = vmatprep.subr.mxu0 0.0
    %1106 = vmatpush1.msra.mxu0 0.0
    %1107 = vmatprep.subr.mxu0 0.0
    %1108 = vmatpush1.msra.mxu0 0.0
    %1109 = vmatprep.subr.mxu0 0.0
    %1110 = vmatpush1.msra.mxu0 0.0
    %1111 = vmatprep.subr.mxu0 0.0
    %1112 = vmatpush1.msra.mxu0 0.0
    %1113 = vmatprep.subr.mxu0 0.0
    %1114 = vmatpush1.msra.mxu0 %v1081
    %1115 = vmatprep.subr.mxu0 0.0
    %1116 = vmatpush1.msra.mxu0 %v1079
    %1117 = vmatprep.subr.mxu0 0.0
    %1118 = vmatpush1.msra.mxu0 %v1077
    %1119 = vmatprep.subr.mxu0 0.0
    %1120 = vmatpush1.msra.mxu0 %v1075
    %1121 = vmatprep.subr.mxu0 0.0
    %1122 = vmatpush2.msra.mxu0 0.0
    %1123 = vmatprep.subr.mxu0 0.0
    %1124 = vmatpush2.msra.mxu0 0.0
    %1125 = vmatprep.subr.mxu0 0.0
    %1126 = vmatpush2.msra.mxu0 0.0
    %1127 = vmatprep.subr.mxu0 0.0
    %1128 = vmatpush2.msra.mxu0 0.0
    %1129 = vmatprep.subr.mxu0 0.0
    %1130 = vmatpush2.msra.mxu0 0.0
    %1131 = vmatprep.subr.mxu0 0.0
    %1132 = vmatpush2.msra.mxu0 0.0
    %1133 = vmatprep.subr.mxu0 0.0
    %1134 = vmatpush2.msra.mxu0 0.0
    %1135 = vmatprep.subr.mxu0 0.0
    %1136 = vmatpush2.msra.mxu0 0.0
    %1137 = vmatprep.subr.mxu0 0.0
    %1138 = vmatpush2.msra.mxu0 0.0
    %1139 = vmatprep.subr.mxu0 0.0
    %1140 = vmatpush2.msra.mxu0 0.0
    %1141 = vmatprep.subr.mxu0 0.0
    %1142 = vmatpush2.msra.mxu0 0.0
    %1143 = vmatprep.subr.mxu0 0.0
    %1144 = vmatpush2.msra.mxu0 0.0
    %1145 = vmatprep.subr.mxu0 0.0
    %1146 = vmatpush2.msra.mxu0 0.0
    %1147 = vmatprep.subr.mxu0 0.0
    %1148 = vmatpush2.msra.mxu0 0.0
    %1149 = vmatprep.subr.mxu0 0.0
    %1150 = vmatpush2.msra.mxu0 0.0
    %1151 = vmatprep.subr.mxu0 0.0
    %1152 = vmatpush2.msra.mxu0 0.0
    %1153 = vmatprep.mubr.f32.mxu0 0.0
    %1154 = vmatmul.mubr.f32.gmra.mxu0 %v1087
    %v1155 = vpop.f32.mrf.mxu0
    %v1156 = vadd.f32 %v1069, %v1155
    %v1157 = vpop.f32.mrf.mxu0
    %1158 = vdwg.mxu0
    %v1159 = vlaneseq
    %v1160 = vshrl.u32 %v1159, 7
    %v1161 = vsub.s32 0, %v1160
    %v1162 = vrot.slane %v1055, %v1161
    %1167 = vrot.lane.b32.xlu0 %v133, 96
    %v1168 = vpop.permute.xlu0 %1167
    %1169 = vrot.lane.b32.xlu0 %v134, 96
    %v1170 = vpop.permute.xlu0 %1169
    %1171 = vrot.lane.b32.xlu0 %v135, 96
    %v1172 = vpop.permute.xlu0 %1171
    %1173 = vrot.lane.b32.xlu0 %v136, 96
    %v1174 = vpop.permute.xlu0 %1173
    %v1180 = vsel %vm168, %v1156, 0
    %1182 = vmatprep.subr.mxu0 0.0
    %1183 = vmatpush1.msra.mxu0 0.0
    %1184 = vmatprep.subr.mxu0 0.0
    %1185 = vmatpush1.msra.mxu0 0.0
    %1186 = vmatprep.subr.mxu0 0.0
    %1187 = vmatpush1.msra.mxu0 0.0
    %1188 = vmatprep.subr.mxu0 0.0
    %1189 = vmatpush1.msra.mxu0 0.0
    %1190 = vmatprep.subr.mxu0 0.0
    %1191 = vmatpush1.msra.mxu0 0.0
    %1192 = vmatprep.subr.mxu0 0.0
    %1193 = vmatpush1.msra.mxu0 0.0
    %1194 = vmatprep.subr.mxu0 0.0
    %1195 = vmatpush1.msra.mxu0 0.0
    %1196 = vmatprep.subr.mxu0 0.0
    %1197 = vmatpush1.msra.mxu0 0.0
    %1198 = vmatprep.subr.mxu0 0.0
    %1199 = vmatpush1.msra.mxu0 0.0
    %1200 = vmatprep.subr.mxu0 0.0
    %1201 = vmatpush1.msra.mxu0 0.0
    %1202 = vmatprep.subr.mxu0 0.0
    %1203 = vmatpush1.msra.mxu0 0.0
    %1204 = vmatprep.subr.mxu0 0.0
    %1205 = vmatpush1.msra.mxu0 0.0
    %1206 = vmatprep.subr.mxu0 0.0
    %1207 = vmatpush1.msra.mxu0 %v1174
    %1208 = vmatprep.subr.mxu0 0.0
    %1209 = vmatpush1.msra.mxu0 %v1172
    %1210 = vmatprep.subr.mxu0 0.0
    %1211 = vmatpush1.msra.mxu0 %v1170
    %1212 = vmatprep.subr.mxu0 0.0
    %1213 = vmatpush1.msra.mxu0 %v1168
    %1214 = vmatprep.subr.mxu0 0.0
    %1215 = vmatpush2.msra.mxu0 0.0
    %1216 = vmatprep.subr.mxu0 0.0
    %1217 = vmatpush2.msra.mxu0 0.0
    %1218 = vmatprep.subr.mxu0 0.0
    %1219 = vmatpush2.msra.mxu0 0.0
    %1220 = vmatprep.subr.mxu0 0.0
    %1221 = vmatpush2.msra.mxu0 0.0
    %1222 = vmatprep.subr.mxu0 0.0
    %1223 = vmatpush2.msra.mxu0 0.0
    %1224 = vmatprep.subr.mxu0 0.0
    %1225 = vmatpush2.msra.mxu0 0.0
    %1226 = vmatprep.subr.mxu0 0.0
    %1227 = vmatpush2.msra.mxu0 0.0
    %1228 = vmatprep.subr.mxu0 0.0
    %1229 = vmatpush2.msra.mxu0 0.0
    %1230 = vmatprep.subr.mxu0 0.0
    %1231 = vmatpush2.msra.mxu0 0.0
    %1232 = vmatprep.subr.mxu0 0.0
    %1233 = vmatpush2.msra.mxu0 0.0
    %1234 = vmatprep.subr.mxu0 0.0
    %1235 = vmatpush2.msra.mxu0 0.0
    %1236 = vmatprep.subr.mxu0 0.0
    %1237 = vmatpush2.msra.mxu0 0.0
    %1238 = vmatprep.subr.mxu0 0.0
    %1239 = vmatpush2.msra.mxu0 0.0
    %1240 = vmatprep.subr.mxu0 0.0
    %1241 = vmatpush2.msra.mxu0 0.0
    %1242 = vmatprep.subr.mxu0 0.0
    %1243 = vmatpush2.msra.mxu0 0.0
    %1244 = vmatprep.subr.mxu0 0.0
    %1245 = vmatpush2.msra.mxu0 0.0
    %1246 = vmatprep.mubr.f32.mxu0 0.0
    %1247 = vmatmul.mubr.f32.gmra.mxu0 %v1180
    %v1248 = vpop.f32.mrf.mxu0
    %v1249 = vadd.f32 %v1162, %v1248
    %v1250 = vpop.f32.mrf.mxu0
    %1251 = vdwg.mxu0
    %v1252 = vadd.f32 %v1053, %v1249
    %v1253 = vsel %vm168, %v1252, 0.0
    %1254 = vadd.xlane.f32.xlu0 %v1253
    %v1255 = vpop.xlane.xlu0 %1254
    %v1256 = vmul.f32 %v1255, %v323
    %v1257 = vsub.f32 %v1252, %v1256
    %v1258 = vmul.f32 %v1257, %v1257
    %v1259 = vsel %vm168, %v1258, 0.0
    %1260 = vadd.xlane.f32.xlu0 %v1259
    %v1261 = vpop.xlane.xlu0 %1260
    %v1262 = vmul.f32 %v1261, %v323
    %v1263 = vadd.f32 %v1262, 1e-05
    %v1264 = vrsqrt.pop %v1263
    %v1265 = vmul.f32 %v1257, %v1264
    %v1266 = vlaneseq
    %v1267 = vshrl.u32 %v1266, 7
    %v1268 = vsub.s32 0, %v1267
    %v1269 = vrot.slane %v1062, %v1268
    %v1270 = vmul.f32 %v1265, %v1269
    %v1271 = vlaneseq
    %v1272 = vshrl.u32 %v1271, 7
    %v1273 = vsub.s32 0, %v1272
    %v1274 = vrot.slane %v1063, %v1273
    %v1275 = vadd.f32 %v1270, %v1274
    %v1276 = vlaneseq
    %v1277 = vshrl.u32 %v1276, 7
    %v1278 = vsub.s32 0, %v1277
    %v1279 = vrot.slane %v1060, %v1278
    %v1281 = vsel %vm168, %v1275, 0
    %1283 = vmatprep.subr.mxu0 0.0
    %1284 = vmatpush1.msra.mxu0 0.0
    %1285 = vmatprep.subr.mxu0 0.0
    %1286 = vmatpush1.msra.mxu0 0.0
    %1287 = vmatprep.subr.mxu0 0.0
    %1288 = vmatpush1.msra.mxu0 0.0
    %1289 = vmatprep.subr.mxu0 0.0
    %1290 = vmatpush1.msra.mxu0 0.0
    %1291 = vmatprep.subr.mxu0 0.0
    %1292 = vmatpush1.msra.mxu0 0.0
    %1293 = vmatprep.subr.mxu0 0.0
    %1294 = vmatpush1.msra.mxu0 0.0
    %1295 = vmatprep.subr.mxu0 0.0
    %1296 = vmatpush1.msra.mxu0 0.0
    %1297 = vmatprep.subr.mxu0 0.0
    %1298 = vmatpush1.msra.mxu0 0.0
    %1299 = vmatprep.subr.mxu0 0.0
    %1300 = vmatpush1.msra.mxu0 0.0
    %1301 = vmatprep.subr.mxu0 0.0
    %1302 = vmatpush1.msra.mxu0 0.0
    %1303 = vmatprep.subr.mxu0 0.0
    %1304 = vmatpush1.msra.mxu0 0.0
    %1305 = vmatprep.subr.mxu0 0.0
    %1306 = vmatpush1.msra.mxu0 0.0
    %1307 = vmatprep.subr.mxu0 0.0
    %1308 = vmatpush1.msra.mxu0 %v1059
    %1309 = vmatprep.subr.mxu0 0.0
    %1310 = vmatpush1.msra.mxu0 %v1058
    %1311 = vmatprep.subr.mxu0 0.0
    %1312 = vmatpush1.msra.mxu0 %v1057
    %1313 = vmatprep.subr.mxu0 0.0
    %1314 = vmatpush1.msra.mxu0 %v1056
    %1315 = vmatprep.subr.mxu0 0.0
    %1316 = vmatpush2.msra.mxu0 0.0
    %1317 = vmatprep.subr.mxu0 0.0
    %1318 = vmatpush2.msra.mxu0 0.0
    %1319 = vmatprep.subr.mxu0 0.0
    %1320 = vmatpush2.msra.mxu0 0.0
    %1321 = vmatprep.subr.mxu0 0.0
    %1322 = vmatpush2.msra.mxu0 0.0
    %1323 = vmatprep.subr.mxu0 0.0
    %1324 = vmatpush2.msra.mxu0 0.0
    %1325 = vmatprep.subr.mxu0 0.0
    %1326 = vmatpush2.msra.mxu0 0.0
    %1327 = vmatprep.subr.mxu0 0.0
    %1328 = vmatpush2.msra.mxu0 0.0
    %1329 = vmatprep.subr.mxu0 0.0
    %1330 = vmatpush2.msra.mxu0 0.0
    %1331 = vmatprep.subr.mxu0 0.0
    %1332 = vmatpush2.msra.mxu0 0.0
    %1333 = vmatprep.subr.mxu0 0.0
    %1334 = vmatpush2.msra.mxu0 0.0
    %1335 = vmatprep.subr.mxu0 0.0
    %1336 = vmatpush2.msra.mxu0 0.0
    %1337 = vmatprep.subr.mxu0 0.0
    %1338 = vmatpush2.msra.mxu0 0.0
    %1339 = vmatprep.subr.mxu0 0.0
    %1340 = vmatpush2.msra.mxu0 0.0
    %1341 = vmatprep.subr.mxu0 0.0
    %1342 = vmatpush2.msra.mxu0 0.0
    %1343 = vmatprep.subr.mxu0 0.0
    %1344 = vmatpush2.msra.mxu0 0.0
    %1345 = vmatprep.subr.mxu0 0.0
    %1346 = vmatpush2.msra.mxu0 0.0
    %1347 = vmatprep.mubr.f32.mxu0 0.0
    %1348 = vmatmul.mubr.f32.gmra.mxu0 %v1281
    %v1349 = vpop.f32.mrf.mxu0
    %v1350 = vadd.f32 %v1279, %v1349
    %v1351 = vpop.f32.mrf.mxu0
    %1352 = vdwg.mxu0
    %v1353 = vmax.f32 %v1350, 0.0
    %v1354 = vlaneseq
    %v1355 = vshrl.u32 %v1354, 7
    %v1356 = vsub.s32 0, %v1355
    %v1357 = vrot.slane %v1061, %v1356
    %1374 = vrot.lane.b32.xlu0 %v143, 96
    %v1375 = vpop.permute.xlu0 %1374
    %1376 = vrot.lane.b32.xlu0 %v144, 96
    %v1377 = vpop.permute.xlu0 %1376
    %1378 = vrot.lane.b32.xlu0 %v145, 96
    %v1379 = vpop.permute.xlu0 %1378
    %1380 = vrot.lane.b32.xlu0 %v146, 96
    %v1381 = vpop.permute.xlu0 %1380
    %1382 = vrot.lane.b32.xlu0 %v147, 96
    %v1383 = vpop.permute.xlu0 %1382
    %1384 = vrot.lane.b32.xlu0 %v148, 96
    %v1385 = vpop.permute.xlu0 %1384
    %1386 = vrot.lane.b32.xlu0 %v149, 96
    %v1387 = vpop.permute.xlu0 %1386
    %1388 = vrot.lane.b32.xlu0 %v150, 96
    %v1389 = vpop.permute.xlu0 %1388
    %1390 = vrot.lane.b32.xlu0 %v151, 96
    %v1391 = vpop.permute.xlu0 %1390
    %1392 = vrot.lane.b32.xlu0 %v152, 96
    %v1393 = vpop.permute.xlu0 %1392
    %1394 = vrot.lane.b32.xlu0 %v153, 96
    %v1395 = vpop.permute.xlu0 %1394
    %1396 = vrot.lane.b32.xlu0 %v154, 96
    %v1397 = vpop.permute.xlu0 %1396
    %1398 = vrot.lane.b32.xlu0 %v155, 96
    %v1399 = vpop.permute.xlu0 %1398
    %1400 = vrot.lane.b32.xlu0 %v156, 96
    %v1401 = vpop.permute.xlu0 %1400
    %1402 = vrot.lane.b32.xlu0 %v157, 96
    %v1403 = vpop.permute.xlu0 %1402
    %1404 = vrot.lane.b32.xlu0 %v158, 96
    %v1405 = vpop.permute.xlu0 %1404
    %1422 = vmatprep.subr.mxu0 0.0
    %1423 = vmatpush1.msra.mxu0 %v1405
    %1424 = vmatprep.subr.mxu0 0.0
    %1425 = vmatpush1.msra.mxu0 %v1403
    %1426 = vmatprep.subr.mxu0 0.0
    %1427 = vmatpush1.msra.mxu0 %v1401
    %1428 = vmatprep.subr.mxu0 0.0
    %1429 = vmatpush1.msra.mxu0 %v1399
    %1430 = vmatprep.subr.mxu0 0.0
    %1431 = vmatpush1.msra.mxu0 %v1397
    %1432 = vmatprep.subr.mxu0 0.0
    %1433 = vmatpush1.msra.mxu0 %v1395
    %1434 = vmatprep.subr.mxu0 0.0
    %1435 = vmatpush1.msra.mxu0 %v1393
    %1436 = vmatprep.subr.mxu0 0.0
    %1437 = vmatpush1.msra.mxu0 %v1391
    %1438 = vmatprep.subr.mxu0 0.0
    %1439 = vmatpush1.msra.mxu0 %v1389
    %1440 = vmatprep.subr.mxu0 0.0
    %1441 = vmatpush1.msra.mxu0 %v1387
    %1442 = vmatprep.subr.mxu0 0.0
    %1443 = vmatpush1.msra.mxu0 %v1385
    %1444 = vmatprep.subr.mxu0 0.0
    %1445 = vmatpush1.msra.mxu0 %v1383
    %1446 = vmatprep.subr.mxu0 0.0
    %1447 = vmatpush1.msra.mxu0 %v1381
    %1448 = vmatprep.subr.mxu0 0.0
    %1449 = vmatpush1.msra.mxu0 %v1379
    %1450 = vmatprep.subr.mxu0 0.0
    %1451 = vmatpush1.msra.mxu0 %v1377
    %1452 = vmatprep.subr.mxu0 0.0
    %1453 = vmatpush1.msra.mxu0 %v1375
    %1454 = vmatprep.subr.mxu0 0.0
    %1455 = vmatpush2.msra.mxu0 0.0
    %1456 = vmatprep.subr.mxu0 0.0
    %1457 = vmatpush2.msra.mxu0 0.0
    %1458 = vmatprep.subr.mxu0 0.0
    %1459 = vmatpush2.msra.mxu0 0.0
    %1460 = vmatprep.subr.mxu0 0.0
    %1461 = vmatpush2.msra.mxu0 0.0
    %1462 = vmatprep.subr.mxu0 0.0
    %1463 = vmatpush2.msra.mxu0 0.0
    %1464 = vmatprep.subr.mxu0 0.0
    %1465 = vmatpush2.msra.mxu0 0.0
    %1466 = vmatprep.subr.mxu0 0.0
    %1467 = vmatpush2.msra.mxu0 0.0
    %1468 = vmatprep.subr.mxu0 0.0
    %1469 = vmatpush2.msra.mxu0 0.0
    %1470 = vmatprep.subr.mxu0 0.0
    %1471 = vmatpush2.msra.mxu0 0.0
    %1472 = vmatprep.subr.mxu0 0.0
    %1473 = vmatpush2.msra.mxu0 0.0
    %1474 = vmatprep.subr.mxu0 0.0
    %1475 = vmatpush2.msra.mxu0 0.0
    %1476 = vmatprep.subr.mxu0 0.0
    %1477 = vmatpush2.msra.mxu0 0.0
    %1478 = vmatprep.subr.mxu0 0.0
    %1479 = vmatpush2.msra.mxu0 0.0
    %1480 = vmatprep.subr.mxu0 0.0
    %1481 = vmatpush2.msra.mxu0 0.0
    %1482 = vmatprep.subr.mxu0 0.0
    %1483 = vmatpush2.msra.mxu0 0.0
    %1484 = vmatprep.subr.mxu0 0.0
    %1485 = vmatpush2.msra.mxu0 0.0
    %1486 = vmatprep.mubr.f32.mxu0 0.0
    %1487 = vmatmul.mubr.f32.gmra.mxu0 %v1353
    %v1488 = vpop.f32.mrf.mxu0
    %v1489 = vadd.f32 %v1357, %v1488
    %v1490 = vpop.f32.mrf.mxu0
    %1491 = vdwg.mxu0
    %v1492 = vadd.f32 %v1275, %v1489
    %v1493 = vsel %vm168, %v1492, 0.0
    %1494 = vadd.xlane.f32.xlu0 %v1493
    %v1495 = vpop.xlane.xlu0 %1494
    %v1496 = vmul.f32 %v1495, %v323
    %v1497 = vsub.f32 %v1492, %v1496
    %v1498 = vmul.f32 %v1497, %v1497
    %v1499 = vsel %vm168, %v1498, 0.0
    %1500 = vadd.xlane.f32.xlu0 %v1499
    %v1501 = vpop.xlane.xlu0 %1500
    %v1502 = vmul.f32 %v1501, %v323
    %v1503 = vadd.f32 %v1502, 1e-05
    %v1504 = vrsqrt.pop %v1503
    %v1505 = vmul.f32 %v1497, %v1504
    %v1506 = vlaneseq
    %v1507 = vshrl.u32 %v1506, 7
    %v1508 = vsub.s32 0, %v1507
    %v1509 = vrot.slane %v1064, %v1508
    %v1510 = vmul.f32 %v1505, %v1509
    %v1511 = vlaneseq
    %v1512 = vshrl.u32 %v1511, 7
    %v1513 = vsub.s32 0, %v1512
    %v1514 = vrot.slane %v1065, %v1513
    %v1515 = vadd.f32 %v1510, %v1514
    %v1516 = vld [vmem:[#allocation3 + $0x298] sm:$0x1]
    %v1517 = vld [vmem:[#allocation3 + $0x299] sm:$0x1]
    %v1518 = vld [vmem:[#allocation3 + $0x278] sm:$0xff]
    %v1519 = vld [vmem:[#allocation3 + $0x280] sm:$0xff]
    %v1520 = vld [vmem:[#allocation3 + $0x288] sm:$0xff]
    %v1521 = vld [vmem:[#allocation3 + $0x290] sm:$0xff]
    %v1522 = vld [vmem:[#allocation3 + $0x29f] sm:$0x1]
    %v1523 = vld [vmem:[#allocation3 + $0x29a] sm:$0x1]
    %v1524 = vld [vmem:[#allocation3 + $0x29b] sm:$0x1]
    %v1525 = vld [vmem:[#allocation3 + $0x29c] sm:$0x1]
    %v1526 = vld [vmem:[#allocation3 + $0x29d] sm:$0x1]
    %v1527 = vld [vmem:[#allocation3 + $0x29e] sm:$0x1]
    %v1528 = vlaneseq
    %v1529 = vshrl.u32 %v1528, 7
    %v1530 = vsub.s32 0, %v1529
    %v1531 = vrot.slane %v1516, %v1530
    %1536 = vrot.lane.b32.xlu0 %v520, 96
    %v1537 = vpop.permute.xlu0 %1536
    %1538 = vrot.lane.b32.xlu0 %v521, 96
    %v1539 = vpop.permute.xlu0 %1538
    %1540 = vrot.lane.b32.xlu0 %v522, 96
    %v1541 = vpop.permute.xlu0 %1540
    %1542 = vrot.lane.b32.xlu0 %v523, 96
    %v1543 = vpop.permute.xlu0 %1542
    %v1549 = vsel %vm168, %v1515, 0
    %1551 = vmatprep.subr.mxu0 0.0
    %1552 = vmatpush1.msra.mxu0 0.0
    %1553 = vmatprep.subr.mxu0 0.0
    %1554 = vmatpush1.msra.mxu0 0.0
    %1555 = vmatprep.subr.mxu0 0.0
    %1556 = vmatpush1.msra.mxu0 0.0
    %1557 = vmatprep.subr.mxu0 0.0
    %1558 = vmatpush1.msra.mxu0 0.0
    %1559 = vmatprep.subr.mxu0 0.0
    %1560 = vmatpush1.msra.mxu0 0.0
    %1561 = vmatprep.subr.mxu0 0.0
    %1562 = vmatpush1.msra.mxu0 0.0
    %1563 = vmatprep.subr.mxu0 0.0
    %1564 = vmatpush1.msra.mxu0 0.0
    %1565 = vmatprep.subr.mxu0 0.0
    %1566 = vmatpush1.msra.mxu0 0.0
    %1567 = vmatprep.subr.mxu0 0.0
    %1568 = vmatpush1.msra.mxu0 0.0
    %1569 = vmatprep.subr.mxu0 0.0
    %1570 = vmatpush1.msra.mxu0 0.0
    %1571 = vmatprep.subr.mxu0 0.0
    %1572 = vmatpush1.msra.mxu0 0.0
    %1573 = vmatprep.subr.mxu0 0.0
    %1574 = vmatpush1.msra.mxu0 0.0
    %1575 = vmatprep.subr.mxu0 0.0
    %1576 = vmatpush1.msra.mxu0 %v1543
    %1577 = vmatprep.subr.mxu0 0.0
    %1578 = vmatpush1.msra.mxu0 %v1541
    %1579 = vmatprep.subr.mxu0 0.0
    %1580 = vmatpush1.msra.mxu0 %v1539
    %1581 = vmatprep.subr.mxu0 0.0
    %1582 = vmatpush1.msra.mxu0 %v1537
    %1583 = vmatprep.subr.mxu0 0.0
    %1584 = vmatpush2.msra.mxu0 0.0
    %1585 = vmatprep.subr.mxu0 0.0
    %1586 = vmatpush2.msra.mxu0 0.0
    %1587 = vmatprep.subr.mxu0 0.0
    %1588 = vmatpush2.msra.mxu0 0.0
    %1589 = vmatprep.subr.mxu0 0.0
    %1590 = vmatpush2.msra.mxu0 0.0
    %1591 = vmatprep.subr.mxu0 0.0
    %1592 = vmatpush2.msra.mxu0 0.0
    %1593 = vmatprep.subr.mxu0 0.0
    %1594 = vmatpush2.msra.mxu0 0.0
    %1595 = vmatprep.subr.mxu0 0.0
    %1596 = vmatpush2.msra.mxu0 0.0
    %1597 = vmatprep.subr.mxu0 0.0
    %1598 = vmatpush2.msra.mxu0 0.0
    %1599 = vmatprep.subr.mxu0 0.0
    %1600 = vmatpush2.msra.mxu0 0.0
    %1601 = vmatprep.subr.mxu0 0.0
    %1602 = vmatpush2.msra.mxu0 0.0
    %1603 = vmatprep.subr.mxu0 0.0
    %1604 = vmatpush2.msra.mxu0 0.0
    %1605 = vmatprep.subr.mxu0 0.0
    %1606 = vmatpush2.msra.mxu0 0.0
    %1607 = vmatprep.subr.mxu0 0.0
    %1608 = vmatpush2.msra.mxu0 0.0
    %1609 = vmatprep.subr.mxu0 0.0
    %1610 = vmatpush2.msra.mxu0 0.0
    %1611 = vmatprep.subr.mxu0 0.0
    %1612 = vmatpush2.msra.mxu0 0.0
    %1613 = vmatprep.subr.mxu0 0.0
    %1614 = vmatpush2.msra.mxu0 0.0
    %1615 = vmatprep.mubr.f32.mxu0 0.0
    %1616 = vmatmul.mubr.f32.gmra.mxu0 %v1549
    %v1617 = vpop.f32.mrf.mxu0
    %v1618 = vadd.f32 %v1531, %v1617
    %v1619 = vpop.f32.mrf.mxu0
    %1620 = vdwg.mxu0
    %v1621 = vlaneseq
    %v1622 = vshrl.u32 %v1621, 7
    %v1623 = vsub.s32 0, %v1622
    %v1624 = vrot.slane %v1517, %v1623
    %1629 = vrot.lane.b32.xlu0 %v525, 96
    %v1630 = vpop.permute.xlu0 %1629
    %1631 = vrot.lane.b32.xlu0 %v526, 96
    %v1632 = vpop.permute.xlu0 %1631
    %1633 = vrot.lane.b32.xlu0 %v527, 96
    %v1634 = vpop.permute.xlu0 %1633
    %1635 = vrot.lane.b32.xlu0 %v528, 96
    %v1636 = vpop.permute.xlu0 %1635
    %v1642 = vsel %vm168, %v1618, 0
    %1644 = vmatprep.subr.mxu0 0.0
    %1645 = vmatpush1.msra.mxu0 0.0
    %1646 = vmatprep.subr.mxu0 0.0
    %1647 = vmatpush1.msra.mxu0 0.0
    %1648 = vmatprep.subr.mxu0 0.0
    %1649 = vmatpush1.msra.mxu0 0.0
    %1650 = vmatprep.subr.mxu0 0.0
    %1651 = vmatpush1.msra.mxu0 0.0
    %1652 = vmatprep.subr.mxu0 0.0
    %1653 = vmatpush1.msra.mxu0 0.0
    %1654 = vmatprep.subr.mxu0 0.0
    %1655 = vmatpush1.msra.mxu0 0.0
    %1656 = vmatprep.subr.mxu0 0.0
    %1657 = vmatpush1.msra.mxu0 0.0
    %1658 = vmatprep.subr.mxu0 0.0
    %1659 = vmatpush1.msra.mxu0 0.0
    %1660 = vmatprep.subr.mxu0 0.0
    %1661 = vmatpush1.msra.mxu0 0.0
    %1662 = vmatprep.subr.mxu0 0.0
    %1663 = vmatpush1.msra.mxu0 0.0
    %1664 = vmatprep.subr.mxu0 0.0
    %1665 = vmatpush1.msra.mxu0 0.0
    %1666 = vmatprep.subr.mxu0 0.0
    %1667 = vmatpush1.msra.mxu0 0.0
    %1668 = vmatprep.subr.mxu0 0.0
    %1669 = vmatpush1.msra.mxu0 %v1636
    %1670 = vmatprep.subr.mxu0 0.0
    %1671 = vmatpush1.msra.mxu0 %v1634
    %1672 = vmatprep.subr.mxu0 0.0
    %1673 = vmatpush1.msra.mxu0 %v1632
    %1674 = vmatprep.subr.mxu0 0.0
    %1675 = vmatpush1.msra.mxu0 %v1630
    %1676 = vmatprep.subr.mxu0 0.0
    %1677 = vmatpush2.msra.mxu0 0.0
    %1678 = vmatprep.subr.mxu0 0.0
    %1679 = vmatpush2.msra.mxu0 0.0
    %1680 = vmatprep.subr.mxu0 0.0
    %1681 = vmatpush2.msra.mxu0 0.0
    %1682 = vmatprep.subr.mxu0 0.0
    %1683 = vmatpush2.msra.mxu0 0.0
    %1684 = vmatprep.subr.mxu0 0.0
    %1685 = vmatpush2.msra.mxu0 0.0
    %1686 = vmatprep.subr.mxu0 0.0
    %1687 = vmatpush2.msra.mxu0 0.0
    %1688 = vmatprep.subr.mxu0 0.0
    %1689 = vmatpush2.msra.mxu0 0.0
    %1690 = vmatprep.subr.mxu0 0.0
    %1691 = vmatpush2.msra.mxu0 0.0
    %1692 = vmatprep.subr.mxu0 0.0
    %1693 = vmatpush2.msra.mxu0 0.0
    %1694 = vmatprep.subr.mxu0 0.0
    %1695 = vmatpush2.msra.mxu0 0.0
    %1696 = vmatprep.subr.mxu0 0.0
    %1697 = vmatpush2.msra.mxu0 0.0
    %1698 = vmatprep.subr.mxu0 0.0
    %1699 = vmatpush2.msra.mxu0 0.0
    %1700 = vmatprep.subr.mxu0 0.0
    %1701 = vmatpush2.msra.mxu0 0.0
    %1702 = vmatprep.subr.mxu0 0.0
    %1703 = vmatpush2.msra.mxu0 0.0
    %1704 = vmatprep.subr.mxu0 0.0
    %1705 = vmatpush2.msra.mxu0 0.0
    %1706 = vmatprep.subr.mxu0 0.0
    %1707 = vmatpush2.msra.mxu0 0.0
    %1708 = vmatprep.mubr.f32.mxu0 0.0
    %1709 = vmatmul.mubr.f32.gmra.mxu0 %v1642
    %v1710 = vpop.f32.mrf.mxu0
    %v1711 = vadd.f32 %v1624, %v1710
    %v1712 = vpop.f32.mrf.mxu0
    %1713 = vdwg.mxu0
    %v1714 = vadd.f32 %v1515, %v1711
    %v1715 = vsel %vm168, %v1714, 0.0
    %1716 = vadd.xlane.f32.xlu0 %v1715
    %v1717 = vpop.xlane.xlu0 %1716
    %v1718 = vmul.f32 %v1717, %v323
    %v1719 = vsub.f32 %v1714, %v1718
    %v1720 = vmul.f32 %v1719, %v1719
    %v1721 = vsel %vm168, %v1720, 0.0
    %1722 = vadd.xlane.f32.xlu0 %v1721
    %v1723 = vpop.xlane.xlu0 %1722
    %v1724 = vmul.f32 %v1723, %v323
    %v1725 = vadd.f32 %v1724, 1e-05
    %v1726 = vrsqrt.pop %v1725
    %v1727 = vmul.f32 %v1719, %v1726
    %v1728 = vlaneseq
    %v1729 = vshrl.u32 %v1728, 7
    %v1730 = vsub.s32 0, %v1729
    %v1731 = vrot.slane %v1524, %v1730
    %v1732 = vmul.f32 %v1727, %v1731
    %v1733 = vlaneseq
    %v1734 = vshrl.u32 %v1733, 7
    %v1735 = vsub.s32 0, %v1734
    %v1736 = vrot.slane %v1525, %v1735
    %v1737 = vadd.f32 %v1732, %v1736
    %v1738 = vlaneseq
    %v1739 = vshrl.u32 %v1738, 7
    %v1740 = vsub.s32 0, %v1739
    %v1741 = vrot.slane %v1522, %v1740
    %v1743 = vsel %vm168, %v1737, 0
    %1745 = vmatprep.subr.mxu0 0.0
    %1746 = vmatpush1.msra.mxu0 0.0
    %1747 = vmatprep.subr.mxu0 0.0
    %1748 = vmatpush1.msra.mxu0 0.0
    %1749 = vmatprep.subr.mxu0 0.0
    %1750 = vmatpush1.msra.mxu0 0.0
    %1751 = vmatprep.subr.mxu0 0.0
    %1752 = vmatpush1.msra.mxu0 0.0
    %1753 = vmatprep.subr.mxu0 0.0
    %1754 = vmatpush1.msra.mxu0 0.0
    %1755 = vmatprep.subr.mxu0 0.0
    %1756 = vmatpush1.msra.mxu0 0.0
    %1757 = vmatprep.subr.mxu0 0.0
    %1758 = vmatpush1.msra.mxu0 0.0
    %1759 = vmatprep.subr.mxu0 0.0
    %1760 = vmatpush1.msra.mxu0 0.0
    %1761 = vmatprep.subr.mxu0 0.0
    %1762 = vmatpush1.msra.mxu0 0.0
    %1763 = vmatprep.subr.mxu0 0.0
    %1764 = vmatpush1.msra.mxu0 0.0
    %1765 = vmatprep.subr.mxu0 0.0
    %1766 = vmatpush1.msra.mxu0 0.0
    %1767 = vmatprep.subr.mxu0 0.0
    %1768 = vmatpush1.msra.mxu0 0.0
    %1769 = vmatprep.subr.mxu0 0.0
    %1770 = vmatpush1.msra.mxu0 %v1521
    %1771 = vmatprep.subr.mxu0 0.0
    %1772 = vmatpush1.msra.mxu0 %v1520
    %1773 = vmatprep.subr.mxu0 0.0
    %1774 = vmatpush1.msra.mxu0 %v1519
    %1775 = vmatprep.subr.mxu0 0.0
    %1776 = vmatpush1.msra.mxu0 %v1518
    %1777 = vmatprep.subr.mxu0 0.0
    %1778 = vmatpush2.msra.mxu0 0.0
    %1779 = vmatprep.subr.mxu0 0.0
    %1780 = vmatpush2.msra.mxu0 0.0
    %1781 = vmatprep.subr.mxu0 0.0
    %1782 = vmatpush2.msra.mxu0 0.0
    %1783 = vmatprep.subr.mxu0 0.0
    %1784 = vmatpush2.msra.mxu0 0.0
    %1785 = vmatprep.subr.mxu0 0.0
    %1786 = vmatpush2.msra.mxu0 0.0
    %1787 = vmatprep.subr.mxu0 0.0
    %1788 = vmatpush2.msra.mxu0 0.0
    %1789 = vmatprep.subr.mxu0 0.0
    %1790 = vmatpush2.msra.mxu0 0.0
    %1791 = vmatprep.subr.mxu0 0.0
    %1792 = vmatpush2.msra.mxu0 0.0
    %1793 = vmatprep.subr.mxu0 0.0
    %1794 = vmatpush2.msra.mxu0 0.0
    %1795 = vmatprep.subr.mxu0 0.0
    %1796 = vmatpush2.msra.mxu0 0.0
    %1797 = vmatprep.subr.mxu0 0.0
    %1798 = vmatpush2.msra.mxu0 0.0
    %1799 = vmatprep.subr.mxu0 0.0
    %1800 = vmatpush2.msra.mxu0 0.0
    %1801 = vmatprep.subr.mxu0 0.0
    %1802 = vmatpush2.msra.mxu0 0.0
    %1803 = vmatprep.subr.mxu0 0.0
    %1804 = vmatpush2.msra.mxu0 0.0
    %1805 = vmatprep.subr.mxu0 0.0
    %1806 = vmatpush2.msra.mxu0 0.0
    %1807 = vmatprep.subr.mxu0 0.0
    %1808 = vmatpush2.msra.mxu0 0.0
    %1809 = vmatprep.mubr.f32.mxu0 0.0
    %1810 = vmatmul.mubr.f32.gmra.mxu0 %v1743
    %v1811 = vpop.f32.mrf.mxu0
    %v1812 = vadd.f32 %v1741, %v1811
    %v1813 = vpop.f32.mrf.mxu0
    %1814 = vdwg.mxu0
    %v1815 = vmax.f32 %v1812, 0.0
    %v1816 = vlaneseq
    %v1817 = vshrl.u32 %v1816, 7
    %v1818 = vsub.s32 0, %v1817
    %v1819 = vrot.slane %v1523, %v1818
    %1836 = vrot.lane.b32.xlu0 %v535, 96
    %v1837 = vpop.permute.xlu0 %1836
    %1838 = vrot.lane.b32.xlu0 %v536, 96
    %v1839 = vpop.permute.xlu0 %1838
    %1840 = vrot.lane.b32.xlu0 %v537, 96
    %v1841 = vpop.permute.xlu0 %1840
    %1842 = vrot.lane.b32.xlu0 %v538, 96
    %v1843 = vpop.permute.xlu0 %1842
    %1844 = vrot.lane.b32.xlu0 %v539, 96
    %v1845 = vpop.permute.xlu0 %1844
    %1846 = vrot.lane.b32.xlu0 %v540, 96
    %v1847 = vpop.permute.xlu0 %1846
    %1848 = vrot.lane.b32.xlu0 %v541, 96
    %v1849 = vpop.permute.xlu0 %1848
    %1850 = vrot.lane.b32.xlu0 %v542, 96
    %v1851 = vpop.permute.xlu0 %1850
    %1852 = vrot.lane.b32.xlu0 %v543, 96
    %v1853 = vpop.permute.xlu0 %1852
    %1854 = vrot.lane.b32.xlu0 %v544, 96
    %v1855 = vpop.permute.xlu0 %1854
    %1856 = vrot.lane.b32.xlu0 %v545, 96
    %v1857 = vpop.permute.xlu0 %1856
    %1858 = vrot.lane.b32.xlu0 %v546, 96
    %v1859 = vpop.permute.xlu0 %1858
    %1860 = vrot.lane.b32.xlu0 %v547, 96
    %v1861 = vpop.permute.xlu0 %1860
    %1862 = vrot.lane.b32.xlu0 %v548, 96
    %v1863 = vpop.permute.xlu0 %1862
    %1864 = vrot.lane.b32.xlu0 %v549, 96
    %v1865 = vpop.permute.xlu0 %1864
    %1866 = vrot.lane.b32.xlu0 %v550, 96
    %v1867 = vpop.permute.xlu0 %1866
    %1884 = vmatprep.subr.mxu0 0.0
    %1885 = vmatpush1.msra.mxu0 %v1867
    %1886 = vmatprep.subr.mxu0 0.0
    %1887 = vmatpush1.msra.mxu0 %v1865
    %1888 = vmatprep.subr.mxu0 0.0
    %1889 = vmatpush1.msra.mxu0 %v1863
    %1890 = vmatprep.subr.mxu0 0.0
    %1891 = vmatpush1.msra.mxu0 %v1861
    %1892 = vmatprep.subr.mxu0 0.0
    %1893 = vmatpush1.msra.mxu0 %v1859
    %1894 = vmatprep.subr.mxu0 0.0
    %1895 = vmatpush1.msra.mxu0 %v1857
    %1896 = vmatprep.subr.mxu0 0.0
    %1897 = vmatpush1.msra.mxu0 %v1855
    %1898 = vmatprep.subr.mxu0 0.0
    %1899 = vmatpush1.msra.mxu0 %v1853
    %1900 = vmatprep.subr.mxu0 0.0
    %1901 = vmatpush1.msra.mxu0 %v1851
    %1902 = vmatprep.subr.mxu0 0.0
    %1903 = vmatpush1.msra.mxu0 %v1849
    %1904 = vmatprep.subr.mxu0 0.0
    %1905 = vmatpush1.msra.mxu0 %v1847
    %1906 = vmatprep.subr.mxu0 0.0
    %1907 = vmatpush1.msra.mxu0 %v1845
    %1908 = vmatprep.subr.mxu0 0.0
    %1909 = vmatpush1.msra.mxu0 %v1843
    %1910 = vmatprep.subr.mxu0 0.0
    %1911 = vmatpush1.msra.mxu0 %v1841
    %1912 = vmatprep.subr.mxu0 0.0
    %1913 = vmatpush1.msra.mxu0 %v1839
    %1914 = vmatprep.subr.mxu0 0.0
    %1915 = vmatpush1.msra.mxu0 %v1837
    %1916 = vmatprep.subr.mxu0 0.0
    %1917 = vmatpush2.msra.mxu0 0.0
    %1918 = vmatprep.subr.mxu0 0.0
    %1919 = vmatpush2.msra.mxu0 0.0
    %1920 = vmatprep.subr.mxu0 0.0
    %1921 = vmatpush2.msra.mxu0 0.0
    %1922 = vmatprep.subr.mxu0 0.0
    %1923 = vmatpush2.msra.mxu0 0.0
    %1924 = vmatprep.subr.mxu0 0.0
    %1925 = vmatpush2.msra.mxu0 0.0
    %1926 = vmatprep.subr.mxu0 0.0
    %1927 = vmatpush2.msra.mxu0 0.0
    %1928 = vmatprep.subr.mxu0 0.0
    %1929 = vmatpush2.msra.mxu0 0.0
    %1930 = vmatprep.subr.mxu0 0.0
    %1931 = vmatpush2.msra.mxu0 0.0
    %1932 = vmatprep.subr.mxu0 0.0
    %1933 = vmatpush2.msra.mxu0 0.0
    %1934 = vmatprep.subr.mxu0 0.0
    %1935 = vmatpush2.msra.mxu0 0.0
    %1936 = vmatprep.subr.mxu0 0.0
    %1937 = vmatpush2.msra.mxu0 0.0
    %1938 = vmatprep.subr.mxu0 0.0
    %1939 = vmatpush2.msra.mxu0 0.0
    %1940 = vmatprep.subr.mxu0 0.0
    %1941 = vmatpush2.msra.mxu0 0.0
    %1942 = vmatprep.subr.mxu0 0.0
    %1943 = vmatpush2.msra.mxu0 0.0
    %1944 = vmatprep.subr.mxu0 0.0
    %1945 = vmatpush2.msra.mxu0 0.0
    %1946 = vmatprep.subr.mxu0 0.0
    %1947 = vmatpush2.msra.mxu0 0.0
    %1948 = vmatprep.mubr.f32.mxu0 0.0
    %1949 = vmatmul.mubr.f32.gmra.mxu0 %v1815
    %v1950 = vpop.f32.mrf.mxu0
    %v1951 = vadd.f32 %v1819, %v1950
    %v1952 = vpop.f32.mrf.mxu0
    %1953 = vdwg.mxu0
    %v1954 = vadd.f32 %v1737, %v1951
    %v1955 = vsel %vm168, %v1954, 0.0
    %1956 = vadd.xlane.f32.xlu0 %v1955
    %v1957 = vpop.xlane.xlu0 %1956
    %v1958 = vmul.f32 %v1957, %v323
    %v1959 = vsub.f32 %v1954, %v1958
    %v1960 = vmul.f32 %v1959, %v1959
    %v1961 = vsel %vm168, %v1960, 0.0
    %1962 = vadd.xlane.f32.xlu0 %v1961
    %v1963 = vpop.xlane.xlu0 %1962
    %v1964 = vmul.f32 %v1963, %v323
    %v1965 = vadd.f32 %v1964, 1e-05
    %v1966 = vrsqrt.pop %v1965
    %v1967 = vmul.f32 %v1959, %v1966
    %v1968 = vlaneseq
    %v1969 = vshrl.u32 %v1968, 7
    %v1970 = vsub.s32 0, %v1969
    %v1971 = vrot.slane %v1526, %v1970
    %v1972 = vmul.f32 %v1967, %v1971
    %v1973 = vlaneseq
    %v1974 = vshrl.u32 %v1973, 7
    %v1975 = vsub.s32 0, %v1974
    %v1976 = vrot.slane %v1527, %v1975
    %v1977 = vadd.f32 %v1972, %v1976
    %v1978 = vld [vmem:[%s0 + $0x10] sm:$0xff]
    %1979 = vrot.lane.b32.xlu0 %v31, 64
    %v1980 = vpop.permute.xlu0 %1979
    %1981 = vrot.lane.b32.xlu0 %v32, 64
    %v1982 = vpop.permute.xlu0 %1981
    %1983 = vrot.lane.b32.xlu0 %v33, 64
    %v1984 = vpop.permute.xlu0 %1983
    %1985 = vrot.lane.b32.xlu0 %v34, 64
    %v1986 = vpop.permute.xlu0 %1985
    %1987 = vrot.lane.b32.xlu0 %v35, 64
    %v1988 = vpop.permute.xlu0 %1987
    %1989 = vrot.lane.b32.xlu0 %v36, 64
    %v1990 = vpop.permute.xlu0 %1989
    %1991 = vrot.lane.b32.xlu0 %v37, 64
    %v1992 = vpop.permute.xlu0 %1991
    %1993 = vrot.lane.b32.xlu0 %v38, 64
    %v1994 = vpop.permute.xlu0 %1993
    %1995 = vrot.lane.b32.xlu0 %v39, 64
    %v1996 = vpop.permute.xlu0 %1995
    %1997 = vrot.lane.b32.xlu0 %v40, 64
    %v1998 = vpop.permute.xlu0 %1997
    %1999 = vrot.lane.b32.xlu0 %v41, 64
    %v2000 = vpop.permute.xlu0 %1999
    %2001 = vrot.lane.b32.xlu0 %v42, 64
    %v2002 = vpop.permute.xlu0 %2001
    %2003 = vrot.lane.b32.xlu0 %v43, 64
    %v2004 = vpop.permute.xlu0 %2003
    %2005 = vrot.lane.b32.xlu0 %v44, 64
    %v2006 = vpop.permute.xlu0 %2005
    %2007 = vrot.lane.b32.xlu0 %v45, 64
    %v2008 = vpop.permute.xlu0 %2007
    %2009 = vrot.lane.b32.xlu0 %v46, 64
    %v2010 = vpop.permute.xlu0 %2009
    %2027 = vrot.lane.b32.xlu0 %v51, 64
    %v2028 = vpop.permute.xlu0 %2027
    %2030 = vmatprep.subr.mxu0 0.0
    %2031 = vmatpush1.msra.mxu0 %v2010
    %2032 = vmatprep.subr.mxu0 0.0
    %2033 = vmatpush1.msra.mxu0 %v2008
    %2034 = vmatprep.subr.mxu0 0.0
    %2035 = vmatpush1.msra.mxu0 %v2006
    %2036 = vmatprep.subr.mxu0 0.0
    %2037 = vmatpush1.msra.mxu0 %v2004
    %2038 = vmatprep.subr.mxu0 0.0
    %2039 = vmatpush1.msra.mxu0 %v2002
    %2040 = vmatprep.subr.mxu0 0.0
    %2041 = vmatpush1.msra.mxu0 %v2000
    %2042 = vmatprep.subr.mxu0 0.0
    %2043 = vmatpush1.msra.mxu0 %v1998
    %2044 = vmatprep.subr.mxu0 0.0
    %2045 = vmatpush1.msra.mxu0 %v1996
    %2046 = vmatprep.subr.mxu0 0.0
    %2047 = vmatpush1.msra.mxu0 %v1994
    %2048 = vmatprep.subr.mxu0 0.0
    %2049 = vmatpush1.msra.mxu0 %v1992
    %2050 = vmatprep.subr.mxu0 0.0
    %2051 = vmatpush1.msra.mxu0 %v1990
    %2052 = vmatprep.subr.mxu0 0.0
    %2053 = vmatpush1.msra.mxu0 %v1988
    %2054 = vmatprep.subr.mxu0 0.0
    %2055 = vmatpush1.msra.mxu0 %v1986
    %2056 = vmatprep.subr.mxu0 0.0
    %2057 = vmatpush1.msra.mxu0 %v1984
    %2058 = vmatprep.subr.mxu0 0.0
    %2059 = vmatpush1.msra.mxu0 %v1982
    %2060 = vmatprep.subr.mxu0 0.0
    %2061 = vmatpush1.msra.mxu0 %v1980
    %2062 = vmatprep.subr.mxu0 0.0
    %2063 = vmatpush2.msra.mxu0 0.0
    %2064 = vmatprep.subr.mxu0 0.0
    %2065 = vmatpush2.msra.mxu0 0.0
    %2066 = vmatprep.subr.mxu0 0.0
    %2067 = vmatpush2.msra.mxu0 0.0
    %2068 = vmatprep.subr.mxu0 0.0
    %2069 = vmatpush2.msra.mxu0 0.0
    %2070 = vmatprep.subr.mxu0 0.0
    %2071 = vmatpush2.msra.mxu0 0.0
    %2072 = vmatprep.subr.mxu0 0.0
    %2073 = vmatpush2.msra.mxu0 0.0
    %2074 = vmatprep.subr.mxu0 0.0
    %2075 = vmatpush2.msra.mxu0 0.0
    %2076 = vmatprep.subr.mxu0 0.0
    %2077 = vmatpush2.msra.mxu0 0.0
    %2078 = vmatprep.subr.mxu0 0.0
    %2079 = vmatpush2.msra.mxu0 0.0
    %2080 = vmatprep.subr.mxu0 0.0
    %2081 = vmatpush2.msra.mxu0 0.0
    %2082 = vmatprep.subr.mxu0 0.0
    %2083 = vmatpush2.msra.mxu0 0.0
    %2084 = vmatprep.subr.mxu0 0.0
    %2085 = vmatpush2.msra.mxu0 0.0
    %2086 = vmatprep.subr.mxu0 0.0
    %2087 = vmatpush2.msra.mxu0 0.0
    %2088 = vmatprep.subr.mxu0 0.0
    %2089 = vmatpush2.msra.mxu0 0.0
    %2090 = vmatprep.subr.mxu0 0.0
    %2091 = vmatpush2.msra.mxu0 0.0
    %2092 = vmatprep.subr.mxu0 0.0
    %2093 = vmatpush2.msra.mxu0 0.0
    %2094 = vmatprep.mubr.f32.mxu0 0.0
    %2095 = vmatmul.mubr.f32.gmra.mxu0 %v1978
    %v2096 = vpop.f32.mrf.mxu0
    %v2097 = vadd.f32 %v2028, %v2096
    %v2098 = vpop.f32.mrf.mxu0
    %2099 = vdwg.mxu0
    %2100 = vrot.lane.b32.xlu0 %v126, 64
    %v2101 = vpop.permute.xlu0 %2100
    %v2103 = vadd.f32 %v2097, %v2101
    %v2104 = vld [vmem:[#allocation3 + $0x2c0] sm:$0x1]
    %v2105 = vld [vmem:[#allocation3 + $0x2c1] sm:$0x1]
    %v2106 = vld [vmem:[#allocation3 + $0x2a0] sm:$0xff]
    %v2107 = vld [vmem:[#allocation3 + $0x2a8] sm:$0xff]
    %v2108 = vld [vmem:[#allocation3 + $0x2b0] sm:$0xff]
    %v2109 = vld [vmem:[#allocation3 + $0x2b8] sm:$0xff]
    %v2110 = vld [vmem:[#allocation3 + $0x2c7] sm:$0x1]
    %v2111 = vld [vmem:[#allocation3 + $0x2c2] sm:$0x1]
    %v2112 = vld [vmem:[#allocation3 + $0x2c3] sm:$0x1]
    %v2113 = vld [vmem:[#allocation3 + $0x2c4] sm:$0x1]
    %v2114 = vld [vmem:[#allocation3 + $0x2c5] sm:$0x1]
    %v2115 = vld [vmem:[#allocation3 + $0x2c6] sm:$0x1]
    %v2116 = vlaneseq
    %v2117 = vshrl.u32 %v2116, 7
    %v2118 = vsub.s32 0, %v2117
    %v2119 = vrot.slane %v2104, %v2118
    %2120 = vrot.lane.b32.xlu0 %v128, 64
    %v2121 = vpop.permute.xlu0 %2120
    %2122 = vrot.lane.b32.xlu0 %v129, 64
    %v2123 = vpop.permute.xlu0 %2122
    %2124 = vrot.lane.b32.xlu0 %v130, 64
    %v2125 = vpop.permute.xlu0 %2124
    %2126 = vrot.lane.b32.xlu0 %v131, 64
    %v2127 = vpop.permute.xlu0 %2126
    %v2133 = vsel %vm168, %v2103, 0
    %2135 = vmatprep.subr.mxu0 0.0
    %2136 = vmatpush1.msra.mxu0 0.0
    %2137 = vmatprep.subr.mxu0 0.0
    %2138 = vmatpush1.msra.mxu0 0.0
    %2139 = vmatprep.subr.mxu0 0.0
    %2140 = vmatpush1.msra.mxu0 0.0
    %2141 = vmatprep.subr.mxu0 0.0
    %2142 = vmatpush1.msra.mxu0 0.0
    %2143 = vmatprep.subr.mxu0 0.0
    %2144 = vmatpush1.msra.mxu0 0.0
    %2145 = vmatprep.subr.mxu0 0.0
    %2146 = vmatpush1.msra.mxu0 0.0
    %2147 = vmatprep.subr.mxu0 0.0
    %2148 = vmatpush1.msra.mxu0 0.0
    %2149 = vmatprep.subr.mxu0 0.0
    %2150 = vmatpush1.msra.mxu0 0.0
    %2151 = vmatprep.subr.mxu0 0.0
    %2152 = vmatpush1.msra.mxu0 0.0
    %2153 = vmatprep.subr.mxu0 0.0
    %2154 = vmatpush1.msra.mxu0 0.0
    %2155 = vmatprep.subr.mxu0 0.0
    %2156 = vmatpush1.msra.mxu0 0.0
    %2157 = vmatprep.subr.mxu0 0.0
    %2158 = vmatpush1.msra.mxu0 0.0
    %2159 = vmatprep.subr.mxu0 0.0
    %2160 = vmatpush1.msra.mxu0 %v2127
    %2161 = vmatprep.subr.mxu0 0.0
    %2162 = vmatpush1.msra.mxu0 %v2125
    %2163 = vmatprep.subr.mxu0 0.0
    %2164 = vmatpush1.msra.mxu0 %v2123
    %2165 = vmatprep.subr.mxu0 0.0
    %2166 = vmatpush1.msra.mxu0 %v2121
    %2167 = vmatprep.subr.mxu0 0.0
    %2168 = vmatpush2.msra.mxu0 0.0
    %2169 = vmatprep.subr.mxu0 0.0
    %2170 = vmatpush2.msra.mxu0 0.0
    %2171 = vmatprep.subr.mxu0 0.0
    %2172 = vmatpush2.msra.mxu0 0.0
    %2173 = vmatprep.subr.mxu0 0.0
    %2174 = vmatpush2.msra.mxu0 0.0
    %2175 = vmatprep.subr.mxu0 0.0
    %2176 = vmatpush2.msra.mxu0 0.0
    %2177 = vmatprep.subr.mxu0 0.0
    %2178 = vmatpush2.msra.mxu0 0.0
    %2179 = vmatprep.subr.mxu0 0.0
    %2180 = vmatpush2.msra.mxu0 0.0
    %2181 = vmatprep.subr.mxu0 0.0
    %2182 = vmatpush2.msra.mxu0 0.0
    %2183 = vmatprep.subr.mxu0 0.0
    %2184 = vmatpush2.msra.mxu0 0.0
    %2185 = vmatprep.subr.mxu0 0.0
    %2186 = vmatpush2.msra.mxu0 0.0
    %2187 = vmatprep.subr.mxu0 0.0
    %2188 = vmatpush2.msra.mxu0 0.0
    %2189 = vmatprep.subr.mxu0 0.0
    %2190 = vmatpush2.msra.mxu0 0.0
    %2191 = vmatprep.subr.mxu0 0.0
    %2192 = vmatpush2.msra.mxu0 0.0
    %2193 = vmatprep.subr.mxu0 0.0
    %2194 = vmatpush2.msra.mxu0 0.0
    %2195 = vmatprep.subr.mxu0 0.0
    %2196 = vmatpush2.msra.mxu0 0.0
    %2197 = vmatprep.subr.mxu0 0.0
    %2198 = vmatpush2.msra.mxu0 0.0
    %2199 = vmatprep.mubr.f32.mxu0 0.0
    %2200 = vmatmul.mubr.f32.gmra.mxu0 %v2133
    %v2201 = vpop.f32.mrf.mxu0
    %v2202 = vadd.f32 %v2119, %v2201
    %v2203 = vpop.f32.mrf.mxu0
    %2204 = vdwg.mxu0
    %v2205 = vlaneseq
    %v2206 = vshrl.u32 %v2205, 7
    %v2207 = vsub.s32 0, %v2206
    %v2208 = vrot.slane %v2105, %v2207
    %2209 = vrot.lane.b32.xlu0 %v133, 64
    %v2210 = vpop.permute.xlu0 %2209
    %2211 = vrot.lane.b32.xlu0 %v134, 64
    %v2212 = vpop.permute.xlu0 %2211
    %2213 = vrot.lane.b32.xlu0 %v135, 64
    %v2214 = vpop.permute.xlu0 %2213
    %2215 = vrot.lane.b32.xlu0 %v136, 64
    %v2216 = vpop.permute.xlu0 %2215
    %v2222 = vsel %vm168, %v2202, 0
    %2224 = vmatprep.subr.mxu0 0.0
    %2225 = vmatpush1.msra.mxu0 0.0
    %2226 = vmatprep.subr.mxu0 0.0
    %2227 = vmatpush1.msra.mxu0 0.0
    %2228 = vmatprep.subr.mxu0 0.0
    %2229 = vmatpush1.msra.mxu0 0.0
    %2230 = vmatprep.subr.mxu0 0.0
    %2231 = vmatpush1.msra.mxu0 0.0
    %2232 = vmatprep.subr.mxu0 0.0
    %2233 = vmatpush1.msra.mxu0 0.0
    %2234 = vmatprep.subr.mxu0 0.0
    %2235 = vmatpush1.msra.mxu0 0.0
    %2236 = vmatprep.subr.mxu0 0.0
    %2237 = vmatpush1.msra.mxu0 0.0
    %2238 = vmatprep.subr.mxu0 0.0
    %2239 = vmatpush1.msra.mxu0 0.0
    %2240 = vmatprep.subr.mxu0 0.0
    %2241 = vmatpush1.msra.mxu0 0.0
    %2242 = vmatprep.subr.mxu0 0.0
    %2243 = vmatpush1.msra.mxu0 0.0
    %2244 = vmatprep.subr.mxu0 0.0
    %2245 = vmatpush1.msra.mxu0 0.0
    %2246 = vmatprep.subr.mxu0 0.0
    %2247 = vmatpush1.msra.mxu0 0.0
    %2248 = vmatprep.subr.mxu0 0.0
    %2249 = vmatpush1.msra.mxu0 %v2216
    %2250 = vmatprep.subr.mxu0 0.0
    %2251 = vmatpush1.msra.mxu0 %v2214
    %2252 = vmatprep.subr.mxu0 0.0
    %2253 = vmatpush1.msra.mxu0 %v2212
    %2254 = vmatprep.subr.mxu0 0.0
    %2255 = vmatpush1.msra.mxu0 %v2210
    %2256 = vmatprep.subr.mxu0 0.0
    %2257 = vmatpush2.msra.mxu0 0.0
    %2258 = vmatprep.subr.mxu0 0.0
    %2259 = vmatpush2.msra.mxu0 0.0
    %2260 = vmatprep.subr.mxu0 0.0
    %2261 = vmatpush2.msra.mxu0 0.0
    %2262 = vmatprep.subr.mxu0 0.0
    %2263 = vmatpush2.msra.mxu0 0.0
    %2264 = vmatprep.subr.mxu0 0.0
    %2265 = vmatpush2.msra.mxu0 0.0
    %2266 = vmatprep.subr.mxu0 0.0
    %2267 = vmatpush2.msra.mxu0 0.0
    %2268 = vmatprep.subr.mxu0 0.0
    %2269 = vmatpush2.msra.mxu0 0.0
    %2270 = vmatprep.subr.mxu0 0.0
    %2271 = vmatpush2.msra.mxu0 0.0
    %2272 = vmatprep.subr.mxu0 0.0
    %2273 = vmatpush2.msra.mxu0 0.0
    %2274 = vmatprep.subr.mxu0 0.0
    %2275 = vmatpush2.msra.mxu0 0.0
    %2276 = vmatprep.subr.mxu0 0.0
    %2277 = vmatpush2.msra.mxu0 0.0
    %2278 = vmatprep.subr.mxu0 0.0
    %2279 = vmatpush2.msra.mxu0 0.0
    %2280 = vmatprep.subr.mxu0 0.0
    %2281 = vmatpush2.msra.mxu0 0.0
    %2282 = vmatprep.subr.mxu0 0.0
    %2283 = vmatpush2.msra.mxu0 0.0
    %2284 = vmatprep.subr.mxu0 0.0
    %2285 = vmatpush2.msra.mxu0 0.0
    %2286 = vmatprep.subr.mxu0 0.0
    %2287 = vmatpush2.msra.mxu0 0.0
    %2288 = vmatprep.mubr.f32.mxu0 0.0
    %2289 = vmatmul.mubr.f32.gmra.mxu0 %v2222
    %v2290 = vpop.f32.mrf.mxu0
    %v2291 = vadd.f32 %v2208, %v2290
    %v2292 = vpop.f32.mrf.mxu0
    %2293 = vdwg.mxu0
    %v2294 = vadd.f32 %v2103, %v2291
    %v2295 = vsel %vm168, %v2294, 0.0
    %2296 = vadd.xlane.f32.xlu0 %v2295
    %v2297 = vpop.xlane.xlu0 %2296
    %v2298 = vmul.f32 %v2297, %v323
    %v2299 = vsub.f32 %v2294, %v2298
    %v2300 = vmul.f32 %v2299, %v2299
    %v2301 = vsel %vm168, %v2300, 0.0
    %2302 = vadd.xlane.f32.xlu0 %v2301
    %v2303 = vpop.xlane.xlu0 %2302
    %v2304 = vmul.f32 %v2303, %v323
    %v2305 = vadd.f32 %v2304, 1e-05
    %v2306 = vrsqrt.pop %v2305
    %v2307 = vmul.f32 %v2299, %v2306
    %v2308 = vlaneseq
    %v2309 = vshrl.u32 %v2308, 7
    %v2310 = vsub.s32 0, %v2309
    %v2311 = vrot.slane %v2112, %v2310
    %v2312 = vmul.f32 %v2307, %v2311
    %v2313 = vlaneseq
    %v2314 = vshrl.u32 %v2313, 7
    %v2315 = vsub.s32 0, %v2314
    %v2316 = vrot.slane %v2113, %v2315
    %v2317 = vadd.f32 %v2312, %v2316
    %v2318 = vlaneseq
    %v2319 = vshrl.u32 %v2318, 7
    %v2320 = vsub.s32 0, %v2319
    %v2321 = vrot.slane %v2110, %v2320
    %v2323 = vsel %vm168, %v2317, 0
    %2325 = vmatprep.subr.mxu0 0.0
    %2326 = vmatpush1.msra.mxu0 0.0
    %2327 = vmatprep.subr.mxu0 0.0
    %2328 = vmatpush1.msra.mxu0 0.0
    %2329 = vmatprep.subr.mxu0 0.0
    %2330 = vmatpush1.msra.mxu0 0.0
    %2331 = vmatprep.subr.mxu0 0.0
    %2332 = vmatpush1.msra.mxu0 0.0
    %2333 = vmatprep.subr.mxu0 0.0
    %2334 = vmatpush1.msra.mxu0 0.0
    %2335 = vmatprep.subr.mxu0 0.0
    %2336 = vmatpush1.msra.mxu0 0.0
    %2337 = vmatprep.subr.mxu0 0.0
    %2338 = vmatpush1.msra.mxu0 0.0
    %2339 = vmatprep.subr.mxu0 0.0
    %2340 = vmatpush1.msra.mxu0 0.0
    %2341 = vmatprep.subr.mxu0 0.0
    %2342 = vmatpush1.msra.mxu0 0.0
    %2343 = vmatprep.subr.mxu0 0.0
    %2344 = vmatpush1.msra.mxu0 0.0
    %2345 = vmatprep.subr.mxu0 0.0
    %2346 = vmatpush1.msra.mxu0 0.0
    %2347 = vmatprep.subr.mxu0 0.0
    %2348 = vmatpush1.msra.mxu0 0.0
    %2349 = vmatprep.subr.mxu0 0.0
    %2350 = vmatpush1.msra.mxu0 %v2109
    %2351 = vmatprep.subr.mxu0 0.0
    %2352 = vmatpush1.msra.mxu0 %v2108
    %2353 = vmatprep.subr.mxu0 0.0
    %2354 = vmatpush1.msra.mxu0 %v2107
    %2355 = vmatprep.subr.mxu0 0.0
    %2356 = vmatpush1.msra.mxu0 %v2106
    %2357 = vmatprep.subr.mxu0 0.0
    %2358 = vmatpush2.msra.mxu0 0.0
    %2359 = vmatprep.subr.mxu0 0.0
    %2360 = vmatpush2.msra.mxu0 0.0
    %2361 = vmatprep.subr.mxu0 0.0
    %2362 = vmatpush2.msra.mxu0 0.0
    %2363 = vmatprep.subr.mxu0 0.0
    %2364 = vmatpush2.msra.mxu0 0.0
    %2365 = vmatprep.subr.mxu0 0.0
    %2366 = vmatpush2.msra.mxu0 0.0
    %2367 = vmatprep.subr.mxu0 0.0
    %2368 = vmatpush2.msra.mxu0 0.0
    %2369 = vmatprep.subr.mxu0 0.0
    %2370 = vmatpush2.msra.mxu0 0.0
    %2371 = vmatprep.subr.mxu0 0.0
    %2372 = vmatpush2.msra.mxu0 0.0
    %2373 = vmatprep.subr.mxu0 0.0
    %2374 = vmatpush2.msra.mxu0 0.0
    %2375 = vmatprep.subr.mxu0 0.0
    %2376 = vmatpush2.msra.mxu0 0.0
    %2377 = vmatprep.subr.mxu0 0.0
    %2378 = vmatpush2.msra.mxu0 0.0
    %2379 = vmatprep.subr.mxu0 0.0
    %2380 = vmatpush2.msra.mxu0 0.0
    %2381 = vmatprep.subr.mxu0 0.0
    %2382 = vmatpush2.msra.mxu0 0.0
    %2383 = vmatprep.subr.mxu0 0.0
    %2384 = vmatpush2.msra.mxu0 0.0
    %2385 = vmatprep.subr.mxu0 0.0
    %2386 = vmatpush2.msra.mxu0 0.0
    %2387 = vmatprep.subr.mxu0 0.0
    %2388 = vmatpush2.msra.mxu0 0.0
    %2389 = vmatprep.mubr.f32.mxu0 0.0
    %2390 = vmatmul.mubr.f32.gmra.mxu0 %v2323
    %v2391 = vpop.f32.mrf.mxu0
    %v2392 = vadd.f32 %v2321, %v2391
    %v2393 = vpop.f32.mrf.mxu0
    %2394 = vdwg.mxu0
    %v2395 = vmax.f32 %v2392, 0.0
    %v2396 = vlaneseq
    %v2397 = vshrl.u32 %v2396, 7
    %v2398 = vsub.s32 0, %v2397
    %v2399 = vrot.slane %v2111, %v2398
    %2400 = vrot.lane.b32.xlu0 %v143, 64
    %v2401 = vpop.permute.xlu0 %2400
    %2402 = vrot.lane.b32.xlu0 %v144, 64
    %v2403 = vpop.permute.xlu0 %2402
    %2404 = vrot.lane.b32.xlu0 %v145, 64
    %v2405 = vpop.permute.xlu0 %2404
    %2406 = vrot.lane.b32.xlu0 %v146, 64
    %v2407 = vpop.permute.xlu0 %2406
    %2408 = vrot.lane.b32.xlu0 %v147, 64
    %v2409 = vpop.permute.xlu0 %2408
    %2410 = vrot.lane.b32.xlu0 %v148, 64
    %v2411 = vpop.permute.xlu0 %2410
    %2412 = vrot.lane.b32.xlu0 %v149, 64
    %v2413 = vpop.permute.xlu0 %2412
    %2414 = vrot.lane.b32.xlu0 %v150, 64
    %v2415 = vpop.permute.xlu0 %2414
    %2416 = vrot.lane.b32.xlu0 %v151, 64
    %v2417 = vpop.permute.xlu0 %2416
    %2418 = vrot.lane.b32.xlu0 %v152, 64
    %v2419 = vpop.permute.xlu0 %2418
    %2420 = vrot.lane.b32.xlu0 %v153, 64
    %v2421 = vpop.permute.xlu0 %2420
    %2422 = vrot.lane.b32.xlu0 %v154, 64
    %v2423 = vpop.permute.xlu0 %2422
    %2424 = vrot.lane.b32.xlu0 %v155, 64
    %v2425 = vpop.permute.xlu0 %2424
    %2426 = vrot.lane.b32.xlu0 %v156, 64
    %v2427 = vpop.permute.xlu0 %2426
    %2428 = vrot.lane.b32.xlu0 %v157, 64
    %v2429 = vpop.permute.xlu0 %2428
    %2430 = vrot.lane.b32.xlu0 %v158, 64
    %v2431 = vpop.permute.xlu0 %2430
    %2448 = vmatprep.subr.mxu0 0.0
    %2449 = vmatpush1.msra.mxu0 %v2431
    %2450 = vmatprep.subr.mxu0 0.0
    %2451 = vmatpush1.msra.mxu0 %v2429
    %2452 = vmatprep.subr.mxu0 0.0
    %2453 = vmatpush1.msra.mxu0 %v2427
    %2454 = vmatprep.subr.mxu0 0.0
    %2455 = vmatpush1.msra.mxu0 %v2425
    %2456 = vmatprep.subr.mxu0 0.0
    %2457 = vmatpush1.msra.mxu0 %v2423
    %2458 = vmatprep.subr.mxu0 0.0
    %2459 = vmatpush1.msra.mxu0 %v2421
    %2460 = vmatprep.subr.mxu0 0.0
    %2461 = vmatpush1.msra.mxu0 %v2419
    %2462 = vmatprep.subr.mxu0 0.0
    %2463 = vmatpush1.msra.mxu0 %v2417
    %2464 = vmatprep.subr.mxu0 0.0
    %2465 = vmatpush1.msra.mxu0 %v2415
    %2466 = vmatprep.subr.mxu0 0.0
    %2467 = vmatpush1.msra.mxu0 %v2413
    %2468 = vmatprep.subr.mxu0 0.0
    %2469 = vmatpush1.msra.mxu0 %v2411
    %2470 = vmatprep.subr.mxu0 0.0
    %2471 = vmatpush1.msra.mxu0 %v2409
    %2472 = vmatprep.subr.mxu0 0.0
    %2473 = vmatpush1.msra.mxu0 %v2407
    %2474 = vmatprep.subr.mxu0 0.0
    %2475 = vmatpush1.msra.mxu0 %v2405
    %2476 = vmatprep.subr.mxu0 0.0
    %2477 = vmatpush1.msra.mxu0 %v2403
    %2478 = vmatprep.subr.mxu0 0.0
    %2479 = vmatpush1.msra.mxu0 %v2401
    %2480 = vmatprep.subr.mxu0 0.0
    %2481 = vmatpush2.msra.mxu0 0.0
    %2482 = vmatprep.subr.mxu0 0.0
    %2483 = vmatpush2.msra.mxu0 0.0
    %2484 = vmatprep.subr.mxu0 0.0
    %2485 = vmatpush2.msra.mxu0 0.0
    %2486 = vmatprep.subr.mxu0 0.0
    %2487 = vmatpush2.msra.mxu0 0.0
    %2488 = vmatprep.subr.mxu0 0.0
    %2489 = vmatpush2.msra.mxu0 0.0
    %2490 = vmatprep.subr.mxu0 0.0
    %2491 = vmatpush2.msra.mxu0 0.0
    %2492 = vmatprep.subr.mxu0 0.0
    %2493 = vmatpush2.msra.mxu0 0.0
    %2494 = vmatprep.subr.mxu0 0.0
    %2495 = vmatpush2.msra.mxu0 0.0
    %2496 = vmatprep.subr.mxu0 0.0
    %2497 = vmatpush2.msra.mxu0 0.0
    %2498 = vmatprep.subr.mxu0 0.0
    %2499 = vmatpush2.msra.mxu0 0.0
    %2500 = vmatprep.subr.mxu0 0.0
    %2501 = vmatpush2.msra.mxu0 0.0
    %2502 = vmatprep.subr.mxu0 0.0
    %2503 = vmatpush2.msra.mxu0 0.0
    %2504 = vmatprep.subr.mxu0 0.0
    %2505 = vmatpush2.msra.mxu0 0.0
    %2506 = vmatprep.subr.mxu0 0.0
    %2507 = vmatpush2.msra.mxu0 0.0
    %2508 = vmatprep.subr.mxu0 0.0
    %2509 = vmatpush2.msra.mxu0 0.0
    %2510 = vmatprep.subr.mxu0 0.0
    %2511 = vmatpush2.msra.mxu0 0.0
    %2512 = vmatprep.mubr.f32.mxu0 0.0
    %2513 = vmatmul.mubr.f32.gmra.mxu0 %v2395
    %v2514 = vpop.f32.mrf.mxu0
    %v2515 = vadd.f32 %v2399, %v2514
    %v2516 = vpop.f32.mrf.mxu0
    %2517 = vdwg.mxu0
    %v2518 = vadd.f32 %v2317, %v2515
    %v2519 = vsel %vm168, %v2518, 0.0
    %2520 = vadd.xlane.f32.xlu0 %v2519
    %v2521 = vpop.xlane.xlu0 %2520
    %v2522 = vmul.f32 %v2521, %v323
    %v2523 = vsub.f32 %v2518, %v2522
    %v2524 = vmul.f32 %v2523, %v2523
    %v2525 = vsel %vm168, %v2524, 0.0
    %2526 = vadd.xlane.f32.xlu0 %v2525
    %v2527 = vpop.xlane.xlu0 %2526
    %v2528 = vmul.f32 %v2527, %v323
    %v2529 = vadd.f32 %v2528, 1e-05
    %v2530 = vrsqrt.pop %v2529
    %v2531 = vmul.f32 %v2523, %v2530
    %v2532 = vlaneseq
    %v2533 = vshrl.u32 %v2532, 7
    %v2534 = vsub.s32 0, %v2533
    %v2535 = vrot.slane %v2114, %v2534
    %v2536 = vmul.f32 %v2531, %v2535
    %v2537 = vlaneseq
    %v2538 = vshrl.u32 %v2537, 7
    %v2539 = vsub.s32 0, %v2538
    %v2540 = vrot.slane %v2115, %v2539
    %v2541 = vadd.f32 %v2536, %v2540
    %v2542 = vld [vmem:[#allocation3 + $0x2e8] sm:$0x1]
    %v2543 = vld [vmem:[#allocation3 + $0x2e9] sm:$0x1]
    %v2544 = vld [vmem:[#allocation3 + $0x2c8] sm:$0xff]
    %v2545 = vld [vmem:[#allocation3 + $0x2d0] sm:$0xff]
    %v2546 = vld [vmem:[#allocation3 + $0x2d8] sm:$0xff]
    %v2547 = vld [vmem:[#allocation3 + $0x2e0] sm:$0xff]
    %v2548 = vld [vmem:[#allocation3 + $0x2ef] sm:$0x1]
    %v2549 = vld [vmem:[#allocation3 + $0x2ea] sm:$0x1]
    %v2550 = vld [vmem:[#allocation3 + $0x2eb] sm:$0x1]
    %v2551 = vld [vmem:[#allocation3 + $0x2ec] sm:$0x1]
    %v2552 = vld [vmem:[#allocation3 + $0x2ed] sm:$0x1]
    %v2553 = vld [vmem:[#allocation3 + $0x2ee] sm:$0x1]
    %v2554 = vlaneseq
    %v2555 = vshrl.u32 %v2554, 7
    %v2556 = vsub.s32 0, %v2555
    %v2557 = vrot.slane %v2542, %v2556
    %2558 = vrot.lane.b32.xlu0 %v520, 64
    %v2559 = vpop.permute.xlu0 %2558
    %2560 = vrot.lane.b32.xlu0 %v521, 64
    %v2561 = vpop.permute.xlu0 %2560
    %2562 = vrot.lane.b32.xlu0 %v522, 64
    %v2563 = vpop.permute.xlu0 %2562
    %2564 = vrot.lane.b32.xlu0 %v523, 64
    %v2565 = vpop.permute.xlu0 %2564
    %v2571 = vsel %vm168, %v2541, 0
    %2573 = vmatprep.subr.mxu0 0.0
    %2574 = vmatpush1.msra.mxu0 0.0
    %2575 = vmatprep.subr.mxu0 0.0
    %2576 = vmatpush1.msra.mxu0 0.0
    %2577 = vmatprep.subr.mxu0 0.0
    %2578 = vmatpush1.msra.mxu0 0.0
    %2579 = vmatprep.subr.mxu0 0.0
    %2580 = vmatpush1.msra.mxu0 0.0
    %2581 = vmatprep.subr.mxu0 0.0
    %2582 = vmatpush1.msra.mxu0 0.0
    %2583 = vmatprep.subr.mxu0 0.0
    %2584 = vmatpush1.msra.mxu0 0.0
    %2585 = vmatprep.subr.mxu0 0.0
    %2586 = vmatpush1.msra.mxu0 0.0
    %2587 = vmatprep.subr.mxu0 0.0
    %2588 = vmatpush1.msra.mxu0 0.0
    %2589 = vmatprep.subr.mxu0 0.0
    %2590 = vmatpush1.msra.mxu0 0.0
    %2591 = vmatprep.subr.mxu0 0.0
    %2592 = vmatpush1.msra.mxu0 0.0
    %2593 = vmatprep.subr.mxu0 0.0
    %2594 = vmatpush1.msra.mxu0 0.0
    %2595 = vmatprep.subr.mxu0 0.0
    %2596 = vmatpush1.msra.mxu0 0.0
    %2597 = vmatprep.subr.mxu0 0.0
    %2598 = vmatpush1.msra.mxu0 %v2565
    %2599 = vmatprep.subr.mxu0 0.0
    %2600 = vmatpush1.msra.mxu0 %v2563
    %2601 = vmatprep.subr.mxu0 0.0
    %2602 = vmatpush1.msra.mxu0 %v2561
    %2603 = vmatprep.subr.mxu0 0.0
    %2604 = vmatpush1.msra.mxu0 %v2559
    %2605 = vmatprep.subr.mxu0 0.0
    %2606 = vmatpush2.msra.mxu0 0.0
    %2607 = vmatprep.subr.mxu0 0.0
    %2608 = vmatpush2.msra.mxu0 0.0
    %2609 = vmatprep.subr.mxu0 0.0
    %2610 = vmatpush2.msra.mxu0 0.0
    %2611 = vmatprep.subr.mxu0 0.0
    %2612 = vmatpush2.msra.mxu0 0.0
    %2613 = vmatprep.subr.mxu0 0.0
    %2614 = vmatpush2.msra.mxu0 0.0
    %2615 = vmatprep.subr.mxu0 0.0
    %2616 = vmatpush2.msra.mxu0 0.0
    %2617 = vmatprep.subr.mxu0 0.0
    %2618 = vmatpush2.msra.mxu0 0.0
    %2619 = vmatprep.subr.mxu0 0.0
    %2620 = vmatpush2.msra.mxu0 0.0
    %2621 = vmatprep.subr.mxu0 0.0
    %2622 = vmatpush2.msra.mxu0 0.0
    %2623 = vmatprep.subr.mxu0 0.0
    %2624 = vmatpush2.msra.mxu0 0.0
    %2625 = vmatprep.subr.mxu0 0.0
    %2626 = vmatpush2.msra.mxu0 0.0
    %2627 = vmatprep.subr.mxu0 0.0
    %2628 = vmatpush2.msra.mxu0 0.0
    %2629 = vmatprep.subr.mxu0 0.0
    %2630 = vmatpush2.msra.mxu0 0.0
    %2631 = vmatprep.subr.mxu0 0.0
    %2632 = vmatpush2.msra.mxu0 0.0
    %2633 = vmatprep.subr.mxu0 0.0
    %2634 = vmatpush2.msra.mxu0 0.0
    %2635 = vmatprep.subr.mxu0 0.0
    %2636 = vmatpush2.msra.mxu0 0.0
    %2637 = vmatprep.mubr.f32.mxu0 0.0
    %2638 = vmatmul.mubr.f32.gmra.mxu0 %v2571
    %v2639 = vpop.f32.mrf.mxu0
    %v2640 = vadd.f32 %v2557, %v2639
    %v2641 = vpop.f32.mrf.mxu0
    %2642 = vdwg.mxu0
    %v2643 = vlaneseq
    %v2644 = vshrl.u32 %v2643, 7
    %v2645 = vsub.s32 0, %v2644
    %v2646 = vrot.slane %v2543, %v2645
    %2647 = vrot.lane.b32.xlu0 %v525, 64
    %v2648 = vpop.permute.xlu0 %2647
    %2649 = vrot.lane.b32.xlu0 %v526, 64
    %v2650 = vpop.permute.xlu0 %2649
    %2651 = vrot.lane.b32.xlu0 %v527, 64
    %v2652 = vpop.permute.xlu0 %2651
    %2653 = vrot.lane.b32.xlu0 %v528, 64
    %v2654 = vpop.permute.xlu0 %2653
    %v2660 = vsel %vm168, %v2640, 0
    %2662 = vmatprep.subr.mxu0 0.0
    %2663 = vmatpush1.msra.mxu0 0.0
    %2664 = vmatprep.subr.mxu0 0.0
    %2665 = vmatpush1.msra.mxu0 0.0
    %2666 = vmatprep.subr.mxu0 0.0
    %2667 = vmatpush1.msra.mxu0 0.0
    %2668 = vmatprep.subr.mxu0 0.0
    %2669 = vmatpush1.msra.mxu0 0.0
    %2670 = vmatprep.subr.mxu0 0.0
    %2671 = vmatpush1.msra.mxu0 0.0
    %2672 = vmatprep.subr.mxu0 0.0
    %2673 = vmatpush1.msra.mxu0 0.0
    %2674 = vmatprep.subr.mxu0 0.0
    %2675 = vmatpush1.msra.mxu0 0.0
    %2676 = vmatprep.subr.mxu0 0.0
    %2677 = vmatpush1.msra.mxu0 0.0
    %2678 = vmatprep.subr.mxu0 0.0
    %2679 = vmatpush1.msra.mxu0 0.0
    %2680 = vmatprep.subr.mxu0 0.0
    %2681 = vmatpush1.msra.mxu0 0.0
    %2682 = vmatprep.subr.mxu0 0.0
    %2683 = vmatpush1.msra.mxu0 0.0
    %2684 = vmatprep.subr.mxu0 0.0
    %2685 = vmatpush1.msra.mxu0 0.0
    %2686 = vmatprep.subr.mxu0 0.0
    %2687 = vmatpush1.msra.mxu0 %v2654
    %2688 = vmatprep.subr.mxu0 0.0
    %2689 = vmatpush1.msra.mxu0 %v2652
    %2690 = vmatprep.subr.mxu0 0.0
    %2691 = vmatpush1.msra.mxu0 %v2650
    %2692 = vmatprep.subr.mxu0 0.0
    %2693 = vmatpush1.msra.mxu0 %v2648
    %2694 = vmatprep.subr.mxu0 0.0
    %2695 = vmatpush2.msra.mxu0 0.0
    %2696 = vmatprep.subr.mxu0 0.0
    %2697 = vmatpush2.msra.mxu0 0.0
    %2698 = vmatprep.subr.mxu0 0.0
    %2699 = vmatpush2.msra.mxu0 0.0
    %2700 = vmatprep.subr.mxu0 0.0
    %2701 = vmatpush2.msra.mxu0 0.0
    %2702 = vmatprep.subr.mxu0 0.0
    %2703 = vmatpush2.msra.mxu0 0.0
    %2704 = vmatprep.subr.mxu0 0.0
    %2705 = vmatpush2.msra.mxu0 0.0
    %2706 = vmatprep.subr.mxu0 0.0
    %2707 = vmatpush2.msra.mxu0 0.0
    %2708 = vmatprep.subr.mxu0 0.0
    %2709 = vmatpush2.msra.mxu0 0.0
    %2710 = vmatprep.subr.mxu0 0.0
    %2711 = vmatpush2.msra.mxu0 0.0
    %2712 = vmatprep.subr.mxu0 0.0
    %2713 = vmatpush2.msra.mxu0 0.0
    %2714 = vmatprep.subr.mxu0 0.0
    %2715 = vmatpush2.msra.mxu0 0.0
    %2716 = vmatprep.subr.mxu0 0.0
    %2717 = vmatpush2.msra.mxu0 0.0
    %2718 = vmatprep.subr.mxu0 0.0
    %2719 = vmatpush2.msra.mxu0 0.0
    %2720 = vmatprep.subr.mxu0 0.0
    %2721 = vmatpush2.msra.mxu0 0.0
    %2722 = vmatprep.subr.mxu0 0.0
    %2723 = vmatpush2.msra.mxu0 0.0
    %2724 = vmatprep.subr.mxu0 0.0
    %2725 = vmatpush2.msra.mxu0 0.0
    %2726 = vmatprep.mubr.f32.mxu0 0.0
    %2727 = vmatmul.mubr.f32.gmra.mxu0 %v2660
    %v2728 = vpop.f32.mrf.mxu0
    %v2729 = vadd.f32 %v2646, %v2728
    %v2730 = vpop.f32.mrf.mxu0
    %2731 = vdwg.mxu0
    %v2732 = vadd.f32 %v2541, %v2729
    %v2733 = vsel %vm168, %v2732, 0.0
    %2734 = vadd.xlane.f32.xlu0 %v2733
    %v2735 = vpop.xlane.xlu0 %2734
    %v2736 = vmul.f32 %v2735, %v323
    %v2737 = vsub.f32 %v2732, %v2736
    %v2738 = vmul.f32 %v2737, %v2737
    %v2739 = vsel %vm168, %v2738, 0.0
    %2740 = vadd.xlane.f32.xlu0 %v2739
    %v2741 = vpop.xlane.xlu0 %2740
    %v2742 = vmul.f32 %v2741, %v323
    %v2743 = vadd.f32 %v2742, 1e-05
    %v2744 = vrsqrt.pop %v2743
    %v2745 = vmul.f32 %v2737, %v2744
    %v2746 = vlaneseq
    %v2747 = vshrl.u32 %v2746, 7
    %v2748 = vsub.s32 0, %v2747
    %v2749 = vrot.slane %v2550, %v2748
    %v2750 = vmul.f32 %v2745, %v2749
    %v2751 = vlaneseq
    %v2752 = vshrl.u32 %v2751, 7
    %v2753 = vsub.s32 0, %v2752
    %v2754 = vrot.slane %v2551, %v2753
    %v2755 = vadd.f32 %v2750, %v2754
    %v2756 = vlaneseq
    %v2757 = vshrl.u32 %v2756, 7
    %v2758 = vsub.s32 0, %v2757
    %v2759 = vrot.slane %v2548, %v2758
    %v2761 = vsel %vm168, %v2755, 0
    %2763 = vmatprep.subr.mxu0 0.0
    %2764 = vmatpush1.msra.mxu0 0.0
    %2765 = vmatprep.subr.mxu0 0.0
    %2766 = vmatpush1.msra.mxu0 0.0
    %2767 = vmatprep.subr.mxu0 0.0
    %2768 = vmatpush1.msra.mxu0 0.0
    %2769 = vmatprep.subr.mxu0 0.0
    %2770 = vmatpush1.msra.mxu0 0.0
    %2771 = vmatprep.subr.mxu0 0.0
    %2772 = vmatpush1.msra.mxu0 0.0
    %2773 = vmatprep.subr.mxu0 0.0
    %2774 = vmatpush1.msra.mxu0 0.0
    %2775 = vmatprep.subr.mxu0 0.0
    %2776 = vmatpush1.msra.mxu0 0.0
    %2777 = vmatprep.subr.mxu0 0.0
    %2778 = vmatpush1.msra.mxu0 0.0
    %2779 = vmatprep.subr.mxu0 0.0
    %2780 = vmatpush1.msra.mxu0 0.0
    %2781 = vmatprep.subr.mxu0 0.0
    %2782 = vmatpush1.msra.mxu0 0.0
    %2783 = vmatprep.subr.mxu0 0.0
    %2784 = vmatpush1.msra.mxu0 0.0
    %2785 = vmatprep.subr.mxu0 0.0
    %2786 = vmatpush1.msra.mxu0 0.0
    %2787 = vmatprep.subr.mxu0 0.0
    %2788 = vmatpush1.msra.mxu0 %v2547
    %2789 = vmatprep.subr.mxu0 0.0
    %2790 = vmatpush1.msra.mxu0 %v2546
    %2791 = vmatprep.subr.mxu0 0.0
    %2792 = vmatpush1.msra.mxu0 %v2545
    %2793 = vmatprep.subr.mxu0 0.0
    %2794 = vmatpush1.msra.mxu0 %v2544
    %2795 = vmatprep.subr.mxu0 0.0
    %2796 = vmatpush2.msra.mxu0 0.0
    %2797 = vmatprep.subr.mxu0 0.0
    %2798 = vmatpush2.msra.mxu0 0.0
    %2799 = vmatprep.subr.mxu0 0.0
    %2800 = vmatpush2.msra.mxu0 0.0
    %2801 = vmatprep.subr.mxu0 0.0
    %2802 = vmatpush2.msra.mxu0 0.0
    %2803 = vmatprep.subr.mxu0 0.0
    %2804 = vmatpush2.msra.mxu0 0.0
    %2805 = vmatprep.subr.mxu0 0.0
    %2806 = vmatpush2.msra.mxu0 0.0
    %2807 = vmatprep.subr.mxu0 0.0
    %2808 = vmatpush2.msra.mxu0 0.0
    %2809 = vmatprep.subr.mxu0 0.0
    %2810 = vmatpush2.msra.mxu0 0.0
    %2811 = vmatprep.subr.mxu0 0.0
    %2812 = vmatpush2.msra.mxu0 0.0
    %2813 = vmatprep.subr.mxu0 0.0
    %2814 = vmatpush2.msra.mxu0 0.0
    %2815 = vmatprep.subr.mxu0 0.0
    %2816 = vmatpush2.msra.mxu0 0.0
    %2817 = vmatprep.subr.mxu0 0.0
    %2818 = vmatpush2.msra.mxu0 0.0
    %2819 = vmatprep.subr.mxu0 0.0
    %2820 = vmatpush2.msra.mxu0 0.0
    %2821 = vmatprep.subr.mxu0 0.0
    %2822 = vmatpush2.msra.mxu0 0.0
    %2823 = vmatprep.subr.mxu0 0.0
    %2824 = vmatpush2.msra.mxu0 0.0
    %2825 = vmatprep.subr.mxu0 0.0
    %2826 = vmatpush2.msra.mxu0 0.0
    %2827 = vmatprep.mubr.f32.mxu0 0.0
    %2828 = vmatmul.mubr.f32.gmra.mxu0 %v2761
    %v2829 = vpop.f32.mrf.mxu0
    %v2830 = vadd.f32 %v2759, %v2829
    %v2831 = vpop.f32.mrf.mxu0
    %2832 = vdwg.mxu0
    %v2833 = vmax.f32 %v2830, 0.0
    %v2834 = vlaneseq
    %v2835 = vshrl.u32 %v2834, 7
    %v2836 = vsub.s32 0, %v2835
    %v2837 = vrot.slane %v2549, %v2836
    %2838 = vrot.lane.b32.xlu0 %v535, 64
    %v2839 = vpop.permute.xlu0 %2838
    %2840 = vrot.lane.b32.xlu0 %v536, 64
    %v2841 = vpop.permute.xlu0 %2840
    %2842 = vrot.lane.b32.xlu0 %v537, 64
    %v2843 = vpop.permute.xlu0 %2842
    %2844 = vrot.lane.b32.xlu0 %v538, 64
    %v2845 = vpop.permute.xlu0 %2844
    %2846 = vrot.lane.b32.xlu0 %v539, 64
    %v2847 = vpop.permute.xlu0 %2846
    %2848 = vrot.lane.b32.xlu0 %v540, 64
    %v2849 = vpop.permute.xlu0 %2848
    %2850 = vrot.lane.b32.xlu0 %v541, 64
    %v2851 = vpop.permute.xlu0 %2850
    %2852 = vrot.lane.b32.xlu0 %v542, 64
    %v2853 = vpop.permute.xlu0 %2852
    %2854 = vrot.lane.b32.xlu0 %v543, 64
    %v2855 = vpop.permute.xlu0 %2854
    %2856 = vrot.lane.b32.xlu0 %v544, 64
    %v2857 = vpop.permute.xlu0 %2856
    %2858 = vrot.lane.b32.xlu0 %v545, 64
    %v2859 = vpop.permute.xlu0 %2858
    %2860 = vrot.lane.b32.xlu0 %v546, 64
    %v2861 = vpop.permute.xlu0 %2860
    %2862 = vrot.lane.b32.xlu0 %v547, 64
    %v2863 = vpop.permute.xlu0 %2862
    %2864 = vrot.lane.b32.xlu0 %v548, 64
    %v2865 = vpop.permute.xlu0 %2864
    %2866 = vrot.lane.b32.xlu0 %v549, 64
    %v2867 = vpop.permute.xlu0 %2866
    %2868 = vrot.lane.b32.xlu0 %v550, 64
    %v2869 = vpop.permute.xlu0 %2868
    %2886 = vmatprep.subr.mxu0 0.0
    %2887 = vmatpush1.msra.mxu0 %v2869
    %2888 = vmatprep.subr.mxu0 0.0
    %2889 = vmatpush1.msra.mxu0 %v2867
    %2890 = vmatprep.subr.mxu0 0.0
    %2891 = vmatpush1.msra.mxu0 %v2865
    %2892 = vmatprep.subr.mxu0 0.0
    %2893 = vmatpush1.msra.mxu0 %v2863
    %2894 = vmatprep.subr.mxu0 0.0
    %2895 = vmatpush1.msra.mxu0 %v2861
    %2896 = vmatprep.subr.mxu0 0.0
    %2897 = vmatpush1.msra.mxu0 %v2859
    %2898 = vmatprep.subr.mxu0 0.0
    %2899 = vmatpush1.msra.mxu0 %v2857
    %2900 = vmatprep.subr.mxu0 0.0
    %2901 = vmatpush1.msra.mxu0 %v2855
    %2902 = vmatprep.subr.mxu0 0.0
    %2903 = vmatpush1.msra.mxu0 %v2853
    %2904 = vmatprep.subr.mxu0 0.0
    %2905 = vmatpush1.msra.mxu0 %v2851
    %2906 = vmatprep.subr.mxu0 0.0
    %2907 = vmatpush1.msra.mxu0 %v2849
    %2908 = vmatprep.subr.mxu0 0.0
    %2909 = vmatpush1.msra.mxu0 %v2847
    %2910 = vmatprep.subr.mxu0 0.0
    %2911 = vmatpush1.msra.mxu0 %v2845
    %2912 = vmatprep.subr.mxu0 0.0
    %2913 = vmatpush1.msra.mxu0 %v2843
    %2914 = vmatprep.subr.mxu0 0.0
    %2915 = vmatpush1.msra.mxu0 %v2841
    %2916 = vmatprep.subr.mxu0 0.0
    %2917 = vmatpush1.msra.mxu0 %v2839
    %2918 = vmatprep.subr.mxu0 0.0
    %2919 = vmatpush2.msra.mxu0 0.0
    %2920 = vmatprep.subr.mxu0 0.0
    %2921 = vmatpush2.msra.mxu0 0.0
    %2922 = vmatprep.subr.mxu0 0.0
    %2923 = vmatpush2.msra.mxu0 0.0
    %2924 = vmatprep.subr.mxu0 0.0
    %2925 = vmatpush2.msra.mxu0 0.0
    %2926 = vmatprep.subr.mxu0 0.0
    %2927 = vmatpush2.msra.mxu0 0.0
    %2928 = vmatprep.subr.mxu0 0.0
    %2929 = vmatpush2.msra.mxu0 0.0
    %2930 = vmatprep.subr.mxu0 0.0
    %2931 = vmatpush2.msra.mxu0 0.0
    %2932 = vmatprep.subr.mxu0 0.0
    %2933 = vmatpush2.msra.mxu0 0.0
    %2934 = vmatprep.subr.mxu0 0.0
    %2935 = vmatpush2.msra.mxu0 0.0
    %2936 = vmatprep.subr.mxu0 0.0
    %2937 = vmatpush2.msra.mxu0 0.0
    %2938 = vmatprep.subr.mxu0 0.0
    %2939 = vmatpush2.msra.mxu0 0.0
    %2940 = vmatprep.subr.mxu0 0.0
    %2941 = vmatpush2.msra.mxu0 0.0
    %2942 = vmatprep.subr.mxu0 0.0
    %2943 = vmatpush2.msra.mxu0 0.0
    %2944 = vmatprep.subr.mxu0 0.0
    %2945 = vmatpush2.msra.mxu0 0.0
    %2946 = vmatprep.subr.mxu0 0.0
    %2947 = vmatpush2.msra.mxu0 0.0
    %2948 = vmatprep.subr.mxu0 0.0
    %2949 = vmatpush2.msra.mxu0 0.0
    %2950 = vmatprep.mubr.f32.mxu0 0.0
    %2951 = vmatmul.mubr.f32.gmra.mxu0 %v2833
    %v2952 = vpop.f32.mrf.mxu0
    %v2953 = vadd.f32 %v2837, %v2952
    %v2954 = vpop.f32.mrf.mxu0
    %2955 = vdwg.mxu0
    %v2956 = vadd.f32 %v2755, %v2953
    %v2957 = vsel %vm168, %v2956, 0.0
    %2958 = vadd.xlane.f32.xlu0 %v2957
    %v2959 = vpop.xlane.xlu0 %2958
    %v2960 = vmul.f32 %v2959, %v323
    %v2961 = vsub.f32 %v2956, %v2960
    %v2962 = vmul.f32 %v2961, %v2961
    %v2963 = vsel %vm168, %v2962, 0.0
    %2964 = vadd.xlane.f32.xlu0 %v2963
    %v2965 = vpop.xlane.xlu0 %2964
    %v2966 = vmul.f32 %v2965, %v323
    %v2967 = vadd.f32 %v2966, 1e-05
    %v2968 = vrsqrt.pop %v2967
    %v2969 = vmul.f32 %v2961, %v2968
    %v2970 = vlaneseq
    %v2971 = vshrl.u32 %v2970, 7
    %v2972 = vsub.s32 0, %v2971
    %v2973 = vrot.slane %v2552, %v2972
    %v2974 = vmul.f32 %v2969, %v2973
    %v2975 = vlaneseq
    %v2976 = vshrl.u32 %v2975, 7
    %v2977 = vsub.s32 0, %v2976
    %v2978 = vrot.slane %v2553, %v2977
    %v2979 = vadd.f32 %v2974, %v2978
    %v2980 = vld [vmem:[%s0 + $0x18] sm:$0xff]
    %2981 = vrot.lane.b32.xlu0 %v31, 32
    %v2982 = vpop.permute.xlu0 %2981
    %2983 = vrot.lane.b32.xlu0 %v32, 32
    %v2984 = vpop.permute.xlu0 %2983
    %2985 = vrot.lane.b32.xlu0 %v33, 32
    %v2986 = vpop.permute.xlu0 %2985
    %2987 = vrot.lane.b32.xlu0 %v34, 32
    %v2988 = vpop.permute.xlu0 %2987
    %2989 = vrot.lane.b32.xlu0 %v35, 32
    %v2990 = vpop.permute.xlu0 %2989
    %2991 = vrot.lane.b32.xlu0 %v36, 32
    %v2992 = vpop.permute.xlu0 %2991
    %2993 = vrot.lane.b32.xlu0 %v37, 32
    %v2994 = vpop.permute.xlu0 %2993
    %2995 = vrot.lane.b32.xlu0 %v38, 32
    %v2996 = vpop.permute.xlu0 %2995
    %2997 = vrot.lane.b32.xlu0 %v39, 32
    %v2998 = vpop.permute.xlu0 %2997
    %2999 = vrot.lane.b32.xlu0 %v40, 32
    %v3000 = vpop.permute.xlu0 %2999
    %3001 = vrot.lane.b32.xlu0 %v41, 32
    %v3002 = vpop.permute.xlu0 %3001
    %3003 = vrot.lane.b32.xlu0 %v42, 32
    %v3004 = vpop.permute.xlu0 %3003
    %3005 = vrot.lane.b32.xlu0 %v43, 32
    %v3006 = vpop.permute.xlu0 %3005
    %3007 = vrot.lane.b32.xlu0 %v44, 32
    %v3008 = vpop.permute.xlu0 %3007
    %3009 = vrot.lane.b32.xlu0 %v45, 32
    %v3010 = vpop.permute.xlu0 %3009
    %3011 = vrot.lane.b32.xlu0 %v46, 32
    %v3012 = vpop.permute.xlu0 %3011
    %3029 = vrot.lane.b32.xlu0 %v51, 32
    %v3030 = vpop.permute.xlu0 %3029
    %3032 = vmatprep.subr.mxu0 0.0
    %3033 = vmatpush1.msra.mxu0 %v3012
    %3034 = vmatprep.subr.mxu0 0.0
    %3035 = vmatpush1.msra.mxu0 %v3010
    %3036 = vmatprep.subr.mxu0 0.0
    %3037 = vmatpush1.msra.mxu0 %v3008
    %3038 = vmatprep.subr.mxu0 0.0
    %3039 = vmatpush1.msra.mxu0 %v3006
    %3040 = vmatprep.subr.mxu0 0.0
    %3041 = vmatpush1.msra.mxu0 %v3004
    %3042 = vmatprep.subr.mxu0 0.0
    %3043 = vmatpush1.msra.mxu0 %v3002
    %3044 = vmatprep.subr.mxu0 0.0
    %3045 = vmatpush1.msra.mxu0 %v3000
    %3046 = vmatprep.subr.mxu0 0.0
    %3047 = vmatpush1.msra.mxu0 %v2998
    %3048 = vmatprep.subr.mxu0 0.0
    %3049 = vmatpush1.msra.mxu0 %v2996
    %3050 = vmatprep.subr.mxu0 0.0
    %3051 = vmatpush1.msra.mxu0 %v2994
    %3052 = vmatprep.subr.mxu0 0.0
    %3053 = vmatpush1.msra.mxu0 %v2992
    %3054 = vmatprep.subr.mxu0 0.0
    %3055 = vmatpush1.msra.mxu0 %v2990
    %3056 = vmatprep.subr.mxu0 0.0
    %3057 = vmatpush1.msra.mxu0 %v2988
    %3058 = vmatprep.subr.mxu0 0.0
    %3059 = vmatpush1.msra.mxu0 %v2986
    %3060 = vmatprep.subr.mxu0 0.0
    %3061 = vmatpush1.msra.mxu0 %v2984
    %3062 = vmatprep.subr.mxu0 0.0
    %3063 = vmatpush1.msra.mxu0 %v2982
    %3064 = vmatprep.subr.mxu0 0.0
    %3065 = vmatpush2.msra.mxu0 0.0
    %3066 = vmatprep.subr.mxu0 0.0
    %3067 = vmatpush2.msra.mxu0 0.0
    %3068 = vmatprep.subr.mxu0 0.0
    %3069 = vmatpush2.msra.mxu0 0.0
    %3070 = vmatprep.subr.mxu0 0.0
    %3071 = vmatpush2.msra.mxu0 0.0
    %3072 = vmatprep.subr.mxu0 0.0
    %3073 = vmatpush2.msra.mxu0 0.0
    %3074 = vmatprep.subr.mxu0 0.0
    %3075 = vmatpush2.msra.mxu0 0.0
    %3076 = vmatprep.subr.mxu0 0.0
    %3077 = vmatpush2.msra.mxu0 0.0
    %3078 = vmatprep.subr.mxu0 0.0
    %3079 = vmatpush2.msra.mxu0 0.0
    %3080 = vmatprep.subr.mxu0 0.0
    %3081 = vmatpush2.msra.mxu0 0.0
    %3082 = vmatprep.subr.mxu0 0.0
    %3083 = vmatpush2.msra.mxu0 0.0
    %3084 = vmatprep.subr.mxu0 0.0
    %3085 = vmatpush2.msra.mxu0 0.0
    %3086 = vmatprep.subr.mxu0 0.0
    %3087 = vmatpush2.msra.mxu0 0.0
    %3088 = vmatprep.subr.mxu0 0.0
    %3089 = vmatpush2.msra.mxu0 0.0
    %3090 = vmatprep.subr.mxu0 0.0
    %3091 = vmatpush2.msra.mxu0 0.0
    %3092 = vmatprep.subr.mxu0 0.0
    %3093 = vmatpush2.msra.mxu0 0.0
    %3094 = vmatprep.subr.mxu0 0.0
    %3095 = vmatpush2.msra.mxu0 0.0
    %3096 = vmatprep.mubr.f32.mxu0 0.0
    %3097 = vmatmul.mubr.f32.gmra.mxu0 %v2980
    %v3098 = vpop.f32.mrf.mxu0
    %v3099 = vadd.f32 %v3030, %v3098
    %v3100 = vpop.f32.mrf.mxu0
    %3101 = vdwg.mxu0
    %3102 = vrot.lane.b32.xlu0 %v126, 32
    %v3103 = vpop.permute.xlu0 %3102
    %v3105 = vadd.f32 %v3099, %v3103
    %v3106 = vld [vmem:[#allocation3 + $0x310] sm:$0x1]
    %v3107 = vld [vmem:[#allocation3 + $0x311] sm:$0x1]
    %v3108 = vld [vmem:[#allocation3 + $0x2f0] sm:$0xff]
    %v3109 = vld [vmem:[#allocation3 + $0x2f8] sm:$0xff]
    %v3110 = vld [vmem:[#allocation3 + $0x300] sm:$0xff]
    %v3111 = vld [vmem:[#allocation3 + $0x308] sm:$0xff]
    %v3112 = vld [vmem:[#allocation3 + $0x317] sm:$0x1]
    %v3113 = vld [vmem:[#allocation3 + $0x312] sm:$0x1]
    %v3114 = vld [vmem:[#allocation3 + $0x313] sm:$0x1]
    %v3115 = vld [vmem:[#allocation3 + $0x314] sm:$0x1]
    %v3116 = vld [vmem:[#allocation3 + $0x315] sm:$0x1]
    %v3117 = vld [vmem:[#allocation3 + $0x316] sm:$0x1]
    %v3118 = vlaneseq
    %v3119 = vshrl.u32 %v3118, 7
    %v3120 = vsub.s32 0, %v3119
    %v3121 = vrot.slane %v3106, %v3120
    %3122 = vrot.lane.b32.xlu0 %v128, 32
    %v3123 = vpop.permute.xlu0 %3122
    %3124 = vrot.lane.b32.xlu0 %v129, 32
    %v3125 = vpop.permute.xlu0 %3124
    %3126 = vrot.lane.b32.xlu0 %v130, 32
    %v3127 = vpop.permute.xlu0 %3126
    %3128 = vrot.lane.b32.xlu0 %v131, 32
    %v3129 = vpop.permute.xlu0 %3128
    %v3135 = vsel %vm168, %v3105, 0
    %3137 = vmatprep.subr.mxu0 0.0
    %3138 = vmatpush1.msra.mxu0 0.0
    %3139 = vmatprep.subr.mxu0 0.0
    %3140 = vmatpush1.msra.mxu0 0.0
    %3141 = vmatprep.subr.mxu0 0.0
    %3142 = vmatpush1.msra.mxu0 0.0
    %3143 = vmatprep.subr.mxu0 0.0
    %3144 = vmatpush1.msra.mxu0 0.0
    %3145 = vmatprep.subr.mxu0 0.0
    %3146 = vmatpush1.msra.mxu0 0.0
    %3147 = vmatprep.subr.mxu0 0.0
    %3148 = vmatpush1.msra.mxu0 0.0
    %3149 = vmatprep.subr.mxu0 0.0
    %3150 = vmatpush1.msra.mxu0 0.0
    %3151 = vmatprep.subr.mxu0 0.0
    %3152 = vmatpush1.msra.mxu0 0.0
    %3153 = vmatprep.subr.mxu0 0.0
    %3154 = vmatpush1.msra.mxu0 0.0
    %3155 = vmatprep.subr.mxu0 0.0
    %3156 = vmatpush1.msra.mxu0 0.0
    %3157 = vmatprep.subr.mxu0 0.0
    %3158 = vmatpush1.msra.mxu0 0.0
    %3159 = vmatprep.subr.mxu0 0.0
    %3160 = vmatpush1.msra.mxu0 0.0
    %3161 = vmatprep.subr.mxu0 0.0
    %3162 = vmatpush1.msra.mxu0 %v3129
    %3163 = vmatprep.subr.mxu0 0.0
    %3164 = vmatpush1.msra.mxu0 %v3127
    %3165 = vmatprep.subr.mxu0 0.0
    %3166 = vmatpush1.msra.mxu0 %v3125
    %3167 = vmatprep.subr.mxu0 0.0
    %3168 = vmatpush1.msra.mxu0 %v3123
    %3169 = vmatprep.subr.mxu0 0.0
    %3170 = vmatpush2.msra.mxu0 0.0
    %3171 = vmatprep.subr.mxu0 0.0
    %3172 = vmatpush2.msra.mxu0 0.0
    %3173 = vmatprep.subr.mxu0 0.0
    %3174 = vmatpush2.msra.mxu0 0.0
    %3175 = vmatprep.subr.mxu0 0.0
    %3176 = vmatpush2.msra.mxu0 0.0
    %3177 = vmatprep.subr.mxu0 0.0
    %3178 = vmatpush2.msra.mxu0 0.0
    %3179 = vmatprep.subr.mxu0 0.0
    %3180 = vmatpush2.msra.mxu0 0.0
    %3181 = vmatprep.subr.mxu0 0.0
    %3182 = vmatpush2.msra.mxu0 0.0
    %3183 = vmatprep.subr.mxu0 0.0
    %3184 = vmatpush2.msra.mxu0 0.0
    %3185 = vmatprep.subr.mxu0 0.0
    %3186 = vmatpush2.msra.mxu0 0.0
    %3187 = vmatprep.subr.mxu0 0.0
    %3188 = vmatpush2.msra.mxu0 0.0
    %3189 = vmatprep.subr.mxu0 0.0
    %3190 = vmatpush2.msra.mxu0 0.0
    %3191 = vmatprep.subr.mxu0 0.0
    %3192 = vmatpush2.msra.mxu0 0.0
    %3193 = vmatprep.subr.mxu0 0.0
    %3194 = vmatpush2.msra.mxu0 0.0
    %3195 = vmatprep.subr.mxu0 0.0
    %3196 = vmatpush2.msra.mxu0 0.0
    %3197 = vmatprep.subr.mxu0 0.0
    %3198 = vmatpush2.msra.mxu0 0.0
    %3199 = vmatprep.subr.mxu0 0.0
    %3200 = vmatpush2.msra.mxu0 0.0
    %3201 = vmatprep.mubr.f32.mxu0 0.0
    %3202 = vmatmul.mubr.f32.gmra.mxu0 %v3135
    %v3203 = vpop.f32.mrf.mxu0
    %v3204 = vadd.f32 %v3121, %v3203
    %v3205 = vpop.f32.mrf.mxu0
    %3206 = vdwg.mxu0
    %v3207 = vlaneseq
    %v3208 = vshrl.u32 %v3207, 7
    %v3209 = vsub.s32 0, %v3208
    %v3210 = vrot.slane %v3107, %v3209
    %3211 = vrot.lane.b32.xlu0 %v133, 32
    %v3212 = vpop.permute.xlu0 %3211
    %3213 = vrot.lane.b32.xlu0 %v134, 32
    %v3214 = vpop.permute.xlu0 %3213
    %3215 = vrot.lane.b32.xlu0 %v135, 32
    %v3216 = vpop.permute.xlu0 %3215
    %3217 = vrot.lane.b32.xlu0 %v136, 32
    %v3218 = vpop.permute.xlu0 %3217
    %v3224 = vsel %vm168, %v3204, 0
    %3226 = vmatprep.subr.mxu0 0.0
    %3227 = vmatpush1.msra.mxu0 0.0
    %3228 = vmatprep.subr.mxu0 0.0
    %3229 = vmatpush1.msra.mxu0 0.0
    %3230 = vmatprep.subr.mxu0 0.0
    %3231 = vmatpush1.msra.mxu0 0.0
    %3232 = vmatprep.subr.mxu0 0.0
    %3233 = vmatpush1.msra.mxu0 0.0
    %3234 = vmatprep.subr.mxu0 0.0
    %3235 = vmatpush1.msra.mxu0 0.0
    %3236 = vmatprep.subr.mxu0 0.0
    %3237 = vmatpush1.msra.mxu0 0.0
    %3238 = vmatprep.subr.mxu0 0.0
    %3239 = vmatpush1.msra.mxu0 0.0
    %3240 = vmatprep.subr.mxu0 0.0
    %3241 = vmatpush1.msra.mxu0 0.0
    %3242 = vmatprep.subr.mxu0 0.0
    %3243 = vmatpush1.msra.mxu0 0.0
    %3244 = vmatprep.subr.mxu0 0.0
    %3245 = vmatpush1.msra.mxu0 0.0
    %3246 = vmatprep.subr.mxu0 0.0
    %3247 = vmatpush1.msra.mxu0 0.0
    %3248 = vmatprep.subr.mxu0 0.0
    %3249 = vmatpush1.msra.mxu0 0.0
    %3250 = vmatprep.subr.mxu0 0.0
    %3251 = vmatpush1.msra.mxu0 %v3218
    %3252 = vmatprep.subr.mxu0 0.0
    %3253 = vmatpush1.msra.mxu0 %v3216
    %3254 = vmatprep.subr.mxu0 0.0
    %3255 = vmatpush1.msra.mxu0 %v3214
    %3256 = vmatprep.subr.mxu0 0.0
    %3257 = vmatpush1.msra.mxu0 %v3212
    %3258 = vmatprep.subr.mxu0 0.0
    %3259 = vmatpush2.msra.mxu0 0.0
    %3260 = vmatprep.subr.mxu0 0.0
    %3261 = vmatpush2.msra.mxu0 0.0
    %3262 = vmatprep.subr.mxu0 0.0
    %3263 = vmatpush2.msra.mxu0 0.0
    %3264 = vmatprep.subr.mxu0 0.0
    %3265 = vmatpush2.msra.mxu0 0.0
    %3266 = vmatprep.subr.mxu0 0.0
    %3267 = vmatpush2.msra.mxu0 0.0
    %3268 = vmatprep.subr.mxu0 0.0
    %3269 = vmatpush2.msra.mxu0 0.0
    %3270 = vmatprep.subr.mxu0 0.0
    %3271 = vmatpush2.msra.mxu0 0.0
    %3272 = vmatprep.subr.mxu0 0.0
    %3273 = vmatpush2.msra.mxu0 0.0
    %3274 = vmatprep.subr.mxu0 0.0
    %3275 = vmatpush2.msra.mxu0 0.0
    %3276 = vmatprep.subr.mxu0 0.0
    %3277 = vmatpush2.msra.mxu0 0.0
    %3278 = vmatprep.subr.mxu0 0.0
    %3279 = vmatpush2.msra.mxu0 0.0
    %3280 = vmatprep.subr.mxu0 0.0
    %3281 = vmatpush2.msra.mxu0 0.0
    %3282 = vmatprep.subr.mxu0 0.0
    %3283 = vmatpush2.msra.mxu0 0.0
    %3284 = vmatprep.subr.mxu0 0.0
    %3285 = vmatpush2.msra.mxu0 0.0
    %3286 = vmatprep.subr.mxu0 0.0
    %3287 = vmatpush2.msra.mxu0 0.0
    %3288 = vmatprep.subr.mxu0 0.0
    %3289 = vmatpush2.msra.mxu0 0.0
    %3290 = vmatprep.mubr.f32.mxu0 0.0
    %3291 = vmatmul.mubr.f32.gmra.mxu0 %v3224
    %v3292 = vpop.f32.mrf.mxu0
    %v3293 = vadd.f32 %v3210, %v3292
    %v3294 = vpop.f32.mrf.mxu0
    %3295 = vdwg.mxu0
    %v3296 = vadd.f32 %v3105, %v3293
    %v3297 = vsel %vm168, %v3296, 0.0
    %3298 = vadd.xlane.f32.xlu0 %v3297
    %v3299 = vpop.xlane.xlu0 %3298
    %v3300 = vmul.f32 %v3299, %v323
    %v3301 = vsub.f32 %v3296, %v3300
    %v3302 = vmul.f32 %v3301, %v3301
    %v3303 = vsel %vm168, %v3302, 0.0
    %3304 = vadd.xlane.f32.xlu0 %v3303
    %v3305 = vpop.xlane.xlu0 %3304
    %v3306 = vmul.f32 %v3305, %v323
    %v3307 = vadd.f32 %v3306, 1e-05
    %v3308 = vrsqrt.pop %v3307
    %v3309 = vmul.f32 %v3301, %v3308
    %v3310 = vlaneseq
    %v3311 = vshrl.u32 %v3310, 7
    %v3312 = vsub.s32 0, %v3311
    %v3313 = vrot.slane %v3114, %v3312
    %v3314 = vmul.f32 %v3309, %v3313
    %v3315 = vlaneseq
    %v3316 = vshrl.u32 %v3315, 7
    %v3317 = vsub.s32 0, %v3316
    %v3318 = vrot.slane %v3115, %v3317
    %v3319 = vadd.f32 %v3314, %v3318
    %v3320 = vlaneseq
    %v3321 = vshrl.u32 %v3320, 7
    %v3322 = vsub.s32 0, %v3321
    %v3323 = vrot.slane %v3112, %v3322
    %v3325 = vsel %vm168, %v3319, 0
    %3327 = vmatprep.subr.mxu0 0.0
    %3328 = vmatpush1.msra.mxu0 0.0
    %3329 = vmatprep.subr.mxu0 0.0
    %3330 = vmatpush1.msra.mxu0 0.0
    %3331 = vmatprep.subr.mxu0 0.0
    %3332 = vmatpush1.msra.mxu0 0.0
    %3333 = vmatprep.subr.mxu0 0.0
    %3334 = vmatpush1.msra.mxu0 0.0
    %3335 = vmatprep.subr.mxu0 0.0
    %3336 = vmatpush1.msra.mxu0 0.0
    %3337 = vmatprep.subr.mxu0 0.0
    %3338 = vmatpush1.msra.mxu0 0.0
    %3339 = vmatprep.subr.mxu0 0.0
    %3340 = vmatpush1.msra.mxu0 0.0
    %3341 = vmatprep.subr.mxu0 0.0
    %3342 = vmatpush1.msra.mxu0 0.0
    %3343 = vmatprep.subr.mxu0 0.0
    %3344 = vmatpush1.msra.mxu0 0.0
    %3345 = vmatprep.subr.mxu0 0.0
    %3346 = vmatpush1.msra.mxu0 0.0
    %3347 = vmatprep.subr.mxu0 0.0
    %3348 = vmatpush1.msra.mxu0 0.0
    %3349 = vmatprep.subr.mxu0 0.0
    %3350 = vmatpush1.msra.mxu0 0.0
    %3351 = vmatprep.subr.mxu0 0.0
    %3352 = vmatpush1.msra.mxu0 %v3111
    %3353 = vmatprep.subr.mxu0 0.0
    %3354 = vmatpush1.msra.mxu0 %v3110
    %3355 = vmatprep.subr.mxu0 0.0
    %3356 = vmatpush1.msra.mxu0 %v3109
    %3357 = vmatprep.subr.mxu0 0.0
    %3358 = vmatpush1.msra.mxu0 %v3108
    %3359 = vmatprep.subr.mxu0 0.0
    %3360 = vmatpush2.msra.mxu0 0.0
    %3361 = vmatprep.subr.mxu0 0.0
    %3362 = vmatpush2.msra.mxu0 0.0
    %3363 = vmatprep.subr.mxu0 0.0
    %3364 = vmatpush2.msra.mxu0 0.0
    %3365 = vmatprep.subr.mxu0 0.0
    %3366 = vmatpush2.msra.mxu0 0.0
    %3367 = vmatprep.subr.mxu0 0.0
    %3368 = vmatpush2.msra.mxu0 0.0
    %3369 = vmatprep.subr.mxu0 0.0
    %3370 = vmatpush2.msra.mxu0 0.0
    %3371 = vmatprep.subr.mxu0 0.0
    %3372 = vmatpush2.msra.mxu0 0.0
    %3373 = vmatprep.subr.mxu0 0.0
    %3374 = vmatpush2.msra.mxu0 0.0
    %3375 = vmatprep.subr.mxu0 0.0
    %3376 = vmatpush2.msra.mxu0 0.0
    %3377 = vmatprep.subr.mxu0 0.0
    %3378 = vmatpush2.msra.mxu0 0.0
    %3379 = vmatprep.subr.mxu0 0.0
    %3380 = vmatpush2.msra.mxu0 0.0
    %3381 = vmatprep.subr.mxu0 0.0
    %3382 = vmatpush2.msra.mxu0 0.0
    %3383 = vmatprep.subr.mxu0 0.0
    %3384 = vmatpush2.msra.mxu0 0.0
    %3385 = vmatprep.subr.mxu0 0.0
    %3386 = vmatpush2.msra.mxu0 0.0
    %3387 = vmatprep.subr.mxu0 0.0
    %3388 = vmatpush2.msra.mxu0 0.0
    %3389 = vmatprep.subr.mxu0 0.0
    %3390 = vmatpush2.msra.mxu0 0.0
    %3391 = vmatprep.mubr.f32.mxu0 0.0
    %3392 = vmatmul.mubr.f32.gmra.mxu0 %v3325
    %v3393 = vpop.f32.mrf.mxu0
    %v3394 = vadd.f32 %v3323, %v3393
    %v3395 = vpop.f32.mrf.mxu0
    %3396 = vdwg.mxu0
    %v3397 = vmax.f32 %v3394, 0.0
    %v3398 = vlaneseq
    %v3399 = vshrl.u32 %v3398, 7
    %v3400 = vsub.s32 0, %v3399
    %v3401 = vrot.slane %v3113, %v3400
    %3402 = vrot.lane.b32.xlu0 %v143, 32
    %v3403 = vpop.permute.xlu0 %3402
    %3404 = vrot.lane.b32.xlu0 %v144, 32
    %v3405 = vpop.permute.xlu0 %3404
    %3406 = vrot.lane.b32.xlu0 %v145, 32
    %v3407 = vpop.permute.xlu0 %3406
    %3408 = vrot.lane.b32.xlu0 %v146, 32
    %v3409 = vpop.permute.xlu0 %3408
    %3410 = vrot.lane.b32.xlu0 %v147, 32
    %v3411 = vpop.permute.xlu0 %3410
    %3412 = vrot.lane.b32.xlu0 %v148, 32
    %v3413 = vpop.permute.xlu0 %3412
    %3414 = vrot.lane.b32.xlu0 %v149, 32
    %v3415 = vpop.permute.xlu0 %3414
    %3416 = vrot.lane.b32.xlu0 %v150, 32
    %v3417 = vpop.permute.xlu0 %3416
    %3418 = vrot.lane.b32.xlu0 %v151, 32
    %v3419 = vpop.permute.xlu0 %3418
    %3420 = vrot.lane.b32.xlu0 %v152, 32
    %v3421 = vpop.permute.xlu0 %3420
    %3422 = vrot.lane.b32.xlu0 %v153, 32
    %v3423 = vpop.permute.xlu0 %3422
    %3424 = vrot.lane.b32.xlu0 %v154, 32
    %v3425 = vpop.permute.xlu0 %3424
    %3426 = vrot.lane.b32.xlu0 %v155, 32
    %v3427 = vpop.permute.xlu0 %3426
    %3428 = vrot.lane.b32.xlu0 %v156, 32
    %v3429 = vpop.permute.xlu0 %3428
    %3430 = vrot.lane.b32.xlu0 %v157, 32
    %v3431 = vpop.permute.xlu0 %3430
    %3432 = vrot.lane.b32.xlu0 %v158, 32
    %v3433 = vpop.permute.xlu0 %3432
    %3450 = vmatprep.subr.mxu0 0.0
    %3451 = vmatpush1.msra.mxu0 %v3433
    %3452 = vmatprep.subr.mxu0 0.0
    %3453 = vmatpush1.msra.mxu0 %v3431
    %3454 = vmatprep.subr.mxu0 0.0
    %3455 = vmatpush1.msra.mxu0 %v3429
    %3456 = vmatprep.subr.mxu0 0.0
    %3457 = vmatpush1.msra.mxu0 %v3427
    %3458 = vmatprep.subr.mxu0 0.0
    %3459 = vmatpush1.msra.mxu0 %v3425
    %3460 = vmatprep.subr.mxu0 0.0
    %3461 = vmatpush1.msra.mxu0 %v3423
    %3462 = vmatprep.subr.mxu0 0.0
    %3463 = vmatpush1.msra.mxu0 %v3421
    %3464 = vmatprep.subr.mxu0 0.0
    %3465 = vmatpush1.msra.mxu0 %v3419
    %3466 = vmatprep.subr.mxu0 0.0
    %3467 = vmatpush1.msra.mxu0 %v3417
    %3468 = vmatprep.subr.mxu0 0.0
    %3469 = vmatpush1.msra.mxu0 %v3415
    %3470 = vmatprep.subr.mxu0 0.0
    %3471 = vmatpush1.msra.mxu0 %v3413
    %3472 = vmatprep.subr.mxu0 0.0
    %3473 = vmatpush1.msra.mxu0 %v3411
    %3474 = vmatprep.subr.mxu0 0.0
    %3475 = vmatpush1.msra.mxu0 %v3409
    %3476 = vmatprep.subr.mxu0 0.0
    %3477 = vmatpush1.msra.mxu0 %v3407
    %3478 = vmatprep.subr.mxu0 0.0
    %3479 = vmatpush1.msra.mxu0 %v3405
    %3480 = vmatprep.subr.mxu0 0.0
    %3481 = vmatpush1.msra.mxu0 %v3403
    %3482 = vmatprep.subr.mxu0 0.0
    %3483 = vmatpush2.msra.mxu0 0.0
    %3484 = vmatprep.subr.mxu0 0.0
    %3485 = vmatpush2.msra.mxu0 0.0
    %3486 = vmatprep.subr.mxu0 0.0
    %3487 = vmatpush2.msra.mxu0 0.0
    %3488 = vmatprep.subr.mxu0 0.0
    %3489 = vmatpush2.msra.mxu0 0.0
    %3490 = vmatprep.subr.mxu0 0.0
    %3491 = vmatpush2.msra.mxu0 0.0
    %3492 = vmatprep.subr.mxu0 0.0
    %3493 = vmatpush2.msra.mxu0 0.0
    %3494 = vmatprep.subr.mxu0 0.0
    %3495 = vmatpush2.msra.mxu0 0.0
    %3496 = vmatprep.subr.mxu0 0.0
    %3497 = vmatpush2.msra.mxu0 0.0
    %3498 = vmatprep.subr.mxu0 0.0
    %3499 = vmatpush2.msra.mxu0 0.0
    %3500 = vmatprep.subr.mxu0 0.0
    %3501 = vmatpush2.msra.mxu0 0.0
    %3502 = vmatprep.subr.mxu0 0.0
    %3503 = vmatpush2.msra.mxu0 0.0
    %3504 = vmatprep.subr.mxu0 0.0
    %3505 = vmatpush2.msra.mxu0 0.0
    %3506 = vmatprep.subr.mxu0 0.0
    %3507 = vmatpush2.msra.mxu0 0.0
    %3508 = vmatprep.subr.mxu0 0.0
    %3509 = vmatpush2.msra.mxu0 0.0
    %3510 = vmatprep.subr.mxu0 0.0
    %3511 = vmatpush2.msra.mxu0 0.0
    %3512 = vmatprep.subr.mxu0 0.0
    %3513 = vmatpush2.msra.mxu0 0.0
    %3514 = vmatprep.mubr.f32.mxu0 0.0
    %3515 = vmatmul.mubr.f32.gmra.mxu0 %v3397
    %v3516 = vpop.f32.mrf.mxu0
    %v3517 = vadd.f32 %v3401, %v3516
    %v3518 = vpop.f32.mrf.mxu0
    %3519 = vdwg.mxu0
    %v3520 = vadd.f32 %v3319, %v3517
    %v3521 = vsel %vm168, %v3520, 0.0
    %3522 = vadd.xlane.f32.xlu0 %v3521
    %v3523 = vpop.xlane.xlu0 %3522
    %v3524 = vmul.f32 %v3523, %v323
    %v3525 = vsub.f32 %v3520, %v3524
    %v3526 = vmul.f32 %v3525, %v3525
    %v3527 = vsel %vm168, %v3526, 0.0
    %3528 = vadd.xlane.f32.xlu0 %v3527
    %v3529 = vpop.xlane.xlu0 %3528
    %v3530 = vmul.f32 %v3529, %v323
    %v3531 = vadd.f32 %v3530, 1e-05
    %v3532 = vrsqrt.pop %v3531
    %v3533 = vmul.f32 %v3525, %v3532
    %v3534 = vlaneseq
    %v3535 = vshrl.u32 %v3534, 7
    %v3536 = vsub.s32 0, %v3535
    %v3537 = vrot.slane %v3116, %v3536
    %v3538 = vmul.f32 %v3533, %v3537
    %v3539 = vlaneseq
    %v3540 = vshrl.u32 %v3539, 7
    %v3541 = vsub.s32 0, %v3540
    %v3542 = vrot.slane %v3117, %v3541
    %v3543 = vadd.f32 %v3538, %v3542
    %v3544 = vld [vmem:[#allocation3 + $0x338] sm:$0x1]
    %v3545 = vld [vmem:[#allocation3 + $0x339] sm:$0x1]
    %v3546 = vld [vmem:[#allocation3 + $0x318] sm:$0xff]
    %v3547 = vld [vmem:[#allocation3 + $0x320] sm:$0xff]
    %v3548 = vld [vmem:[#allocation3 + $0x328] sm:$0xff]
    %v3549 = vld [vmem:[#allocation3 + $0x330] sm:$0xff]
    %v3550 = vld [vmem:[#allocation3 + $0x33f] sm:$0x1]
    %v3551 = vld [vmem:[#allocation3 + $0x33a] sm:$0x1]
    %v3552 = vld [vmem:[#allocation3 + $0x33b] sm:$0x1]
    %v3553 = vld [vmem:[#allocation3 + $0x33c] sm:$0x1]
    %v3554 = vld [vmem:[#allocation3 + $0x33d] sm:$0x1]
    %v3555 = vld [vmem:[#allocation3 + $0x33e] sm:$0x1]
    %v3556 = vlaneseq
    %v3557 = vshrl.u32 %v3556, 7
    %v3558 = vsub.s32 0, %v3557
    %v3559 = vrot.slane %v3544, %v3558
    %3560 = vrot.lane.b32.xlu0 %v520, 32
    %v3561 = vpop.permute.xlu0 %3560
    %3562 = vrot.lane.b32.xlu0 %v521, 32
    %v3563 = vpop.permute.xlu0 %3562
    %3564 = vrot.lane.b32.xlu0 %v522, 32
    %v3565 = vpop.permute.xlu0 %3564
    %3566 = vrot.lane.b32.xlu0 %v523, 32
    %v3567 = vpop.permute.xlu0 %3566
    %v3573 = vsel %vm168, %v3543, 0
    %3575 = vmatprep.subr.mxu0 0.0
    %3576 = vmatpush1.msra.mxu0 0.0
    %3577 = vmatprep.subr.mxu0 0.0
    %3578 = vmatpush1.msra.mxu0 0.0
    %3579 = vmatprep.subr.mxu0 0.0
    %3580 = vmatpush1.msra.mxu0 0.0
    %3581 = vmatprep.subr.mxu0 0.0
    %3582 = vmatpush1.msra.mxu0 0.0
    %3583 = vmatprep.subr.mxu0 0.0
    %3584 = vmatpush1.msra.mxu0 0.0
    %3585 = vmatprep.subr.mxu0 0.0
    %3586 = vmatpush1.msra.mxu0 0.0
    %3587 = vmatprep.subr.mxu0 0.0
    %3588 = vmatpush1.msra.mxu0 0.0
    %3589 = vmatprep.subr.mxu0 0.0
    %3590 = vmatpush1.msra.mxu0 0.0
    %3591 = vmatprep.subr.mxu0 0.0
    %3592 = vmatpush1.msra.mxu0 0.0
    %3593 = vmatprep.subr.mxu0 0.0
    %3594 = vmatpush1.msra.mxu0 0.0
    %3595 = vmatprep.subr.mxu0 0.0
    %3596 = vmatpush1.msra.mxu0 0.0
    %3597 = vmatprep.subr.mxu0 0.0
    %3598 = vmatpush1.msra.mxu0 0.0
    %3599 = vmatprep.subr.mxu0 0.0
    %3600 = vmatpush1.msra.mxu0 %v3567
    %3601 = vmatprep.subr.mxu0 0.0
    %3602 = vmatpush1.msra.mxu0 %v3565
    %3603 = vmatprep.subr.mxu0 0.0
    %3604 = vmatpush1.msra.mxu0 %v3563
    %3605 = vmatprep.subr.mxu0 0.0
    %3606 = vmatpush1.msra.mxu0 %v3561
    %3607 = vmatprep.subr.mxu0 0.0
    %3608 = vmatpush2.msra.mxu0 0.0
    %3609 = vmatprep.subr.mxu0 0.0
    %3610 = vmatpush2.msra.mxu0 0.0
    %3611 = vmatprep.subr.mxu0 0.0
    %3612 = vmatpush2.msra.mxu0 0.0
    %3613 = vmatprep.subr.mxu0 0.0
    %3614 = vmatpush2.msra.mxu0 0.0
    %3615 = vmatprep.subr.mxu0 0.0
    %3616 = vmatpush2.msra.mxu0 0.0
    %3617 = vmatprep.subr.mxu0 0.0
    %3618 = vmatpush2.msra.mxu0 0.0
    %3619 = vmatprep.subr.mxu0 0.0
    %3620 = vmatpush2.msra.mxu0 0.0
    %3621 = vmatprep.subr.mxu0 0.0
    %3622 = vmatpush2.msra.mxu0 0.0
    %3623 = vmatprep.subr.mxu0 0.0
    %3624 = vmatpush2.msra.mxu0 0.0
    %3625 = vmatprep.subr.mxu0 0.0
    %3626 = vmatpush2.msra.mxu0 0.0
    %3627 = vmatprep.subr.mxu0 0.0
    %3628 = vmatpush2.msra.mxu0 0.0
    %3629 = vmatprep.subr.mxu0 0.0
    %3630 = vmatpush2.msra.mxu0 0.0
    %3631 = vmatprep.subr.mxu0 0.0
    %3632 = vmatpush2.msra.mxu0 0.0
    %3633 = vmatprep.subr.mxu0 0.0
    %3634 = vmatpush2.msra.mxu0 0.0
    %3635 = vmatprep.subr.mxu0 0.0
    %3636 = vmatpush2.msra.mxu0 0.0
    %3637 = vmatprep.subr.mxu0 0.0
    %3638 = vmatpush2.msra.mxu0 0.0
    %3639 = vmatprep.mubr.f32.mxu0 0.0
    %3640 = vmatmul.mubr.f32.gmra.mxu0 %v3573
    %v3641 = vpop.f32.mrf.mxu0
    %v3642 = vadd.f32 %v3559, %v3641
    %v3643 = vpop.f32.mrf.mxu0
    %3644 = vdwg.mxu0
    %v3645 = vlaneseq
    %v3646 = vshrl.u32 %v3645, 7
    %v3647 = vsub.s32 0, %v3646
    %v3648 = vrot.slane %v3545, %v3647
    %3649 = vrot.lane.b32.xlu0 %v525, 32
    %v3650 = vpop.permute.xlu0 %3649
    %3651 = vrot.lane.b32.xlu0 %v526, 32
    %v3652 = vpop.permute.xlu0 %3651
    %3653 = vrot.lane.b32.xlu0 %v527, 32
    %v3654 = vpop.permute.xlu0 %3653
    %3655 = vrot.lane.b32.xlu0 %v528, 32
    %v3656 = vpop.permute.xlu0 %3655
    %v3662 = vsel %vm168, %v3642, 0
    %3664 = vmatprep.subr.mxu0 0.0
    %3665 = vmatpush1.msra.mxu0 0.0
    %3666 = vmatprep.subr.mxu0 0.0
    %3667 = vmatpush1.msra.mxu0 0.0
    %3668 = vmatprep.subr.mxu0 0.0
    %3669 = vmatpush1.msra.mxu0 0.0
    %3670 = vmatprep.subr.mxu0 0.0
    %3671 = vmatpush1.msra.mxu0 0.0
    %3672 = vmatprep.subr.mxu0 0.0
    %3673 = vmatpush1.msra.mxu0 0.0
    %3674 = vmatprep.subr.mxu0 0.0
    %3675 = vmatpush1.msra.mxu0 0.0
    %3676 = vmatprep.subr.mxu0 0.0
    %3677 = vmatpush1.msra.mxu0 0.0
    %3678 = vmatprep.subr.mxu0 0.0
    %3679 = vmatpush1.msra.mxu0 0.0
    %3680 = vmatprep.subr.mxu0 0.0
    %3681 = vmatpush1.msra.mxu0 0.0
    %3682 = vmatprep.subr.mxu0 0.0
    %3683 = vmatpush1.msra.mxu0 0.0
    %3684 = vmatprep.subr.mxu0 0.0
    %3685 = vmatpush1.msra.mxu0 0.0
    %3686 = vmatprep.subr.mxu0 0.0
    %3687 = vmatpush1.msra.mxu0 0.0
    %3688 = vmatprep.subr.mxu0 0.0
    %3689 = vmatpush1.msra.mxu0 %v3656
    %3690 = vmatprep.subr.mxu0 0.0
    %3691 = vmatpush1.msra.mxu0 %v3654
    %3692 = vmatprep.subr.mxu0 0.0
    %3693 = vmatpush1.msra.mxu0 %v3652
    %3694 = vmatprep.subr.mxu0 0.0
    %3695 = vmatpush1.msra.mxu0 %v3650
    %3696 = vmatprep.subr.mxu0 0.0
    %3697 = vmatpush2.msra.mxu0 0.0
    %3698 = vmatprep.subr.mxu0 0.0
    %3699 = vmatpush2.msra.mxu0 0.0
    %3700 = vmatprep.subr.mxu0 0.0
    %3701 = vmatpush2.msra.mxu0 0.0
    %3702 = vmatprep.subr.mxu0 0.0
    %3703 = vmatpush2.msra.mxu0 0.0
    %3704 = vmatprep.subr.mxu0 0.0
    %3705 = vmatpush2.msra.mxu0 0.0
    %3706 = vmatprep.subr.mxu0 0.0
    %3707 = vmatpush2.msra.mxu0 0.0
    %3708 = vmatprep.subr.mxu0 0.0
    %3709 = vmatpush2.msra.mxu0 0.0
    %3710 = vmatprep.subr.mxu0 0.0
    %3711 = vmatpush2.msra.mxu0 0.0
    %3712 = vmatprep.subr.mxu0 0.0
    %3713 = vmatpush2.msra.mxu0 0.0
    %3714 = vmatprep.subr.mxu0 0.0
    %3715 = vmatpush2.msra.mxu0 0.0
    %3716 = vmatprep.subr.mxu0 0.0
    %3717 = vmatpush2.msra.mxu0 0.0
    %3718 = vmatprep.subr.mxu0 0.0
    %3719 = vmatpush2.msra.mxu0 0.0
    %3720 = vmatprep.subr.mxu0 0.0
    %3721 = vmatpush2.msra.mxu0 0.0
    %3722 = vmatprep.subr.mxu0 0.0
    %3723 = vmatpush2.msra.mxu0 0.0
    %3724 = vmatprep.subr.mxu0 0.0
    %3725 = vmatpush2.msra.mxu0 0.0
    %3726 = vmatprep.subr.mxu0 0.0
    %3727 = vmatpush2.msra.mxu0 0.0
    %3728 = vmatprep.mubr.f32.mxu0 0.0
    %3729 = vmatmul.mubr.f32.gmra.mxu0 %v3662
    %v3730 = vpop.f32.mrf.mxu0
    %v3731 = vadd.f32 %v3648, %v3730
    %v3732 = vpop.f32.mrf.mxu0
    %3733 = vdwg.mxu0
    %v3734 = vadd.f32 %v3543, %v3731
    %v3735 = vsel %vm168, %v3734, 0.0
    %3736 = vadd.xlane.f32.xlu0 %v3735
    %v3737 = vpop.xlane.xlu0 %3736
    %v3738 = vmul.f32 %v3737, %v323
    %v3739 = vsub.f32 %v3734, %v3738
    %v3740 = vmul.f32 %v3739, %v3739
    %v3741 = vsel %vm168, %v3740, 0.0
    %3742 = vadd.xlane.f32.xlu0 %v3741
    %v3743 = vpop.xlane.xlu0 %3742
    %v3744 = vmul.f32 %v3743, %v323
    %v3745 = vadd.f32 %v3744, 1e-05
    %v3746 = vrsqrt.pop %v3745
    %v3747 = vmul.f32 %v3739, %v3746
    %v3748 = vlaneseq
    %v3749 = vshrl.u32 %v3748, 7
    %v3750 = vsub.s32 0, %v3749
    %v3751 = vrot.slane %v3552, %v3750
    %v3752 = vmul.f32 %v3747, %v3751
    %v3753 = vlaneseq
    %v3754 = vshrl.u32 %v3753, 7
    %v3755 = vsub.s32 0, %v3754
    %v3756 = vrot.slane %v3553, %v3755
    %v3757 = vadd.f32 %v3752, %v3756
    %v3758 = vlaneseq
    %v3759 = vshrl.u32 %v3758, 7
    %v3760 = vsub.s32 0, %v3759
    %v3761 = vrot.slane %v3550, %v3760
    %v3763 = vsel %vm168, %v3757, 0
    %3765 = vmatprep.subr.mxu0 0.0
    %3766 = vmatpush1.msra.mxu0 0.0
    %3767 = vmatprep.subr.mxu0 0.0
    %3768 = vmatpush1.msra.mxu0 0.0
    %3769 = vmatprep.subr.mxu0 0.0
    %3770 = vmatpush1.msra.mxu0 0.0
    %3771 = vmatprep.subr.mxu0 0.0
    %3772 = vmatpush1.msra.mxu0 0.0
    %3773 = vmatprep.subr.mxu0 0.0
    %3774 = vmatpush1.msra.mxu0 0.0
    %3775 = vmatprep.subr.mxu0 0.0
    %3776 = vmatpush1.msra.mxu0 0.0
    %3777 = vmatprep.subr.mxu0 0.0
    %3778 = vmatpush1.msra.mxu0 0.0
    %3779 = vmatprep.subr.mxu0 0.0
    %3780 = vmatpush1.msra.mxu0 0.0
    %3781 = vmatprep.subr.mxu0 0.0
    %3782 = vmatpush1.msra.mxu0 0.0
    %3783 = vmatprep.subr.mxu0 0.0
    %3784 = vmatpush1.msra.mxu0 0.0
    %3785 = vmatprep.subr.mxu0 0.0
    %3786 = vmatpush1.msra.mxu0 0.0
    %3787 = vmatprep.subr.mxu0 0.0
    %3788 = vmatpush1.msra.mxu0 0.0
    %3789 = vmatprep.subr.mxu0 0.0
    %3790 = vmatpush1.msra.mxu0 %v3549
    %3791 = vmatprep.subr.mxu0 0.0
    %3792 = vmatpush1.msra.mxu0 %v3548
    %3793 = vmatprep.subr.mxu0 0.0
    %3794 = vmatpush1.msra.mxu0 %v3547
    %3795 = vmatprep.subr.mxu0 0.0
    %3796 = vmatpush1.msra.mxu0 %v3546
    %3797 = vmatprep.subr.mxu0 0.0
    %3798 = vmatpush2.msra.mxu0 0.0
    %3799 = vmatprep.subr.mxu0 0.0
    %3800 = vmatpush2.msra.mxu0 0.0
    %3801 = vmatprep.subr.mxu0 0.0
    %3802 = vmatpush2.msra.mxu0 0.0
    %3803 = vmatprep.subr.mxu0 0.0
    %3804 = vmatpush2.msra.mxu0 0.0
    %3805 = vmatprep.subr.mxu0 0.0
    %3806 = vmatpush2.msra.mxu0 0.0
    %3807 = vmatprep.subr.mxu0 0.0
    %3808 = vmatpush2.msra.mxu0 0.0
    %3809 = vmatprep.subr.mxu0 0.0
    %3810 = vmatpush2.msra.mxu0 0.0
    %3811 = vmatprep.subr.mxu0 0.0
    %3812 = vmatpush2.msra.mxu0 0.0
    %3813 = vmatprep.subr.mxu0 0.0
    %3814 = vmatpush2.msra.mxu0 0.0
    %3815 = vmatprep.subr.mxu0 0.0
    %3816 = vmatpush2.msra.mxu0 0.0
    %3817 = vmatprep.subr.mxu0 0.0
    %3818 = vmatpush2.msra.mxu0 0.0
    %3819 = vmatprep.subr.mxu0 0.0
    %3820 = vmatpush2.msra.mxu0 0.0
    %3821 = vmatprep.subr.mxu0 0.0
    %3822 = vmatpush2.msra.mxu0 0.0
    %3823 = vmatprep.subr.mxu0 0.0
    %3824 = vmatpush2.msra.mxu0 0.0
    %3825 = vmatprep.subr.mxu0 0.0
    %3826 = vmatpush2.msra.mxu0 0.0
    %3827 = vmatprep.subr.mxu0 0.0
    %3828 = vmatpush2.msra.mxu0 0.0
    %3829 = vmatprep.mubr.f32.mxu0 0.0
    %3830 = vmatmul.mubr.f32.gmra.mxu0 %v3763
    %v3831 = vpop.f32.mrf.mxu0
    %v3832 = vadd.f32 %v3761, %v3831
    %v3833 = vpop.f32.mrf.mxu0
    %3834 = vdwg.mxu0
    %v3835 = vmax.f32 %v3832, 0.0
    %v3836 = vlaneseq
    %v3837 = vshrl.u32 %v3836, 7
    %v3838 = vsub.s32 0, %v3837
    %v3839 = vrot.slane %v3551, %v3838
    %3840 = vrot.lane.b32.xlu0 %v535, 32
    %v3841 = vpop.permute.xlu0 %3840
    %3842 = vrot.lane.b32.xlu0 %v536, 32
    %v3843 = vpop.permute.xlu0 %3842
    %3844 = vrot.lane.b32.xlu0 %v537, 32
    %v3845 = vpop.permute.xlu0 %3844
    %3846 = vrot.lane.b32.xlu0 %v538, 32
    %v3847 = vpop.permute.xlu0 %3846
    %3848 = vrot.lane.b32.xlu0 %v539, 32
    %v3849 = vpop.permute.xlu0 %3848
    %3850 = vrot.lane.b32.xlu0 %v540, 32
    %v3851 = vpop.permute.xlu0 %3850
    %3852 = vrot.lane.b32.xlu0 %v541, 32
    %v3853 = vpop.permute.xlu0 %3852
    %3854 = vrot.lane.b32.xlu0 %v542, 32
    %v3855 = vpop.permute.xlu0 %3854
    %3856 = vrot.lane.b32.xlu0 %v543, 32
    %v3857 = vpop.permute.xlu0 %3856
    %3858 = vrot.lane.b32.xlu0 %v544, 32
    %v3859 = vpop.permute.xlu0 %3858
    %3860 = vrot.lane.b32.xlu0 %v545, 32
    %v3861 = vpop.permute.xlu0 %3860
    %3862 = vrot.lane.b32.xlu0 %v546, 32
    %v3863 = vpop.permute.xlu0 %3862
    %3864 = vrot.lane.b32.xlu0 %v547, 32
    %v3865 = vpop.permute.xlu0 %3864
    %3866 = vrot.lane.b32.xlu0 %v548, 32
    %v3867 = vpop.permute.xlu0 %3866
    %3868 = vrot.lane.b32.xlu0 %v549, 32
    %v3869 = vpop.permute.xlu0 %3868
    %3870 = vrot.lane.b32.xlu0 %v550, 32
    %v3871 = vpop.permute.xlu0 %3870
    %3888 = vmatprep.subr.mxu0 0.0
    %3889 = vmatpush1.msra.mxu0 %v3871
    %3890 = vmatprep.subr.mxu0 0.0
    %3891 = vmatpush1.msra.mxu0 %v3869
    %3892 = vmatprep.subr.mxu0 0.0
    %3893 = vmatpush1.msra.mxu0 %v3867
    %3894 = vmatprep.subr.mxu0 0.0
    %3895 = vmatpush1.msra.mxu0 %v3865
    %3896 = vmatprep.subr.mxu0 0.0
    %3897 = vmatpush1.msra.mxu0 %v3863
    %3898 = vmatprep.subr.mxu0 0.0
    %3899 = vmatpush1.msra.mxu0 %v3861
    %3900 = vmatprep.subr.mxu0 0.0
    %3901 = vmatpush1.msra.mxu0 %v3859
    %3902 = vmatprep.subr.mxu0 0.0
    %3903 = vmatpush1.msra.mxu0 %v3857
    %3904 = vmatprep.subr.mxu0 0.0
    %3905 = vmatpush1.msra.mxu0 %v3855
    %3906 = vmatprep.subr.mxu0 0.0
    %3907 = vmatpush1.msra.mxu0 %v3853
    %3908 = vmatprep.subr.mxu0 0.0
    %3909 = vmatpush1.msra.mxu0 %v3851
    %3910 = vmatprep.subr.mxu0 0.0
    %3911 = vmatpush1.msra.mxu0 %v3849
    %3912 = vmatprep.subr.mxu0 0.0
    %3913 = vmatpush1.msra.mxu0 %v3847
    %3914 = vmatprep.subr.mxu0 0.0
    %3915 = vmatpush1.msra.mxu0 %v3845
    %3916 = vmatprep.subr.mxu0 0.0
    %3917 = vmatpush1.msra.mxu0 %v3843
    %3918 = vmatprep.subr.mxu0 0.0
    %3919 = vmatpush1.msra.mxu0 %v3841
    %3920 = vmatprep.subr.mxu0 0.0
    %3921 = vmatpush2.msra.mxu0 0.0
    %3922 = vmatprep.subr.mxu0 0.0
    %3923 = vmatpush2.msra.mxu0 0.0
    %3924 = vmatprep.subr.mxu0 0.0
    %3925 = vmatpush2.msra.mxu0 0.0
    %3926 = vmatprep.subr.mxu0 0.0
    %3927 = vmatpush2.msra.mxu0 0.0
    %3928 = vmatprep.subr.mxu0 0.0
    %3929 = vmatpush2.msra.mxu0 0.0
    %3930 = vmatprep.subr.mxu0 0.0
    %3931 = vmatpush2.msra.mxu0 0.0
    %3932 = vmatprep.subr.mxu0 0.0
    %3933 = vmatpush2.msra.mxu0 0.0
    %3934 = vmatprep.subr.mxu0 0.0
    %3935 = vmatpush2.msra.mxu0 0.0
    %3936 = vmatprep.subr.mxu0 0.0
    %3937 = vmatpush2.msra.mxu0 0.0
    %3938 = vmatprep.subr.mxu0 0.0
    %3939 = vmatpush2.msra.mxu0 0.0
    %3940 = vmatprep.subr.mxu0 0.0
    %3941 = vmatpush2.msra.mxu0 0.0
    %3942 = vmatprep.subr.mxu0 0.0
    %3943 = vmatpush2.msra.mxu0 0.0
    %3944 = vmatprep.subr.mxu0 0.0
    %3945 = vmatpush2.msra.mxu0 0.0
    %3946 = vmatprep.subr.mxu0 0.0
    %3947 = vmatpush2.msra.mxu0 0.0
    %3948 = vmatprep.subr.mxu0 0.0
    %3949 = vmatpush2.msra.mxu0 0.0
    %3950 = vmatprep.subr.mxu0 0.0
    %3951 = vmatpush2.msra.mxu0 0.0
    %3952 = vmatprep.mubr.f32.mxu0 0.0
    %3953 = vmatmul.mubr.f32.gmra.mxu0 %v3835
    %v3954 = vpop.f32.mrf.mxu0
    %v3955 = vadd.f32 %v3839, %v3954
    %v3956 = vpop.f32.mrf.mxu0
    %3957 = vdwg.mxu0
    %v3958 = vadd.f32 %v3757, %v3955
    %v3959 = vsel %vm168, %v3958, 0.0
    %3960 = vadd.xlane.f32.xlu0 %v3959
    %v3961 = vpop.xlane.xlu0 %3960
    %v3962 = vmul.f32 %v3961, %v323
    %v3963 = vsub.f32 %v3958, %v3962
    %v3964 = vmul.f32 %v3963, %v3963
    %v3965 = vsel %vm168, %v3964, 0.0
    %3966 = vadd.xlane.f32.xlu0 %v3965
    %v3967 = vpop.xlane.xlu0 %3966
    %v3968 = vmul.f32 %v3967, %v323
    %v3969 = vadd.f32 %v3968, 1e-05
    %v3970 = vrsqrt.pop %v3969
    %v3971 = vmul.f32 %v3963, %v3970
    %v3972 = vlaneseq
    %v3973 = vshrl.u32 %v3972, 7
    %v3974 = vsub.s32 0, %v3973
    %v3975 = vrot.slane %v3554, %v3974
    %v3976 = vmul.f32 %v3971, %v3975
    %v3977 = vlaneseq
    %v3978 = vshrl.u32 %v3977, 7
    %v3979 = vsub.s32 0, %v3978
    %v3980 = vrot.slane %v3555, %v3979
    %v3981 = vadd.f32 %v3976, %v3980
    %v3982 = vld [vmem:[#allocation3 + $0x568] sm:$0x1]
    %v3983 = vlaneseq
    %v3984 = vshrl.u32 %v3983, 7
    %vm3985 = vcmp.eq.s32.totalorder %v3984, 0
    %v3986 = vlaneseq
    %v3987 = vshrl.u32 %v3986, 7
    %v3988 = vsub.s32 0, %v3987
    %v3989 = vrot.slane %v909, %v3988
    %v3990 = vlaneseq
    %v3991 = vshrl.u32 %v3990, 7
    %v3992 = vsub.s32 0, %v3991
    %v3993 = vrot.slane %v3982, %v3992
    %v3994 = vsel %vm3985, %v3989, %v3993
    %v3995 = vld [vmem:[#allocation3 + $0x348] sm:$0xff]
    %v3996 = vld [vmem:[#allocation3 + $0x350] sm:$0xff]
    %v3997 = vld [vmem:[#allocation3 + $0x358] sm:$0xff]
    %v3998 = vld [vmem:[#allocation3 + $0x360] sm:$0xff]
    %v3999 = vld [vmem:[#allocation3 + $0x4e8] sm:$0x1]
    %v4000 = vld [vmem:[#allocation3 + $0x368] sm:$0xff]
    %v4001 = vld [vmem:[#allocation3 + $0x370] sm:$0xff]
    %v4002 = vld [vmem:[#allocation3 + $0x378] sm:$0xff]
    %v4003 = vld [vmem:[#allocation3 + $0x380] sm:$0xff]
    %v4004 = vld [vmem:[#allocation3 + $0x4e9] sm:$0x1]
    %v4005 = vld [vmem:[#allocation3 + $0x4c8] sm:$0xff]
    %v4006 = vld [vmem:[#allocation3 + $0x4d0] sm:$0xff]
    %v4007 = vld [vmem:[#allocation3 + $0x4d8] sm:$0xff]
    %v4008 = vld [vmem:[#allocation3 + $0x4e0] sm:$0xff]
    %v4009 = vld [vmem:[#allocation3 + $0x4ef] sm:$0x1]
    %v4010 = vld [vmem:[#allocation3 + $0x388] sm:$0xff]
    %v4011 = vld [vmem:[#allocation3 + $0x390] sm:$0xff]
    %v4012 = vld [vmem:[#allocation3 + $0x398] sm:$0xff]
    %v4013 = vld [vmem:[#allocation3 + $0x3a0] sm:$0xff]
    %v4014 = vld [vmem:[#allocation3 + $0x3a8] sm:$0xff]
    %v4015 = vld [vmem:[#allocation3 + $0x3b0] sm:$0xff]
    %v4016 = vld [vmem:[#allocation3 + $0x3b8] sm:$0xff]
    %v4017 = vld [vmem:[#allocation3 + $0x3c0] sm:$0xff]
    %v4018 = vld [vmem:[#allocation3 + $0x3c8] sm:$0xff]
    %v4019 = vld [vmem:[#allocation3 + $0x3d0] sm:$0xff]
    %v4020 = vld [vmem:[#allocation3 + $0x3d8] sm:$0xff]
    %v4021 = vld [vmem:[#allocation3 + $0x3e0] sm:$0xff]
    %v4022 = vld [vmem:[#allocation3 + $0x3e8] sm:$0xff]
    %v4023 = vld [vmem:[#allocation3 + $0x3f0] sm:$0xff]
    %v4024 = vld [vmem:[#allocation3 + $0x3f8] sm:$0xff]
    %v4025 = vld [vmem:[#allocation3 + $0x400] sm:$0xff]
    %v4026 = vld [vmem:[#allocation3 + $0x4ea] sm:$0x1]
    %v4027 = vld [vmem:[#allocation3 + $0x4eb] sm:$0x1]
    %v4028 = vld [vmem:[#allocation3 + $0x4ec] sm:$0x1]
    %v4029 = vld [vmem:[#allocation3 + $0x4ed] sm:$0x1]
    %v4030 = vld [vmem:[#allocation3 + $0x4ee] sm:$0x1]
    %v4031 = vlaneseq
    %v4032 = vshrl.u32 %v4031, 7
    %v4033 = vsub.s32 0, %v4032
    %v4034 = vrot.slane %v3999, %v4033
    %v4036 = vsel %vm168, %v3994, 0
    %4038 = vmatprep.subr.mxu0 0.0
    %4039 = vmatpush1.msra.mxu0 0.0
    %4040 = vmatprep.subr.mxu0 0.0
    %4041 = vmatpush1.msra.mxu0 0.0
    %4042 = vmatprep.subr.mxu0 0.0
    %4043 = vmatpush1.msra.mxu0 0.0
    %4044 = vmatprep.subr.mxu0 0.0
    %4045 = vmatpush1.msra.mxu0 0.0
    %4046 = vmatprep.subr.mxu0 0.0
    %4047 = vmatpush1.msra.mxu0 0.0
    %4048 = vmatprep.subr.mxu0 0.0
    %4049 = vmatpush1.msra.mxu0 0.0
    %4050 = vmatprep.subr.mxu0 0.0
    %4051 = vmatpush1.msra.mxu0 0.0
    %4052 = vmatprep.subr.mxu0 0.0
    %4053 = vmatpush1.msra.mxu0 0.0
    %4054 = vmatprep.subr.mxu0 0.0
    %4055 = vmatpush1.msra.mxu0 0.0
    %4056 = vmatprep.subr.mxu0 0.0
    %4057 = vmatpush1.msra.mxu0 0.0
    %4058 = vmatprep.subr.mxu0 0.0
    %4059 = vmatpush1.msra.mxu0 0.0
    %4060 = vmatprep.subr.mxu0 0.0
    %4061 = vmatpush1.msra.mxu0 0.0
    %4062 = vmatprep.subr.mxu0 0.0
    %4063 = vmatpush1.msra.mxu0 %v3998
    %4064 = vmatprep.subr.mxu0 0.0
    %4065 = vmatpush1.msra.mxu0 %v3997
    %4066 = vmatprep.subr.mxu0 0.0
    %4067 = vmatpush1.msra.mxu0 %v3996
    %4068 = vmatprep.subr.mxu0 0.0
    %4069 = vmatpush1.msra.mxu0 %v3995
    %4070 = vmatprep.subr.mxu0 0.0
    %4071 = vmatpush2.msra.mxu0 0.0
    %4072 = vmatprep.subr.mxu0 0.0
    %4073 = vmatpush2.msra.mxu0 0.0
    %4074 = vmatprep.subr.mxu0 0.0
    %4075 = vmatpush2.msra.mxu0 0.0
    %4076 = vmatprep.subr.mxu0 0.0
    %4077 = vmatpush2.msra.mxu0 0.0
    %4078 = vmatprep.subr.mxu0 0.0
    %4079 = vmatpush2.msra.mxu0 0.0
    %4080 = vmatprep.subr.mxu0 0.0
    %4081 = vmatpush2.msra.mxu0 0.0
    %4082 = vmatprep.subr.mxu0 0.0
    %4083 = vmatpush2.msra.mxu0 0.0
    %4084 = vmatprep.subr.mxu0 0.0
    %4085 = vmatpush2.msra.mxu0 0.0
    %4086 = vmatprep.subr.mxu0 0.0
    %4087 = vmatpush2.msra.mxu0 0.0
    %4088 = vmatprep.subr.mxu0 0.0
    %4089 = vmatpush2.msra.mxu0 0.0
    %4090 = vmatprep.subr.mxu0 0.0
    %4091 = vmatpush2.msra.mxu0 0.0
    %4092 = vmatprep.subr.mxu0 0.0
    %4093 = vmatpush2.msra.mxu0 0.0
    %4094 = vmatprep.subr.mxu0 0.0
    %4095 = vmatpush2.msra.mxu0 0.0
    %4096 = vmatprep.subr.mxu0 0.0
    %4097 = vmatpush2.msra.mxu0 0.0
    %4098 = vmatprep.subr.mxu0 0.0
    %4099 = vmatpush2.msra.mxu0 0.0
    %4100 = vmatprep.subr.mxu0 0.0
    %4101 = vmatpush2.msra.mxu0 0.0
    %4102 = vmatprep.mubr.f32.mxu0 0.0
    %4103 = vmatmul.mubr.f32.gmra.mxu0 %v4036
    %v4104 = vpop.f32.mrf.mxu0
    %v4105 = vadd.f32 %v4034, %v4104
    %v4106 = vpop.f32.mrf.mxu0
    %4107 = vdwg.mxu0
    %v4108 = vlaneseq
    %v4109 = vshrl.u32 %v4108, 7
    %v4110 = vsub.s32 0, %v4109
    %v4111 = vrot.slane %v4004, %v4110
    %v4113 = vsel %vm168, %v4105, 0
    %4115 = vmatprep.subr.mxu0 0.0
    %4116 = vmatpush1.msra.mxu0 0.0
    %4117 = vmatprep.subr.mxu0 0.0
    %4118 = vmatpush1.msra.mxu0 0.0
    %4119 = vmatprep.subr.mxu0 0.0
    %4120 = vmatpush1.msra.mxu0 0.0
    %4121 = vmatprep.subr.mxu0 0.0
    %4122 = vmatpush1.msra.mxu0 0.0
    %4123 = vmatprep.subr.mxu0 0.0
    %4124 = vmatpush1.msra.mxu0 0.0
    %4125 = vmatprep.subr.mxu0 0.0
    %4126 = vmatpush1.msra.mxu0 0.0
    %4127 = vmatprep.subr.mxu0 0.0
    %4128 = vmatpush1.msra.mxu0 0.0
    %4129 = vmatprep.subr.mxu0 0.0
    %4130 = vmatpush1.msra.mxu0 0.0
    %4131 = vmatprep.subr.mxu0 0.0
    %4132 = vmatpush1.msra.mxu0 0.0
    %4133 = vmatprep.subr.mxu0 0.0
    %4134 = vmatpush1.msra.mxu0 0.0
    %4135 = vmatprep.subr.mxu0 0.0
    %4136 = vmatpush1.msra.mxu0 0.0
    %4137 = vmatprep.subr.mxu0 0.0
    %4138 = vmatpush1.msra.mxu0 0.0
    %4139 = vmatprep.subr.mxu0 0.0
    %4140 = vmatpush1.msra.mxu0 %v4003
    %4141 = vmatprep.subr.mxu0 0.0
    %4142 = vmatpush1.msra.mxu0 %v4002
    %4143 = vmatprep.subr.mxu0 0.0
    %4144 = vmatpush1.msra.mxu0 %v4001
    %4145 = vmatprep.subr.mxu0 0.0
    %4146 = vmatpush1.msra.mxu0 %v4000
    %4147 = vmatprep.subr.mxu0 0.0
    %4148 = vmatpush2.msra.mxu0 0.0
    %4149 = vmatprep.subr.mxu0 0.0
    %4150 = vmatpush2.msra.mxu0 0.0
    %4151 = vmatprep.subr.mxu0 0.0
    %4152 = vmatpush2.msra.mxu0 0.0
    %4153 = vmatprep.subr.mxu0 0.0
    %4154 = vmatpush2.msra.mxu0 0.0
    %4155 = vmatprep.subr.mxu0 0.0
    %4156 = vmatpush2.msra.mxu0 0.0
    %4157 = vmatprep.subr.mxu0 0.0
    %4158 = vmatpush2.msra.mxu0 0.0
    %4159 = vmatprep.subr.mxu0 0.0
    %4160 = vmatpush2.msra.mxu0 0.0
    %4161 = vmatprep.subr.mxu0 0.0
    %4162 = vmatpush2.msra.mxu0 0.0
    %4163 = vmatprep.subr.mxu0 0.0
    %4164 = vmatpush2.msra.mxu0 0.0
    %4165 = vmatprep.subr.mxu0 0.0
    %4166 = vmatpush2.msra.mxu0 0.0
    %4167 = vmatprep.subr.mxu0 0.0
    %4168 = vmatpush2.msra.mxu0 0.0
    %4169 = vmatprep.subr.mxu0 0.0
    %4170 = vmatpush2.msra.mxu0 0.0
    %4171 = vmatprep.subr.mxu0 0.0
    %4172 = vmatpush2.msra.mxu0 0.0
    %4173 = vmatprep.subr.mxu0 0.0
    %4174 = vmatpush2.msra.mxu0 0.0
    %4175 = vmatprep.subr.mxu0 0.0
    %4176 = vmatpush2.msra.mxu0 0.0
    %4177 = vmatprep.subr.mxu0 0.0
    %4178 = vmatpush2.msra.mxu0 0.0
    %4179 = vmatprep.mubr.f32.mxu0 0.0
    %4180 = vmatmul.mubr.f32.gmra.mxu0 %v4113
    %v4181 = vpop.f32.mrf.mxu0
    %v4182 = vadd.f32 %v4111, %v4181
    %v4183 = vpop.f32.mrf.mxu0
    %4184 = vdwg.mxu0
    %v4185 = vadd.f32 %v3994, %v4182
    %vm4186 = vcmask 254976
    %v4187 = vsel %vm4186, %v4185, 0.0
    %4188 = vadd.xlane.f32.xlu0 %v4187
    %v4189 = vpop.xlane.xlu0 %4188
    %v4190 = vmul.f32 %v4189, %v323
    %v4191 = vsub.f32 %v4185, %v4190
    %v4192 = vmul.f32 %v4191, %v4191
    %v4193 = vsel %vm4186, %v4192, 0.0
    %4194 = vadd.xlane.f32.xlu0 %v4193
    %v4195 = vpop.xlane.xlu0 %4194
    %v4196 = vmul.f32 %v4195, %v323
    %v4197 = vadd.f32 %v4196, 1e-05
    %v4198 = vrsqrt.pop %v4197
    %v4199 = vmul.f32 %v4191, %v4198
    %v4200 = vlaneseq
    %v4201 = vshrl.u32 %v4200, 7
    %v4202 = vsub.s32 0, %v4201
    %v4203 = vrot.slane %v4027, %v4202
    %v4204 = vmul.f32 %v4199, %v4203
    %v4205 = vlaneseq
    %v4206 = vshrl.u32 %v4205, 7
    %v4207 = vsub.s32 0, %v4206
    %v4208 = vrot.slane %v4028, %v4207
    %v4209 = vadd.f32 %v4204, %v4208
    %v4210 = vlaneseq
    %v4211 = vshrl.u32 %v4210, 7
    %v4212 = vsub.s32 0, %v4211
    %v4213 = vrot.slane %v4009, %v4212
    %v4215 = vsel %vm168, %v4209, 0
    %4217 = vmatprep.subr.mxu0 0.0
    %4218 = vmatpush1.msra.mxu0 0.0
    %4219 = vmatprep.subr.mxu0 0.0
    %4220 = vmatpush1.msra.mxu0 0.0
    %4221 = vmatprep.subr.mxu0 0.0
    %4222 = vmatpush1.msra.mxu0 0.0
    %4223 = vmatprep.subr.mxu0 0.0
    %4224 = vmatpush1.msra.mxu0 0.0
    %4225 = vmatprep.subr.mxu0 0.0
    %4226 = vmatpush1.msra.mxu0 0.0
    %4227 = vmatprep.subr.mxu0 0.0
    %4228 = vmatpush1.msra.mxu0 0.0
    %4229 = vmatprep.subr.mxu0 0.0
    %4230 = vmatpush1.msra.mxu0 0.0
    %4231 = vmatprep.subr.mxu0 0.0
    %4232 = vmatpush1.msra.mxu0 0.0
    %4233 = vmatprep.subr.mxu0 0.0
    %4234 = vmatpush1.msra.mxu0 0.0
    %4235 = vmatprep.subr.mxu0 0.0
    %4236 = vmatpush1.msra.mxu0 0.0
    %4237 = vmatprep.subr.mxu0 0.0
    %4238 = vmatpush1.msra.mxu0 0.0
    %4239 = vmatprep.subr.mxu0 0.0
    %4240 = vmatpush1.msra.mxu0 0.0
    %4241 = vmatprep.subr.mxu0 0.0
    %4242 = vmatpush1.msra.mxu0 %v4008
    %4243 = vmatprep.subr.mxu0 0.0
    %4244 = vmatpush1.msra.mxu0 %v4007
    %4245 = vmatprep.subr.mxu0 0.0
    %4246 = vmatpush1.msra.mxu0 %v4006
    %4247 = vmatprep.subr.mxu0 0.0
    %4248 = vmatpush1.msra.mxu0 %v4005
    %4249 = vmatprep.subr.mxu0 0.0
    %4250 = vmatpush2.msra.mxu0 0.0
    %4251 = vmatprep.subr.mxu0 0.0
    %4252 = vmatpush2.msra.mxu0 0.0
    %4253 = vmatprep.subr.mxu0 0.0
    %4254 = vmatpush2.msra.mxu0 0.0
    %4255 = vmatprep.subr.mxu0 0.0
    %4256 = vmatpush2.msra.mxu0 0.0
    %4257 = vmatprep.subr.mxu0 0.0
    %4258 = vmatpush2.msra.mxu0 0.0
    %4259 = vmatprep.subr.mxu0 0.0
    %4260 = vmatpush2.msra.mxu0 0.0
    %4261 = vmatprep.subr.mxu0 0.0
    %4262 = vmatpush2.msra.mxu0 0.0
    %4263 = vmatprep.subr.mxu0 0.0
    %4264 = vmatpush2.msra.mxu0 0.0
    %4265 = vmatprep.subr.mxu0 0.0
    %4266 = vmatpush2.msra.mxu0 0.0
    %4267 = vmatprep.subr.mxu0 0.0
    %4268 = vmatpush2.msra.mxu0 0.0
    %4269 = vmatprep.subr.mxu0 0.0
    %4270 = vmatpush2.msra.mxu0 0.0
    %4271 = vmatprep.subr.mxu0 0.0
    %4272 = vmatpush2.msra.mxu0 0.0
    %4273 = vmatprep.subr.mxu0 0.0
    %4274 = vmatpush2.msra.mxu0 0.0
    %4275 = vmatprep.subr.mxu0 0.0
    %4276 = vmatpush2.msra.mxu0 0.0
    %4277 = vmatprep.subr.mxu0 0.0
    %4278 = vmatpush2.msra.mxu0 0.0
    %4279 = vmatprep.subr.mxu0 0.0
    %4280 = vmatpush2.msra.mxu0 0.0
    %4281 = vmatprep.mubr.f32.mxu0 0.0
    %4282 = vmatmul.mubr.f32.gmra.mxu0 %v4215
    %v4283 = vpop.f32.mrf.mxu0
    %v4284 = vadd.f32 %v4213, %v4283
    %v4285 = vpop.f32.mrf.mxu0
    %4286 = vdwg.mxu0
    %v4287 = vmax.f32 %v4284, 0.0
    %v4288 = vlaneseq
    %v4289 = vshrl.u32 %v4288, 7
    %v4290 = vsub.s32 0, %v4289
    %v4291 = vrot.slane %v4026, %v4290
    %4292 = vmatprep.subr.mxu0 0.0
    %4293 = vmatpush1.msra.mxu0 %v4025
    %4294 = vmatprep.subr.mxu0 0.0
    %4295 = vmatpush1.msra.mxu0 %v4024
    %4296 = vmatprep.subr.mxu0 0.0
    %4297 = vmatpush1.msra.mxu0 %v4023
    %4298 = vmatprep.subr.mxu0 0.0
    %4299 = vmatpush1.msra.mxu0 %v4022
    %4300 = vmatprep.subr.mxu0 0.0
    %4301 = vmatpush1.msra.mxu0 %v4021
    %4302 = vmatprep.subr.mxu0 0.0
    %4303 = vmatpush1.msra.mxu0 %v4020
    %4304 = vmatprep.subr.mxu0 0.0
    %4305 = vmatpush1.msra.mxu0 %v4019
    %4306 = vmatprep.subr.mxu0 0.0
    %4307 = vmatpush1.msra.mxu0 %v4018
    %4308 = vmatprep.subr.mxu0 0.0
    %4309 = vmatpush1.msra.mxu0 %v4017
    %4310 = vmatprep.subr.mxu0 0.0
    %4311 = vmatpush1.msra.mxu0 %v4016
    %4312 = vmatprep.subr.mxu0 0.0
    %4313 = vmatpush1.msra.mxu0 %v4015
    %4314 = vmatprep.subr.mxu0 0.0
    %4315 = vmatpush1.msra.mxu0 %v4014
    %4316 = vmatprep.subr.mxu0 0.0
    %4317 = vmatpush1.msra.mxu0 %v4013
    %4318 = vmatprep.subr.mxu0 0.0
    %4319 = vmatpush1.msra.mxu0 %v4012
    %4320 = vmatprep.subr.mxu0 0.0
    %4321 = vmatpush1.msra.mxu0 %v4011
    %4322 = vmatprep.subr.mxu0 0.0
    %4323 = vmatpush1.msra.mxu0 %v4010
    %4324 = vmatprep.subr.mxu0 0.0
    %4325 = vmatpush2.msra.mxu0 0.0
    %4326 = vmatprep.subr.mxu0 0.0
    %4327 = vmatpush2.msra.mxu0 0.0
    %4328 = vmatprep.subr.mxu0 0.0
    %4329 = vmatpush2.msra.mxu0 0.0
    %4330 = vmatprep.subr.mxu0 0.0
    %4331 = vmatpush2.msra.mxu0 0.0
    %4332 = vmatprep.subr.mxu0 0.0
    %4333 = vmatpush2.msra.mxu0 0.0
    %4334 = vmatprep.subr.mxu0 0.0
    %4335 = vmatpush2.msra.mxu0 0.0
    %4336 = vmatprep.subr.mxu0 0.0
    %4337 = vmatpush2.msra.mxu0 0.0
    %4338 = vmatprep.subr.mxu0 0.0
    %4339 = vmatpush2.msra.mxu0 0.0
    %4340 = vmatprep.subr.mxu0 0.0
    %4341 = vmatpush2.msra.mxu0 0.0
    %4342 = vmatprep.subr.mxu0 0.0
    %4343 = vmatpush2.msra.mxu0 0.0
    %4344 = vmatprep.subr.mxu0 0.0
    %4345 = vmatpush2.msra.mxu0 0.0
    %4346 = vmatprep.subr.mxu0 0.0
    %4347 = vmatpush2.msra.mxu0 0.0
    %4348 = vmatprep.subr.mxu0 0.0
    %4349 = vmatpush2.msra.mxu0 0.0
    %4350 = vmatprep.subr.mxu0 0.0
    %4351 = vmatpush2.msra.mxu0 0.0
    %4352 = vmatprep.subr.mxu0 0.0
    %4353 = vmatpush2.msra.mxu0 0.0
    %4354 = vmatprep.subr.mxu0 0.0
    %4355 = vmatpush2.msra.mxu0 0.0
    %4356 = vmatprep.mubr.f32.mxu0 0.0
    %4357 = vmatmul.mubr.f32.gmra.mxu0 %v4287
    %v4358 = vpop.f32.mrf.mxu0
    %v4359 = vadd.f32 %v4291, %v4358
    %v4360 = vpop.f32.mrf.mxu0
    %4361 = vdwg.mxu0
    %v4362 = vadd.f32 %v4209, %v4359
    %v4363 = vsel %vm4186, %v4362, 0.0
    %4364 = vadd.xlane.f32.xlu0 %v4363
    %v4365 = vpop.xlane.xlu0 %4364
    %v4366 = vmul.f32 %v4365, %v323
    %v4367 = vsub.f32 %v4362, %v4366
    %v4368 = vmul.f32 %v4367, %v4367
    %v4369 = vsel %vm4186, %v4368, 0.0
    %4370 = vadd.xlane.f32.xlu0 %v4369
    %v4371 = vpop.xlane.xlu0 %4370
    %v4372 = vmul.f32 %v4371, %v323
    %v4373 = vadd.f32 %v4372, 1e-05
    %v4374 = vrsqrt.pop %v4373
    %v4375 = vmul.f32 %v4367, %v4374
    %v4376 = vlaneseq
    %v4377 = vshrl.u32 %v4376, 7
    %v4378 = vsub.s32 0, %v4377
    %v4379 = vrot.slane %v4029, %v4378
    %v4380 = vmul.f32 %v4375, %v4379
    %v4381 = vlaneseq
    %v4382 = vshrl.u32 %v4381, 7
    %v4383 = vsub.s32 0, %v4382
    %v4384 = vrot.slane %v4030, %v4383
    %v4385 = vadd.f32 %v4380, %v4384
    %v4386 = vld [vmem:[#allocation3 + $0x408] sm:$0xff]
    %v4387 = vld [vmem:[#allocation3 + $0x410] sm:$0xff]
    %v4388 = vld [vmem:[#allocation3 + $0x418] sm:$0xff]
    %v4389 = vld [vmem:[#allocation3 + $0x420] sm:$0xff]
    %v4390 = vld [vmem:[#allocation3 + $0x510] sm:$0x1]
    %v4391 = vld [vmem:[#allocation3 + $0x428] sm:$0xff]
    %v4392 = vld [vmem:[#allocation3 + $0x430] sm:$0xff]
    %v4393 = vld [vmem:[#allocation3 + $0x438] sm:$0xff]
    %v4394 = vld [vmem:[#allocation3 + $0x440] sm:$0xff]
    %v4395 = vld [vmem:[#allocation3 + $0x511] sm:$0x1]
    %v4396 = vld [vmem:[#allocation3 + $0x4f0] sm:$0xff]
    %v4397 = vld [vmem:[#allocation3 + $0x4f8] sm:$0xff]
    %v4398 = vld [vmem:[#allocation3 + $0x500] sm:$0xff]
    %v4399 = vld [vmem:[#allocation3 + $0x508] sm:$0xff]
    %v4400 = vld [vmem:[#allocation3 + $0x517] sm:$0x1]
    %v4401 = vld [vmem:[#allocation3 + $0x448] sm:$0xff]
    %v4402 = vld [vmem:[#allocation3 + $0x450] sm:$0xff]
    %v4403 = vld [vmem:[#allocation3 + $0x458] sm:$0xff]
    %v4404 = vld [vmem:[#allocation3 + $0x460] sm:$0xff]
    %v4405 = vld [vmem:[#allocation3 + $0x468] sm:$0xff]
    %v4406 = vld [vmem:[#allocation3 + $0x470] sm:$0xff]
    %v4407 = vld [vmem:[#allocation3 + $0x478] sm:$0xff]
    %v4408 = vld [vmem:[#allocation3 + $0x480] sm:$0xff]
    %v4409 = vld [vmem:[#allocation3 + $0x488] sm:$0xff]
    %v4410 = vld [vmem:[#allocation3 + $0x490] sm:$0xff]
    %v4411 = vld [vmem:[#allocation3 + $0x498] sm:$0xff]
    %v4412 = vld [vmem:[#allocation3 + $0x4a0] sm:$0xff]
    %v4413 = vld [vmem:[#allocation3 + $0x4a8] sm:$0xff]
    %v4414 = vld [vmem:[#allocation3 + $0x4b0] sm:$0xff]
    %v4415 = vld [vmem:[#allocation3 + $0x4b8] sm:$0xff]
    %v4416 = vld [vmem:[#allocation3 + $0x4c0] sm:$0xff]
    %v4417 = vld [vmem:[#allocation3 + $0x512] sm:$0x1]
    %v4418 = vld [vmem:[#allocation3 + $0x513] sm:$0x1]
    %v4419 = vld [vmem:[#allocation3 + $0x514] sm:$0x1]
    %v4420 = vld [vmem:[#allocation3 + $0x515] sm:$0x1]
    %v4421 = vld [vmem:[#allocation3 + $0x516] sm:$0x1]
    %v4422 = vlaneseq
    %v4423 = vshrl.u32 %v4422, 7
    %v4424 = vsub.s32 0, %v4423
    %v4425 = vrot.slane %v4390, %v4424
    %v4427 = vsel %vm168, %v4385, 0
    %4429 = vmatprep.subr.mxu0 0.0
    %4430 = vmatpush1.msra.mxu0 0.0
    %4431 = vmatprep.subr.mxu0 0.0
    %4432 = vmatpush1.msra.mxu0 0.0
    %4433 = vmatprep.subr.mxu0 0.0
    %4434 = vmatpush1.msra.mxu0 0.0
    %4435 = vmatprep.subr.mxu0 0.0
    %4436 = vmatpush1.msra.mxu0 0.0
    %4437 = vmatprep.subr.mxu0 0.0
    %4438 = vmatpush1.msra.mxu0 0.0
    %4439 = vmatprep.subr.mxu0 0.0
    %4440 = vmatpush1.msra.mxu0 0.0
    %4441 = vmatprep.subr.mxu0 0.0
    %4442 = vmatpush1.msra.mxu0 0.0
    %4443 = vmatprep.subr.mxu0 0.0
    %4444 = vmatpush1.msra.mxu0 0.0
    %4445 = vmatprep.subr.mxu0 0.0
    %4446 = vmatpush1.msra.mxu0 0.0
    %4447 = vmatprep.subr.mxu0 0.0
    %4448 = vmatpush1.msra.mxu0 0.0
    %4449 = vmatprep.subr.mxu0 0.0
    %4450 = vmatpush1.msra.mxu0 0.0
    %4451 = vmatprep.subr.mxu0 0.0
    %4452 = vmatpush1.msra.mxu0 0.0
    %4453 = vmatprep.subr.mxu0 0.0
    %4454 = vmatpush1.msra.mxu0 %v4389
    %4455 = vmatprep.subr.mxu0 0.0
    %4456 = vmatpush1.msra.mxu0 %v4388
    %4457 = vmatprep.subr.mxu0 0.0
    %4458 = vmatpush1.msra.mxu0 %v4387
    %4459 = vmatprep.subr.mxu0 0.0
    %4460 = vmatpush1.msra.mxu0 %v4386
    %4461 = vmatprep.subr.mxu0 0.0
    %4462 = vmatpush2.msra.mxu0 0.0
    %4463 = vmatprep.subr.mxu0 0.0
    %4464 = vmatpush2.msra.mxu0 0.0
    %4465 = vmatprep.subr.mxu0 0.0
    %4466 = vmatpush2.msra.mxu0 0.0
    %4467 = vmatprep.subr.mxu0 0.0
    %4468 = vmatpush2.msra.mxu0 0.0
    %4469 = vmatprep.subr.mxu0 0.0
    %4470 = vmatpush2.msra.mxu0 0.0
    %4471 = vmatprep.subr.mxu0 0.0
    %4472 = vmatpush2.msra.mxu0 0.0
    %4473 = vmatprep.subr.mxu0 0.0
    %4474 = vmatpush2.msra.mxu0 0.0
    %4475 = vmatprep.subr.mxu0 0.0
    %4476 = vmatpush2.msra.mxu0 0.0
    %4477 = vmatprep.subr.mxu0 0.0
    %4478 = vmatpush2.msra.mxu0 0.0
    %4479 = vmatprep.subr.mxu0 0.0
    %4480 = vmatpush2.msra.mxu0 0.0
    %4481 = vmatprep.subr.mxu0 0.0
    %4482 = vmatpush2.msra.mxu0 0.0
    %4483 = vmatprep.subr.mxu0 0.0
    %4484 = vmatpush2.msra.mxu0 0.0
    %4485 = vmatprep.subr.mxu0 0.0
    %4486 = vmatpush2.msra.mxu0 0.0
    %4487 = vmatprep.subr.mxu0 0.0
    %4488 = vmatpush2.msra.mxu0 0.0
    %4489 = vmatprep.subr.mxu0 0.0
    %4490 = vmatpush2.msra.mxu0 0.0
    %4491 = vmatprep.subr.mxu0 0.0
    %4492 = vmatpush2.msra.mxu0 0.0
    %4493 = vmatprep.mubr.f32.mxu0 0.0
    %4494 = vmatmul.mubr.f32.gmra.mxu0 %v4427
    %v4495 = vpop.f32.mrf.mxu0
    %v4496 = vadd.f32 %v4425, %v4495
    %v4497 = vpop.f32.mrf.mxu0
    %4498 = vdwg.mxu0
    %v4499 = vlaneseq
    %v4500 = vshrl.u32 %v4499, 7
    %v4501 = vsub.s32 0, %v4500
    %v4502 = vrot.slane %v4395, %v4501
    %v4504 = vsel %vm168, %v4496, 0
    %4506 = vmatprep.subr.mxu0 0.0
    %4507 = vmatpush1.msra.mxu0 0.0
    %4508 = vmatprep.subr.mxu0 0.0
    %4509 = vmatpush1.msra.mxu0 0.0
    %4510 = vmatprep.subr.mxu0 0.0
    %4511 = vmatpush1.msra.mxu0 0.0
    %4512 = vmatprep.subr.mxu0 0.0
    %4513 = vmatpush1.msra.mxu0 0.0
    %4514 = vmatprep.subr.mxu0 0.0
    %4515 = vmatpush1.msra.mxu0 0.0
    %4516 = vmatprep.subr.mxu0 0.0
    %4517 = vmatpush1.msra.mxu0 0.0
    %4518 = vmatprep.subr.mxu0 0.0
    %4519 = vmatpush1.msra.mxu0 0.0
    %4520 = vmatprep.subr.mxu0 0.0
    %4521 = vmatpush1.msra.mxu0 0.0
    %4522 = vmatprep.subr.mxu0 0.0
    %4523 = vmatpush1.msra.mxu0 0.0
    %4524 = vmatprep.subr.mxu0 0.0
    %4525 = vmatpush1.msra.mxu0 0.0
    %4526 = vmatprep.subr.mxu0 0.0
    %4527 = vmatpush1.msra.mxu0 0.0
    %4528 = vmatprep.subr.mxu0 0.0
    %4529 = vmatpush1.msra.mxu0 0.0
    %4530 = vmatprep.subr.mxu0 0.0
    %4531 = vmatpush1.msra.mxu0 %v4394
    %4532 = vmatprep.subr.mxu0 0.0
    %4533 = vmatpush1.msra.mxu0 %v4393
    %4534 = vmatprep.subr.mxu0 0.0
    %4535 = vmatpush1.msra.mxu0 %v4392
    %4536 = vmatprep.subr.mxu0 0.0
    %4537 = vmatpush1.msra.mxu0 %v4391
    %4538 = vmatprep.subr.mxu0 0.0
    %4539 = vmatpush2.msra.mxu0 0.0
    %4540 = vmatprep.subr.mxu0 0.0
    %4541 = vmatpush2.msra.mxu0 0.0
    %4542 = vmatprep.subr.mxu0 0.0
    %4543 = vmatpush2.msra.mxu0 0.0
    %4544 = vmatprep.subr.mxu0 0.0
    %4545 = vmatpush2.msra.mxu0 0.0
    %4546 = vmatprep.subr.mxu0 0.0
    %4547 = vmatpush2.msra.mxu0 0.0
    %4548 = vmatprep.subr.mxu0 0.0
    %4549 = vmatpush2.msra.mxu0 0.0
    %4550 = vmatprep.subr.mxu0 0.0
    %4551 = vmatpush2.msra.mxu0 0.0
    %4552 = vmatprep.subr.mxu0 0.0
    %4553 = vmatpush2.msra.mxu0 0.0
    %4554 = vmatprep.subr.mxu0 0.0
    %4555 = vmatpush2.msra.mxu0 0.0
    %4556 = vmatprep.subr.mxu0 0.0
    %4557 = vmatpush2.msra.mxu0 0.0
    %4558 = vmatprep.subr.mxu0 0.0
    %4559 = vmatpush2.msra.mxu0 0.0
    %4560 = vmatprep.subr.mxu0 0.0
    %4561 = vmatpush2.msra.mxu0 0.0
    %4562 = vmatprep.subr.mxu0 0.0
    %4563 = vmatpush2.msra.mxu0 0.0
    %4564 = vmatprep.subr.mxu0 0.0
    %4565 = vmatpush2.msra.mxu0 0.0
    %4566 = vmatprep.subr.mxu0 0.0
    %4567 = vmatpush2.msra.mxu0 0.0
    %4568 = vmatprep.subr.mxu0 0.0
    %4569 = vmatpush2.msra.mxu0 0.0
    %4570 = vmatprep.mubr.f32.mxu0 0.0
    %4571 = vmatmul.mubr.f32.gmra.mxu0 %v4504
    %v4572 = vpop.f32.mrf.mxu0
    %v4573 = vadd.f32 %v4502, %v4572
    %v4574 = vpop.f32.mrf.mxu0
    %4575 = vdwg.mxu0
    %v4576 = vadd.f32 %v4385, %v4573
    %v4577 = vsel %vm4186, %v4576, 0.0
    %4578 = vadd.xlane.f32.xlu0 %v4577
    %v4579 = vpop.xlane.xlu0 %4578
    %v4580 = vmul.f32 %v4579, %v323
    %v4581 = vsub.f32 %v4576, %v4580
    %v4582 = vmul.f32 %v4581, %v4581
    %v4583 = vsel %vm4186, %v4582, 0.0
    %4584 = vadd.xlane.f32.xlu0 %v4583
    %v4585 = vpop.xlane.xlu0 %4584
    %v4586 = vmul.f32 %v4585, %v323
    %v4587 = vadd.f32 %v4586, 1e-05
    %v4588 = vrsqrt.pop %v4587
    %v4589 = vmul.f32 %v4581, %v4588
    %v4590 = vlaneseq
    %v4591 = vshrl.u32 %v4590, 7
    %v4592 = vsub.s32 0, %v4591
    %v4593 = vrot.slane %v4418, %v4592
    %v4594 = vmul.f32 %v4589, %v4593
    %v4595 = vlaneseq
    %v4596 = vshrl.u32 %v4595, 7
    %v4597 = vsub.s32 0, %v4596
    %v4598 = vrot.slane %v4419, %v4597
    %v4599 = vadd.f32 %v4594, %v4598
    %v4600 = vlaneseq
    %v4601 = vshrl.u32 %v4600, 7
    %v4602 = vsub.s32 0, %v4601
    %v4603 = vrot.slane %v4400, %v4602
    %v4605 = vsel %vm168, %v4599, 0
    %4607 = vmatprep.subr.mxu0 0.0
    %4608 = vmatpush1.msra.mxu0 0.0
    %4609 = vmatprep.subr.mxu0 0.0
    %4610 = vmatpush1.msra.mxu0 0.0
    %4611 = vmatprep.subr.mxu0 0.0
    %4612 = vmatpush1.msra.mxu0 0.0
    %4613 = vmatprep.subr.mxu0 0.0
    %4614 = vmatpush1.msra.mxu0 0.0
    %4615 = vmatprep.subr.mxu0 0.0
    %4616 = vmatpush1.msra.mxu0 0.0
    %4617 = vmatprep.subr.mxu0 0.0
    %4618 = vmatpush1.msra.mxu0 0.0
    %4619 = vmatprep.subr.mxu0 0.0
    %4620 = vmatpush1.msra.mxu0 0.0
    %4621 = vmatprep.subr.mxu0 0.0
    %4622 = vmatpush1.msra.mxu0 0.0
    %4623 = vmatprep.subr.mxu0 0.0
    %4624 = vmatpush1.msra.mxu0 0.0
    %4625 = vmatprep.subr.mxu0 0.0
    %4626 = vmatpush1.msra.mxu0 0.0
    %4627 = vmatprep.subr.mxu0 0.0
    %4628 = vmatpush1.msra.mxu0 0.0
    %4629 = vmatprep.subr.mxu0 0.0
    %4630 = vmatpush1.msra.mxu0 0.0
    %4631 = vmatprep.subr.mxu0 0.0
    %4632 = vmatpush1.msra.mxu0 %v4399
    %4633 = vmatprep.subr.mxu0 0.0
    %4634 = vmatpush1.msra.mxu0 %v4398
    %4635 = vmatprep.subr.mxu0 0.0
    %4636 = vmatpush1.msra.mxu0 %v4397
    %4637 = vmatprep.subr.mxu0 0.0
    %4638 = vmatpush1.msra.mxu0 %v4396
    %4639 = vmatprep.subr.mxu0 0.0
    %4640 = vmatpush2.msra.mxu0 0.0
    %4641 = vmatprep.subr.mxu0 0.0
    %4642 = vmatpush2.msra.mxu0 0.0
    %4643 = vmatprep.subr.mxu0 0.0
    %4644 = vmatpush2.msra.mxu0 0.0
    %4645 = vmatprep.subr.mxu0 0.0
    %4646 = vmatpush2.msra.mxu0 0.0
    %4647 = vmatprep.subr.mxu0 0.0
    %4648 = vmatpush2.msra.mxu0 0.0
    %4649 = vmatprep.subr.mxu0 0.0
    %4650 = vmatpush2.msra.mxu0 0.0
    %4651 = vmatprep.subr.mxu0 0.0
    %4652 = vmatpush2.msra.mxu0 0.0
    %4653 = vmatprep.subr.mxu0 0.0
    %4654 = vmatpush2.msra.mxu0 0.0
    %4655 = vmatprep.subr.mxu0 0.0
    %4656 = vmatpush2.msra.mxu0 0.0
    %4657 = vmatprep.subr.mxu0 0.0
    %4658 = vmatpush2.msra.mxu0 0.0
    %4659 = vmatprep.subr.mxu0 0.0
    %4660 = vmatpush2.msra.mxu0 0.0
    %4661 = vmatprep.subr.mxu0 0.0
    %4662 = vmatpush2.msra.mxu0 0.0
    %4663 = vmatprep.subr.mxu0 0.0
    %4664 = vmatpush2.msra.mxu0 0.0
    %4665 = vmatprep.subr.mxu0 0.0
    %4666 = vmatpush2.msra.mxu0 0.0
    %4667 = vmatprep.subr.mxu0 0.0
    %4668 = vmatpush2.msra.mxu0 0.0
    %4669 = vmatprep.subr.mxu0 0.0
    %4670 = vmatpush2.msra.mxu0 0.0
    %4671 = vmatprep.mubr.f32.mxu0 0.0
    %4672 = vmatmul.mubr.f32.gmra.mxu0 %v4605
    %v4673 = vpop.f32.mrf.mxu0
    %v4674 = vadd.f32 %v4603, %v4673
    %v4675 = vpop.f32.mrf.mxu0
    %4676 = vdwg.mxu0
    %v4677 = vmax.f32 %v4674, 0.0
    %v4678 = vlaneseq
    %v4679 = vshrl.u32 %v4678, 7
    %v4680 = vsub.s32 0, %v4679
    %v4681 = vrot.slane %v4417, %v4680
    %4682 = vmatprep.subr.mxu0 0.0
    %4683 = vmatpush1.msra.mxu0 %v4416
    %4684 = vmatprep.subr.mxu0 0.0
    %4685 = vmatpush1.msra.mxu0 %v4415
    %4686 = vmatprep.subr.mxu0 0.0
    %4687 = vmatpush1.msra.mxu0 %v4414
    %4688 = vmatprep.subr.mxu0 0.0
    %4689 = vmatpush1.msra.mxu0 %v4413
    %4690 = vmatprep.subr.mxu0 0.0
    %4691 = vmatpush1.msra.mxu0 %v4412
    %4692 = vmatprep.subr.mxu0 0.0
    %4693 = vmatpush1.msra.mxu0 %v4411
    %4694 = vmatprep.subr.mxu0 0.0
    %4695 = vmatpush1.msra.mxu0 %v4410
    %4696 = vmatprep.subr.mxu0 0.0
    %4697 = vmatpush1.msra.mxu0 %v4409
    %4698 = vmatprep.subr.mxu0 0.0
    %4699 = vmatpush1.msra.mxu0 %v4408
    %4700 = vmatprep.subr.mxu0 0.0
    %4701 = vmatpush1.msra.mxu0 %v4407
    %4702 = vmatprep.subr.mxu0 0.0
    %4703 = vmatpush1.msra.mxu0 %v4406
    %4704 = vmatprep.subr.mxu0 0.0
    %4705 = vmatpush1.msra.mxu0 %v4405
    %4706 = vmatprep.subr.mxu0 0.0
    %4707 = vmatpush1.msra.mxu0 %v4404
    %4708 = vmatprep.subr.mxu0 0.0
    %4709 = vmatpush1.msra.mxu0 %v4403
    %4710 = vmatprep.subr.mxu0 0.0
    %4711 = vmatpush1.msra.mxu0 %v4402
    %4712 = vmatprep.subr.mxu0 0.0
    %4713 = vmatpush1.msra.mxu0 %v4401
    %4714 = vmatprep.subr.mxu0 0.0
    %4715 = vmatpush2.msra.mxu0 0.0
    %4716 = vmatprep.subr.mxu0 0.0
    %4717 = vmatpush2.msra.mxu0 0.0
    %4718 = vmatprep.subr.mxu0 0.0
    %4719 = vmatpush2.msra.mxu0 0.0
    %4720 = vmatprep.subr.mxu0 0.0
    %4721 = vmatpush2.msra.mxu0 0.0
    %4722 = vmatprep.subr.mxu0 0.0
    %4723 = vmatpush2.msra.mxu0 0.0
    %4724 = vmatprep.subr.mxu0 0.0
    %4725 = vmatpush2.msra.mxu0 0.0
    %4726 = vmatprep.subr.mxu0 0.0
    %4727 = vmatpush2.msra.mxu0 0.0
    %4728 = vmatprep.subr.mxu0 0.0
    %4729 = vmatpush2.msra.mxu0 0.0
    %4730 = vmatprep.subr.mxu0 0.0
    %4731 = vmatpush2.msra.mxu0 0.0
    %4732 = vmatprep.subr.mxu0 0.0
    %4733 = vmatpush2.msra.mxu0 0.0
    %4734 = vmatprep.subr.mxu0 0.0
    %4735 = vmatpush2.msra.mxu0 0.0
    %4736 = vmatprep.subr.mxu0 0.0
    %4737 = vmatpush2.msra.mxu0 0.0
    %4738 = vmatprep.subr.mxu0 0.0
    %4739 = vmatpush2.msra.mxu0 0.0
    %4740 = vmatprep.subr.mxu0 0.0
    %4741 = vmatpush2.msra.mxu0 0.0
    %4742 = vmatprep.subr.mxu0 0.0
    %4743 = vmatpush2.msra.mxu0 0.0
    %4744 = vmatprep.subr.mxu0 0.0
    %4745 = vmatpush2.msra.mxu0 0.0
    %4746 = vmatprep.mubr.f32.mxu0 0.0
    %4747 = vmatmul.mubr.f32.gmra.mxu0 %v4677
    %v4748 = vpop.f32.mrf.mxu0
    %v4749 = vadd.f32 %v4681, %v4748
    %v4750 = vpop.f32.mrf.mxu0
    %4751 = vdwg.mxu0
    %v4752 = vadd.f32 %v4599, %v4749
    %v4753 = vsel %vm4186, %v4752, 0.0
    %4754 = vadd.xlane.f32.xlu0 %v4753
    %v4755 = vpop.xlane.xlu0 %4754
    %v4756 = vmul.f32 %v4755, %v323
    %v4757 = vsub.f32 %v4752, %v4756
    %v4758 = vmul.f32 %v4757, %v4757
    %v4759 = vsel %vm4186, %v4758, 0.0
    %4760 = vadd.xlane.f32.xlu0 %v4759
    %v4761 = vpop.xlane.xlu0 %4760
    %v4762 = vmul.f32 %v4761, %v323
    %v4763 = vadd.f32 %v4762, 1e-05
    %v4764 = vrsqrt.pop %v4763
    %v4765 = vmul.f32 %v4757, %v4764
    %v4766 = vlaneseq
    %v4767 = vshrl.u32 %v4766, 7
    %v4768 = vsub.s32 0, %v4767
    %v4769 = vrot.slane %v4420, %v4768
    %v4770 = vmul.f32 %v4765, %v4769
    %v4771 = vlaneseq
    %v4772 = vshrl.u32 %v4771, 7
    %v4773 = vsub.s32 0, %v4772
    %v4774 = vrot.slane %v4421, %v4773
    %v4775 = vadd.f32 %v4770, %v4774
    %v4776 = vlaneseq
    %v4777 = vshrl.u32 %v4776, 7
    %v4778 = vsub.s32 0, %v4777
    %v4779 = vrot.slane %v2979, %v4778
    %4781 = vrot.lane.b32.xlu0 %v3993, 96
    %v4782 = vpop.permute.xlu0 %4781
    %v4784 = vsel %vm3985, %v4779, %v4782
    %v4785 = vld [vmem:[#allocation3 + $0x538] sm:$0x1]
    %v4786 = vld [vmem:[#allocation3 + $0x539] sm:$0x1]
    %v4787 = vld [vmem:[#allocation3 + $0x518] sm:$0xff]
    %v4788 = vld [vmem:[#allocation3 + $0x520] sm:$0xff]
    %v4789 = vld [vmem:[#allocation3 + $0x528] sm:$0xff]
    %v4790 = vld [vmem:[#allocation3 + $0x530] sm:$0xff]
    %v4791 = vld [vmem:[#allocation3 + $0x53f] sm:$0x1]
    %v4792 = vld [vmem:[#allocation3 + $0x53a] sm:$0x1]
    %v4793 = vld [vmem:[#allocation3 + $0x53b] sm:$0x1]
    %v4794 = vld [vmem:[#allocation3 + $0x53c] sm:$0x1]
    %v4795 = vld [vmem:[#allocation3 + $0x53d] sm:$0x1]
    %v4796 = vld [vmem:[#allocation3 + $0x53e] sm:$0x1]
    %v4797 = vlaneseq
    %v4798 = vshrl.u32 %v4797, 7
    %v4799 = vsub.s32 0, %v4798
    %v4800 = vrot.slane %v4785, %v4799
    %4805 = vrot.lane.b32.xlu0 %v3995, 96
    %v4806 = vpop.permute.xlu0 %4805
    %4807 = vrot.lane.b32.xlu0 %v3996, 96
    %v4808 = vpop.permute.xlu0 %4807
    %4809 = vrot.lane.b32.xlu0 %v3997, 96
    %v4810 = vpop.permute.xlu0 %4809
    %4811 = vrot.lane.b32.xlu0 %v3998, 96
    %v4812 = vpop.permute.xlu0 %4811
    %v4818 = vsel %vm168, %v4784, 0
    %4820 = vmatprep.subr.mxu0 0.0
    %4821 = vmatpush1.msra.mxu0 0.0
    %4822 = vmatprep.subr.mxu0 0.0
    %4823 = vmatpush1.msra.mxu0 0.0
    %4824 = vmatprep.subr.mxu0 0.0
    %4825 = vmatpush1.msra.mxu0 0.0
    %4826 = vmatprep.subr.mxu0 0.0
    %4827 = vmatpush1.msra.mxu0 0.0
    %4828 = vmatprep.subr.mxu0 0.0
    %4829 = vmatpush1.msra.mxu0 0.0
    %4830 = vmatprep.subr.mxu0 0.0
    %4831 = vmatpush1.msra.mxu0 0.0
    %4832 = vmatprep.subr.mxu0 0.0
    %4833 = vmatpush1.msra.mxu0 0.0
    %4834 = vmatprep.subr.mxu0 0.0
    %4835 = vmatpush1.msra.mxu0 0.0
    %4836 = vmatprep.subr.mxu0 0.0
    %4837 = vmatpush1.msra.mxu0 0.0
    %4838 = vmatprep.subr.mxu0 0.0
    %4839 = vmatpush1.msra.mxu0 0.0
    %4840 = vmatprep.subr.mxu0 0.0
    %4841 = vmatpush1.msra.mxu0 0.0
    %4842 = vmatprep.subr.mxu0 0.0
    %4843 = vmatpush1.msra.mxu0 0.0
    %4844 = vmatprep.subr.mxu0 0.0
    %4845 = vmatpush1.msra.mxu0 %v4812
    %4846 = vmatprep.subr.mxu0 0.0
    %4847 = vmatpush1.msra.mxu0 %v4810
    %4848 = vmatprep.subr.mxu0 0.0
    %4849 = vmatpush1.msra.mxu0 %v4808
    %4850 = vmatprep.subr.mxu0 0.0
    %4851 = vmatpush1.msra.mxu0 %v4806
    %4852 = vmatprep.subr.mxu0 0.0
    %4853 = vmatpush2.msra.mxu0 0.0
    %4854 = vmatprep.subr.mxu0 0.0
    %4855 = vmatpush2.msra.mxu0 0.0
    %4856 = vmatprep.subr.mxu0 0.0
    %4857 = vmatpush2.msra.mxu0 0.0
    %4858 = vmatprep.subr.mxu0 0.0
    %4859 = vmatpush2.msra.mxu0 0.0
    %4860 = vmatprep.subr.mxu0 0.0
    %4861 = vmatpush2.msra.mxu0 0.0
    %4862 = vmatprep.subr.mxu0 0.0
    %4863 = vmatpush2.msra.mxu0 0.0
    %4864 = vmatprep.subr.mxu0 0.0
    %4865 = vmatpush2.msra.mxu0 0.0
    %4866 = vmatprep.subr.mxu0 0.0
    %4867 = vmatpush2.msra.mxu0 0.0
    %4868 = vmatprep.subr.mxu0 0.0
    %4869 = vmatpush2.msra.mxu0 0.0
    %4870 = vmatprep.subr.mxu0 0.0
    %4871 = vmatpush2.msra.mxu0 0.0
    %4872 = vmatprep.subr.mxu0 0.0
    %4873 = vmatpush2.msra.mxu0 0.0
    %4874 = vmatprep.subr.mxu0 0.0
    %4875 = vmatpush2.msra.mxu0 0.0
    %4876 = vmatprep.subr.mxu0 0.0
    %4877 = vmatpush2.msra.mxu0 0.0
    %4878 = vmatprep.subr.mxu0 0.0
    %4879 = vmatpush2.msra.mxu0 0.0
    %4880 = vmatprep.subr.mxu0 0.0
    %4881 = vmatpush2.msra.mxu0 0.0
    %4882 = vmatprep.subr.mxu0 0.0
    %4883 = vmatpush2.msra.mxu0 0.0
    %4884 = vmatprep.mubr.f32.mxu0 0.0
    %4885 = vmatmul.mubr.f32.gmra.mxu0 %v4818
    %v4886 = vpop.f32.mrf.mxu0
    %v4887 = vadd.f32 %v4800, %v4886
    %v4888 = vpop.f32.mrf.mxu0
    %4889 = vdwg.mxu0
    %v4890 = vlaneseq
    %v4891 = vshrl.u32 %v4890, 7
    %v4892 = vsub.s32 0, %v4891
    %v4893 = vrot.slane %v4786, %v4892
    %4898 = vrot.lane.b32.xlu0 %v4000, 96
    %v4899 = vpop.permute.xlu0 %4898
    %4900 = vrot.lane.b32.xlu0 %v4001, 96
    %v4901 = vpop.permute.xlu0 %4900
    %4902 = vrot.lane.b32.xlu0 %v4002, 96
    %v4903 = vpop.permute.xlu0 %4902
    %4904 = vrot.lane.b32.xlu0 %v4003, 96
    %v4905 = vpop.permute.xlu0 %4904
    %v4911 = vsel %vm168, %v4887, 0
    %4913 = vmatprep.subr.mxu0 0.0
    %4914 = vmatpush1.msra.mxu0 0.0
    %4915 = vmatprep.subr.mxu0 0.0
    %4916 = vmatpush1.msra.mxu0 0.0
    %4917 = vmatprep.subr.mxu0 0.0
    %4918 = vmatpush1.msra.mxu0 0.0
    %4919 = vmatprep.subr.mxu0 0.0
    %4920 = vmatpush1.msra.mxu0 0.0
    %4921 = vmatprep.subr.mxu0 0.0
    %4922 = vmatpush1.msra.mxu0 0.0
    %4923 = vmatprep.subr.mxu0 0.0
    %4924 = vmatpush1.msra.mxu0 0.0
    %4925 = vmatprep.subr.mxu0 0.0
    %4926 = vmatpush1.msra.mxu0 0.0
    %4927 = vmatprep.subr.mxu0 0.0
    %4928 = vmatpush1.msra.mxu0 0.0
    %4929 = vmatprep.subr.mxu0 0.0
    %4930 = vmatpush1.msra.mxu0 0.0
    %4931 = vmatprep.subr.mxu0 0.0
    %4932 = vmatpush1.msra.mxu0 0.0
    %4933 = vmatprep.subr.mxu0 0.0
    %4934 = vmatpush1.msra.mxu0 0.0
    %4935 = vmatprep.subr.mxu0 0.0
    %4936 = vmatpush1.msra.mxu0 0.0
    %4937 = vmatprep.subr.mxu0 0.0
    %4938 = vmatpush1.msra.mxu0 %v4905
    %4939 = vmatprep.subr.mxu0 0.0
    %4940 = vmatpush1.msra.mxu0 %v4903
    %4941 = vmatprep.subr.mxu0 0.0
    %4942 = vmatpush1.msra.mxu0 %v4901
    %4943 = vmatprep.subr.mxu0 0.0
    %4944 = vmatpush1.msra.mxu0 %v4899
    %4945 = vmatprep.subr.mxu0 0.0
    %4946 = vmatpush2.msra.mxu0 0.0
    %4947 = vmatprep.subr.mxu0 0.0
    %4948 = vmatpush2.msra.mxu0 0.0
    %4949 = vmatprep.subr.mxu0 0.0
    %4950 = vmatpush2.msra.mxu0 0.0
    %4951 = vmatprep.subr.mxu0 0.0
    %4952 = vmatpush2.msra.mxu0 0.0
    %4953 = vmatprep.subr.mxu0 0.0
    %4954 = vmatpush2.msra.mxu0 0.0
    %4955 = vmatprep.subr.mxu0 0.0
    %4956 = vmatpush2.msra.mxu0 0.0
    %4957 = vmatprep.subr.mxu0 0.0
    %4958 = vmatpush2.msra.mxu0 0.0
    %4959 = vmatprep.subr.mxu0 0.0
    %4960 = vmatpush2.msra.mxu0 0.0
    %4961 = vmatprep.subr.mxu0 0.0
    %4962 = vmatpush2.msra.mxu0 0.0
    %4963 = vmatprep.subr.mxu0 0.0
    %4964 = vmatpush2.msra.mxu0 0.0
    %4965 = vmatprep.subr.mxu0 0.0
    %4966 = vmatpush2.msra.mxu0 0.0
    %4967 = vmatprep.subr.mxu0 0.0
    %4968 = vmatpush2.msra.mxu0 0.0
    %4969 = vmatprep.subr.mxu0 0.0
    %4970 = vmatpush2.msra.mxu0 0.0
    %4971 = vmatprep.subr.mxu0 0.0
    %4972 = vmatpush2.msra.mxu0 0.0
    %4973 = vmatprep.subr.mxu0 0.0
    %4974 = vmatpush2.msra.mxu0 0.0
    %4975 = vmatprep.subr.mxu0 0.0
    %4976 = vmatpush2.msra.mxu0 0.0
    %4977 = vmatprep.mubr.f32.mxu0 0.0
    %4978 = vmatmul.mubr.f32.gmra.mxu0 %v4911
    %v4979 = vpop.f32.mrf.mxu0
    %v4980 = vadd.f32 %v4893, %v4979
    %v4981 = vpop.f32.mrf.mxu0
    %4982 = vdwg.mxu0
    %v4983 = vadd.f32 %v4784, %v4980
    %v4984 = vsel %vm4186, %v4983, 0.0
    %4985 = vadd.xlane.f32.xlu0 %v4984
    %v4986 = vpop.xlane.xlu0 %4985
    %v4987 = vmul.f32 %v4986, %v323
    %v4988 = vsub.f32 %v4983, %v4987
    %v4989 = vmul.f32 %v4988, %v4988
    %v4990 = vsel %vm4186, %v4989, 0.0
    %4991 = vadd.xlane.f32.xlu0 %v4990
    %v4992 = vpop.xlane.xlu0 %4991
    %v4993 = vmul.f32 %v4992, %v323
    %v4994 = vadd.f32 %v4993, 1e-05
    %v4995 = vrsqrt.pop %v4994
    %v4996 = vmul.f32 %v4988, %v4995
    %v4997 = vlaneseq
    %v4998 = vshrl.u32 %v4997, 7
    %v4999 = vsub.s32 0, %v4998
    %v5000 = vrot.slane %v4793, %v4999
    %v5001 = vmul.f32 %v4996, %v5000
    %v5002 = vlaneseq
    %v5003 = vshrl.u32 %v5002, 7
    %v5004 = vsub.s32 0, %v5003
    %v5005 = vrot.slane %v4794, %v5004
    %v5006 = vadd.f32 %v5001, %v5005
    %v5007 = vlaneseq
    %v5008 = vshrl.u32 %v5007, 7
    %v5009 = vsub.s32 0, %v5008
    %v5010 = vrot.slane %v4791, %v5009
    %v5012 = vsel %vm168, %v5006, 0
    %5014 = vmatprep.subr.mxu0 0.0
    %5015 = vmatpush1.msra.mxu0 0.0
    %5016 = vmatprep.subr.mxu0 0.0
    %5017 = vmatpush1.msra.mxu0 0.0
    %5018 = vmatprep.subr.mxu0 0.0
    %5019 = vmatpush1.msra.mxu0 0.0
    %5020 = vmatprep.subr.mxu0 0.0
    %5021 = vmatpush1.msra.mxu0 0.0
    %5022 = vmatprep.subr.mxu0 0.0
    %5023 = vmatpush1.msra.mxu0 0.0
    %5024 = vmatprep.subr.mxu0 0.0
    %5025 = vmatpush1.msra.mxu0 0.0
    %5026 = vmatprep.subr.mxu0 0.0
    %5027 = vmatpush1.msra.mxu0 0.0
    %5028 = vmatprep.subr.mxu0 0.0
    %5029 = vmatpush1.msra.mxu0 0.0
    %5030 = vmatprep.subr.mxu0 0.0
    %5031 = vmatpush1.msra.mxu0 0.0
    %5032 = vmatprep.subr.mxu0 0.0
    %5033 = vmatpush1.msra.mxu0 0.0
    %5034 = vmatprep.subr.mxu0 0.0
    %5035 = vmatpush1.msra.mxu0 0.0
    %5036 = vmatprep.subr.mxu0 0.0
    %5037 = vmatpush1.msra.mxu0 0.0
    %5038 = vmatprep.subr.mxu0 0.0
    %5039 = vmatpush1.msra.mxu0 %v4790
    %5040 = vmatprep.subr.mxu0 0.0
    %5041 = vmatpush1.msra.mxu0 %v4789
    %5042 = vmatprep.subr.mxu0 0.0
    %5043 = vmatpush1.msra.mxu0 %v4788
    %5044 = vmatprep.subr.mxu0 0.0
    %5045 = vmatpush1.msra.mxu0 %v4787
    %5046 = vmatprep.subr.mxu0 0.0
    %5047 = vmatpush2.msra.mxu0 0.0
    %5048 = vmatprep.subr.mxu0 0.0
    %5049 = vmatpush2.msra.mxu0 0.0
    %5050 = vmatprep.subr.mxu0 0.0
    %5051 = vmatpush2.msra.mxu0 0.0
    %5052 = vmatprep.subr.mxu0 0.0
    %5053 = vmatpush2.msra.mxu0 0.0
    %5054 = vmatprep.subr.mxu0 0.0
    %5055 = vmatpush2.msra.mxu0 0.0
    %5056 = vmatprep.subr.mxu0 0.0
    %5057 = vmatpush2.msra.mxu0 0.0
    %5058 = vmatprep.subr.mxu0 0.0
    %5059 = vmatpush2.msra.mxu0 0.0
    %5060 = vmatprep.subr.mxu0 0.0
    %5061 = vmatpush2.msra.mxu0 0.0
    %5062 = vmatprep.subr.mxu0 0.0
    %5063 = vmatpush2.msra.mxu0 0.0
    %5064 = vmatprep.subr.mxu0 0.0
    %5065 = vmatpush2.msra.mxu0 0.0
    %5066 = vmatprep.subr.mxu0 0.0
    %5067 = vmatpush2.msra.mxu0 0.0
    %5068 = vmatprep.subr.mxu0 0.0
    %5069 = vmatpush2.msra.mxu0 0.0
    %5070 = vmatprep.subr.mxu0 0.0
    %5071 = vmatpush2.msra.mxu0 0.0
    %5072 = vmatprep.subr.mxu0 0.0
    %5073 = vmatpush2.msra.mxu0 0.0
    %5074 = vmatprep.subr.mxu0 0.0
    %5075 = vmatpush2.msra.mxu0 0.0
    %5076 = vmatprep.subr.mxu0 0.0
    %5077 = vmatpush2.msra.mxu0 0.0
    %5078 = vmatprep.mubr.f32.mxu0 0.0
    %5079 = vmatmul.mubr.f32.gmra.mxu0 %v5012
    %v5080 = vpop.f32.mrf.mxu0
    %v5081 = vadd.f32 %v5010, %v5080
    %v5082 = vpop.f32.mrf.mxu0
    %5083 = vdwg.mxu0
    %v5084 = vmax.f32 %v5081, 0.0
    %v5085 = vlaneseq
    %v5086 = vshrl.u32 %v5085, 7
    %v5087 = vsub.s32 0, %v5086
    %v5088 = vrot.slane %v4792, %v5087
    %5105 = vrot.lane.b32.xlu0 %v4010, 96
    %v5106 = vpop.permute.xlu0 %5105
    %5107 = vrot.lane.b32.xlu0 %v4011, 96
    %v5108 = vpop.permute.xlu0 %5107
    %5109 = vrot.lane.b32.xlu0 %v4012, 96
    %v5110 = vpop.permute.xlu0 %5109
    %5111 = vrot.lane.b32.xlu0 %v4013, 96
    %v5112 = vpop.permute.xlu0 %5111
    %5113 = vrot.lane.b32.xlu0 %v4014, 96
    %v5114 = vpop.permute.xlu0 %5113
    %5115 = vrot.lane.b32.xlu0 %v4015, 96
    %v5116 = vpop.permute.xlu0 %5115
    %5117 = vrot.lane.b32.xlu0 %v4016, 96
    %v5118 = vpop.permute.xlu0 %5117
    %5119 = vrot.lane.b32.xlu0 %v4017, 96
    %v5120 = vpop.permute.xlu0 %5119
    %5121 = vrot.lane.b32.xlu0 %v4018, 96
    %v5122 = vpop.permute.xlu0 %5121
    %5123 = vrot.lane.b32.xlu0 %v4019, 96
    %v5124 = vpop.permute.xlu0 %5123
    %5125 = vrot.lane.b32.xlu0 %v4020, 96
    %v5126 = vpop.permute.xlu0 %5125
    %5127 = vrot.lane.b32.xlu0 %v4021, 96
    %v5128 = vpop.permute.xlu0 %5127
    %5129 = vrot.lane.b32.xlu0 %v4022, 96
    %v5130 = vpop.permute.xlu0 %5129
    %5131 = vrot.lane.b32.xlu0 %v4023, 96
    %v5132 = vpop.permute.xlu0 %5131
    %5133 = vrot.lane.b32.xlu0 %v4024, 96
    %v5134 = vpop.permute.xlu0 %5133
    %5135 = vrot.lane.b32.xlu0 %v4025, 96
    %v5136 = vpop.permute.xlu0 %5135
    %5153 = vmatprep.subr.mxu0 0.0
    %5154 = vmatpush1.msra.mxu0 %v5136
    %5155 = vmatprep.subr.mxu0 0.0
    %5156 = vmatpush1.msra.mxu0 %v5134
    %5157 = vmatprep.subr.mxu0 0.0
    %5158 = vmatpush1.msra.mxu0 %v5132
    %5159 = vmatprep.subr.mxu0 0.0
    %5160 = vmatpush1.msra.mxu0 %v5130
    %5161 = vmatprep.subr.mxu0 0.0
    %5162 = vmatpush1.msra.mxu0 %v5128
    %5163 = vmatprep.subr.mxu0 0.0
    %5164 = vmatpush1.msra.mxu0 %v5126
    %5165 = vmatprep.subr.mxu0 0.0
    %5166 = vmatpush1.msra.mxu0 %v5124
    %5167 = vmatprep.subr.mxu0 0.0
    %5168 = vmatpush1.msra.mxu0 %v5122
    %5169 = vmatprep.subr.mxu0 0.0
    %5170 = vmatpush1.msra.mxu0 %v5120
    %5171 = vmatprep.subr.mxu0 0.0
    %5172 = vmatpush1.msra.mxu0 %v5118
    %5173 = vmatprep.subr.mxu0 0.0
    %5174 = vmatpush1.msra.mxu0 %v5116
    %5175 = vmatprep.subr.mxu0 0.0
    %5176 = vmatpush1.msra.mxu0 %v5114
    %5177 = vmatprep.subr.mxu0 0.0
    %5178 = vmatpush1.msra.mxu0 %v5112
    %5179 = vmatprep.subr.mxu0 0.0
    %5180 = vmatpush1.msra.mxu0 %v5110
    %5181 = vmatprep.subr.mxu0 0.0
    %5182 = vmatpush1.msra.mxu0 %v5108
    %5183 = vmatprep.subr.mxu0 0.0
    %5184 = vmatpush1.msra.mxu0 %v5106
    %5185 = vmatprep.subr.mxu0 0.0
    %5186 = vmatpush2.msra.mxu0 0.0
    %5187 = vmatprep.subr.mxu0 0.0
    %5188 = vmatpush2.msra.mxu0 0.0
    %5189 = vmatprep.subr.mxu0 0.0
    %5190 = vmatpush2.msra.mxu0 0.0
    %5191 = vmatprep.subr.mxu0 0.0
    %5192 = vmatpush2.msra.mxu0 0.0
    %5193 = vmatprep.subr.mxu0 0.0
    %5194 = vmatpush2.msra.mxu0 0.0
    %5195 = vmatprep.subr.mxu0 0.0
    %5196 = vmatpush2.msra.mxu0 0.0
    %5197 = vmatprep.subr.mxu0 0.0
    %5198 = vmatpush2.msra.mxu0 0.0
    %5199 = vmatprep.subr.mxu0 0.0
    %5200 = vmatpush2.msra.mxu0 0.0
    %5201 = vmatprep.subr.mxu0 0.0
    %5202 = vmatpush2.msra.mxu0 0.0
    %5203 = vmatprep.subr.mxu0 0.0
    %5204 = vmatpush2.msra.mxu0 0.0
    %5205 = vmatprep.subr.mxu0 0.0
    %5206 = vmatpush2.msra.mxu0 0.0
    %5207 = vmatprep.subr.mxu0 0.0
    %5208 = vmatpush2.msra.mxu0 0.0
    %5209 = vmatprep.subr.mxu0 0.0
    %5210 = vmatpush2.msra.mxu0 0.0
    %5211 = vmatprep.subr.mxu0 0.0
    %5212 = vmatpush2.msra.mxu0 0.0
    %5213 = vmatprep.subr.mxu0 0.0
    %5214 = vmatpush2.msra.mxu0 0.0
    %5215 = vmatprep.subr.mxu0 0.0
    %5216 = vmatpush2.msra.mxu0 0.0
    %5217 = vmatprep.mubr.f32.mxu0 0.0
    %5218 = vmatmul.mubr.f32.gmra.mxu0 %v5084
    %v5219 = vpop.f32.mrf.mxu0
    %v5220 = vadd.f32 %v5088, %v5219
    %v5221 = vpop.f32.mrf.mxu0
    %5222 = vdwg.mxu0
    %v5223 = vadd.f32 %v5006, %v5220
    %v5224 = vsel %vm4186, %v5223, 0.0
    %5225 = vadd.xlane.f32.xlu0 %v5224
    %v5226 = vpop.xlane.xlu0 %5225
    %v5227 = vmul.f32 %v5226, %v323
    %v5228 = vsub.f32 %v5223, %v5227
    %v5229 = vmul.f32 %v5228, %v5228
    %v5230 = vsel %vm4186, %v5229, 0.0
    %5231 = vadd.xlane.f32.xlu0 %v5230
    %v5232 = vpop.xlane.xlu0 %5231
    %v5233 = vmul.f32 %v5232, %v323
    %v5234 = vadd.f32 %v5233, 1e-05
    %v5235 = vrsqrt.pop %v5234
    %v5236 = vmul.f32 %v5228, %v5235
    %v5237 = vlaneseq
    %v5238 = vshrl.u32 %v5237, 7
    %v5239 = vsub.s32 0, %v5238
    %v5240 = vrot.slane %v4795, %v5239
    %v5241 = vmul.f32 %v5236, %v5240
    %v5242 = vlaneseq
    %v5243 = vshrl.u32 %v5242, 7
    %v5244 = vsub.s32 0, %v5243
    %v5245 = vrot.slane %v4796, %v5244
    %v5246 = vadd.f32 %v5241, %v5245
    %v5247 = vld [vmem:[#allocation3 + $0x560] sm:$0x1]
    %v5248 = vld [vmem:[#allocation3 + $0x561] sm:$0x1]
    %v5249 = vld [vmem:[#allocation3 + $0x540] sm:$0xff]
    %v5250 = vld [vmem:[#allocation3 + $0x548] sm:$0xff]
    %v5251 = vld [vmem:[#allocation3 + $0x550] sm:$0xff]
    %v5252 = vld [vmem:[#allocation3 + $0x558] sm:$0xff]
    %v5253 = vld [vmem:[#allocation3 + $0x567] sm:$0x1]
    %v5254 = vld [vmem:[#allocation3 + $0x562] sm:$0x1]
    %v5255 = vld [vmem:[#allocation3 + $0x563] sm:$0x1]
    %v5256 = vld [vmem:[#allocation3 + $0x564] sm:$0x1]
    %v5257 = vld [vmem:[#allocation3 + $0x565] sm:$0x1]
    %v5258 = vld [vmem:[#allocation3 + $0x566] sm:$0x1]
    %v5259 = vlaneseq
    %v5260 = vshrl.u32 %v5259, 7
    %v5261 = vsub.s32 0, %v5260
    %v5262 = vrot.slane %v5247, %v5261
    %5267 = vrot.lane.b32.xlu0 %v4386, 96
    %v5268 = vpop.permute.xlu0 %5267
    %5269 = vrot.lane.b32.xlu0 %v4387, 96
    %v5270 = vpop.permute.xlu0 %5269
    %5271 = vrot.lane.b32.xlu0 %v4388, 96
    %v5272 = vpop.permute.xlu0 %5271
    %5273 = vrot.lane.b32.xlu0 %v4389, 96
    %v5274 = vpop.permute.xlu0 %5273
    %v5280 = vsel %vm168, %v5246, 0
    %5282 = vmatprep.subr.mxu0 0.0
    %5283 = vmatpush1.msra.mxu0 0.0
    %5284 = vmatprep.subr.mxu0 0.0
    %5285 = vmatpush1.msra.mxu0 0.0
    %5286 = vmatprep.subr.mxu0 0.0
    %5287 = vmatpush1.msra.mxu0 0.0
    %5288 = vmatprep.subr.mxu0 0.0
    %5289 = vmatpush1.msra.mxu0 0.0
    %5290 = vmatprep.subr.mxu0 0.0
    %5291 = vmatpush1.msra.mxu0 0.0
    %5292 = vmatprep.subr.mxu0 0.0
    %5293 = vmatpush1.msra.mxu0 0.0
    %5294 = vmatprep.subr.mxu0 0.0
    %5295 = vmatpush1.msra.mxu0 0.0
    %5296 = vmatprep.subr.mxu0 0.0
    %5297 = vmatpush1.msra.mxu0 0.0
    %5298 = vmatprep.subr.mxu0 0.0
    %5299 = vmatpush1.msra.mxu0 0.0
    %5300 = vmatprep.subr.mxu0 0.0
    %5301 = vmatpush1.msra.mxu0 0.0
    %5302 = vmatprep.subr.mxu0 0.0
    %5303 = vmatpush1.msra.mxu0 0.0
    %5304 = vmatprep.subr.mxu0 0.0
    %5305 = vmatpush1.msra.mxu0 0.0
    %5306 = vmatprep.subr.mxu0 0.0
    %5307 = vmatpush1.msra.mxu0 %v5274
    %5308 = vmatprep.subr.mxu0 0.0
    %5309 = vmatpush1.msra.mxu0 %v5272
    %5310 = vmatprep.subr.mxu0 0.0
    %5311 = vmatpush1.msra.mxu0 %v5270
    %5312 = vmatprep.subr.mxu0 0.0
    %5313 = vmatpush1.msra.mxu0 %v5268
    %5314 = vmatprep.subr.mxu0 0.0
    %5315 = vmatpush2.msra.mxu0 0.0
    %5316 = vmatprep.subr.mxu0 0.0
    %5317 = vmatpush2.msra.mxu0 0.0
    %5318 = vmatprep.subr.mxu0 0.0
    %5319 = vmatpush2.msra.mxu0 0.0
    %5320 = vmatprep.subr.mxu0 0.0
    %5321 = vmatpush2.msra.mxu0 0.0
    %5322 = vmatprep.subr.mxu0 0.0
    %5323 = vmatpush2.msra.mxu0 0.0
    %5324 = vmatprep.subr.mxu0 0.0
    %5325 = vmatpush2.msra.mxu0 0.0
    %5326 = vmatprep.subr.mxu0 0.0
    %5327 = vmatpush2.msra.mxu0 0.0
    %5328 = vmatprep.subr.mxu0 0.0
    %5329 = vmatpush2.msra.mxu0 0.0
    %5330 = vmatprep.subr.mxu0 0.0
    %5331 = vmatpush2.msra.mxu0 0.0
    %5332 = vmatprep.subr.mxu0 0.0
    %5333 = vmatpush2.msra.mxu0 0.0
    %5334 = vmatprep.subr.mxu0 0.0
    %5335 = vmatpush2.msra.mxu0 0.0
    %5336 = vmatprep.subr.mxu0 0.0
    %5337 = vmatpush2.msra.mxu0 0.0
    %5338 = vmatprep.subr.mxu0 0.0
    %5339 = vmatpush2.msra.mxu0 0.0
    %5340 = vmatprep.subr.mxu0 0.0
    %5341 = vmatpush2.msra.mxu0 0.0
    %5342 = vmatprep.subr.mxu0 0.0
    %5343 = vmatpush2.msra.mxu0 0.0
    %5344 = vmatprep.subr.mxu0 0.0
    %5345 = vmatpush2.msra.mxu0 0.0
    %5346 = vmatprep.mubr.f32.mxu0 0.0
    %5347 = vmatmul.mubr.f32.gmra.mxu0 %v5280
    %v5348 = vpop.f32.mrf.mxu0
    %v5349 = vadd.f32 %v5262, %v5348
    %v5350 = vpop.f32.mrf.mxu0
    %5351 = vdwg.mxu0
    %v5352 = vlaneseq
    %v5353 = vshrl.u32 %v5352, 7
    %v5354 = vsub.s32 0, %v5353
    %v5355 = vrot.slane %v5248, %v5354
    %5360 = vrot.lane.b32.xlu0 %v4391, 96
    %v5361 = vpop.permute.xlu0 %5360
    %5362 = vrot.lane.b32.xlu0 %v4392, 96
    %v5363 = vpop.permute.xlu0 %5362
    %5364 = vrot.lane.b32.xlu0 %v4393, 96
    %v5365 = vpop.permute.xlu0 %5364
    %5366 = vrot.lane.b32.xlu0 %v4394, 96
    %v5367 = vpop.permute.xlu0 %5366
    %v5373 = vsel %vm168, %v5349, 0
    %5375 = vmatprep.subr.mxu0 0.0
    %5376 = vmatpush1.msra.mxu0 0.0
    %5377 = vmatprep.subr.mxu0 0.0
    %5378 = vmatpush1.msra.mxu0 0.0
    %5379 = vmatprep.subr.mxu0 0.0
    %5380 = vmatpush1.msra.mxu0 0.0
    %5381 = vmatprep.subr.mxu0 0.0
    %5382 = vmatpush1.msra.mxu0 0.0
    %5383 = vmatprep.subr.mxu0 0.0
    %5384 = vmatpush1.msra.mxu0 0.0
    %5385 = vmatprep.subr.mxu0 0.0
    %5386 = vmatpush1.msra.mxu0 0.0
    %5387 = vmatprep.subr.mxu0 0.0
    %5388 = vmatpush1.msra.mxu0 0.0
    %5389 = vmatprep.subr.mxu0 0.0
    %5390 = vmatpush1.msra.mxu0 0.0
    %5391 = vmatprep.subr.mxu0 0.0
    %5392 = vmatpush1.msra.mxu0 0.0
    %5393 = vmatprep.subr.mxu0 0.0
    %5394 = vmatpush1.msra.mxu0 0.0
    %5395 = vmatprep.subr.mxu0 0.0
    %5396 = vmatpush1.msra.mxu0 0.0
    %5397 = vmatprep.subr.mxu0 0.0
    %5398 = vmatpush1.msra.mxu0 0.0
    %5399 = vmatprep.subr.mxu0 0.0
    %5400 = vmatpush1.msra.mxu0 %v5367
    %5401 = vmatprep.subr.mxu0 0.0
    %5402 = vmatpush1.msra.mxu0 %v5365
    %5403 = vmatprep.subr.mxu0 0.0
    %5404 = vmatpush1.msra.mxu0 %v5363
    %5405 = vmatprep.subr.mxu0 0.0
    %5406 = vmatpush1.msra.mxu0 %v5361
    %5407 = vmatprep.subr.mxu0 0.0
    %5408 = vmatpush2.msra.mxu0 0.0
    %5409 = vmatprep.subr.mxu0 0.0
    %5410 = vmatpush2.msra.mxu0 0.0
    %5411 = vmatprep.subr.mxu0 0.0
    %5412 = vmatpush2.msra.mxu0 0.0
    %5413 = vmatprep.subr.mxu0 0.0
    %5414 = vmatpush2.msra.mxu0 0.0
    %5415 = vmatprep.subr.mxu0 0.0
    %5416 = vmatpush2.msra.mxu0 0.0
    %5417 = vmatprep.subr.mxu0 0.0
    %5418 = vmatpush2.msra.mxu0 0.0
    %5419 = vmatprep.subr.mxu0 0.0
    %5420 = vmatpush2.msra.mxu0 0.0
    %5421 = vmatprep.subr.mxu0 0.0
    %5422 = vmatpush2.msra.mxu0 0.0
    %5423 = vmatprep.subr.mxu0 0.0
    %5424 = vmatpush2.msra.mxu0 0.0
    %5425 = vmatprep.subr.mxu0 0.0
    %5426 = vmatpush2.msra.mxu0 0.0
    %5427 = vmatprep.subr.mxu0 0.0
    %5428 = vmatpush2.msra.mxu0 0.0
    %5429 = vmatprep.subr.mxu0 0.0
    %5430 = vmatpush2.msra.mxu0 0.0
    %5431 = vmatprep.subr.mxu0 0.0
    %5432 = vmatpush2.msra.mxu0 0.0
    %5433 = vmatprep.subr.mxu0 0.0
    %5434 = vmatpush2.msra.mxu0 0.0
    %5435 = vmatprep.subr.mxu0 0.0
    %5436 = vmatpush2.msra.mxu0 0.0
    %5437 = vmatprep.subr.mxu0 0.0
    %5438 = vmatpush2.msra.mxu0 0.0
    %5439 = vmatprep.mubr.f32.mxu0 0.0
    %5440 = vmatmul.mubr.f32.gmra.mxu0 %v5373
    %v5441 = vpop.f32.mrf.mxu0
    %v5442 = vadd.f32 %v5355, %v5441
    %v5443 = vpop.f32.mrf.mxu0
    %5444 = vdwg.mxu0
    %v5445 = vadd.f32 %v5246, %v5442
    %v5446 = vsel %vm4186, %v5445, 0.0
    %5447 = vadd.xlane.f32.xlu0 %v5446
    %v5448 = vpop.xlane.xlu0 %5447
    %v5449 = vmul.f32 %v5448, %v323
    %v5450 = vsub.f32 %v5445, %v5449
    %v5451 = vmul.f32 %v5450, %v5450
    %v5452 = vsel %vm4186, %v5451, 0.0
    %5453 = vadd.xlane.f32.xlu0 %v5452
    %v5454 = vpop.xlane.xlu0 %5453
    %v5455 = vmul.f32 %v5454, %v323
    %v5456 = vadd.f32 %v5455, 1e-05
    %v5457 = vrsqrt.pop %v5456
    %v5458 = vmul.f32 %v5450, %v5457
    %v5459 = vlaneseq
    %v5460 = vshrl.u32 %v5459, 7
    %v5461 = vsub.s32 0, %v5460
    %v5462 = vrot.slane %v5255, %v5461
    %v5463 = vmul.f32 %v5458, %v5462
    %v5464 = vlaneseq
    %v5465 = vshrl.u32 %v5464, 7
    %v5466 = vsub.s32 0, %v5465
    %v5467 = vrot.slane %v5256, %v5466
    %v5468 = vadd.f32 %v5463, %v5467
    %v5469 = vlaneseq
    %v5470 = vshrl.u32 %v5469, 7
    %v5471 = vsub.s32 0, %v5470
    %v5472 = vrot.slane %v5253, %v5471
    %v5474 = vsel %vm168, %v5468, 0
    %5476 = vmatprep.subr.mxu0 0.0
    %5477 = vmatpush1.msra.mxu0 0.0
    %5478 = vmatprep.subr.mxu0 0.0
    %5479 = vmatpush1.msra.mxu0 0.0
    %5480 = vmatprep.subr.mxu0 0.0
    %5481 = vmatpush1.msra.mxu0 0.0
    %5482 = vmatprep.subr.mxu0 0.0
    %5483 = vmatpush1.msra.mxu0 0.0
    %5484 = vmatprep.subr.mxu0 0.0
    %5485 = vmatpush1.msra.mxu0 0.0
    %5486 = vmatprep.subr.mxu0 0.0
    %5487 = vmatpush1.msra.mxu0 0.0
    %5488 = vmatprep.subr.mxu0 0.0
    %5489 = vmatpush1.msra.mxu0 0.0
    %5490 = vmatprep.subr.mxu0 0.0
    %5491 = vmatpush1.msra.mxu0 0.0
    %5492 = vmatprep.subr.mxu0 0.0
    %5493 = vmatpush1.msra.mxu0 0.0
    %5494 = vmatprep.subr.mxu0 0.0
    %5495 = vmatpush1.msra.mxu0 0.0
    %5496 = vmatprep.subr.mxu0 0.0
    %5497 = vmatpush1.msra.mxu0 0.0
    %5498 = vmatprep.subr.mxu0 0.0
    %5499 = vmatpush1.msra.mxu0 0.0
    %5500 = vmatprep.subr.mxu0 0.0
    %5501 = vmatpush1.msra.mxu0 %v5252
    %5502 = vmatprep.subr.mxu0 0.0
    %5503 = vmatpush1.msra.mxu0 %v5251
    %5504 = vmatprep.subr.mxu0 0.0
    %5505 = vmatpush1.msra.mxu0 %v5250
    %5506 = vmatprep.subr.mxu0 0.0
    %5507 = vmatpush1.msra.mxu0 %v5249
    %5508 = vmatprep.subr.mxu0 0.0
    %5509 = vmatpush2.msra.mxu0 0.0
    %5510 = vmatprep.subr.mxu0 0.0
    %5511 = vmatpush2.msra.mxu0 0.0
    %5512 = vmatprep.subr.mxu0 0.0
    %5513 = vmatpush2.msra.mxu0 0.0
    %5514 = vmatprep.subr.mxu0 0.0
    %5515 = vmatpush2.msra.mxu0 0.0
    %5516 = vmatprep.subr.mxu0 0.0
    %5517 = vmatpush2.msra.mxu0 0.0
    %5518 = vmatprep.subr.mxu0 0.0
    %5519 = vmatpush2.msra.mxu0 0.0
    %5520 = vmatprep.subr.mxu0 0.0
    %5521 = vmatpush2.msra.mxu0 0.0
    %5522 = vmatprep.subr.mxu0 0.0
    %5523 = vmatpush2.msra.mxu0 0.0
    %5524 = vmatprep.subr.mxu0 0.0
    %5525 = vmatpush2.msra.mxu0 0.0
    %5526 = vmatprep.subr.mxu0 0.0
    %5527 = vmatpush2.msra.mxu0 0.0
    %5528 = vmatprep.subr.mxu0 0.0
    %5529 = vmatpush2.msra.mxu0 0.0
    %5530 = vmatprep.subr.mxu0 0.0
    %5531 = vmatpush2.msra.mxu0 0.0
    %5532 = vmatprep.subr.mxu0 0.0
    %5533 = vmatpush2.msra.mxu0 0.0
    %5534 = vmatprep.subr.mxu0 0.0
    %5535 = vmatpush2.msra.mxu0 0.0
    %5536 = vmatprep.subr.mxu0 0.0
    %5537 = vmatpush2.msra.mxu0 0.0
    %5538 = vmatprep.subr.mxu0 0.0
    %5539 = vmatpush2.msra.mxu0 0.0
    %5540 = vmatprep.mubr.f32.mxu0 0.0
    %5541 = vmatmul.mubr.f32.gmra.mxu0 %v5474
    %v5542 = vpop.f32.mrf.mxu0
    %v5543 = vadd.f32 %v5472, %v5542
    %v5544 = vpop.f32.mrf.mxu0
    %5545 = vdwg.mxu0
    %v5546 = vmax.f32 %v5543, 0.0
    %v5547 = vlaneseq
    %v5548 = vshrl.u32 %v5547, 7
    %v5549 = vsub.s32 0, %v5548
    %v5550 = vrot.slane %v5254, %v5549
    %5567 = vrot.lane.b32.xlu0 %v4401, 96
    %v5568 = vpop.permute.xlu0 %5567
    %5569 = vrot.lane.b32.xlu0 %v4402, 96
    %v5570 = vpop.permute.xlu0 %5569
    %5571 = vrot.lane.b32.xlu0 %v4403, 96
    %v5572 = vpop.permute.xlu0 %5571
    %5573 = vrot.lane.b32.xlu0 %v4404, 96
    %v5574 = vpop.permute.xlu0 %5573
    %5575 = vrot.lane.b32.xlu0 %v4405, 96
    %v5576 = vpop.permute.xlu0 %5575
    %5577 = vrot.lane.b32.xlu0 %v4406, 96
    %v5578 = vpop.permute.xlu0 %5577
    %5579 = vrot.lane.b32.xlu0 %v4407, 96
    %v5580 = vpop.permute.xlu0 %5579
    %5581 = vrot.lane.b32.xlu0 %v4408, 96
    %v5582 = vpop.permute.xlu0 %5581
    %5583 = vrot.lane.b32.xlu0 %v4409, 96
    %v5584 = vpop.permute.xlu0 %5583
    %5585 = vrot.lane.b32.xlu0 %v4410, 96
    %v5586 = vpop.permute.xlu0 %5585
    %5587 = vrot.lane.b32.xlu0 %v4411, 96
    %v5588 = vpop.permute.xlu0 %5587
    %5589 = vrot.lane.b32.xlu0 %v4412, 96
    %v5590 = vpop.permute.xlu0 %5589
    %5591 = vrot.lane.b32.xlu0 %v4413, 96
    %v5592 = vpop.permute.xlu0 %5591
    %5593 = vrot.lane.b32.xlu0 %v4414, 96
    %v5594 = vpop.permute.xlu0 %5593
    %5595 = vrot.lane.b32.xlu0 %v4415, 96
    %v5596 = vpop.permute.xlu0 %5595
    %5597 = vrot.lane.b32.xlu0 %v4416, 96
    %v5598 = vpop.permute.xlu0 %5597
    %5615 = vmatprep.subr.mxu0 0.0
    %5616 = vmatpush1.msra.mxu0 %v5598
    %5617 = vmatprep.subr.mxu0 0.0
    %5618 = vmatpush1.msra.mxu0 %v5596
    %5619 = vmatprep.subr.mxu0 0.0
    %5620 = vmatpush1.msra.mxu0 %v5594
    %5621 = vmatprep.subr.mxu0 0.0
    %5622 = vmatpush1.msra.mxu0 %v5592
    %5623 = vmatprep.subr.mxu0 0.0
    %5624 = vmatpush1.msra.mxu0 %v5590
    %5625 = vmatprep.subr.mxu0 0.0
    %5626 = vmatpush1.msra.mxu0 %v5588
    %5627 = vmatprep.subr.mxu0 0.0
    %5628 = vmatpush1.msra.mxu0 %v5586
    %5629 = vmatprep.subr.mxu0 0.0
    %5630 = vmatpush1.msra.mxu0 %v5584
    %5631 = vmatprep.subr.mxu0 0.0
    %5632 = vmatpush1.msra.mxu0 %v5582
    %5633 = vmatprep.subr.mxu0 0.0
    %5634 = vmatpush1.msra.mxu0 %v5580
    %5635 = vmatprep.subr.mxu0 0.0
    %5636 = vmatpush1.msra.mxu0 %v5578
    %5637 = vmatprep.subr.mxu0 0.0
    %5638 = vmatpush1.msra.mxu0 %v5576
    %5639 = vmatprep.subr.mxu0 0.0
    %5640 = vmatpush1.msra.mxu0 %v5574
    %5641 = vmatprep.subr.mxu0 0.0
    %5642 = vmatpush1.msra.mxu0 %v5572
    %5643 = vmatprep.subr.mxu0 0.0
    %5644 = vmatpush1.msra.mxu0 %v5570
    %5645 = vmatprep.subr.mxu0 0.0
    %5646 = vmatpush1.msra.mxu0 %v5568
    %5647 = vmatprep.subr.mxu0 0.0
    %5648 = vmatpush2.msra.mxu0 0.0
    %5649 = vmatprep.subr.mxu0 0.0
    %5650 = vmatpush2.msra.mxu0 0.0
    %5651 = vmatprep.subr.mxu0 0.0
    %5652 = vmatpush2.msra.mxu0 0.0
    %5653 = vmatprep.subr.mxu0 0.0
    %5654 = vmatpush2.msra.mxu0 0.0
    %5655 = vmatprep.subr.mxu0 0.0
    %5656 = vmatpush2.msra.mxu0 0.0
    %5657 = vmatprep.subr.mxu0 0.0
    %5658 = vmatpush2.msra.mxu0 0.0
    %5659 = vmatprep.subr.mxu0 0.0
    %5660 = vmatpush2.msra.mxu0 0.0
    %5661 = vmatprep.subr.mxu0 0.0
    %5662 = vmatpush2.msra.mxu0 0.0
    %5663 = vmatprep.subr.mxu0 0.0
    %5664 = vmatpush2.msra.mxu0 0.0
    %5665 = vmatprep.subr.mxu0 0.0
    %5666 = vmatpush2.msra.mxu0 0.0
    %5667 = vmatprep.subr.mxu0 0.0
    %5668 = vmatpush2.msra.mxu0 0.0
    %5669 = vmatprep.subr.mxu0 0.0
    %5670 = vmatpush2.msra.mxu0 0.0
    %5671 = vmatprep.subr.mxu0 0.0
    %5672 = vmatpush2.msra.mxu0 0.0
    %5673 = vmatprep.subr.mxu0 0.0
    %5674 = vmatpush2.msra.mxu0 0.0
    %5675 = vmatprep.subr.mxu0 0.0
    %5676 = vmatpush2.msra.mxu0 0.0
    %5677 = vmatprep.subr.mxu0 0.0
    %5678 = vmatpush2.msra.mxu0 0.0
    %5679 = vmatprep.mubr.f32.mxu0 0.0
    %5680 = vmatmul.mubr.f32.gmra.mxu0 %v5546
    %v5681 = vpop.f32.mrf.mxu0
    %v5682 = vadd.f32 %v5550, %v5681
    %v5683 = vpop.f32.mrf.mxu0
    %5684 = vdwg.mxu0
    %v5685 = vadd.f32 %v5468, %v5682
    %v5686 = vsel %vm4186, %v5685, 0.0
    %5687 = vadd.xlane.f32.xlu0 %v5686
    %v5688 = vpop.xlane.xlu0 %5687
    %v5689 = vmul.f32 %v5688, %v323
    %v5690 = vsub.f32 %v5685, %v5689
    %v5691 = vmul.f32 %v5690, %v5690
    %v5692 = vsel %vm4186, %v5691, 0.0
    %5693 = vadd.xlane.f32.xlu0 %v5692
    %v5694 = vpop.xlane.xlu0 %5693
    %v5695 = vmul.f32 %v5694, %v323
    %v5696 = vadd.f32 %v5695, 1e-05
    %v5697 = vrsqrt.pop %v5696
    %v5698 = vmul.f32 %v5690, %v5697
    %v5699 = vlaneseq
    %v5700 = vshrl.u32 %v5699, 7
    %v5701 = vsub.s32 0, %v5700
    %v5702 = vrot.slane %v5257, %v5701
    %v5703 = vmul.f32 %v5698, %v5702
    %v5704 = vlaneseq
    %v5705 = vshrl.u32 %v5704, 7
    %v5706 = vsub.s32 0, %v5705
    %v5707 = vrot.slane %v5258, %v5706
    %v5708 = vadd.f32 %v5703, %v5707
    %v5709 = vld [vmem:[#allocation3 + $0x570] sm:$0xff]
    %v5710 = vld [vmem:[#allocation3 + $0x578] sm:$0xff]
    %v5711 = vld [vmem:[#allocation3 + $0x580] sm:$0xff]
    %v5712 = vld [vmem:[#allocation3 + $0x588] sm:$0xff]
    %v5713 = vld [vmem:[#allocation3 + $0x590] sm:$0x1]
    %v5715 = vsel %vm168, %v909, 0
    %5717 = vmatprep.subr.mxu0 0.0
    %5718 = vmatpush1.msra.mxu0 0.0
    %5719 = vmatprep.subr.mxu0 0.0
    %5720 = vmatpush1.msra.mxu0 0.0
    %5721 = vmatprep.subr.mxu0 0.0
    %5722 = vmatpush1.msra.mxu0 0.0
    %5723 = vmatprep.subr.mxu0 0.0
    %5724 = vmatpush1.msra.mxu0 0.0
    %5725 = vmatprep.subr.mxu0 0.0
    %5726 = vmatpush1.msra.mxu0 0.0
    %5727 = vmatprep.subr.mxu0 0.0
    %5728 = vmatpush1.msra.mxu0 0.0
    %5729 = vmatprep.subr.mxu0 0.0
    %5730 = vmatpush1.msra.mxu0 0.0
    %5731 = vmatprep.subr.mxu0 0.0
    %5732 = vmatpush1.msra.mxu0 0.0
    %5733 = vmatprep.subr.mxu0 0.0
    %5734 = vmatpush1.msra.mxu0 0.0
    %5735 = vmatprep.subr.mxu0 0.0
    %5736 = vmatpush1.msra.mxu0 0.0
    %5737 = vmatprep.subr.mxu0 0.0
    %5738 = vmatpush1.msra.mxu0 0.0
    %5739 = vmatprep.subr.mxu0 0.0
    %5740 = vmatpush1.msra.mxu0 0.0
    %5741 = vmatprep.subr.mxu0 0.0
    %5742 = vmatpush1.msra.mxu0 %v5712
    %5743 = vmatprep.subr.mxu0 0.0
    %5744 = vmatpush1.msra.mxu0 %v5711
    %5745 = vmatprep.subr.mxu0 0.0
    %5746 = vmatpush1.msra.mxu0 %v5710
    %5747 = vmatprep.subr.mxu0 0.0
    %5748 = vmatpush1.msra.mxu0 %v5709
    %5749 = vmatprep.subr.mxu0 0.0
    %5750 = vmatpush2.msra.mxu0 0.0
    %5751 = vmatprep.subr.mxu0 0.0
    %5752 = vmatpush2.msra.mxu0 0.0
    %5753 = vmatprep.subr.mxu0 0.0
    %5754 = vmatpush2.msra.mxu0 0.0
    %5755 = vmatprep.subr.mxu0 0.0
    %5756 = vmatpush2.msra.mxu0 0.0
    %5757 = vmatprep.subr.mxu0 0.0
    %5758 = vmatpush2.msra.mxu0 0.0
    %5759 = vmatprep.subr.mxu0 0.0
    %5760 = vmatpush2.msra.mxu0 0.0
    %5761 = vmatprep.subr.mxu0 0.0
    %5762 = vmatpush2.msra.mxu0 0.0
    %5763 = vmatprep.subr.mxu0 0.0
    %5764 = vmatpush2.msra.mxu0 0.0
    %5765 = vmatprep.subr.mxu0 0.0
    %5766 = vmatpush2.msra.mxu0 0.0
    %5767 = vmatprep.subr.mxu0 0.0
    %5768 = vmatpush2.msra.mxu0 0.0
    %5769 = vmatprep.subr.mxu0 0.0
    %5770 = vmatpush2.msra.mxu0 0.0
    %5771 = vmatprep.subr.mxu0 0.0
    %5772 = vmatpush2.msra.mxu0 0.0
    %5773 = vmatprep.subr.mxu0 0.0
    %5774 = vmatpush2.msra.mxu0 0.0
    %5775 = vmatprep.subr.mxu0 0.0
    %5776 = vmatpush2.msra.mxu0 0.0
    %5777 = vmatprep.subr.mxu0 0.0
    %5778 = vmatpush2.msra.mxu0 0.0
    %5779 = vmatprep.subr.mxu0 0.0
    %5780 = vmatpush2.msra.mxu0 0.0
    %5781 = vmatprep.mubr.f32.mxu0 0.0
    %5782 = vmatmul.mubr.f32.gmra.mxu0 %v5715
    %v5783 = vpop.f32.mrf.mxu0
    %v5784 = vadd.f32 %v5713, %v5783
    %v5785 = vpop.f32.mrf.mxu0
    %5786 = vdwg.mxu0
    %s5787 = sld [smem:[#allocation2]]
    %v5788 = vstv %s5787
    %v5789 = vsub.f32 %v5784, %v5788
    %v5790 = vld [vmem:[#allocation3 + $0x591] sm:$0x1]
    %v5791 = vlaneseq
    %v5792 = vshrl.u32 %v5791, 7
    %v5793 = vsub.s32 1, %v5792
    %v5794 = vrot.slane %v4775, %v5793
    %v5795 = vsub.f32 %v5794, %v1977
    %v5797 = vrot.slane %v3981, 7
    %v5799 = vsub.f32 %v5708, %v5797
    %v5800 = vmul.f32 %v5795, %v5795
    %vm5801 = vcmask 257024
    %v5802 = vsel %vm5801, %v5800, 0.0
    %5803 = vadd.xlane.f32.xlu0 %v5802
    %v5804 = vpop.xlane.xlu0 %5803
    %v5805 = vrot.slane %v5804, 4
    %v5806 = vadd.f32 %v5804, %v5805
    %v5807 = vrot.slane %v5806, 2
    %v5808 = vadd.f32 %v5806, %v5807
    %v5809 = vrot.slane %v5808, 1
    %v5810 = vadd.f32 %v5808, %v5809
    %s5811 = vtos %v5810
    %s5812 = smul.f32 %s5811, 0.0078125
    %v5813 = vmul.f32 %v5799, %v5799
    %v5815 = vrot.slane %v5813, 1
    %vm5817 = vcmask 253952
    %v5818 = vsel %vm5817, %v5815, 0.0
    %5819 = vadd.xlane.f32.xlu0 %v5818
    %v5820 = vpop.xlane.xlu0 %5819
    %v5821 = vrot.slane %v5820, 4
    %v5822 = vadd.f32 %v5820, %v5821
    %v5823 = vrot.slane %v5822, 2
    %v5824 = vadd.f32 %v5822, %v5823
    %v5825 = vrot.slane %v5824, 1
    %v5826 = vadd.f32 %v5824, %v5825
    %s5827 = vtos %v5826
    %s5828 = smul.f32 %s5827, 0.03125
    %v5829 = vmul.f32 %v5789, %v5789
    %v5830 = vmul.f32 %v5829, %v5790
    %vm5831 = vcmask 1040384
    %v5832 = vsel %vm5831, %v5830, 0.0
    %5833 = vadd.xlane.f32.xlu0 %v5832
    %v5834 = vpop.xlane.xlu0 %5833
    %v5835 = vrot.slane %v5834, 4
    %v5836 = vadd.f32 %v5834, %v5835
    %v5837 = vrot.slane %v5836, 2
    %v5838 = vadd.f32 %v5836, %v5837
    %v5839 = vrot.slane %v5838, 1
    %v5840 = vadd.f32 %v5838, %v5839
    %s5841 = vtos %v5840
    %s5842 = smul.f32 %s5841, 0.083333336
    %s5843 = sadd.f32 %s5812, %s5828
    %s5844 = sadd.f32 %s5843, %s5842
    %s5845 = scalar_lea.smem [#allocation6], 0
    %5846 = sst [smem:[%s5845]] %s5844
    // Predicated region
    $region18: #{_cjepa_core.1} parent=1 // pred_check
      _
    $region19: #{_cjepa_core.1} parent=1 // pred_check_branch
      %5848 = sbr.rel (0) target = $region21
    $region20: #{_cjepa_core.1} parent=1 // pred_region
      %s5850 = ssub.s32 16, 16
      %5851 = vsyncadd [#allocation5], %s5850
      %5854 = dma.smem_to_hbm [#allocation6], 16, %s3, [#allocation5]
    $region21: #{_cjepa_core.1} parent=1 // pred_fallthru
      _
    // Predicated region
    $region22: #{_cjepa_core.1} parent=1 // pred_check
      _
    $region23: #{_cjepa_core.1} parent=1 // pred_check_branch
      %5856 = sbr.rel (0) target = $region25
    $region24: #{_cjepa_core.1} parent=1 // pred_region
      %5857 = dma.done [#allocation5], 16
    $region25: #{_cjepa_core.1} parent=1 // pred_fallthru
      _
    %5858 = sfence
    %5859 = vsyncpa [#allocation4], 1
    %5860 = vsyncpa [#allocation5], 1

</llo_original>
